<compile_context>
chip_gen: v5e
topology: v5e:2x2
jax: 0.10.0
libtpu: 0.0.40
codegen_flags: <defaults>
</compile_context>

<pallas_src>
import functools

import jax
import jax.numpy as jnp
from jax.experimental import pallas as pl
from jax.experimental.pallas import tpu as pltpu

# Layer dimensions of the PlannerNetwork MLP.
HIDDEN_DIMS = [1024, 896, 768, 512, 384, 256, 128, 64, 32]
NLAYERS = len(HIDDEN_DIMS) + 1          # 10 Linear layers
_LANE = 128
_SUBLANE = 8
_BF16_SUBLANE = 16                      # bf16 native sublane tile
_ROW_TILE_CAP = 256                     # rows per grid step (keeps activations ~1 MiB)
_TAIL_START = 6                         # layers 6..9 (out <= 128) live in the packed tail buffer


def _round_up(v, m):
    return (v + m - 1) // m * m


def _layer_dims(input_size, output_size):
    dims = [input_size] + HIDDEN_DIMS + [output_size]
    return tuple((dims[i], dims[i + 1]) for i in range(NLAYERS))


def _bias_offsets(out_dims):
    """128-lane-aligned offset of each layer's bias inside the packed bias buffer."""
    offs, off = [], 0
    for d in out_dims:
        offs.append(off)
        off += _round_up(d, _LANE)
    return offs, off


def _tail_offsets(in_dims):
    """bf16-sublane-aligned offset of each tail layer's weight inside the packed buffer."""
    offs, off = [], 0
    for d in in_dims:
        offs.append(off)
        off += _round_up(d, _BF16_SUBLANE)
    return offs, off


def _mlp_kernel(layer_dims, bias_offs, tail_offs,
                x_ref, alpha_ref, bias_ref, *refs):
    """Fused 10-layer MLP on one (row_tile, input_size) tile of rows.

    Refs (in order):
      x_ref     : (row_tile, input_size)  f32  VMEM   input rows (grid-indexed)
      alpha_ref : (NLAYERS-1,)            f32  SMEM   PReLU scalar per activation layer
      bias_ref  : (1, bias_total)         f32  VMEM   packed biases (pinned block)
      w_0..w_5  : (in_i, out_i)           bf16 VMEM   big weights, pre-transposed (pinned)
      tail_ref  : (tail_total, 128)       bf16 VMEM   packed layer-6..9 weights (pinned)
      o_ref     : (row_tile, output_size) f32  VMEM
    """
    n_big = _TAIL_START
    big_w = refs[:n_big]
    tail_ref = refs[n_big]
    o_ref = refs[n_big + 1]

    h = x_ref[...]                                   # f32 activations
    for i in range(NLAYERS):                         # fully unrolled: full LLO visibility
        in_d, out_d = layer_dims[i]
        if i < n_big:
            w = big_w[i][...]
        else:
            t = tail_offs[i - n_big]                 # static, bf16-tile-aligned sublane offset
            w = tail_ref[t:t + in_d, :out_d]
        # bf16 x bf16 matmul on the MXU with f32 accumulation.
        acc = jnp.dot(h.astype(jnp.bfloat16), w, preferred_element_type=jnp.float32)
        b = bias_ref[:, bias_offs[i]:bias_offs[i] + out_d]   # static 128-aligned lane slice
        h = acc + b                                  # broadcasts over rows, f32
        if i < NLAYERS - 1:
            a = alpha_ref[i]                         # scalar PReLU alpha from SMEM
            h = jnp.where(h >= 0.0, h, a * h)        # PReLU in f32 on the VPU
            # Dropout: identity in eval mode.
            # TODO(synk): training-mode dropout (stochastic masking via pltpu.prng_*) not implemented.
    o_ref[...] = h.astype(o_ref.dtype)


@functools.partial(jax.jit, static_argnames=("output_size",))
def planner_forward(x, x_target, z, params, *, output_size):
    """concat along batch (dim=0), then one fused, row-tiled Pallas MLP with resident weights."""
    weights = params["weights"]          # 6 big bf16 (in, out) matrices
    tail_packed = params["tail_packed"]  # (tail_total, 128) bf16
    bias_packed = params["bias_packed"]  # (1, bias_total) f32
    alphas = params["alphas"]            # (9,) f32

    # Concat/pad are a few hundred bytes and fuse into this jitted executable.
    tmp = jnp.concatenate([x, x_target, z], axis=0).astype(jnp.float32)
    rows, input_size = tmp.shape

    layer_dims = _layer_dims(input_size, output_size)
    out_dims = tuple(o for _, o in layer_dims)
    bias_offs, _ = _bias_offsets(out_dims)
    tail_offs, _ = _tail_offsets(tuple(i for i, _ in layer_dims[_TAIL_START:]))

    # Row tiling: weight blocks are pinned (index (0,0) every step) -> DMA'd once per call,
    # so additional queries/rows only add grid-step overhead (~0.35 us) + tiny compute.
    rows8 = _round_up(rows, _SUBLANE)
    row_tile = min(_ROW_TILE_CAP, rows8)
    padded_rows = _round_up(rows, row_tile)
    if padded_rows != rows:
        tmp = jnp.pad(tmp, ((0, padded_rows - rows), (0, 0)))
    nblocks = padded_rows // row_tile

    in_specs = (
        [pl.BlockSpec((row_tile, input_size), lambda i: (i, 0))]            # activations (tiled)
        + [pl.BlockSpec(memory_space=pltpu.MemorySpace.SMEM)]               # PReLU alphas
        + [pl.BlockSpec(bias_packed.shape, lambda i: (0, 0))]               # packed biases (pinned)
        + [pl.BlockSpec(w.shape, lambda i: (0, 0)) for w in weights]        # big weights (pinned)
        + [pl.BlockSpec(tail_packed.shape, lambda i: (0, 0))]               # tail pack (pinned)
    )
    out_specs = pl.BlockSpec((row_tile, output_size), lambda i: (i, 0))

    # Advisory cost estimate: lets XLA overlap neighbors with this DMA-dominated call.
    n_mac = sum(i_d * o_d for i_d, o_d in layer_dims)
    bytes_accessed = (
        sum(int(w.size) * w.dtype.itemsize for w in weights)
        + int(tail_packed.size) * tail_packed.dtype.itemsize
        + int(bias_packed.size) * bias_packed.dtype.itemsize
        + int(tmp.size) * 4
        + padded_rows * output_size * 4
        + int(alphas.size) * 4
    )
    cost = pl.CostEstimate(flops=2 * padded_rows * n_mac, transcendentals=0,
                           bytes_accessed=int(bytes_accessed))

    kernel = functools.partial(_mlp_kernel, layer_dims, tuple(bias_offs), tuple(tail_offs))
    fn = pl.pallas_call(
        kernel,
        out_shape=jax.ShapeDtypeStruct((padded_rows, output_size), jnp.float32),
        grid=(nblocks,),
        in_specs=in_specs,
        out_specs=out_specs,
        compiler_params=pltpu.CompilerParams(
            dimension_semantics=("arbitrary",),   # keep the single weight stream on one TC
            vmem_limit_bytes=32 << 20,
        ),
        cost_estimate=cost,
    )
    y = fn(tmp, alphas, bias_packed, *weights, tail_packed)
    return y[:rows]


def init_params(input_size, output_size, key):
    """PyTorch-style init: Linear U(-1/sqrt(fan_in), 1/sqrt(fan_in)); PReLU alpha = 0.25 per layer.

    Returns (kernel_params, ref_params):
      kernel_params: 6 big bf16 pre-transposed weights, packed bf16 tail weights,
                     packed 128-aligned f32 biases, f32 alphas.
      ref_params:    original f32 weights/biases (fidelity reference only).
    """
    assert output_size <= _LANE, "tail-weight packing assumes output_size <= 128"
    layer_dims = _layer_dims(input_size, output_size)
    out_dims = tuple(o for _, o in layer_dims)
    bias_offs, bias_total = _bias_offsets(out_dims)
    tail_in = tuple(i for i, _ in layer_dims[_TAIL_START:])
    tail_offs, tail_total = _tail_offsets(tail_in)

    keys = jax.random.split(key, 2 * NLAYERS)
    weights_f32, biases_f32 = [], []
    for i, (fan_in, fan_out) in enumerate(layer_dims):
        bound = 1.0 / (fan_in ** 0.5)
        weights_f32.append(jax.random.uniform(keys[2 * i], (fan_in, fan_out),
                                              minval=-bound, maxval=bound, dtype=jnp.float32))
        biases_f32.append(jax.random.uniform(keys[2 * i + 1], (fan_out,),
                                             minval=-bound, maxval=bound, dtype=jnp.float32))

    bias_packed = jnp.zeros((1, bias_total), dtype=jnp.float32)
    for i, b in enumerate(biases_f32):
        bias_packed = bias_packed.at[0, bias_offs[i]:bias_offs[i] + b.shape[0]].set(b)

    big_weights = [w.astype(jnp.bfloat16) for w in weights_f32[:_TAIL_START]]

    tail_packed = jnp.zeros((tail_total, _LANE), dtype=jnp.bfloat16)
    for j in range(NLAYERS - _TAIL_START):
        w = weights_f32[_TAIL_START + j].astype(jnp.bfloat16)
        tail_packed = tail_packed.at[tail_offs[j]:tail_offs[j] + w.shape[0], :w.shape[1]].set(w)

    alphas = jnp.full((NLAYERS - 1,), 0.25, dtype=jnp.float32)

    kernel_params = {"weights": big_weights, "tail_packed": tail_packed,
                     "bias_packed": bias_packed, "alphas": alphas}
    ref_params = {"weights": weights_f32, "biases": biases_f32}
    return kernel_params, ref_params


def reference_forward_bf16(x, x_target, z, ref_params, alphas):
    """Pure-JAX mirror of the kernel math (bf16 operands, f32 accumulation)."""
    h = jnp.concatenate([x, x_target, z], axis=0).astype(jnp.float32)
    for i, (w, b) in enumerate(zip(ref_params["weights"], ref_params["biases"])):
        h = jnp.dot(h.astype(jnp.bfloat16), w.astype(jnp.bfloat16),
                    preferred_element_type=jnp.float32) + b
        if i < NLAYERS - 1:
            a = alphas[i]
            h = jnp.where(h >= 0.0, h, a * h)
    return h


def reference_forward_f32(x, x_target, z, ref_params, alphas):
    """Full-f32 reference matching the original PyTorch module (eval mode)."""
    h = jnp.concatenate([x, x_target, z], axis=0).astype(jnp.float32)
    for i, (w, b) in enumerate(zip(ref_params["weights"], ref_params["biases"])):
        h = h @ w + b
        if i < NLAYERS - 1:
            a = alphas[i]
            h = jnp.where(h >= 0.0, h, a * h)
    return h


if __name__ == "__main__":
    input_size = 40
    output_size = 16
    batch = 2  # per-input batch; concat along dim=0 gives 3*batch rows

    key = jax.random.PRNGKey(0)
    k_params, kx, kt, kz = jax.random.split(key, 4)

    params, ref_params = init_params(input_size, output_size, k_params)
    x = jax.random.normal(kx, (batch, input_size), dtype=jnp.float32)
    x_target = jax.random.normal(kt, (batch, input_size), dtype=jnp.float32)
    z = jax.random.normal(kz, (batch, input_size), dtype=jnp.float32)

    y = jax.block_until_ready(planner_forward(x, x_target, z, params, output_size=output_size))
    assert y.shape == (3 * batch, output_size), y.shape

    # Kernel vs. identical-quantization mirror: tight tolerance (validates kernel math).
    y_bf16 = reference_forward_bf16(x, x_target, z, ref_params, params["alphas"])
    err_bf16 = float(jnp.max(jnp.abs(y - y_bf16)))
    assert jnp.allclose(y, y_bf16, atol=2e-3, rtol=2e-3), err_bf16

    # Kernel vs. original f32 network: quantifies bf16-weight drift (looser tolerance).
    y_f32 = reference_forward_f32(x, x_target, z, ref_params, params["alphas"])
    err_f32 = float(jnp.max(jnp.abs(y - y_f32)))
    assert jnp.allclose(y, y_f32, atol=5e-2, rtol=5e-2), err_f32

    print("KERNEL_OK")
</pallas_src>

<mosaic_0001>
module attributes {stable_mosaic.version = 11 : i64} {
  func.func @_mlp_kernel(%arg0: i32, %arg1: memref<8x40xf32, #tpu.memory_space<vmem>>, %arg2: memref<9xf32, #tpu.memory_space<smem>>, %arg3: memref<1x4352xf32, #tpu.memory_space<vmem>>, %arg4: memref<40x1024xbf16, #tpu.memory_space<vmem>>, %arg5: memref<1024x896xbf16, #tpu.memory_space<vmem>>, %arg6: memref<896x768xbf16, #tpu.memory_space<vmem>>, %arg7: memref<768x512xbf16, #tpu.memory_space<vmem>>, %arg8: memref<512x384xbf16, #tpu.memory_space<vmem>>, %arg9: memref<384x256xbf16, #tpu.memory_space<vmem>>, %arg10: memref<480x128xbf16, #tpu.memory_space<vmem>>, %arg11: memref<8x16xf32, #tpu.memory_space<vmem>>) attributes {dimension_semantics = [#tpu.dimension_semantics<arbitrary>], iteration_bounds = array<i64: 1>, scalar_prefetch = 0 : i64, scratch_operands = 0 : i64, tpu.core_type = #tpu.core_type<tc>, window_params = [{transform_indices = @transform_0, window_bounds = array<i64: 8, 40>}, {transform_indices = @transform_1, window_bounds = array<i64: 9>}, {pipeline_mode = #tpu.pipeline_mode<synchronous>, transform_indices = @transform_2, window_bounds = array<i64: 1, 4352>}, {pipeline_mode = #tpu.pipeline_mode<synchronous>, transform_indices = @transform_3, window_bounds = array<i64: 40, 1024>}, {pipeline_mode = #tpu.pipeline_mode<synchronous>, transform_indices = @transform_4, window_bounds = array<i64: 1024, 896>}, {pipeline_mode = #tpu.pipeline_mode<synchronous>, transform_indices = @transform_5, window_bounds = array<i64: 896, 768>}, {pipeline_mode = #tpu.pipeline_mode<synchronous>, transform_indices = @transform_6, window_bounds = array<i64: 768, 512>}, {pipeline_mode = #tpu.pipeline_mode<synchronous>, transform_indices = @transform_7, window_bounds = array<i64: 512, 384>}, {pipeline_mode = #tpu.pipeline_mode<synchronous>, transform_indices = @transform_8, window_bounds = array<i64: 384, 256>}, {pipeline_mode = #tpu.pipeline_mode<synchronous>, transform_indices = @transform_9, window_bounds = array<i64: 480, 128>}, {transform_indices = @transform_10, window_bounds = array<i64: 8, 16>}]} {
    %c0 = arith.constant 0 : index
    %c0_0 = arith.constant 0 : index
    %0 = vector.load %arg1[%c0, %c0_0] : memref<8x40xf32, #tpu.memory_space<vmem>>, vector<8x40xf32>
    %c0_1 = arith.constant 0 : index
    %c0_2 = arith.constant 0 : index
    %1 = vector.load %arg4[%c0_1, %c0_2] : memref<40x1024xbf16, #tpu.memory_space<vmem>>, vector<40x1024xbf16>
    %2 = arith.truncf %0 : vector<8x40xf32> to vector<8x40xbf16>
    %cst = arith.constant dense<0.000000e+00> : vector<8x1024xf32>
    %3 = tpu.matmul %2, %1, %cst {dimension_numbers = #tpu.dot_dimension_numbers<[1], [0], [0], [1], [0, 0, 1, 1], [], []>} : vector<8x40xbf16>, vector<40x1024xbf16>, vector<8x1024xf32> -> vector<8x1024xf32>
    %c0_3 = arith.constant 0 : index
    %c0_4 = arith.constant 0 : index
    %4 = vector.load %arg3[%c0_3, %c0_4] : memref<1x4352xf32, #tpu.memory_space<vmem>>, vector<1x1024xf32>
    %5 = vector.broadcast %4 : vector<1x1024xf32> to vector<8x1024xf32>
    %6 = arith.addf %3, %5 : vector<8x1024xf32>
    %c0_5 = arith.constant 0 : index
    %7 = memref.load %arg2[%c0_5] : memref<9xf32, #tpu.memory_space<smem>>
    %cst_6 = arith.constant 0.000000e+00 : f32
    %8 = vector.broadcast %cst_6 : f32 to vector<8x1024xf32>
    %9 = arith.cmpf oge, %6, %8 : vector<8x1024xf32>
    %10 = vector.broadcast %7 : f32 to vector<8x1024xf32>
    %11 = arith.mulf %10, %6 : vector<8x1024xf32>
    %12 = arith.select %9, %6, %11 : vector<8x1024xi1>, vector<8x1024xf32>
    %c0_7 = arith.constant 0 : index
    %c0_8 = arith.constant 0 : index
    %13 = vector.load %arg5[%c0_7, %c0_8] : memref<1024x896xbf16, #tpu.memory_space<vmem>>, vector<1024x896xbf16>
    %14 = arith.truncf %12 : vector<8x1024xf32> to vector<8x1024xbf16>
    %cst_9 = arith.constant dense<0.000000e+00> : vector<8x896xf32>
    %15 = tpu.matmul %14, %13, %cst_9 {dimension_numbers = #tpu.dot_dimension_numbers<[1], [0], [0], [1], [0, 0, 1, 1], [], []>} : vector<8x1024xbf16>, vector<1024x896xbf16>, vector<8x896xf32> -> vector<8x896xf32>
    %c0_10 = arith.constant 0 : index
    %c1024 = arith.constant 1024 : index
    %16 = vector.load %arg3[%c0_10, %c1024] : memref<1x4352xf32, #tpu.memory_space<vmem>>, vector<1x896xf32>
    %17 = vector.broadcast %16 : vector<1x896xf32> to vector<8x896xf32>
    %18 = arith.addf %15, %17 : vector<8x896xf32>
    %c1 = arith.constant 1 : index
    %19 = memref.load %arg2[%c1] : memref<9xf32, #tpu.memory_space<smem>>
    %cst_11 = arith.constant 0.000000e+00 : f32
    %20 = vector.broadcast %cst_11 : f32 to vector<8x896xf32>
    %21 = arith.cmpf oge, %18, %20 : vector<8x896xf32>
    %22 = vector.broadcast %19 : f32 to vector<8x896xf32>
    %23 = arith.mulf %22, %18 : vector<8x896xf32>
    %24 = arith.select %21, %18, %23 : vector<8x896xi1>, vector<8x896xf32>
    %c0_12 = arith.constant 0 : index
    %c0_13 = arith.constant 0 : index
    %25 = vector.load %arg6[%c0_12, %c0_13] : memref<896x768xbf16, #tpu.memory_space<vmem>>, vector<896x768xbf16>
    %26 = arith.truncf %24 : vector<8x896xf32> to vector<8x896xbf16>
    %cst_14 = arith.constant dense<0.000000e+00> : vector<8x768xf32>
    %27 = tpu.matmul %26, %25, %cst_14 {dimension_numbers = #tpu.dot_dimension_numbers<[1], [0], [0], [1], [0, 0, 1, 1], [], []>} : vector<8x896xbf16>, vector<896x768xbf16>, vector<8x768xf32> -> vector<8x768xf32>
    %c0_15 = arith.constant 0 : index
    %c1920 = arith.constant 1920 : index
    %28 = vector.load %arg3[%c0_15, %c1920] : memref<1x4352xf32, #tpu.memory_space<vmem>>, vector<1x768xf32>
    %29 = vector.broadcast %28 : vector<1x768xf32> to vector<8x768xf32>
    %30 = arith.addf %27, %29 : vector<8x768xf32>
    %c2 = arith.constant 2 : index
    %31 = memref.load %arg2[%c2] : memref<9xf32, #tpu.memory_space<smem>>
    %cst_16 = arith.constant 0.000000e+00 : f32
    %32 = vector.broadcast %cst_16 : f32 to vector<8x768xf32>
    %33 = arith.cmpf oge, %30, %32 : vector<8x768xf32>
    %34 = vector.broadcast %31 : f32 to vector<8x768xf32>
    %35 = arith.mulf %34, %30 : vector<8x768xf32>
    %36 = arith.select %33, %30, %35 : vector<8x768xi1>, vector<8x768xf32>
    %c0_17 = arith.constant 0 : index
    %c0_18 = arith.constant 0 : index
    %37 = vector.load %arg7[%c0_17, %c0_18] : memref<768x512xbf16, #tpu.memory_space<vmem>>, vector<768x512xbf16>
    %38 = arith.truncf %36 : vector<8x768xf32> to vector<8x768xbf16>
    %cst_19 = arith.constant dense<0.000000e+00> : vector<8x512xf32>
    %39 = tpu.matmul %38, %37, %cst_19 {dimension_numbers = #tpu.dot_dimension_numbers<[1], [0], [0], [1], [0, 0, 1, 1], [], []>} : vector<8x768xbf16>, vector<768x512xbf16>, vector<8x512xf32> -> vector<8x512xf32>
    %c0_20 = arith.constant 0 : index
    %c2688 = arith.constant 2688 : index
    %40 = vector.load %arg3[%c0_20, %c2688] : memref<1x4352xf32, #tpu.memory_space<vmem>>, vector<1x512xf32>
    %41 = vector.broadcast %40 : vector<1x512xf32> to vector<8x512xf32>
    %42 = arith.addf %39, %41 : vector<8x512xf32>
    %c3 = arith.constant 3 : index
    %43 = memref.load %arg2[%c3] : memref<9xf32, #tpu.memory_space<smem>>
    %cst_21 = arith.constant 0.000000e+00 : f32
    %44 = vector.broadcast %cst_21 : f32 to vector<8x512xf32>
    %45 = arith.cmpf oge, %42, %44 : vector<8x512xf32>
    %46 = vector.broadcast %43 : f32 to vector<8x512xf32>
    %47 = arith.mulf %46, %42 : vector<8x512xf32>
    %48 = arith.select %45, %42, %47 : vector<8x512xi1>, vector<8x512xf32>
    %c0_22 = arith.constant 0 : index
    %c0_23 = arith.constant 0 : index
    %49 = vector.load %arg8[%c0_22, %c0_23] : memref<512x384xbf16, #tpu.memory_space<vmem>>, vector<512x384xbf16>
    %50 = arith.truncf %48 : vector<8x512xf32> to vector<8x512xbf16>
    %cst_24 = arith.constant dense<0.000000e+00> : vector<8x384xf32>
    %51 = tpu.matmul %50, %49, %cst_24 {dimension_numbers = #tpu.dot_dimension_numbers<[1], [0], [0], [1], [0, 0, 1, 1], [], []>} : vector<8x512xbf16>, vector<512x384xbf16>, vector<8x384xf32> -> vector<8x384xf32>
    %c0_25 = arith.constant 0 : index
    %c3200 = arith.constant 3200 : index
    %52 = vector.load %arg3[%c0_25, %c3200] : memref<1x4352xf32, #tpu.memory_space<vmem>>, vector<1x384xf32>
    %53 = vector.broadcast %52 : vector<1x384xf32> to vector<8x384xf32>
    %54 = arith.addf %51, %53 : vector<8x384xf32>
    %c4 = arith.constant 4 : index
    %55 = memref.load %arg2[%c4] : memref<9xf32, #tpu.memory_space<smem>>
    %cst_26 = arith.constant 0.000000e+00 : f32
    %56 = vector.broadcast %cst_26 : f32 to vector<8x384xf32>
    %57 = arith.cmpf oge, %54, %56 : vector<8x384xf32>
    %58 = vector.broadcast %55 : f32 to vector<8x384xf32>
    %59 = arith.mulf %58, %54 : vector<8x384xf32>
    %60 = arith.select %57, %54, %59 : vector<8x384xi1>, vector<8x384xf32>
    %c0_27 = arith.constant 0 : index
    %c0_28 = arith.constant 0 : index
    %61 = vector.load %arg9[%c0_27, %c0_28] : memref<384x256xbf16, #tpu.memory_space<vmem>>, vector<384x256xbf16>
    %62 = arith.truncf %60 : vector<8x384xf32> to vector<8x384xbf16>
    %cst_29 = arith.constant dense<0.000000e+00> : vector<8x256xf32>
    %63 = tpu.matmul %62, %61, %cst_29 {dimension_numbers = #tpu.dot_dimension_numbers<[1], [0], [0], [1], [0, 0, 1, 1], [], []>} : vector<8x384xbf16>, vector<384x256xbf16>, vector<8x256xf32> -> vector<8x256xf32>
    %c0_30 = arith.constant 0 : index
    %c3584 = arith.constant 3584 : index
    %64 = vector.load %arg3[%c0_30, %c3584] : memref<1x4352xf32, #tpu.memory_space<vmem>>, vector<1x256xf32>
    %65 = vector.broadcast %64 : vector<1x256xf32> to vector<8x256xf32>
    %66 = arith.addf %63, %65 : vector<8x256xf32>
    %c5 = arith.constant 5 : index
    %67 = memref.load %arg2[%c5] : memref<9xf32, #tpu.memory_space<smem>>
    %cst_31 = arith.constant 0.000000e+00 : f32
    %68 = vector.broadcast %cst_31 : f32 to vector<8x256xf32>
    %69 = arith.cmpf oge, %66, %68 : vector<8x256xf32>
    %70 = vector.broadcast %67 : f32 to vector<8x256xf32>
    %71 = arith.mulf %70, %66 : vector<8x256xf32>
    %72 = arith.select %69, %66, %71 : vector<8x256xi1>, vector<8x256xf32>
    %c0_32 = arith.constant 0 : index
    %c0_33 = arith.constant 0 : index
    %73 = vector.load %arg10[%c0_32, %c0_33] : memref<480x128xbf16, #tpu.memory_space<vmem>>, vector<256x128xbf16>
    %74 = arith.truncf %72 : vector<8x256xf32> to vector<8x256xbf16>
    %cst_34 = arith.constant dense<0.000000e+00> : vector<8x128xf32>
    %75 = tpu.matmul %74, %73, %cst_34 {dimension_numbers = #tpu.dot_dimension_numbers<[1], [0], [0], [1], [0, 0, 1, 1], [], []>} : vector<8x256xbf16>, vector<256x128xbf16>, vector<8x128xf32> -> vector<8x128xf32>
    %c0_35 = arith.constant 0 : index
    %c3840 = arith.constant 3840 : index
    %76 = vector.load %arg3[%c0_35, %c3840] : memref<1x4352xf32, #tpu.memory_space<vmem>>, vector<1x128xf32>
    %77 = vector.broadcast %76 : vector<1x128xf32> to vector<8x128xf32>
    %78 = arith.addf %75, %77 : vector<8x128xf32>
    %c6 = arith.constant 6 : index
    %79 = memref.load %arg2[%c6] : memref<9xf32, #tpu.memory_space<smem>>
    %cst_36 = arith.constant 0.000000e+00 : f32
    %80 = vector.broadcast %cst_36 : f32 to vector<8x128xf32>
    %81 = arith.cmpf oge, %78, %80 : vector<8x128xf32>
    %82 = vector.broadcast %79 : f32 to vector<8x128xf32>
    %83 = arith.mulf %82, %78 : vector<8x128xf32>
    %84 = arith.select %81, %78, %83 : vector<8x128xi1>, vector<8x128xf32>
    %c256 = arith.constant 256 : index
    %c0_37 = arith.constant 0 : index
    %85 = vector.load %arg10[%c256, %c0_37] : memref<480x128xbf16, #tpu.memory_space<vmem>>, vector<128x64xbf16>
    %86 = arith.truncf %84 : vector<8x128xf32> to vector<8x128xbf16>
    %cst_38 = arith.constant dense<0.000000e+00> : vector<8x64xf32>
    %87 = tpu.matmul %86, %85, %cst_38 {dimension_numbers = #tpu.dot_dimension_numbers<[1], [0], [0], [1], [0, 0, 1, 1], [], []>} : vector<8x128xbf16>, vector<128x64xbf16>, vector<8x64xf32> -> vector<8x64xf32>
    %c0_39 = arith.constant 0 : index
    %c3968 = arith.constant 3968 : index
    %88 = vector.load %arg3[%c0_39, %c3968] : memref<1x4352xf32, #tpu.memory_space<vmem>>, vector<1x64xf32>
    %89 = vector.broadcast %88 : vector<1x64xf32> to vector<8x64xf32>
    %90 = arith.addf %87, %89 : vector<8x64xf32>
    %c7 = arith.constant 7 : index
    %91 = memref.load %arg2[%c7] : memref<9xf32, #tpu.memory_space<smem>>
    %cst_40 = arith.constant 0.000000e+00 : f32
    %92 = vector.broadcast %cst_40 : f32 to vector<8x64xf32>
    %93 = arith.cmpf oge, %90, %92 : vector<8x64xf32>
    %94 = vector.broadcast %91 : f32 to vector<8x64xf32>
    %95 = arith.mulf %94, %90 : vector<8x64xf32>
    %96 = arith.select %93, %90, %95 : vector<8x64xi1>, vector<8x64xf32>
    %c384 = arith.constant 384 : index
    %c0_41 = arith.constant 0 : index
    %97 = vector.load %arg10[%c384, %c0_41] : memref<480x128xbf16, #tpu.memory_space<vmem>>, vector<64x32xbf16>
    %98 = arith.truncf %96 : vector<8x64xf32> to vector<8x64xbf16>
    %cst_42 = arith.constant dense<0.000000e+00> : vector<8x32xf32>
    %99 = tpu.matmul %98, %97, %cst_42 {dimension_numbers = #tpu.dot_dimension_numbers<[1], [0], [0], [1], [0, 0, 1, 1], [], []>} : vector<8x64xbf16>, vector<64x32xbf16>, vector<8x32xf32> -> vector<8x32xf32>
    %c0_43 = arith.constant 0 : index
    %c4096 = arith.constant 4096 : index
    %100 = vector.load %arg3[%c0_43, %c4096] : memref<1x4352xf32, #tpu.memory_space<vmem>>, vector<1x32xf32>
    %101 = vector.broadcast %100 : vector<1x32xf32> to vector<8x32xf32>
    %102 = arith.addf %99, %101 : vector<8x32xf32>
    %c8 = arith.constant 8 : index
    %103 = memref.load %arg2[%c8] : memref<9xf32, #tpu.memory_space<smem>>
    %cst_44 = arith.constant 0.000000e+00 : f32
    %104 = vector.broadcast %cst_44 : f32 to vector<8x32xf32>
    %105 = arith.cmpf oge, %102, %104 : vector<8x32xf32>
    %106 = vector.broadcast %103 : f32 to vector<8x32xf32>
    %107 = arith.mulf %106, %102 : vector<8x32xf32>
    %108 = arith.select %105, %102, %107 : vector<8x32xi1>, vector<8x32xf32>
    %c448 = arith.constant 448 : index
    %c0_45 = arith.constant 0 : index
    %109 = vector.load %arg10[%c448, %c0_45] : memref<480x128xbf16, #tpu.memory_space<vmem>>, vector<32x16xbf16>
    %110 = arith.truncf %108 : vector<8x32xf32> to vector<8x32xbf16>
    %cst_46 = arith.constant dense<0.000000e+00> : vector<8x16xf32>
    %111 = tpu.matmul %110, %109, %cst_46 {dimension_numbers = #tpu.dot_dimension_numbers<[1], [0], [0], [1], [0, 0, 1, 1], [], []>} : vector<8x32xbf16>, vector<32x16xbf16>, vector<8x16xf32> -> vector<8x16xf32>
    %c0_47 = arith.constant 0 : index
    %c4224 = arith.constant 4224 : index
    %112 = vector.load %arg3[%c0_47, %c4224] : memref<1x4352xf32, #tpu.memory_space<vmem>>, vector<1x16xf32>
    %113 = vector.broadcast %112 : vector<1x16xf32> to vector<8x16xf32>
    %114 = arith.addf %111, %113 : vector<8x16xf32>
    %c0_48 = arith.constant 0 : index
    %c0_49 = arith.constant 0 : index
    %115 = vector.load %arg11[%c0_48, %c0_49] : memref<8x16xf32, #tpu.memory_space<vmem>>, vector<8x16xf32>
    tpu.vector_store %arg11[%c0_48, %c0_49], %114 {strides = array<i32>} : memref<8x16xf32, #tpu.memory_space<vmem>>, vector<8x16xf32>,
    return
  }
  func.func @transform_0(%arg0: i32) -> (i32, i32) {
    %c0_i32 = arith.constant 0 : i32
    %c0_i32_0 = arith.constant 0 : i32
    return %arg0, %c0_i32 : i32, i32
  }
  func.func @transform_1(%arg0: i32) -> i32 {
    %c0_i32 = arith.constant 0 : i32
    %c0_i32_0 = arith.constant 0 : i32
    return %c0_i32 : i32
  }
  func.func @transform_2(%arg0: i32) -> (i32, i32) {
    %c0_i32 = arith.constant 0 : i32
    %c0_i32_0 = arith.constant 0 : i32
    %c0_i32_1 = arith.constant 0 : i32
    return %c0_i32, %c0_i32_0 : i32, i32
  }
  func.func @transform_3(%arg0: i32) -> (i32, i32) {
    %c0_i32 = arith.constant 0 : i32
    %c0_i32_0 = arith.constant 0 : i32
    %c0_i32_1 = arith.constant 0 : i32
    return %c0_i32, %c0_i32_0 : i32, i32
  }
  func.func @transform_4(%arg0: i32) -> (i32, i32) {
    %c0_i32 = arith.constant 0 : i32
    %c0_i32_0 = arith.constant 0 : i32
    %c0_i32_1 = arith.constant 0 : i32
    return %c0_i32, %c0_i32_0 : i32, i32
  }
  func.func @transform_5(%arg0: i32) -> (i32, i32) {
    %c0_i32 = arith.constant 0 : i32
    %c0_i32_0 = arith.constant 0 : i32
    %c0_i32_1 = arith.constant 0 : i32
    return %c0_i32, %c0_i32_0 : i32, i32
  }
  func.func @transform_6(%arg0: i32) -> (i32, i32) {
    %c0_i32 = arith.constant 0 : i32
    %c0_i32_0 = arith.constant 0 : i32
    %c0_i32_1 = arith.constant 0 : i32
    return %c0_i32, %c0_i32_0 : i32, i32
  }
  func.func @transform_7(%arg0: i32) -> (i32, i32) {
    %c0_i32 = arith.constant 0 : i32
    %c0_i32_0 = arith.constant 0 : i32
    %c0_i32_1 = arith.constant 0 : i32
    return %c0_i32, %c0_i32_0 : i32, i32
  }
  func.func @transform_8(%arg0: i32) -> (i32, i32) {
    %c0_i32 = arith.constant 0 : i32
    %c0_i32_0 = arith.constant 0 : i32
    %c0_i32_1 = arith.constant 0 : i32
    return %c0_i32, %c0_i32_0 : i32, i32
  }
  func.func @transform_9(%arg0: i32) -> (i32, i32) {
    %c0_i32 = arith.constant 0 : i32
    %c0_i32_0 = arith.constant 0 : i32
    %c0_i32_1 = arith.constant 0 : i32
    return %c0_i32, %c0_i32_0 : i32, i32
  }
  func.func @transform_10(%arg0: i32) -> (i32, i32) {
    %c0_i32 = arith.constant 0 : i32
    %c0_i32_0 = arith.constant 0 : i32
    return %arg0, %c0_i32 : i32, i32
  }
}

</mosaic_0001>

<llo_original>
// kernel: planner_forward.1
$region0: #{planner_forward.1}
  #allocation0 [shape = 'u32[]', space=smem, size = 0x4, offset = 0x4, fixed_abs, tag = 'smem constant byte address 0x4 - core index']
  #allocation1 [shape = 'u32[72,128]{1,0:T(1,128)}', space=vmem, size = 0x9000, scoped, tag = 'internal scratch']
  %s0 = inlined_call_operand.vmem [shape: f32[8,40], index: 0, kind: input, shape index: {}]
  %s1 = inlined_call_operand.hbm [shape: f32[9], index: 1, kind: input, shape index: {}]
  %s2 = inlined_call_operand.hbm [shape: f32[1,4352], index: 2, kind: input, shape index: {}]
  %s3 = inlined_call_operand.hbm [shape: bf16[40,1024], index: 3, kind: input, shape index: {}]
  %s4 = inlined_call_operand.hbm [shape: bf16[1024,896], index: 4, kind: input, shape index: {}]
  %s5 = inlined_call_operand.hbm [shape: bf16[896,768], index: 5, kind: input, shape index: {}]
  %s6 = inlined_call_operand.hbm [shape: bf16[768,512], index: 6, kind: input, shape index: {}]
  %s7 = inlined_call_operand.hbm [shape: bf16[512,384], index: 7, kind: input, shape index: {}]
  %s8 = inlined_call_operand.hbm [shape: bf16[384,256], index: 8, kind: input, shape index: {}]
  %s9 = inlined_call_operand.hbm [shape: bf16[480,128], index: 9, kind: input, shape index: {}]
  %s10 = inlined_call_operand.hbm [shape: f32[8,16], index: 10, kind: output, shape index: {}]
  %s11 = sld [smem:[#allocation0]]
  $region86: #{planner_forward.1} parent=0
    _
  %s13 = ssub.s32 1, %s11
  %s14 = scalar_select 0, %s13, %s11
  $region1: #{planner_forward.1} parent=0
    #allocation2 [shape = 'u8[512]{0}', space=smem, size = 0x200, scoped, tag = 'input window, operand 1, single buffered']
    #allocation3 [shape = 's32[1]{0}', space=sflag, size = 0x4, scoped, tag = 'scoped memory for planner_forward.1']
    #allocation4 [shape = 's32[1]{0}', space=sflag, size = 0x4, scoped, tag = 'scoped memory for planner_forward.1']
    #allocation5 [shape = 's32[1]{0}', space=sflag, size = 0x4, scoped, tag = 'scoped memory for planner_forward.1']
    #allocation6 [shape = 'u8[17408]{0}', space=vmem, size = 0x4400, scoped, tag = 'input window, operand 2, single buffered']
    #allocation7 [shape = 'u8[81920]{0}', space=vmem, size = 0x14000, scoped, tag = 'input window, operand 3, single buffered']
    #allocation8 [shape = 's32[1]{0}', space=sflag, size = 0x4, scoped, tag = 'scoped memory for planner_forward.1']
    #allocation9 [shape = 'u8[1835008]{0}', space=vmem, size = 0x1c0000, scoped, tag = 'input window, operand 4, single buffered']
    #allocation10 [shape = 'u8[1376256]{0}', space=vmem, size = 0x150000, scoped, tag = 'input window, operand 5, single buffered']
    #allocation11 [shape = 's32[1]{0}', space=sflag, size = 0x4, scoped, tag = 'scoped memory for planner_forward.1']
    #allocation12 [shape = 'u8[786432]{0}', space=vmem, size = 0xc0000, scoped, tag = 'input window, operand 6, single buffered']
    #allocation13 [shape = 'u8[393216]{0}', space=vmem, size = 0x60000, scoped, tag = 'input window, operand 7, single buffered']
    #allocation14 [shape = 's32[1]{0}', space=sflag, size = 0x4, scoped, tag = 'scoped memory for planner_forward.1']
    #allocation15 [shape = 'u8[196608]{0}', space=vmem, size = 0x30000, scoped, tag = 'input window, operand 8, single buffered']
    #allocation16 [shape = 'u8[122880]{0}', space=vmem, size = 0x1e000, scoped, tag = 'input window, operand 9, single buffered']
    #allocation17 [shape = 's32[1]{0}', space=sflag, size = 0x4, scoped, tag = 'scoped memory for planner_forward.1']
    #allocation18 [shape = 'u8[4096]{0}', space=vmem, size = 0x1000, scoped, tag = 'output window, operand 0, single buffered']
    %15 = vsyncpa [#allocation5], 0
    %16 = vsyncpa [#allocation3], 0
    %17 = vsyncpa [#allocation8], 0
    %18 = vsyncpa [#allocation11], 0
    %19 = vsyncpa [#allocation14], 0
    %20 = vsyncpa [#allocation17], 0
    %21 = vsyncpa [#allocation4], 0
    // Predicated region
    $region2: #{planner_forward.1} parent=1 // pred_check
      _
    $region3: #{planner_forward.1} parent=1 // pred_check_branch
      %23 = sbr.rel (0) target = $region5
    $region4: #{planner_forward.1} parent=1 // pred_region
      _
    $region5: #{planner_forward.1} parent=1 // pred_fallthru
      _
    // Predicated region
    $region6: #{planner_forward.1} parent=1 // pred_check
      _
    $region7: #{planner_forward.1} parent=1 // pred_check_branch
      %25 = sbr.rel (0) target = $region9
    $region8: #{planner_forward.1} parent=1 // pred_region
      %27 = vsyncadd [#allocation5], 0
      %s29 = sshll.u32 %s1, 4
      %s30 = int_to_ptr.hbm [resolvable:$true] %s29
      %32 = dma.hbm_to_smem %s30, 16, [#allocation2], [#allocation5]
    $region9: #{planner_forward.1} parent=1 // pred_fallthru
      _
    // Predicated region
    $region10: #{planner_forward.1} parent=1 // pred_check
      _
    $region11: #{planner_forward.1} parent=1 // pred_check_branch
      %34 = sbr.rel (0) target = $region13
    $region12: #{planner_forward.1} parent=1 // pred_region
      %36 = vsyncadd [#allocation3], 0
      %s38 = sshll.u32 %s2, 4
      %s39 = int_to_ptr.hbm [resolvable:$true] %s38
      %s40 = sshll.u32 [#allocation6], 4
      %s41 = int_to_ptr.vmem [resolvable:$true] %s40
      %43 = dma.hbm_to_vmem [thread:$0]  %s39, 544, %s41, [#allocation3]
    $region13: #{planner_forward.1} parent=1 // pred_fallthru
      _
    // Predicated region
    $region14: #{planner_forward.1} parent=1 // pred_check
      _
    $region15: #{planner_forward.1} parent=1 // pred_check_branch
      %45 = sbr.rel (0) target = $region17
    $region16: #{planner_forward.1} parent=1 // pred_region
      %47 = vsyncadd [#allocation8], 0
      %s48 = sshll.u32 %s3, 4
      %s49 = int_to_ptr.hbm [resolvable:$true] %s48
      %s50 = sshll.u32 [#allocation7], 4
      %s51 = int_to_ptr.vmem [resolvable:$true] %s50
      %56 = dma.hbm_to_vmem [thread:$0]  %s49, 2560, %s51, [#allocation8], 512, 512, 32
    $region17: #{planner_forward.1} parent=1 // pred_fallthru
      _
    // Predicated region
    $region18: #{planner_forward.1} parent=1 // pred_check
      _
    $region19: #{planner_forward.1} parent=1 // pred_check_branch
      %58 = sbr.rel (0) target = $region21
    $region20: #{planner_forward.1} parent=1 // pred_region
      %60 = vsyncadd [#allocation8], 0
      %s61 = sshll.u32 %s4, 4
      %s62 = int_to_ptr.hbm [resolvable:$true] %s61
      %s63 = sshll.u32 [#allocation9], 4
      %s64 = int_to_ptr.vmem [resolvable:$true] %s63
      %69 = dma.hbm_to_vmem [thread:$0]  %s62, 57344, %s64, [#allocation8], 448, 448, 28
    $region21: #{planner_forward.1} parent=1 // pred_fallthru
      _
    // Predicated region
    $region22: #{planner_forward.1} parent=1 // pred_check
      _
    $region23: #{planner_forward.1} parent=1 // pred_check_branch
      %71 = sbr.rel (0) target = $region25
    $region24: #{planner_forward.1} parent=1 // pred_region
      %73 = vsyncadd [#allocation11], 0
      %s74 = sshll.u32 %s5, 4
      %s75 = int_to_ptr.hbm [resolvable:$true] %s74
      %s76 = sshll.u32 [#allocation10], 4
      %s77 = int_to_ptr.vmem [resolvable:$true] %s76
      %82 = dma.hbm_to_vmem [thread:$0]  %s75, 43008, %s77, [#allocation11], 384, 384, 24
    $region25: #{planner_forward.1} parent=1 // pred_fallthru
      _
    // Predicated region
    $region26: #{planner_forward.1} parent=1 // pred_check
      _
    $region27: #{planner_forward.1} parent=1 // pred_check_branch
      %84 = sbr.rel (0) target = $region29
    $region28: #{planner_forward.1} parent=1 // pred_region
      %86 = vsyncadd [#allocation11], 0
      %s87 = sshll.u32 %s6, 4
      %s88 = int_to_ptr.hbm [resolvable:$true] %s87
      %s89 = sshll.u32 [#allocation12], 4
      %s90 = int_to_ptr.vmem [resolvable:$true] %s89
      %95 = dma.hbm_to_vmem [thread:$0]  %s88, 24576, %s90, [#allocation11], 256, 256, 16
    $region29: #{planner_forward.1} parent=1 // pred_fallthru
      _
    // Predicated region
    $region30: #{planner_forward.1} parent=1 // pred_check
      _
    $region31: #{planner_forward.1} parent=1 // pred_check_branch
      %97 = sbr.rel (0) target = $region33
    $region32: #{planner_forward.1} parent=1 // pred_region
      %99 = vsyncadd [#allocation14], 0
      %s100 = sshll.u32 %s7, 4
      %s101 = int_to_ptr.hbm [resolvable:$true] %s100
      %s102 = sshll.u32 [#allocation13], 4
      %s103 = int_to_ptr.vmem [resolvable:$true] %s102
      %108 = dma.hbm_to_vmem [thread:$0]  %s101, 12288, %s103, [#allocation14], 192, 192, 12
    $region33: #{planner_forward.1} parent=1 // pred_fallthru
      _
    // Predicated region
    $region34: #{planner_forward.1} parent=1 // pred_check
      _
    $region35: #{planner_forward.1} parent=1 // pred_check_branch
      %110 = sbr.rel (0) target = $region37
    $region36: #{planner_forward.1} parent=1 // pred_region
      %112 = vsyncadd [#allocation14], 0
      %s113 = sshll.u32 %s8, 4
      %s114 = int_to_ptr.hbm [resolvable:$true] %s113
      %s115 = sshll.u32 [#allocation15], 4
      %s116 = int_to_ptr.vmem [resolvable:$true] %s115
      %121 = dma.hbm_to_vmem [thread:$0]  %s114, 6144, %s116, [#allocation14], 128, 128, 8
    $region37: #{planner_forward.1} parent=1 // pred_fallthru
      _
    // Predicated region
    $region38: #{planner_forward.1} parent=1 // pred_check
      _
    $region39: #{planner_forward.1} parent=1 // pred_check_branch
      %123 = sbr.rel (0) target = $region41
    $region40: #{planner_forward.1} parent=1 // pred_region
      %125 = vsyncadd [#allocation17], 0
      %s126 = sshll.u32 %s9, 4
      %s127 = int_to_ptr.hbm [resolvable:$true] %s126
      %s128 = sshll.u32 [#allocation16], 4
      %s129 = int_to_ptr.vmem [resolvable:$true] %s128
      %134 = dma.hbm_to_vmem [thread:$0]  %s127, 3840, %s129, [#allocation17], 64, 64, 4
    $region41: #{planner_forward.1} parent=1 // pred_fallthru
      _
    // Predicated region
    $region42: #{planner_forward.1} parent=1 // pred_check
      _
    $region43: #{planner_forward.1} parent=1 // pred_check_branch
      %136 = sbr.rel (0) target = $region45
    $region44: #{planner_forward.1} parent=1 // pred_region
      %138 = dma.done [#allocation5], 16
    $region45: #{planner_forward.1} parent=1 // pred_fallthru
      _
    // Predicated region
    $region46: #{planner_forward.1} parent=1 // pred_check
      _
    $region47: #{planner_forward.1} parent=1 // pred_check_branch
      %140 = sbr.rel (0) target = $region49
    $region48: #{planner_forward.1} parent=1 // pred_region
      %142 = dma.done [#allocation3], 544
    $region49: #{planner_forward.1} parent=1 // pred_fallthru
      _
    // Predicated region
    $region50: #{planner_forward.1} parent=1 // pred_check
      _
    $region51: #{planner_forward.1} parent=1 // pred_check_branch
      %144 = sbr.rel (0) target = $region53
    $region52: #{planner_forward.1} parent=1 // pred_region
      %146 = dma.done [#allocation8], 2560
    $region53: #{planner_forward.1} parent=1 // pred_fallthru
      _
    // Predicated region
    $region54: #{planner_forward.1} parent=1 // pred_check
      _
    $region55: #{planner_forward.1} parent=1 // pred_check_branch
      %148 = sbr.rel (0) target = $region57
    $region56: #{planner_forward.1} parent=1 // pred_region
      %150 = dma.done [#allocation8], 57344
    $region57: #{planner_forward.1} parent=1 // pred_fallthru
      _
    // Predicated region
    $region58: #{planner_forward.1} parent=1 // pred_check
      _
    $region59: #{planner_forward.1} parent=1 // pred_check_branch
      %152 = sbr.rel (0) target = $region61
    $region60: #{planner_forward.1} parent=1 // pred_region
      %154 = dma.done [#allocation11], 43008
    $region61: #{planner_forward.1} parent=1 // pred_fallthru
      _
    // Predicated region
    $region62: #{planner_forward.1} parent=1 // pred_check
      _
    $region63: #{planner_forward.1} parent=1 // pred_check_branch
      %156 = sbr.rel (0) target = $region65
    $region64: #{planner_forward.1} parent=1 // pred_region
      %158 = dma.done [#allocation11], 24576
    $region65: #{planner_forward.1} parent=1 // pred_fallthru
      _
    // Predicated region
    $region66: #{planner_forward.1} parent=1 // pred_check
      _
    $region67: #{planner_forward.1} parent=1 // pred_check_branch
      %160 = sbr.rel (0) target = $region69
    $region68: #{planner_forward.1} parent=1 // pred_region
      %162 = dma.done [#allocation14], 12288
    $region69: #{planner_forward.1} parent=1 // pred_fallthru
      _
    // Predicated region
    $region70: #{planner_forward.1} parent=1 // pred_check
      _
    $region71: #{planner_forward.1} parent=1 // pred_check_branch
      %164 = sbr.rel (0) target = $region73
    $region72: #{planner_forward.1} parent=1 // pred_region
      %166 = dma.done [#allocation14], 6144
    $region73: #{planner_forward.1} parent=1 // pred_fallthru
      _
    // Predicated region
    $region74: #{planner_forward.1} parent=1 // pred_check
      _
    $region75: #{planner_forward.1} parent=1 // pred_check_branch
      %168 = sbr.rel (0) target = $region77
    $region76: #{planner_forward.1} parent=1 // pred_region
      %170 = dma.done [#allocation17], 3840
    $region77: #{planner_forward.1} parent=1 // pred_fallthru
      _
    %171 = sfence
    %v173 = vld [vmem:[%s0] sm:$0xff]
    %v174 = vld [vmem:[#allocation7] sm:$0xff]
    %v175 = vld [vmem:[#allocation7 + $0x8] sm:$0xff]
    %v176 = vld [vmem:[#allocation7 + $0x10] sm:$0xff]
    %v177 = vld [vmem:[#allocation7 + $0x18] sm:$0xff]
    %v178 = vld [vmem:[#allocation7 + $0x20] sm:$0xff]
    %v179 = vld [vmem:[#allocation7 + $0x28] sm:$0xff]
    %v180 = vld [vmem:[#allocation7 + $0x30] sm:$0xff]
    %v181 = vld [vmem:[#allocation7 + $0x38] sm:$0xff]
    %v182 = vld [vmem:[#allocation7 + $0x40] sm:$0xff]
    %v183 = vld [vmem:[#allocation7 + $0x48] sm:$0xff]
    %v184 = vld [vmem:[#allocation7 + $0x50] sm:$0xff]
    %v185 = vld [vmem:[#allocation7 + $0x58] sm:$0xff]
    %v186 = vld [vmem:[#allocation7 + $0x60] sm:$0xff]
    %v187 = vld [vmem:[#allocation7 + $0x68] sm:$0xff]
    %v188 = vld [vmem:[#allocation7 + $0x70] sm:$0xff]
    %v189 = vld [vmem:[#allocation7 + $0x78] sm:$0xff]
    %v190 = vld [vmem:[#allocation7 + $0x80] sm:$0xff]
    %v191 = vld [vmem:[#allocation7 + $0x88] sm:$0xff]
    %v192 = vld [vmem:[#allocation7 + $0x90] sm:$0xff]
    %v193 = vld [vmem:[#allocation7 + $0x98] sm:$0xff]
    %v194 = vpack.c.bf16 %v173, %v173
    %v195 = vld [vmem:[#allocation6] sm:$0xff]
    %v197 = vperm.slane %v195, 0
    %v198 = vperm.slane %v195, 1
    %v199 = vperm.slane %v195, 2
    %v200 = vperm.slane %v195, 3
    %v201 = vperm.slane %v195, 4
    %v202 = vperm.slane %v195, 5
    %v203 = vperm.slane %v195, 6
    %v204 = vperm.slane %v195, 7
    %v233 = vunpack.c.l.b16 %v174
    %v234 = vunpack.c.h.b16 %v174
    %v235 = vunpack.c.l.b16 %v175
    %v236 = vunpack.c.h.b16 %v175
    %v237 = vunpack.c.l.b16 %v176
    %v238 = vunpack.c.h.b16 %v176
    %v239 = vunpack.c.l.b16 %v177
    %v240 = vunpack.c.h.b16 %v177
    %v241 = vunpack.c.l.b16 %v178
    %v242 = vunpack.c.h.b16 %v178
    %v243 = vunpack.c.l.b16 %v179
    %v244 = vunpack.c.h.b16 %v179
    %v245 = vunpack.c.l.b16 %v180
    %v246 = vunpack.c.h.b16 %v180
    %v247 = vunpack.c.l.b16 %v181
    %v248 = vunpack.c.h.b16 %v181
    %v249 = vunpack.c.l.b16 %v182
    %v250 = vunpack.c.h.b16 %v182
    %v251 = vunpack.c.l.b16 %v183
    %v252 = vunpack.c.h.b16 %v183
    %v253 = vunpack.c.l.b16 %v184
    %v254 = vunpack.c.h.b16 %v184
    %v255 = vunpack.c.l.b16 %v185
    %v256 = vunpack.c.h.b16 %v185
    %v257 = vunpack.c.l.b16 %v186
    %v258 = vunpack.c.h.b16 %v186
    %v259 = vunpack.c.l.b16 %v187
    %v260 = vunpack.c.h.b16 %v187
    %v261 = vunpack.c.l.b16 %v188
    %v262 = vunpack.c.h.b16 %v188
    %v263 = vunpack.c.l.b16 %v189
    %v264 = vunpack.c.h.b16 %v189
    %v265 = vunpack.c.l.b16 %v190
    %v266 = vunpack.c.h.b16 %v190
    %v267 = vunpack.c.l.b16 %v191
    %v268 = vunpack.c.h.b16 %v191
    %v269 = vunpack.c.l.b16 %v192
    %v270 = vunpack.c.h.b16 %v192
    %v271 = vunpack.c.l.b16 %v193
    %v272 = vunpack.c.h.b16 %v193
    %v273 = vpack.c.b16 %v241, %v233
    %v274 = vpack.c.b16 %v242, %v234
    %v275 = vpack.c.b16 %v243, %v235
    %v276 = vpack.c.b16 %v244, %v236
    %v277 = vpack.c.b16 %v245, %v237
    %v278 = vpack.c.b16 %v246, %v238
    %v279 = vpack.c.b16 %v247, %v239
    %v280 = vpack.c.b16 %v248, %v240
    %v281 = vpack.c.b16 %v257, %v249
    %v282 = vpack.c.b16 %v258, %v250
    %v283 = vpack.c.b16 %v259, %v251
    %v284 = vpack.c.b16 %v260, %v252
    %v285 = vpack.c.b16 %v261, %v253
    %v286 = vpack.c.b16 %v262, %v254
    %v287 = vpack.c.b16 %v263, %v255
    %v288 = vpack.c.b16 %v264, %v256
    %v289 = vpack.c.b16 %v265, %v265
    %v290 = vpack.c.b16 %v266, %v266
    %v291 = vpack.c.b16 %v267, %v267
    %v292 = vpack.c.b16 %v268, %v268
    %v293 = vpack.c.b16 %v269, %v269
    %v294 = vpack.c.b16 %v270, %v270
    %v295 = vpack.c.b16 %v271, %v271
    %v296 = vpack.c.b16 %v272, %v272
    %vm313 = vcmask 326656
    %v315 = vsel %vm313, %v194, 0
    %vm317 = vcmask 1043456
    %v319 = vsel %vm317, %v289, 0
    %v322 = vsel %vm317, %v290, 0
    %v325 = vsel %vm317, %v291, 0
    %v328 = vsel %vm317, %v292, 0
    %v331 = vsel %vm317, %v293, 0
    %v334 = vsel %vm317, %v294, 0
    %v337 = vsel %vm317, %v295, 0
    %v340 = vsel %vm317, %v296, 0
    %342 = vmatpush.bf16.msra.mxu0 0
    %343 = vmatpush.bf16.msra.mxu0 0
    %344 = vmatpush.bf16.msra.mxu0 0
    %345 = vmatpush.bf16.msra.mxu0 0
    %346 = vmatpush.bf16.msra.mxu0 0
    %347 = vmatpush.bf16.msra.mxu0 %v319
    %348 = vmatpush.bf16.msra.mxu0 %v281
    %349 = vmatpush.bf16.msra.mxu0 %v273
    %350 = vmatmul.bf16.gmra.mxu0 %v315
    %v351 = vpop.f32.mrf.mxu0
    %v352 = vadd.f32 %v197, %v351
    %v353 = vpop.f32.mrf.mxu0
    %354 = vdwg.mxu0
    %355 = vmatpush.bf16.msra.mxu0 0
    %356 = vmatpush.bf16.msra.mxu0 0
    %357 = vmatpush.bf16.msra.mxu0 0
    %358 = vmatpush.bf16.msra.mxu0 0
    %359 = vmatpush.bf16.msra.mxu0 0
    %360 = vmatpush.bf16.msra.mxu0 %v322
    %361 = vmatpush.bf16.msra.mxu0 %v282
    %362 = vmatpush.bf16.msra.mxu0 %v274
    %363 = vmatmul.bf16.gmra.mxu0 %v315
    %v364 = vpop.f32.mrf.mxu0
    %v365 = vadd.f32 %v198, %v364
    %v366 = vpop.f32.mrf.mxu0
    %367 = vdwg.mxu0
    %368 = vmatpush.bf16.msra.mxu0 0
    %369 = vmatpush.bf16.msra.mxu0 0
    %370 = vmatpush.bf16.msra.mxu0 0
    %371 = vmatpush.bf16.msra.mxu0 0
    %372 = vmatpush.bf16.msra.mxu0 0
    %373 = vmatpush.bf16.msra.mxu0 %v325
    %374 = vmatpush.bf16.msra.mxu0 %v283
    %375 = vmatpush.bf16.msra.mxu0 %v275
    %376 = vmatmul.bf16.gmra.mxu0 %v315
    %v377 = vpop.f32.mrf.mxu0
    %v378 = vadd.f32 %v199, %v377
    %v379 = vpop.f32.mrf.mxu0
    %380 = vdwg.mxu0
    %381 = vmatpush.bf16.msra.mxu0 0
    %382 = vmatpush.bf16.msra.mxu0 0
    %383 = vmatpush.bf16.msra.mxu0 0
    %384 = vmatpush.bf16.msra.mxu0 0
    %385 = vmatpush.bf16.msra.mxu0 0
    %386 = vmatpush.bf16.msra.mxu0 %v328
    %387 = vmatpush.bf16.msra.mxu0 %v284
    %388 = vmatpush.bf16.msra.mxu0 %v276
    %389 = vmatmul.bf16.gmra.mxu0 %v315
    %v390 = vpop.f32.mrf.mxu0
    %v391 = vadd.f32 %v200, %v390
    %v392 = vpop.f32.mrf.mxu0
    %393 = vdwg.mxu0
    %394 = vmatpush.bf16.msra.mxu0 0
    %395 = vmatpush.bf16.msra.mxu0 0
    %396 = vmatpush.bf16.msra.mxu0 0
    %397 = vmatpush.bf16.msra.mxu0 0
    %398 = vmatpush.bf16.msra.mxu0 0
    %399 = vmatpush.bf16.msra.mxu0 %v331
    %400 = vmatpush.bf16.msra.mxu0 %v285
    %401 = vmatpush.bf16.msra.mxu0 %v277
    %402 = vmatmul.bf16.gmra.mxu0 %v315
    %v403 = vpop.f32.mrf.mxu0
    %v404 = vadd.f32 %v201, %v403
    %v405 = vpop.f32.mrf.mxu0
    %406 = vdwg.mxu0
    %407 = vmatpush.bf16.msra.mxu0 0
    %408 = vmatpush.bf16.msra.mxu0 0
    %409 = vmatpush.bf16.msra.mxu0 0
    %410 = vmatpush.bf16.msra.mxu0 0
    %411 = vmatpush.bf16.msra.mxu0 0
    %412 = vmatpush.bf16.msra.mxu0 %v334
    %413 = vmatpush.bf16.msra.mxu0 %v286
    %414 = vmatpush.bf16.msra.mxu0 %v278
    %415 = vmatmul.bf16.gmra.mxu0 %v315
    %v416 = vpop.f32.mrf.mxu0
    %v417 = vadd.f32 %v202, %v416
    %v418 = vpop.f32.mrf.mxu0
    %419 = vdwg.mxu0
    %420 = vmatpush.bf16.msra.mxu0 0
    %421 = vmatpush.bf16.msra.mxu0 0
    %422 = vmatpush.bf16.msra.mxu0 0
    %423 = vmatpush.bf16.msra.mxu0 0
    %424 = vmatpush.bf16.msra.mxu0 0
    %425 = vmatpush.bf16.msra.mxu0 %v337
    %426 = vmatpush.bf16.msra.mxu0 %v287
    %427 = vmatpush.bf16.msra.mxu0 %v279
    %428 = vmatmul.bf16.gmra.mxu0 %v315
    %v429 = vpop.f32.mrf.mxu0
    %v430 = vadd.f32 %v203, %v429
    %v431 = vpop.f32.mrf.mxu0
    %432 = vdwg.mxu0
    %433 = vmatpush.bf16.msra.mxu0 0
    %434 = vmatpush.bf16.msra.mxu0 0
    %435 = vmatpush.bf16.msra.mxu0 0
    %436 = vmatpush.bf16.msra.mxu0 0
    %437 = vmatpush.bf16.msra.mxu0 0
    %438 = vmatpush.bf16.msra.mxu0 %v340
    %439 = vmatpush.bf16.msra.mxu0 %v288
    %440 = vmatpush.bf16.msra.mxu0 %v280
    %441 = vmatmul.bf16.gmra.mxu0 %v315
    %v442 = vpop.f32.mrf.mxu0
    %v443 = vadd.f32 %v204, %v442
    %v444 = vpop.f32.mrf.mxu0
    %445 = vdwg.mxu0
    %s446 = sld [smem:[#allocation2]]
    %vm447 = vcmp.ge.f32.partialorder %v352, 0.0
    %vm448 = vcmp.ge.f32.partialorder %v365, 0.0
    %vm449 = vcmp.ge.f32.partialorder %v378, 0.0
    %vm450 = vcmp.ge.f32.partialorder %v391, 0.0
    %vm451 = vcmp.ge.f32.partialorder %v404, 0.0
    %vm452 = vcmp.ge.f32.partialorder %v417, 0.0
    %vm453 = vcmp.ge.f32.partialorder %v430, 0.0
    %vm454 = vcmp.ge.f32.partialorder %v443, 0.0
    %v455 = vstv %s446
    %v456 = vmul.f32 %v455, %v352
    %v457 = vmul.f32 %v455, %v365
    %v458 = vmul.f32 %v455, %v378
    %v459 = vmul.f32 %v455, %v391
    %v460 = vmul.f32 %v455, %v404
    %v461 = vmul.f32 %v455, %v417
    %v462 = vmul.f32 %v455, %v430
    %v463 = vmul.f32 %v455, %v443
    %v464 = vsel %vm447, %v352, %v456
    %v465 = vsel %vm448, %v365, %v457
    %v466 = vsel %vm449, %v378, %v458
    %v467 = vsel %vm450, %v391, %v459
    %v468 = vsel %vm451, %v404, %v460
    %v469 = vsel %vm452, %v417, %v461
    %v470 = vsel %vm453, %v430, %v462
    %v471 = vsel %vm454, %v443, %v463
    %v472 = vld [vmem:[#allocation9] sm:$0xff]
    %v473 = vld [vmem:[#allocation9 + $0x8] sm:$0xff]
    %v474 = vld [vmem:[#allocation9 + $0x10] sm:$0xff]
    %v475 = vld [vmem:[#allocation9 + $0x18] sm:$0xf]
    %v476 = vld [vmem:[#allocation9 + $0x1c] sm:$0xff]
    %v477 = vld [vmem:[#allocation9 + $0x24] sm:$0xff]
    %v478 = vld [vmem:[#allocation9 + $0x2c] sm:$0xff]
    %v479 = vld [vmem:[#allocation9 + $0x34] sm:$0xf]
    %v480 = vld [vmem:[#allocation9 + $0x38] sm:$0xff]
    %v481 = vld [vmem:[#allocation9 + $0x40] sm:$0xff]
    %v482 = vld [vmem:[#allocation9 + $0x48] sm:$0xff]
    %v483 = vld [vmem:[#allocation9 + $0x50] sm:$0xf]
    %v484 = vld [vmem:[#allocation9 + $0x54] sm:$0xff]
    %v485 = vld [vmem:[#allocation9 + $0x5c] sm:$0xff]
    %v486 = vld [vmem:[#allocation9 + $0x64] sm:$0xff]
    %v487 = vld [vmem:[#allocation9 + $0x6c] sm:$0xf]
    %v488 = vld [vmem:[#allocation9 + $0x70] sm:$0xff]
    %v489 = vld [vmem:[#allocation9 + $0x78] sm:$0xff]
    %v490 = vld [vmem:[#allocation9 + $0x80] sm:$0xff]
    %v491 = vld [vmem:[#allocation9 + $0x88] sm:$0xf]
    %v492 = vld [vmem:[#allocation9 + $0x8c] sm:$0xff]
    %v493 = vld [vmem:[#allocation9 + $0x94] sm:$0xff]
    %v494 = vld [vmem:[#allocation9 + $0x9c] sm:$0xff]
    %v495 = vld [vmem:[#allocation9 + $0xa4] sm:$0xf]
    %v496 = vld [vmem:[#allocation9 + $0xa8] sm:$0xff]
    %v497 = vld [vmem:[#allocation9 + $0xb0] sm:$0xff]
    %v498 = vld [vmem:[#allocation9 + $0xb8] sm:$0xff]
    %v499 = vld [vmem:[#allocation9 + $0xc0] sm:$0xf]
    %v500 = vld [vmem:[#allocation9 + $0xc4] sm:$0xff]
    %v501 = vld [vmem:[#allocation9 + $0xcc] sm:$0xff]
    %v502 = vld [vmem:[#allocation9 + $0xd4] sm:$0xff]
    %v503 = vld [vmem:[#allocation9 + $0xdc] sm:$0xf]
    %v504 = vld [vmem:[#allocation9 + $0xe0] sm:$0xff]
    %v505 = vld [vmem:[#allocation9 + $0xe8] sm:$0xff]
    %v506 = vld [vmem:[#allocation9 + $0xf0] sm:$0xff]
    %v507 = vld [vmem:[#allocation9 + $0xf8] sm:$0xf]
    %v508 = vld [vmem:[#allocation9 + $0xfc] sm:$0xff]
    %v509 = vld [vmem:[#allocation9 + $0x104] sm:$0xff]
    %v510 = vld [vmem:[#allocation9 + $0x10c] sm:$0xff]
    %v511 = vld [vmem:[#allocation9 + $0x114] sm:$0xf]
    %v512 = vld [vmem:[#allocation9 + $0x118] sm:$0xff]
    %v513 = vld [vmem:[#allocation9 + $0x120] sm:$0xff]
    %v514 = vld [vmem:[#allocation9 + $0x128] sm:$0xff]
    %v515 = vld [vmem:[#allocation9 + $0x130] sm:$0xf]
    %v516 = vld [vmem:[#allocation9 + $0x134] sm:$0xff]
    %v517 = vld [vmem:[#allocation9 + $0x13c] sm:$0xff]
    %v518 = vld [vmem:[#allocation9 + $0x144] sm:$0xff]
    %v519 = vld [vmem:[#allocation9 + $0x14c] sm:$0xf]
    %v520 = vld [vmem:[#allocation9 + $0x150] sm:$0xff]
    %v521 = vld [vmem:[#allocation9 + $0x158] sm:$0xff]
    %v522 = vld [vmem:[#allocation9 + $0x160] sm:$0xff]
    %v523 = vld [vmem:[#allocation9 + $0x168] sm:$0xf]
    %v524 = vld [vmem:[#allocation9 + $0x16c] sm:$0xff]
    %v525 = vld [vmem:[#allocation9 + $0x174] sm:$0xff]
    %v526 = vld [vmem:[#allocation9 + $0x17c] sm:$0xff]
    %v527 = vld [vmem:[#allocation9 + $0x184] sm:$0xf]
    %v528 = vld [vmem:[#allocation9 + $0x188] sm:$0xff]
    %v529 = vld [vmem:[#allocation9 + $0x190] sm:$0xff]
    %v530 = vld [vmem:[#allocation9 + $0x198] sm:$0xff]
    %v531 = vld [vmem:[#allocation9 + $0x1a0] sm:$0xf]
    %v532 = vld [vmem:[#allocation9 + $0x1a4] sm:$0xff]
    %v533 = vld [vmem:[#allocation9 + $0x1ac] sm:$0xff]
    %v534 = vld [vmem:[#allocation9 + $0x1b4] sm:$0xff]
    %v535 = vld [vmem:[#allocation9 + $0x1bc] sm:$0xf]
    %v536 = vld [vmem:[#allocation9 + $0x1c0] sm:$0xff]
    %v537 = vld [vmem:[#allocation9 + $0x1c8] sm:$0xff]
    %v538 = vld [vmem:[#allocation9 + $0x1d0] sm:$0xff]
    %v539 = vld [vmem:[#allocation9 + $0x1d8] sm:$0xf]
    %v540 = vld [vmem:[#allocation9 + $0x1dc] sm:$0xff]
    %v541 = vld [vmem:[#allocation9 + $0x1e4] sm:$0xff]
    %v542 = vld [vmem:[#allocation9 + $0x1ec] sm:$0xff]
    %v543 = vld [vmem:[#allocation9 + $0x1f4] sm:$0xf]
    %v544 = vld [vmem:[#allocation9 + $0x1f8] sm:$0xff]
    %v545 = vld [vmem:[#allocation9 + $0x200] sm:$0xff]
    %v546 = vld [vmem:[#allocation9 + $0x208] sm:$0xff]
    %v547 = vld [vmem:[#allocation9 + $0x210] sm:$0xf]
    %v548 = vld [vmem:[#allocation9 + $0x214] sm:$0xff]
    %v549 = vld [vmem:[#allocation9 + $0x21c] sm:$0xff]
    %v550 = vld [vmem:[#allocation9 + $0x224] sm:$0xff]
    %v551 = vld [vmem:[#allocation9 + $0x22c] sm:$0xf]
    %v552 = vld [vmem:[#allocation9 + $0x230] sm:$0xff]
    %v553 = vld [vmem:[#allocation9 + $0x238] sm:$0xff]
    %v554 = vld [vmem:[#allocation9 + $0x240] sm:$0xff]
    %v555 = vld [vmem:[#allocation9 + $0x248] sm:$0xf]
    %v556 = vld [vmem:[#allocation9 + $0x24c] sm:$0xff]
    %v557 = vld [vmem:[#allocation9 + $0x254] sm:$0xff]
    %v558 = vld [vmem:[#allocation9 + $0x25c] sm:$0xff]
    %v559 = vld [vmem:[#allocation9 + $0x264] sm:$0xf]
    %v560 = vld [vmem:[#allocation9 + $0x268] sm:$0xff]
    %v561 = vld [vmem:[#allocation9 + $0x270] sm:$0xff]
    %v562 = vld [vmem:[#allocation9 + $0x278] sm:$0xff]
    %v563 = vld [vmem:[#allocation9 + $0x280] sm:$0xf]
    %v564 = vld [vmem:[#allocation9 + $0x284] sm:$0xff]
    %v565 = vld [vmem:[#allocation9 + $0x28c] sm:$0xff]
    %v566 = vld [vmem:[#allocation9 + $0x294] sm:$0xff]
    %v567 = vld [vmem:[#allocation9 + $0x29c] sm:$0xf]
    %v568 = vld [vmem:[#allocation9 + $0x2a0] sm:$0xff]
    %v569 = vld [vmem:[#allocation9 + $0x2a8] sm:$0xff]
    %v570 = vld [vmem:[#allocation9 + $0x2b0] sm:$0xff]
    %v571 = vld [vmem:[#allocation9 + $0x2b8] sm:$0xf]
    %v572 = vld [vmem:[#allocation9 + $0x2bc] sm:$0xff]
    %v573 = vld [vmem:[#allocation9 + $0x2c4] sm:$0xff]
    %v574 = vld [vmem:[#allocation9 + $0x2cc] sm:$0xff]
    %v575 = vld [vmem:[#allocation9 + $0x2d4] sm:$0xf]
    %v576 = vld [vmem:[#allocation9 + $0x2d8] sm:$0xff]
    %v577 = vld [vmem:[#allocation9 + $0x2e0] sm:$0xff]
    %v578 = vld [vmem:[#allocation9 + $0x2e8] sm:$0xff]
    %v579 = vld [vmem:[#allocation9 + $0x2f0] sm:$0xf]
    %v580 = vld [vmem:[#allocation9 + $0x2f4] sm:$0xff]
    %v581 = vld [vmem:[#allocation9 + $0x2fc] sm:$0xff]
    %v582 = vld [vmem:[#allocation9 + $0x304] sm:$0xff]
    %v583 = vld [vmem:[#allocation9 + $0x30c] sm:$0xf]
    %v584 = vld [vmem:[#allocation9 + $0x310] sm:$0xff]
    %v585 = vld [vmem:[#allocation9 + $0x318] sm:$0xff]
    %v586 = vld [vmem:[#allocation9 + $0x320] sm:$0xff]
    %v587 = vld [vmem:[#allocation9 + $0x328] sm:$0xf]
    %v588 = vld [vmem:[#allocation9 + $0x32c] sm:$0xff]
    %v589 = vld [vmem:[#allocation9 + $0x334] sm:$0xff]
    %v590 = vld [vmem:[#allocation9 + $0x33c] sm:$0xff]
    %v591 = vld [vmem:[#allocation9 + $0x344] sm:$0xf]
    %v592 = vld [vmem:[#allocation9 + $0x348] sm:$0xff]
    %v593 = vld [vmem:[#allocation9 + $0x350] sm:$0xff]
    %v594 = vld [vmem:[#allocation9 + $0x358] sm:$0xff]
    %v595 = vld [vmem:[#allocation9 + $0x360] sm:$0xf]
    %v596 = vld [vmem:[#allocation9 + $0x364] sm:$0xff]
    %v597 = vld [vmem:[#allocation9 + $0x36c] sm:$0xff]
    %v598 = vld [vmem:[#allocation9 + $0x374] sm:$0xff]
    %v599 = vld [vmem:[#allocation9 + $0x37c] sm:$0xf]
    %v600 = vld [vmem:[#allocation9 + $0x380] sm:$0xff]
    %v601 = vld [vmem:[#allocation9 + $0x388] sm:$0xff]
    %v602 = vld [vmem:[#allocation9 + $0x390] sm:$0xff]
    %v603 = vld [vmem:[#allocation9 + $0x398] sm:$0xf]
    %v604 = vld [vmem:[#allocation9 + $0x39c] sm:$0xff]
    %v605 = vld [vmem:[#allocation9 + $0x3a4] sm:$0xff]
    %v606 = vld [vmem:[#allocation9 + $0x3ac] sm:$0xff]
    %v607 = vld [vmem:[#allocation9 + $0x3b4] sm:$0xf]
    %v608 = vld [vmem:[#allocation9 + $0x3b8] sm:$0xff]
    %v609 = vld [vmem:[#allocation9 + $0x3c0] sm:$0xff]
    %v610 = vld [vmem:[#allocation9 + $0x3c8] sm:$0xff]
    %v611 = vld [vmem:[#allocation9 + $0x3d0] sm:$0xf]
    %v612 = vld [vmem:[#allocation9 + $0x3d4] sm:$0xff]
    %v613 = vld [vmem:[#allocation9 + $0x3dc] sm:$0xff]
    %v614 = vld [vmem:[#allocation9 + $0x3e4] sm:$0xff]
    %v615 = vld [vmem:[#allocation9 + $0x3ec] sm:$0xf]
    %v616 = vld [vmem:[#allocation9 + $0x3f0] sm:$0xff]
    %v617 = vld [vmem:[#allocation9 + $0x3f8] sm:$0xff]
    %v618 = vld [vmem:[#allocation9 + $0x400] sm:$0xff]
    %v619 = vld [vmem:[#allocation9 + $0x408] sm:$0xf]
    %v620 = vld [vmem:[#allocation9 + $0x40c] sm:$0xff]
    %v621 = vld [vmem:[#allocation9 + $0x414] sm:$0xff]
    %v622 = vld [vmem:[#allocation9 + $0x41c] sm:$0xff]
    %v623 = vld [vmem:[#allocation9 + $0x424] sm:$0xf]
    %v624 = vld [vmem:[#allocation9 + $0x428] sm:$0xff]
    %v625 = vld [vmem:[#allocation9 + $0x430] sm:$0xff]
    %v626 = vld [vmem:[#allocation9 + $0x438] sm:$0xff]
    %v627 = vld [vmem:[#allocation9 + $0x440] sm:$0xf]
    %v628 = vld [vmem:[#allocation9 + $0x444] sm:$0xff]
    %v629 = vld [vmem:[#allocation9 + $0x44c] sm:$0xff]
    %v630 = vld [vmem:[#allocation9 + $0x454] sm:$0xff]
    %v631 = vld [vmem:[#allocation9 + $0x45c] sm:$0xf]
    %v632 = vld [vmem:[#allocation9 + $0x460] sm:$0xff]
    %v633 = vld [vmem:[#allocation9 + $0x468] sm:$0xff]
    %v634 = vld [vmem:[#allocation9 + $0x470] sm:$0xff]
    %v635 = vld [vmem:[#allocation9 + $0x478] sm:$0xf]
    %v636 = vld [vmem:[#allocation9 + $0x47c] sm:$0xff]
    %v637 = vld [vmem:[#allocation9 + $0x484] sm:$0xff]
    %v638 = vld [vmem:[#allocation9 + $0x48c] sm:$0xff]
    %v639 = vld [vmem:[#allocation9 + $0x494] sm:$0xf]
    %v640 = vld [vmem:[#allocation9 + $0x498] sm:$0xff]
    %v641 = vld [vmem:[#allocation9 + $0x4a0] sm:$0xff]
    %v642 = vld [vmem:[#allocation9 + $0x4a8] sm:$0xff]
    %v643 = vld [vmem:[#allocation9 + $0x4b0] sm:$0xf]
    %v644 = vld [vmem:[#allocation9 + $0x4b4] sm:$0xff]
    %v645 = vld [vmem:[#allocation9 + $0x4bc] sm:$0xff]
    %v646 = vld [vmem:[#allocation9 + $0x4c4] sm:$0xff]
    %v647 = vld [vmem:[#allocation9 + $0x4cc] sm:$0xf]
    %v648 = vld [vmem:[#allocation9 + $0x4d0] sm:$0xff]
    %v649 = vld [vmem:[#allocation9 + $0x4d8] sm:$0xff]
    %v650 = vld [vmem:[#allocation9 + $0x4e0] sm:$0xff]
    %v651 = vld [vmem:[#allocation9 + $0x4e8] sm:$0xf]
    %v652 = vld [vmem:[#allocation9 + $0x4ec] sm:$0xff]
    %v653 = vld [vmem:[#allocation9 + $0x4f4] sm:$0xff]
    %v654 = vld [vmem:[#allocation9 + $0x4fc] sm:$0xff]
    %v655 = vld [vmem:[#allocation9 + $0x504] sm:$0xf]
    %v656 = vld [vmem:[#allocation9 + $0x508] sm:$0xff]
    %v657 = vld [vmem:[#allocation9 + $0x510] sm:$0xff]
    %v658 = vld [vmem:[#allocation9 + $0x518] sm:$0xff]
    %v659 = vld [vmem:[#allocation9 + $0x520] sm:$0xf]
    %v660 = vld [vmem:[#allocation9 + $0x524] sm:$0xff]
    %v661 = vld [vmem:[#allocation9 + $0x52c] sm:$0xff]
    %v662 = vld [vmem:[#allocation9 + $0x534] sm:$0xff]
    %v663 = vld [vmem:[#allocation9 + $0x53c] sm:$0xf]
    %v664 = vld [vmem:[#allocation9 + $0x540] sm:$0xff]
    %v665 = vld [vmem:[#allocation9 + $0x548] sm:$0xff]
    %v666 = vld [vmem:[#allocation9 + $0x550] sm:$0xff]
    %v667 = vld [vmem:[#allocation9 + $0x558] sm:$0xf]
    %v668 = vld [vmem:[#allocation9 + $0x55c] sm:$0xff]
    %v669 = vld [vmem:[#allocation9 + $0x564] sm:$0xff]
    %v670 = vld [vmem:[#allocation9 + $0x56c] sm:$0xff]
    %v671 = vld [vmem:[#allocation9 + $0x574] sm:$0xf]
    %v672 = vld [vmem:[#allocation9 + $0x578] sm:$0xff]
    %v673 = vld [vmem:[#allocation9 + $0x580] sm:$0xff]
    %v674 = vld [vmem:[#allocation9 + $0x588] sm:$0xff]
    %v675 = vld [vmem:[#allocation9 + $0x590] sm:$0xf]
    %v676 = vld [vmem:[#allocation9 + $0x594] sm:$0xff]
    %v677 = vld [vmem:[#allocation9 + $0x59c] sm:$0xff]
    %v678 = vld [vmem:[#allocation9 + $0x5a4] sm:$0xff]
    %v679 = vld [vmem:[#allocation9 + $0x5ac] sm:$0xf]
    %v680 = vld [vmem:[#allocation9 + $0x5b0] sm:$0xff]
    %v681 = vld [vmem:[#allocation9 + $0x5b8] sm:$0xff]
    %v682 = vld [vmem:[#allocation9 + $0x5c0] sm:$0xff]
    %v683 = vld [vmem:[#allocation9 + $0x5c8] sm:$0xf]
    %v684 = vld [vmem:[#allocation9 + $0x5cc] sm:$0xff]
    %v685 = vld [vmem:[#allocation9 + $0x5d4] sm:$0xff]
    %v686 = vld [vmem:[#allocation9 + $0x5dc] sm:$0xff]
    %v687 = vld [vmem:[#allocation9 + $0x5e4] sm:$0xf]
    %v688 = vld [vmem:[#allocation9 + $0x5e8] sm:$0xff]
    %v689 = vld [vmem:[#allocation9 + $0x5f0] sm:$0xff]
    %v690 = vld [vmem:[#allocation9 + $0x5f8] sm:$0xff]
    %v691 = vld [vmem:[#allocation9 + $0x600] sm:$0xf]
    %v692 = vld [vmem:[#allocation9 + $0x604] sm:$0xff]
    %v693 = vld [vmem:[#allocation9 + $0x60c] sm:$0xff]
    %v694 = vld [vmem:[#allocation9 + $0x614] sm:$0xff]
    %v695 = vld [vmem:[#allocation9 + $0x61c] sm:$0xf]
    %v696 = vld [vmem:[#allocation9 + $0x620] sm:$0xff]
    %v697 = vld [vmem:[#allocation9 + $0x628] sm:$0xff]
    %v698 = vld [vmem:[#allocation9 + $0x630] sm:$0xff]
    %v699 = vld [vmem:[#allocation9 + $0x638] sm:$0xf]
    %v700 = vld [vmem:[#allocation9 + $0x63c] sm:$0xff]
    %v701 = vld [vmem:[#allocation9 + $0x644] sm:$0xff]
    %v702 = vld [vmem:[#allocation9 + $0x64c] sm:$0xff]
    %v703 = vld [vmem:[#allocation9 + $0x654] sm:$0xf]
    %v704 = vld [vmem:[#allocation9 + $0x658] sm:$0xff]
    %v705 = vld [vmem:[#allocation9 + $0x660] sm:$0xff]
    %v706 = vld [vmem:[#allocation9 + $0x668] sm:$0xff]
    %v707 = vld [vmem:[#allocation9 + $0x670] sm:$0xf]
    %v708 = vld [vmem:[#allocation9 + $0x674] sm:$0xff]
    %v709 = vld [vmem:[#allocation9 + $0x67c] sm:$0xff]
    %v710 = vld [vmem:[#allocation9 + $0x684] sm:$0xff]
    %v711 = vld [vmem:[#allocation9 + $0x68c] sm:$0xf]
    %v712 = vld [vmem:[#allocation9 + $0x690] sm:$0xff]
    %v713 = vld [vmem:[#allocation9 + $0x698] sm:$0xff]
    %v714 = vld [vmem:[#allocation9 + $0x6a0] sm:$0xff]
    %v715 = vld [vmem:[#allocation9 + $0x6a8] sm:$0xf]
    %v716 = vld [vmem:[#allocation9 + $0x6ac] sm:$0xff]
    %v717 = vld [vmem:[#allocation9 + $0x6b4] sm:$0xff]
    %v718 = vld [vmem:[#allocation9 + $0x6bc] sm:$0xff]
    %v719 = vld [vmem:[#allocation9 + $0x6c4] sm:$0xf]
    %v720 = vld [vmem:[#allocation9 + $0x6c8] sm:$0xff]
    %v721 = vld [vmem:[#allocation9 + $0x6d0] sm:$0xff]
    %v722 = vld [vmem:[#allocation9 + $0x6d8] sm:$0xff]
    %v723 = vld [vmem:[#allocation9 + $0x6e0] sm:$0xf]
    %v724 = vld [vmem:[#allocation9 + $0x6e4] sm:$0xff]
    %v725 = vld [vmem:[#allocation9 + $0x6ec] sm:$0xff]
    %v726 = vld [vmem:[#allocation9 + $0x6f4] sm:$0xff]
    %v727 = vld [vmem:[#allocation9 + $0x6fc] sm:$0xf]
    %v728 = vld [vmem:[#allocation9 + $0x700] sm:$0xff]
    %v729 = vld [vmem:[#allocation9 + $0x708] sm:$0xff]
    %v730 = vld [vmem:[#allocation9 + $0x710] sm:$0xff]
    %v731 = vld [vmem:[#allocation9 + $0x718] sm:$0xf]
    %v732 = vld [vmem:[#allocation9 + $0x71c] sm:$0xff]
    %v733 = vld [vmem:[#allocation9 + $0x724] sm:$0xff]
    %v734 = vld [vmem:[#allocation9 + $0x72c] sm:$0xff]
    %v735 = vld [vmem:[#allocation9 + $0x734] sm:$0xf]
    %v736 = vld [vmem:[#allocation9 + $0x738] sm:$0xff]
    %v737 = vld [vmem:[#allocation9 + $0x740] sm:$0xff]
    %v738 = vld [vmem:[#allocation9 + $0x748] sm:$0xff]
    %v739 = vld [vmem:[#allocation9 + $0x750] sm:$0xf]
    %v740 = vld [vmem:[#allocation9 + $0x754] sm:$0xff]
    %v741 = vld [vmem:[#allocation9 + $0x75c] sm:$0xff]
    %v742 = vld [vmem:[#allocation9 + $0x764] sm:$0xff]
    %v743 = vld [vmem:[#allocation9 + $0x76c] sm:$0xf]
    %v744 = vld [vmem:[#allocation9 + $0x770] sm:$0xff]
    %v745 = vld [vmem:[#allocation9 + $0x778] sm:$0xff]
    %v746 = vld [vmem:[#allocation9 + $0x780] sm:$0xff]
    %v747 = vld [vmem:[#allocation9 + $0x788] sm:$0xf]
    %v748 = vld [vmem:[#allocation9 + $0x78c] sm:$0xff]
    %v749 = vld [vmem:[#allocation9 + $0x794] sm:$0xff]
    %v750 = vld [vmem:[#allocation9 + $0x79c] sm:$0xff]
    %v751 = vld [vmem:[#allocation9 + $0x7a4] sm:$0xf]
    %v752 = vld [vmem:[#allocation9 + $0x7a8] sm:$0xff]
    %v753 = vld [vmem:[#allocation9 + $0x7b0] sm:$0xff]
    %v754 = vld [vmem:[#allocation9 + $0x7b8] sm:$0xff]
    %v755 = vld [vmem:[#allocation9 + $0x7c0] sm:$0xf]
    %v756 = vld [vmem:[#allocation9 + $0x7c4] sm:$0xff]
    %v757 = vld [vmem:[#allocation9 + $0x7cc] sm:$0xff]
    %v758 = vld [vmem:[#allocation9 + $0x7d4] sm:$0xff]
    %v759 = vld [vmem:[#allocation9 + $0x7dc] sm:$0xf]
    %v760 = vld [vmem:[#allocation9 + $0x7e0] sm:$0xff]
    %v761 = vld [vmem:[#allocation9 + $0x7e8] sm:$0xff]
    %v762 = vld [vmem:[#allocation9 + $0x7f0] sm:$0xff]
    %v763 = vld [vmem:[#allocation9 + $0x7f8] sm:$0xf]
    %v764 = vld [vmem:[#allocation9 + $0x7fc] sm:$0xff]
    %v765 = vld [vmem:[#allocation9 + $0x804] sm:$0xff]
    %v766 = vld [vmem:[#allocation9 + $0x80c] sm:$0xff]
    %v767 = vld [vmem:[#allocation9 + $0x814] sm:$0xf]
    %v768 = vld [vmem:[#allocation9 + $0x818] sm:$0xff]
    %v769 = vld [vmem:[#allocation9 + $0x820] sm:$0xff]
    %v770 = vld [vmem:[#allocation9 + $0x828] sm:$0xff]
    %v771 = vld [vmem:[#allocation9 + $0x830] sm:$0xf]
    %v772 = vld [vmem:[#allocation9 + $0x834] sm:$0xff]
    %v773 = vld [vmem:[#allocation9 + $0x83c] sm:$0xff]
    %v774 = vld [vmem:[#allocation9 + $0x844] sm:$0xff]
    %v775 = vld [vmem:[#allocation9 + $0x84c] sm:$0xf]
    %v776 = vld [vmem:[#allocation9 + $0x850] sm:$0xff]
    %v777 = vld [vmem:[#allocation9 + $0x858] sm:$0xff]
    %v778 = vld [vmem:[#allocation9 + $0x860] sm:$0xff]
    %v779 = vld [vmem:[#allocation9 + $0x868] sm:$0xf]
    %v780 = vld [vmem:[#allocation9 + $0x86c] sm:$0xff]
    %v781 = vld [vmem:[#allocation9 + $0x874] sm:$0xff]
    %v782 = vld [vmem:[#allocation9 + $0x87c] sm:$0xff]
    %v783 = vld [vmem:[#allocation9 + $0x884] sm:$0xf]
    %v784 = vld [vmem:[#allocation9 + $0x888] sm:$0xff]
    %v785 = vld [vmem:[#allocation9 + $0x890] sm:$0xff]
    %v786 = vld [vmem:[#allocation9 + $0x898] sm:$0xff]
    %v787 = vld [vmem:[#allocation9 + $0x8a0] sm:$0xf]
    %v788 = vld [vmem:[#allocation9 + $0x8a4] sm:$0xff]
    %v789 = vld [vmem:[#allocation9 + $0x8ac] sm:$0xff]
    %v790 = vld [vmem:[#allocation9 + $0x8b4] sm:$0xff]
    %v791 = vld [vmem:[#allocation9 + $0x8bc] sm:$0xf]
    %v792 = vld [vmem:[#allocation9 + $0x8c0] sm:$0xff]
    %v793 = vld [vmem:[#allocation9 + $0x8c8] sm:$0xff]
    %v794 = vld [vmem:[#allocation9 + $0x8d0] sm:$0xff]
    %v795 = vld [vmem:[#allocation9 + $0x8d8] sm:$0xf]
    %v796 = vld [vmem:[#allocation9 + $0x8dc] sm:$0xff]
    %v797 = vld [vmem:[#allocation9 + $0x8e4] sm:$0xff]
    %v798 = vld [vmem:[#allocation9 + $0x8ec] sm:$0xff]
    %v799 = vld [vmem:[#allocation9 + $0x8f4] sm:$0xf]
    %v800 = vld [vmem:[#allocation9 + $0x8f8] sm:$0xff]
    %v801 = vld [vmem:[#allocation9 + $0x900] sm:$0xff]
    %v802 = vld [vmem:[#allocation9 + $0x908] sm:$0xff]
    %v803 = vld [vmem:[#allocation9 + $0x910] sm:$0xf]
    %v804 = vld [vmem:[#allocation9 + $0x914] sm:$0xff]
    %v805 = vld [vmem:[#allocation9 + $0x91c] sm:$0xff]
    %v806 = vld [vmem:[#allocation9 + $0x924] sm:$0xff]
    %v807 = vld [vmem:[#allocation9 + $0x92c] sm:$0xf]
    %v808 = vld [vmem:[#allocation9 + $0x930] sm:$0xff]
    %v809 = vld [vmem:[#allocation9 + $0x938] sm:$0xff]
    %v810 = vld [vmem:[#allocation9 + $0x940] sm:$0xff]
    %v811 = vld [vmem:[#allocation9 + $0x948] sm:$0xf]
    %v812 = vld [vmem:[#allocation9 + $0x94c] sm:$0xff]
    %v813 = vld [vmem:[#allocation9 + $0x954] sm:$0xff]
    %v814 = vld [vmem:[#allocation9 + $0x95c] sm:$0xff]
    %v815 = vld [vmem:[#allocation9 + $0x964] sm:$0xf]
    %v816 = vld [vmem:[#allocation9 + $0x968] sm:$0xff]
    %v817 = vld [vmem:[#allocation9 + $0x970] sm:$0xff]
    %v818 = vld [vmem:[#allocation9 + $0x978] sm:$0xff]
    %v819 = vld [vmem:[#allocation9 + $0x980] sm:$0xf]
    %v820 = vld [vmem:[#allocation9 + $0x984] sm:$0xff]
    %v821 = vld [vmem:[#allocation9 + $0x98c] sm:$0xff]
    %v822 = vld [vmem:[#allocation9 + $0x994] sm:$0xff]
    %v823 = vld [vmem:[#allocation9 + $0x99c] sm:$0xf]
    %v824 = vld [vmem:[#allocation9 + $0x9a0] sm:$0xff]
    %v825 = vld [vmem:[#allocation9 + $0x9a8] sm:$0xff]
    %v826 = vld [vmem:[#allocation9 + $0x9b0] sm:$0xff]
    %v827 = vld [vmem:[#allocation9 + $0x9b8] sm:$0xf]
    %v828 = vld [vmem:[#allocation9 + $0x9bc] sm:$0xff]
    %v829 = vld [vmem:[#allocation9 + $0x9c4] sm:$0xff]
    %v830 = vld [vmem:[#allocation9 + $0x9cc] sm:$0xff]
    %v831 = vld [vmem:[#allocation9 + $0x9d4] sm:$0xf]
    %v832 = vld [vmem:[#allocation9 + $0x9d8] sm:$0xff]
    %v833 = vld [vmem:[#allocation9 + $0x9e0] sm:$0xff]
    %v834 = vld [vmem:[#allocation9 + $0x9e8] sm:$0xff]
    %v835 = vld [vmem:[#allocation9 + $0x9f0] sm:$0xf]
    %v836 = vld [vmem:[#allocation9 + $0x9f4] sm:$0xff]
    %v837 = vld [vmem:[#allocation9 + $0x9fc] sm:$0xff]
    %v838 = vld [vmem:[#allocation9 + $0xa04] sm:$0xff]
    %v839 = vld [vmem:[#allocation9 + $0xa0c] sm:$0xf]
    %v840 = vld [vmem:[#allocation9 + $0xa10] sm:$0xff]
    %v841 = vld [vmem:[#allocation9 + $0xa18] sm:$0xff]
    %v842 = vld [vmem:[#allocation9 + $0xa20] sm:$0xff]
    %v843 = vld [vmem:[#allocation9 + $0xa28] sm:$0xf]
    %v844 = vld [vmem:[#allocation9 + $0xa2c] sm:$0xff]
    %v845 = vld [vmem:[#allocation9 + $0xa34] sm:$0xff]
    %v846 = vld [vmem:[#allocation9 + $0xa3c] sm:$0xff]
    %v847 = vld [vmem:[#allocation9 + $0xa44] sm:$0xf]
    %v848 = vld [vmem:[#allocation9 + $0xa48] sm:$0xff]
    %v849 = vld [vmem:[#allocation9 + $0xa50] sm:$0xff]
    %v850 = vld [vmem:[#allocation9 + $0xa58] sm:$0xff]
    %v851 = vld [vmem:[#allocation9 + $0xa60] sm:$0xf]
    %v852 = vld [vmem:[#allocation9 + $0xa64] sm:$0xff]
    %v853 = vld [vmem:[#allocation9 + $0xa6c] sm:$0xff]
    %v854 = vld [vmem:[#allocation9 + $0xa74] sm:$0xff]
    %v855 = vld [vmem:[#allocation9 + $0xa7c] sm:$0xf]
    %v856 = vld [vmem:[#allocation9 + $0xa80] sm:$0xff]
    %v857 = vld [vmem:[#allocation9 + $0xa88] sm:$0xff]
    %v858 = vld [vmem:[#allocation9 + $0xa90] sm:$0xff]
    %v859 = vld [vmem:[#allocation9 + $0xa98] sm:$0xf]
    %v860 = vld [vmem:[#allocation9 + $0xa9c] sm:$0xff]
    %v861 = vld [vmem:[#allocation9 + $0xaa4] sm:$0xff]
    %v862 = vld [vmem:[#allocation9 + $0xaac] sm:$0xff]
    %v863 = vld [vmem:[#allocation9 + $0xab4] sm:$0xf]
    %v864 = vld [vmem:[#allocation9 + $0xab8] sm:$0xff]
    %v865 = vld [vmem:[#allocation9 + $0xac0] sm:$0xff]
    %v866 = vld [vmem:[#allocation9 + $0xac8] sm:$0xff]
    %v867 = vld [vmem:[#allocation9 + $0xad0] sm:$0xf]
    %v868 = vld [vmem:[#allocation9 + $0xad4] sm:$0xff]
    %v869 = vld [vmem:[#allocation9 + $0xadc] sm:$0xff]
    %v870 = vld [vmem:[#allocation9 + $0xae4] sm:$0xff]
    %v871 = vld [vmem:[#allocation9 + $0xaec] sm:$0xf]
    %v872 = vld [vmem:[#allocation9 + $0xaf0] sm:$0xff]
    %v873 = vld [vmem:[#allocation9 + $0xaf8] sm:$0xff]
    %v874 = vld [vmem:[#allocation9 + $0xb00] sm:$0xff]
    %v875 = vld [vmem:[#allocation9 + $0xb08] sm:$0xf]
    %v876 = vld [vmem:[#allocation9 + $0xb0c] sm:$0xff]
    %v877 = vld [vmem:[#allocation9 + $0xb14] sm:$0xff]
    %v878 = vld [vmem:[#allocation9 + $0xb1c] sm:$0xff]
    %v879 = vld [vmem:[#allocation9 + $0xb24] sm:$0xf]
    %v880 = vld [vmem:[#allocation9 + $0xb28] sm:$0xff]
    %v881 = vld [vmem:[#allocation9 + $0xb30] sm:$0xff]
    %v882 = vld [vmem:[#allocation9 + $0xb38] sm:$0xff]
    %v883 = vld [vmem:[#allocation9 + $0xb40] sm:$0xf]
    %v884 = vld [vmem:[#allocation9 + $0xb44] sm:$0xff]
    %v885 = vld [vmem:[#allocation9 + $0xb4c] sm:$0xff]
    %v886 = vld [vmem:[#allocation9 + $0xb54] sm:$0xff]
    %v887 = vld [vmem:[#allocation9 + $0xb5c] sm:$0xf]
    %v888 = vld [vmem:[#allocation9 + $0xb60] sm:$0xff]
    %v889 = vld [vmem:[#allocation9 + $0xb68] sm:$0xff]
    %v890 = vld [vmem:[#allocation9 + $0xb70] sm:$0xff]
    %v891 = vld [vmem:[#allocation9 + $0xb78] sm:$0xf]
    %v892 = vld [vmem:[#allocation9 + $0xb7c] sm:$0xff]
    %v893 = vld [vmem:[#allocation9 + $0xb84] sm:$0xff]
    %v894 = vld [vmem:[#allocation9 + $0xb8c] sm:$0xff]
    %v895 = vld [vmem:[#allocation9 + $0xb94] sm:$0xf]
    %v896 = vld [vmem:[#allocation9 + $0xb98] sm:$0xff]
    %v897 = vld [vmem:[#allocation9 + $0xba0] sm:$0xff]
    %v898 = vld [vmem:[#allocation9 + $0xba8] sm:$0xff]
    %v899 = vld [vmem:[#allocation9 + $0xbb0] sm:$0xf]
    %v900 = vld [vmem:[#allocation9 + $0xbb4] sm:$0xff]
    %v901 = vld [vmem:[#allocation9 + $0xbbc] sm:$0xff]
    %v902 = vld [vmem:[#allocation9 + $0xbc4] sm:$0xff]
    %v903 = vld [vmem:[#allocation9 + $0xbcc] sm:$0xf]
    %v904 = vld [vmem:[#allocation9 + $0xbd0] sm:$0xff]
    %v905 = vld [vmem:[#allocation9 + $0xbd8] sm:$0xff]
    %v906 = vld [vmem:[#allocation9 + $0xbe0] sm:$0xff]
    %v907 = vld [vmem:[#allocation9 + $0xbe8] sm:$0xf]
    %v908 = vld [vmem:[#allocation9 + $0xbec] sm:$0xff]
    %v909 = vld [vmem:[#allocation9 + $0xbf4] sm:$0xff]
    %v910 = vld [vmem:[#allocation9 + $0xbfc] sm:$0xff]
    %v911 = vld [vmem:[#allocation9 + $0xc04] sm:$0xf]
    %v912 = vld [vmem:[#allocation9 + $0xc08] sm:$0xff]
    %v913 = vld [vmem:[#allocation9 + $0xc10] sm:$0xff]
    %v914 = vld [vmem:[#allocation9 + $0xc18] sm:$0xff]
    %v915 = vld [vmem:[#allocation9 + $0xc20] sm:$0xf]
    %v916 = vld [vmem:[#allocation9 + $0xc24] sm:$0xff]
    %v917 = vld [vmem:[#allocation9 + $0xc2c] sm:$0xff]
    %v918 = vld [vmem:[#allocation9 + $0xc34] sm:$0xff]
    %v919 = vld [vmem:[#allocation9 + $0xc3c] sm:$0xf]
    %v920 = vld [vmem:[#allocation9 + $0xc40] sm:$0xff]
    %v921 = vld [vmem:[#allocation9 + $0xc48] sm:$0xff]
    %v922 = vld [vmem:[#allocation9 + $0xc50] sm:$0xff]
    %v923 = vld [vmem:[#allocation9 + $0xc58] sm:$0xf]
    %v924 = vld [vmem:[#allocation9 + $0xc5c] sm:$0xff]
    %v925 = vld [vmem:[#allocation9 + $0xc64] sm:$0xff]
    %v926 = vld [vmem:[#allocation9 + $0xc6c] sm:$0xff]
    %v927 = vld [vmem:[#allocation9 + $0xc74] sm:$0xf]
    %v928 = vld [vmem:[#allocation9 + $0xc78] sm:$0xff]
    %v929 = vld [vmem:[#allocation9 + $0xc80] sm:$0xff]
    %v930 = vld [vmem:[#allocation9 + $0xc88] sm:$0xff]
    %v931 = vld [vmem:[#allocation9 + $0xc90] sm:$0xf]
    %v932 = vld [vmem:[#allocation9 + $0xc94] sm:$0xff]
    %v933 = vld [vmem:[#allocation9 + $0xc9c] sm:$0xff]
    %v934 = vld [vmem:[#allocation9 + $0xca4] sm:$0xff]
    %v935 = vld [vmem:[#allocation9 + $0xcac] sm:$0xf]
    %v936 = vld [vmem:[#allocation9 + $0xcb0] sm:$0xff]
    %v937 = vld [vmem:[#allocation9 + $0xcb8] sm:$0xff]
    %v938 = vld [vmem:[#allocation9 + $0xcc0] sm:$0xff]
    %v939 = vld [vmem:[#allocation9 + $0xcc8] sm:$0xf]
    %v940 = vld [vmem:[#allocation9 + $0xccc] sm:$0xff]
    %v941 = vld [vmem:[#allocation9 + $0xcd4] sm:$0xff]
    %v942 = vld [vmem:[#allocation9 + $0xcdc] sm:$0xff]
    %v943 = vld [vmem:[#allocation9 + $0xce4] sm:$0xf]
    %v944 = vld [vmem:[#allocation9 + $0xce8] sm:$0xff]
    %v945 = vld [vmem:[#allocation9 + $0xcf0] sm:$0xff]
    %v946 = vld [vmem:[#allocation9 + $0xcf8] sm:$0xff]
    %v947 = vld [vmem:[#allocation9 + $0xd00] sm:$0xf]
    %v948 = vld [vmem:[#allocation9 + $0xd04] sm:$0xff]
    %v949 = vld [vmem:[#allocation9 + $0xd0c] sm:$0xff]
    %v950 = vld [vmem:[#allocation9 + $0xd14] sm:$0xff]
    %v951 = vld [vmem:[#allocation9 + $0xd1c] sm:$0xf]
    %v952 = vld [vmem:[#allocation9 + $0xd20] sm:$0xff]
    %v953 = vld [vmem:[#allocation9 + $0xd28] sm:$0xff]
    %v954 = vld [vmem:[#allocation9 + $0xd30] sm:$0xff]
    %v955 = vld [vmem:[#allocation9 + $0xd38] sm:$0xf]
    %v956 = vld [vmem:[#allocation9 + $0xd3c] sm:$0xff]
    %v957 = vld [vmem:[#allocation9 + $0xd44] sm:$0xff]
    %v958 = vld [vmem:[#allocation9 + $0xd4c] sm:$0xff]
    %v959 = vld [vmem:[#allocation9 + $0xd54] sm:$0xf]
    %v960 = vld [vmem:[#allocation9 + $0xd58] sm:$0xff]
    %v961 = vld [vmem:[#allocation9 + $0xd60] sm:$0xff]
    %v962 = vld [vmem:[#allocation9 + $0xd68] sm:$0xff]
    %v963 = vld [vmem:[#allocation9 + $0xd70] sm:$0xf]
    %v964 = vld [vmem:[#allocation9 + $0xd74] sm:$0xff]
    %v965 = vld [vmem:[#allocation9 + $0xd7c] sm:$0xff]
    %v966 = vld [vmem:[#allocation9 + $0xd84] sm:$0xff]
    %v967 = vld [vmem:[#allocation9 + $0xd8c] sm:$0xf]
    %v968 = vld [vmem:[#allocation9 + $0xd90] sm:$0xff]
    %v969 = vld [vmem:[#allocation9 + $0xd98] sm:$0xff]
    %v970 = vld [vmem:[#allocation9 + $0xda0] sm:$0xff]
    %v971 = vld [vmem:[#allocation9 + $0xda8] sm:$0xf]
    %v972 = vld [vmem:[#allocation9 + $0xdac] sm:$0xff]
    %v973 = vld [vmem:[#allocation9 + $0xdb4] sm:$0xff]
    %v974 = vld [vmem:[#allocation9 + $0xdbc] sm:$0xff]
    %v975 = vld [vmem:[#allocation9 + $0xdc4] sm:$0xf]
    %v976 = vld [vmem:[#allocation9 + $0xdc8] sm:$0xff]
    %v977 = vld [vmem:[#allocation9 + $0xdd0] sm:$0xff]
    %v978 = vld [vmem:[#allocation9 + $0xdd8] sm:$0xff]
    %v979 = vld [vmem:[#allocation9 + $0xde0] sm:$0xf]
    %v980 = vld [vmem:[#allocation9 + $0xde4] sm:$0xff]
    %v981 = vld [vmem:[#allocation9 + $0xdec] sm:$0xff]
    %v982 = vld [vmem:[#allocation9 + $0xdf4] sm:$0xff]
    %v983 = vld [vmem:[#allocation9 + $0xdfc] sm:$0xf]
    %v984 = vpack.c.bf16 %v464, %v464
    %v985 = vpack.c.bf16 %v465, %v465
    %v986 = vpack.c.bf16 %v466, %v466
    %v987 = vpack.c.bf16 %v467, %v467
    %v988 = vpack.c.bf16 %v468, %v468
    %v989 = vpack.c.bf16 %v469, %v469
    %v990 = vpack.c.bf16 %v470, %v470
    %v991 = vpack.c.bf16 %v471, %v471
    %v992 = vld [vmem:[#allocation6 + $0x8] sm:$0xff]
    %v994 = vperm.slane %v992, 0
    %v995 = vperm.slane %v992, 1
    %v996 = vperm.slane %v992, 2
    %v997 = vperm.slane %v992, 3
    %v998 = vperm.slane %v992, 4
    %v999 = vperm.slane %v992, 5
    %v1000 = vperm.slane %v992, 6
    %v1520 = vunpack.c.l.b16 %v472
    %v1521 = vunpack.c.h.b16 %v472
    %v1522 = vunpack.c.l.b16 %v473
    %v1523 = vunpack.c.h.b16 %v473
    %v1524 = vunpack.c.l.b16 %v474
    %v1525 = vunpack.c.h.b16 %v474
    %v1526 = vunpack.c.l.b16 %v475
    %v1527 = vunpack.c.l.b16 %v476
    %v1528 = vunpack.c.h.b16 %v476
    %v1529 = vunpack.c.l.b16 %v477
    %v1530 = vunpack.c.h.b16 %v477
    %v1531 = vunpack.c.l.b16 %v478
    %v1532 = vunpack.c.h.b16 %v478
    %v1533 = vunpack.c.l.b16 %v479
    %v1534 = vunpack.c.l.b16 %v480
    %v1535 = vunpack.c.h.b16 %v480
    %v1536 = vunpack.c.l.b16 %v481
    %v1537 = vunpack.c.h.b16 %v481
    %v1538 = vunpack.c.l.b16 %v482
    %v1539 = vunpack.c.h.b16 %v482
    %v1540 = vunpack.c.l.b16 %v483
    %v1541 = vunpack.c.l.b16 %v484
    %v1542 = vunpack.c.h.b16 %v484
    %v1543 = vunpack.c.l.b16 %v485
    %v1544 = vunpack.c.h.b16 %v485
    %v1545 = vunpack.c.l.b16 %v486
    %v1546 = vunpack.c.h.b16 %v486
    %v1547 = vunpack.c.l.b16 %v487
    %v1548 = vunpack.c.l.b16 %v488
    %v1549 = vunpack.c.h.b16 %v488
    %v1550 = vunpack.c.l.b16 %v489
    %v1551 = vunpack.c.h.b16 %v489
    %v1552 = vunpack.c.l.b16 %v490
    %v1553 = vunpack.c.h.b16 %v490
    %v1554 = vunpack.c.l.b16 %v491
    %v1555 = vunpack.c.l.b16 %v492
    %v1556 = vunpack.c.h.b16 %v492
    %v1557 = vunpack.c.l.b16 %v493
    %v1558 = vunpack.c.h.b16 %v493
    %v1559 = vunpack.c.l.b16 %v494
    %v1560 = vunpack.c.h.b16 %v494
    %v1561 = vunpack.c.l.b16 %v495
    %v1562 = vunpack.c.l.b16 %v496
    %v1563 = vunpack.c.h.b16 %v496
    %v1564 = vunpack.c.l.b16 %v497
    %v1565 = vunpack.c.h.b16 %v497
    %v1566 = vunpack.c.l.b16 %v498
    %v1567 = vunpack.c.h.b16 %v498
    %v1568 = vunpack.c.l.b16 %v499
    %v1569 = vunpack.c.l.b16 %v500
    %v1570 = vunpack.c.h.b16 %v500
    %v1571 = vunpack.c.l.b16 %v501
    %v1572 = vunpack.c.h.b16 %v501
    %v1573 = vunpack.c.l.b16 %v502
    %v1574 = vunpack.c.h.b16 %v502
    %v1575 = vunpack.c.l.b16 %v503
    %v1576 = vunpack.c.l.b16 %v504
    %v1577 = vunpack.c.h.b16 %v504
    %v1578 = vunpack.c.l.b16 %v505
    %v1579 = vunpack.c.h.b16 %v505
    %v1580 = vunpack.c.l.b16 %v506
    %v1581 = vunpack.c.h.b16 %v506
    %v1582 = vunpack.c.l.b16 %v507
    %v1583 = vunpack.c.l.b16 %v508
    %v1584 = vunpack.c.h.b16 %v508
    %v1585 = vunpack.c.l.b16 %v509
    %v1586 = vunpack.c.h.b16 %v509
    %v1587 = vunpack.c.l.b16 %v510
    %v1588 = vunpack.c.h.b16 %v510
    %v1589 = vunpack.c.l.b16 %v511
    %v1590 = vunpack.c.l.b16 %v512
    %v1591 = vunpack.c.h.b16 %v512
    %v1592 = vunpack.c.l.b16 %v513
    %v1593 = vunpack.c.h.b16 %v513
    %v1594 = vunpack.c.l.b16 %v514
    %v1595 = vunpack.c.h.b16 %v514
    %v1596 = vunpack.c.l.b16 %v515
    %v1597 = vunpack.c.l.b16 %v516
    %v1598 = vunpack.c.h.b16 %v516
    %v1599 = vunpack.c.l.b16 %v517
    %v1600 = vunpack.c.h.b16 %v517
    %v1601 = vunpack.c.l.b16 %v518
    %v1602 = vunpack.c.h.b16 %v518
    %v1603 = vunpack.c.l.b16 %v519
    %v1604 = vunpack.c.l.b16 %v520
    %v1605 = vunpack.c.h.b16 %v520
    %v1606 = vunpack.c.l.b16 %v521
    %v1607 = vunpack.c.h.b16 %v521
    %v1608 = vunpack.c.l.b16 %v522
    %v1609 = vunpack.c.h.b16 %v522
    %v1610 = vunpack.c.l.b16 %v523
    %v1611 = vunpack.c.l.b16 %v524
    %v1612 = vunpack.c.h.b16 %v524
    %v1613 = vunpack.c.l.b16 %v525
    %v1614 = vunpack.c.h.b16 %v525
    %v1615 = vunpack.c.l.b16 %v526
    %v1616 = vunpack.c.h.b16 %v526
    %v1617 = vunpack.c.l.b16 %v527
    %v1618 = vunpack.c.l.b16 %v528
    %v1619 = vunpack.c.h.b16 %v528
    %v1620 = vunpack.c.l.b16 %v529
    %v1621 = vunpack.c.h.b16 %v529
    %v1622 = vunpack.c.l.b16 %v530
    %v1623 = vunpack.c.h.b16 %v530
    %v1624 = vunpack.c.l.b16 %v531
    %v1625 = vunpack.c.l.b16 %v532
    %v1626 = vunpack.c.h.b16 %v532
    %v1627 = vunpack.c.l.b16 %v533
    %v1628 = vunpack.c.h.b16 %v533
    %v1629 = vunpack.c.l.b16 %v534
    %v1630 = vunpack.c.h.b16 %v534
    %v1631 = vunpack.c.l.b16 %v535
    %v1632 = vunpack.c.l.b16 %v536
    %v1633 = vunpack.c.h.b16 %v536
    %v1634 = vunpack.c.l.b16 %v537
    %v1635 = vunpack.c.h.b16 %v537
    %v1636 = vunpack.c.l.b16 %v538
    %v1637 = vunpack.c.h.b16 %v538
    %v1638 = vunpack.c.l.b16 %v539
    %v1639 = vunpack.c.l.b16 %v540
    %v1640 = vunpack.c.h.b16 %v540
    %v1641 = vunpack.c.l.b16 %v541
    %v1642 = vunpack.c.h.b16 %v541
    %v1643 = vunpack.c.l.b16 %v542
    %v1644 = vunpack.c.h.b16 %v542
    %v1645 = vunpack.c.l.b16 %v543
    %v1646 = vunpack.c.l.b16 %v544
    %v1647 = vunpack.c.h.b16 %v544
    %v1648 = vunpack.c.l.b16 %v545
    %v1649 = vunpack.c.h.b16 %v545
    %v1650 = vunpack.c.l.b16 %v546
    %v1651 = vunpack.c.h.b16 %v546
    %v1652 = vunpack.c.l.b16 %v547
    %v1653 = vunpack.c.l.b16 %v548
    %v1654 = vunpack.c.h.b16 %v548
    %v1655 = vunpack.c.l.b16 %v549
    %v1656 = vunpack.c.h.b16 %v549
    %v1657 = vunpack.c.l.b16 %v550
    %v1658 = vunpack.c.h.b16 %v550
    %v1659 = vunpack.c.l.b16 %v551
    %v1660 = vunpack.c.l.b16 %v552
    %v1661 = vunpack.c.h.b16 %v552
    %v1662 = vunpack.c.l.b16 %v553
    %v1663 = vunpack.c.h.b16 %v553
    %v1664 = vunpack.c.l.b16 %v554
    %v1665 = vunpack.c.h.b16 %v554
    %v1666 = vunpack.c.l.b16 %v555
    %v1667 = vunpack.c.l.b16 %v556
    %v1668 = vunpack.c.h.b16 %v556
    %v1669 = vunpack.c.l.b16 %v557
    %v1670 = vunpack.c.h.b16 %v557
    %v1671 = vunpack.c.l.b16 %v558
    %v1672 = vunpack.c.h.b16 %v558
    %v1673 = vunpack.c.l.b16 %v559
    %v1674 = vunpack.c.l.b16 %v560
    %v1675 = vunpack.c.h.b16 %v560
    %v1676 = vunpack.c.l.b16 %v561
    %v1677 = vunpack.c.h.b16 %v561
    %v1678 = vunpack.c.l.b16 %v562
    %v1679 = vunpack.c.h.b16 %v562
    %v1680 = vunpack.c.l.b16 %v563
    %v1681 = vunpack.c.l.b16 %v564
    %v1682 = vunpack.c.h.b16 %v564
    %v1683 = vunpack.c.l.b16 %v565
    %v1684 = vunpack.c.h.b16 %v565
    %v1685 = vunpack.c.l.b16 %v566
    %v1686 = vunpack.c.h.b16 %v566
    %v1687 = vunpack.c.l.b16 %v567
    %v1688 = vunpack.c.l.b16 %v568
    %v1689 = vunpack.c.h.b16 %v568
    %v1690 = vunpack.c.l.b16 %v569
    %v1691 = vunpack.c.h.b16 %v569
    %v1692 = vunpack.c.l.b16 %v570
    %v1693 = vunpack.c.h.b16 %v570
    %v1694 = vunpack.c.l.b16 %v571
    %v1695 = vunpack.c.l.b16 %v572
    %v1696 = vunpack.c.h.b16 %v572
    %v1697 = vunpack.c.l.b16 %v573
    %v1698 = vunpack.c.h.b16 %v573
    %v1699 = vunpack.c.l.b16 %v574
    %v1700 = vunpack.c.h.b16 %v574
    %v1701 = vunpack.c.l.b16 %v575
    %v1702 = vunpack.c.l.b16 %v576
    %v1703 = vunpack.c.h.b16 %v576
    %v1704 = vunpack.c.l.b16 %v577
    %v1705 = vunpack.c.h.b16 %v577
    %v1706 = vunpack.c.l.b16 %v578
    %v1707 = vunpack.c.h.b16 %v578
    %v1708 = vunpack.c.l.b16 %v579
    %v1709 = vunpack.c.l.b16 %v580
    %v1710 = vunpack.c.h.b16 %v580
    %v1711 = vunpack.c.l.b16 %v581
    %v1712 = vunpack.c.h.b16 %v581
    %v1713 = vunpack.c.l.b16 %v582
    %v1714 = vunpack.c.h.b16 %v582
    %v1715 = vunpack.c.l.b16 %v583
    %v1716 = vunpack.c.l.b16 %v584
    %v1717 = vunpack.c.h.b16 %v584
    %v1718 = vunpack.c.l.b16 %v585
    %v1719 = vunpack.c.h.b16 %v585
    %v1720 = vunpack.c.l.b16 %v586
    %v1721 = vunpack.c.h.b16 %v586
    %v1722 = vunpack.c.l.b16 %v587
    %v1723 = vunpack.c.l.b16 %v588
    %v1724 = vunpack.c.h.b16 %v588
    %v1725 = vunpack.c.l.b16 %v589
    %v1726 = vunpack.c.h.b16 %v589
    %v1727 = vunpack.c.l.b16 %v590
    %v1728 = vunpack.c.h.b16 %v590
    %v1729 = vunpack.c.l.b16 %v591
    %v1730 = vunpack.c.l.b16 %v592
    %v1731 = vunpack.c.h.b16 %v592
    %v1732 = vunpack.c.l.b16 %v593
    %v1733 = vunpack.c.h.b16 %v593
    %v1734 = vunpack.c.l.b16 %v594
    %v1735 = vunpack.c.h.b16 %v594
    %v1736 = vunpack.c.l.b16 %v595
    %v1737 = vunpack.c.l.b16 %v596
    %v1738 = vunpack.c.h.b16 %v596
    %v1739 = vunpack.c.l.b16 %v597
    %v1740 = vunpack.c.h.b16 %v597
    %v1741 = vunpack.c.l.b16 %v598
    %v1742 = vunpack.c.h.b16 %v598
    %v1743 = vunpack.c.l.b16 %v599
    %v1744 = vunpack.c.l.b16 %v600
    %v1745 = vunpack.c.h.b16 %v600
    %v1746 = vunpack.c.l.b16 %v601
    %v1747 = vunpack.c.h.b16 %v601
    %v1748 = vunpack.c.l.b16 %v602
    %v1749 = vunpack.c.h.b16 %v602
    %v1750 = vunpack.c.l.b16 %v603
    %v1751 = vunpack.c.l.b16 %v604
    %v1752 = vunpack.c.h.b16 %v604
    %v1753 = vunpack.c.l.b16 %v605
    %v1754 = vunpack.c.h.b16 %v605
    %v1755 = vunpack.c.l.b16 %v606
    %v1756 = vunpack.c.h.b16 %v606
    %v1757 = vunpack.c.l.b16 %v607
    %v1758 = vunpack.c.l.b16 %v608
    %v1759 = vunpack.c.h.b16 %v608
    %v1760 = vunpack.c.l.b16 %v609
    %v1761 = vunpack.c.h.b16 %v609
    %v1762 = vunpack.c.l.b16 %v610
    %v1763 = vunpack.c.h.b16 %v610
    %v1764 = vunpack.c.l.b16 %v611
    %v1765 = vunpack.c.l.b16 %v612
    %v1766 = vunpack.c.h.b16 %v612
    %v1767 = vunpack.c.l.b16 %v613
    %v1768 = vunpack.c.h.b16 %v613
    %v1769 = vunpack.c.l.b16 %v614
    %v1770 = vunpack.c.h.b16 %v614
    %v1771 = vunpack.c.l.b16 %v615
    %v1772 = vunpack.c.l.b16 %v616
    %v1773 = vunpack.c.h.b16 %v616
    %v1774 = vunpack.c.l.b16 %v617
    %v1775 = vunpack.c.h.b16 %v617
    %v1776 = vunpack.c.l.b16 %v618
    %v1777 = vunpack.c.h.b16 %v618
    %v1778 = vunpack.c.l.b16 %v619
    %v1779 = vunpack.c.l.b16 %v620
    %v1780 = vunpack.c.h.b16 %v620
    %v1781 = vunpack.c.l.b16 %v621
    %v1782 = vunpack.c.h.b16 %v621
    %v1783 = vunpack.c.l.b16 %v622
    %v1784 = vunpack.c.h.b16 %v622
    %v1785 = vunpack.c.l.b16 %v623
    %v1786 = vunpack.c.l.b16 %v624
    %v1787 = vunpack.c.h.b16 %v624
    %v1788 = vunpack.c.l.b16 %v625
    %v1789 = vunpack.c.h.b16 %v625
    %v1790 = vunpack.c.l.b16 %v626
    %v1791 = vunpack.c.h.b16 %v626
    %v1792 = vunpack.c.l.b16 %v627
    %v1793 = vunpack.c.l.b16 %v628
    %v1794 = vunpack.c.h.b16 %v628
    %v1795 = vunpack.c.l.b16 %v629
    %v1796 = vunpack.c.h.b16 %v629
    %v1797 = vunpack.c.l.b16 %v630
    %v1798 = vunpack.c.h.b16 %v630
    %v1799 = vunpack.c.l.b16 %v631
    %v1800 = vunpack.c.l.b16 %v632
    %v1801 = vunpack.c.h.b16 %v632
    %v1802 = vunpack.c.l.b16 %v633
    %v1803 = vunpack.c.h.b16 %v633
    %v1804 = vunpack.c.l.b16 %v634
    %v1805 = vunpack.c.h.b16 %v634
    %v1806 = vunpack.c.l.b16 %v635
    %v1807 = vunpack.c.l.b16 %v636
    %v1808 = vunpack.c.h.b16 %v636
    %v1809 = vunpack.c.l.b16 %v637
    %v1810 = vunpack.c.h.b16 %v637
    %v1811 = vunpack.c.l.b16 %v638
    %v1812 = vunpack.c.h.b16 %v638
    %v1813 = vunpack.c.l.b16 %v639
    %v1814 = vunpack.c.l.b16 %v640
    %v1815 = vunpack.c.h.b16 %v640
    %v1816 = vunpack.c.l.b16 %v641
    %v1817 = vunpack.c.h.b16 %v641
    %v1818 = vunpack.c.l.b16 %v642
    %v1819 = vunpack.c.h.b16 %v642
    %v1820 = vunpack.c.l.b16 %v643
    %v1821 = vunpack.c.l.b16 %v644
    %v1822 = vunpack.c.h.b16 %v644
    %v1823 = vunpack.c.l.b16 %v645
    %v1824 = vunpack.c.h.b16 %v645
    %v1825 = vunpack.c.l.b16 %v646
    %v1826 = vunpack.c.h.b16 %v646
    %v1827 = vunpack.c.l.b16 %v647
    %v1828 = vunpack.c.l.b16 %v648
    %v1829 = vunpack.c.h.b16 %v648
    %v1830 = vunpack.c.l.b16 %v649
    %v1831 = vunpack.c.h.b16 %v649
    %v1832 = vunpack.c.l.b16 %v650
    %v1833 = vunpack.c.h.b16 %v650
    %v1834 = vunpack.c.l.b16 %v651
    %v1835 = vunpack.c.l.b16 %v652
    %v1836 = vunpack.c.h.b16 %v652
    %v1837 = vunpack.c.l.b16 %v653
    %v1838 = vunpack.c.h.b16 %v653
    %v1839 = vunpack.c.l.b16 %v654
    %v1840 = vunpack.c.h.b16 %v654
    %v1841 = vunpack.c.l.b16 %v655
    %v1842 = vunpack.c.l.b16 %v656
    %v1843 = vunpack.c.h.b16 %v656
    %v1844 = vunpack.c.l.b16 %v657
    %v1845 = vunpack.c.h.b16 %v657
    %v1846 = vunpack.c.l.b16 %v658
    %v1847 = vunpack.c.h.b16 %v658
    %v1848 = vunpack.c.l.b16 %v659
    %v1849 = vunpack.c.l.b16 %v660
    %v1850 = vunpack.c.h.b16 %v660
    %v1851 = vunpack.c.l.b16 %v661
    %v1852 = vunpack.c.h.b16 %v661
    %v1853 = vunpack.c.l.b16 %v662
    %v1854 = vunpack.c.h.b16 %v662
    %v1855 = vunpack.c.l.b16 %v663
    %v1856 = vunpack.c.l.b16 %v664
    %v1857 = vunpack.c.h.b16 %v664
    %v1858 = vunpack.c.l.b16 %v665
    %v1859 = vunpack.c.h.b16 %v665
    %v1860 = vunpack.c.l.b16 %v666
    %v1861 = vunpack.c.h.b16 %v666
    %v1862 = vunpack.c.l.b16 %v667
    %v1863 = vunpack.c.l.b16 %v668
    %v1864 = vunpack.c.h.b16 %v668
    %v1865 = vunpack.c.l.b16 %v669
    %v1866 = vunpack.c.h.b16 %v669
    %v1867 = vunpack.c.l.b16 %v670
    %v1868 = vunpack.c.h.b16 %v670
    %v1869 = vunpack.c.l.b16 %v671
    %v1870 = vunpack.c.l.b16 %v672
    %v1871 = vunpack.c.h.b16 %v672
    %v1872 = vunpack.c.l.b16 %v673
    %v1873 = vunpack.c.h.b16 %v673
    %v1874 = vunpack.c.l.b16 %v674
    %v1875 = vunpack.c.h.b16 %v674
    %v1876 = vunpack.c.l.b16 %v675
    %v1877 = vunpack.c.l.b16 %v676
    %v1878 = vunpack.c.h.b16 %v676
    %v1879 = vunpack.c.l.b16 %v677
    %v1880 = vunpack.c.h.b16 %v677
    %v1881 = vunpack.c.l.b16 %v678
    %v1882 = vunpack.c.h.b16 %v678
    %v1883 = vunpack.c.l.b16 %v679
    %v1884 = vunpack.c.l.b16 %v680
    %v1885 = vunpack.c.h.b16 %v680
    %v1886 = vunpack.c.l.b16 %v681
    %v1887 = vunpack.c.h.b16 %v681
    %v1888 = vunpack.c.l.b16 %v682
    %v1889 = vunpack.c.h.b16 %v682
    %v1890 = vunpack.c.l.b16 %v683
    %v1891 = vunpack.c.l.b16 %v684
    %v1892 = vunpack.c.h.b16 %v684
    %v1893 = vunpack.c.l.b16 %v685
    %v1894 = vunpack.c.h.b16 %v685
    %v1895 = vunpack.c.l.b16 %v686
    %v1896 = vunpack.c.h.b16 %v686
    %v1897 = vunpack.c.l.b16 %v687
    %v1898 = vunpack.c.l.b16 %v688
    %v1899 = vunpack.c.h.b16 %v688
    %v1900 = vunpack.c.l.b16 %v689
    %v1901 = vunpack.c.h.b16 %v689
    %v1902 = vunpack.c.l.b16 %v690
    %v1903 = vunpack.c.h.b16 %v690
    %v1904 = vunpack.c.l.b16 %v691
    %v1905 = vunpack.c.l.b16 %v692
    %v1906 = vunpack.c.h.b16 %v692
    %v1907 = vunpack.c.l.b16 %v693
    %v1908 = vunpack.c.h.b16 %v693
    %v1909 = vunpack.c.l.b16 %v694
    %v1910 = vunpack.c.h.b16 %v694
    %v1911 = vunpack.c.l.b16 %v695
    %v1912 = vunpack.c.l.b16 %v696
    %v1913 = vunpack.c.h.b16 %v696
    %v1914 = vunpack.c.l.b16 %v697
    %v1915 = vunpack.c.h.b16 %v697
    %v1916 = vunpack.c.l.b16 %v698
    %v1917 = vunpack.c.h.b16 %v698
    %v1918 = vunpack.c.l.b16 %v699
    %v1919 = vunpack.c.l.b16 %v700
    %v1920 = vunpack.c.h.b16 %v700
    %v1921 = vunpack.c.l.b16 %v701
    %v1922 = vunpack.c.h.b16 %v701
    %v1923 = vunpack.c.l.b16 %v702
    %v1924 = vunpack.c.h.b16 %v702
    %v1925 = vunpack.c.l.b16 %v703
    %v1926 = vunpack.c.l.b16 %v704
    %v1927 = vunpack.c.h.b16 %v704
    %v1928 = vunpack.c.l.b16 %v705
    %v1929 = vunpack.c.h.b16 %v705
    %v1930 = vunpack.c.l.b16 %v706
    %v1931 = vunpack.c.h.b16 %v706
    %v1932 = vunpack.c.l.b16 %v707
    %v1933 = vunpack.c.l.b16 %v708
    %v1934 = vunpack.c.h.b16 %v708
    %v1935 = vunpack.c.l.b16 %v709
    %v1936 = vunpack.c.h.b16 %v709
    %v1937 = vunpack.c.l.b16 %v710
    %v1938 = vunpack.c.h.b16 %v710
    %v1939 = vunpack.c.l.b16 %v711
    %v1940 = vunpack.c.l.b16 %v712
    %v1941 = vunpack.c.h.b16 %v712
    %v1942 = vunpack.c.l.b16 %v713
    %v1943 = vunpack.c.h.b16 %v713
    %v1944 = vunpack.c.l.b16 %v714
    %v1945 = vunpack.c.h.b16 %v714
    %v1946 = vunpack.c.l.b16 %v715
    %v1947 = vunpack.c.l.b16 %v716
    %v1948 = vunpack.c.h.b16 %v716
    %v1949 = vunpack.c.l.b16 %v717
    %v1950 = vunpack.c.h.b16 %v717
    %v1951 = vunpack.c.l.b16 %v718
    %v1952 = vunpack.c.h.b16 %v718
    %v1953 = vunpack.c.l.b16 %v719
    %v1954 = vunpack.c.l.b16 %v720
    %v1955 = vunpack.c.h.b16 %v720
    %v1956 = vunpack.c.l.b16 %v721
    %v1957 = vunpack.c.h.b16 %v721
    %v1958 = vunpack.c.l.b16 %v722
    %v1959 = vunpack.c.h.b16 %v722
    %v1960 = vunpack.c.l.b16 %v723
    %v1961 = vunpack.c.l.b16 %v724
    %v1962 = vunpack.c.h.b16 %v724
    %v1963 = vunpack.c.l.b16 %v725
    %v1964 = vunpack.c.h.b16 %v725
    %v1965 = vunpack.c.l.b16 %v726
    %v1966 = vunpack.c.h.b16 %v726
    %v1967 = vunpack.c.l.b16 %v727
    %v1968 = vunpack.c.l.b16 %v728
    %v1969 = vunpack.c.h.b16 %v728
    %v1970 = vunpack.c.l.b16 %v729
    %v1971 = vunpack.c.h.b16 %v729
    %v1972 = vunpack.c.l.b16 %v730
    %v1973 = vunpack.c.h.b16 %v730
    %v1974 = vunpack.c.l.b16 %v731
    %v1975 = vunpack.c.l.b16 %v732
    %v1976 = vunpack.c.h.b16 %v732
    %v1977 = vunpack.c.l.b16 %v733
    %v1978 = vunpack.c.h.b16 %v733
    %v1979 = vunpack.c.l.b16 %v734
    %v1980 = vunpack.c.h.b16 %v734
    %v1981 = vunpack.c.l.b16 %v735
    %v1982 = vunpack.c.l.b16 %v736
    %v1983 = vunpack.c.h.b16 %v736
    %v1984 = vunpack.c.l.b16 %v737
    %v1985 = vunpack.c.h.b16 %v737
    %v1986 = vunpack.c.l.b16 %v738
    %v1987 = vunpack.c.h.b16 %v738
    %v1988 = vunpack.c.l.b16 %v739
    %v1989 = vunpack.c.l.b16 %v740
    %v1990 = vunpack.c.h.b16 %v740
    %v1991 = vunpack.c.l.b16 %v741
    %v1992 = vunpack.c.h.b16 %v741
    %v1993 = vunpack.c.l.b16 %v742
    %v1994 = vunpack.c.h.b16 %v742
    %v1995 = vunpack.c.l.b16 %v743
    %v1996 = vunpack.c.l.b16 %v744
    %v1997 = vunpack.c.h.b16 %v744
    %v1998 = vunpack.c.l.b16 %v745
    %v1999 = vunpack.c.h.b16 %v745
    %v2000 = vunpack.c.l.b16 %v746
    %v2001 = vunpack.c.h.b16 %v746
    %v2002 = vunpack.c.l.b16 %v747
    %v2003 = vunpack.c.l.b16 %v748
    %v2004 = vunpack.c.h.b16 %v748
    %v2005 = vunpack.c.l.b16 %v749
    %v2006 = vunpack.c.h.b16 %v749
    %v2007 = vunpack.c.l.b16 %v750
    %v2008 = vunpack.c.h.b16 %v750
    %v2009 = vunpack.c.l.b16 %v751
    %v2010 = vunpack.c.l.b16 %v752
    %v2011 = vunpack.c.h.b16 %v752
    %v2012 = vunpack.c.l.b16 %v753
    %v2013 = vunpack.c.h.b16 %v753
    %v2014 = vunpack.c.l.b16 %v754
    %v2015 = vunpack.c.h.b16 %v754
    %v2016 = vunpack.c.l.b16 %v755
    %v2017 = vunpack.c.l.b16 %v756
    %v2018 = vunpack.c.h.b16 %v756
    %v2019 = vunpack.c.l.b16 %v757
    %v2020 = vunpack.c.h.b16 %v757
    %v2021 = vunpack.c.l.b16 %v758
    %v2022 = vunpack.c.h.b16 %v758
    %v2023 = vunpack.c.l.b16 %v759
    %v2024 = vunpack.c.l.b16 %v760
    %v2025 = vunpack.c.h.b16 %v760
    %v2026 = vunpack.c.l.b16 %v761
    %v2027 = vunpack.c.h.b16 %v761
    %v2028 = vunpack.c.l.b16 %v762
    %v2029 = vunpack.c.h.b16 %v762
    %v2030 = vunpack.c.l.b16 %v763
    %v2031 = vunpack.c.l.b16 %v764
    %v2032 = vunpack.c.h.b16 %v764
    %v2033 = vunpack.c.l.b16 %v765
    %v2034 = vunpack.c.h.b16 %v765
    %v2035 = vunpack.c.l.b16 %v766
    %v2036 = vunpack.c.h.b16 %v766
    %v2037 = vunpack.c.l.b16 %v767
    %v2038 = vunpack.c.l.b16 %v768
    %v2039 = vunpack.c.h.b16 %v768
    %v2040 = vunpack.c.l.b16 %v769
    %v2041 = vunpack.c.h.b16 %v769
    %v2042 = vunpack.c.l.b16 %v770
    %v2043 = vunpack.c.h.b16 %v770
    %v2044 = vunpack.c.l.b16 %v771
    %v2045 = vunpack.c.l.b16 %v772
    %v2046 = vunpack.c.h.b16 %v772
    %v2047 = vunpack.c.l.b16 %v773
    %v2048 = vunpack.c.h.b16 %v773
    %v2049 = vunpack.c.l.b16 %v774
    %v2050 = vunpack.c.h.b16 %v774
    %v2051 = vunpack.c.l.b16 %v775
    %v2052 = vunpack.c.l.b16 %v776
    %v2053 = vunpack.c.h.b16 %v776
    %v2054 = vunpack.c.l.b16 %v777
    %v2055 = vunpack.c.h.b16 %v777
    %v2056 = vunpack.c.l.b16 %v778
    %v2057 = vunpack.c.h.b16 %v778
    %v2058 = vunpack.c.l.b16 %v779
    %v2059 = vunpack.c.l.b16 %v780
    %v2060 = vunpack.c.h.b16 %v780
    %v2061 = vunpack.c.l.b16 %v781
    %v2062 = vunpack.c.h.b16 %v781
    %v2063 = vunpack.c.l.b16 %v782
    %v2064 = vunpack.c.h.b16 %v782
    %v2065 = vunpack.c.l.b16 %v783
    %v2066 = vunpack.c.l.b16 %v784
    %v2067 = vunpack.c.h.b16 %v784
    %v2068 = vunpack.c.l.b16 %v785
    %v2069 = vunpack.c.h.b16 %v785
    %v2070 = vunpack.c.l.b16 %v786
    %v2071 = vunpack.c.h.b16 %v786
    %v2072 = vunpack.c.l.b16 %v787
    %v2073 = vunpack.c.l.b16 %v788
    %v2074 = vunpack.c.h.b16 %v788
    %v2075 = vunpack.c.l.b16 %v789
    %v2076 = vunpack.c.h.b16 %v789
    %v2077 = vunpack.c.l.b16 %v790
    %v2078 = vunpack.c.h.b16 %v790
    %v2079 = vunpack.c.l.b16 %v791
    %v2080 = vunpack.c.l.b16 %v792
    %v2081 = vunpack.c.h.b16 %v792
    %v2082 = vunpack.c.l.b16 %v793
    %v2083 = vunpack.c.h.b16 %v793
    %v2084 = vunpack.c.l.b16 %v794
    %v2085 = vunpack.c.h.b16 %v794
    %v2086 = vunpack.c.l.b16 %v795
    %v2087 = vunpack.c.l.b16 %v796
    %v2088 = vunpack.c.h.b16 %v796
    %v2089 = vunpack.c.l.b16 %v797
    %v2090 = vunpack.c.h.b16 %v797
    %v2091 = vunpack.c.l.b16 %v798
    %v2092 = vunpack.c.h.b16 %v798
    %v2093 = vunpack.c.l.b16 %v799
    %v2094 = vunpack.c.l.b16 %v800
    %v2095 = vunpack.c.h.b16 %v800
    %v2096 = vunpack.c.l.b16 %v801
    %v2097 = vunpack.c.h.b16 %v801
    %v2098 = vunpack.c.l.b16 %v802
    %v2099 = vunpack.c.h.b16 %v802
    %v2100 = vunpack.c.l.b16 %v803
    %v2101 = vunpack.c.l.b16 %v804
    %v2102 = vunpack.c.h.b16 %v804
    %v2103 = vunpack.c.l.b16 %v805
    %v2104 = vunpack.c.h.b16 %v805
    %v2105 = vunpack.c.l.b16 %v806
    %v2106 = vunpack.c.h.b16 %v806
    %v2107 = vunpack.c.l.b16 %v807
    %v2108 = vunpack.c.l.b16 %v808
    %v2109 = vunpack.c.h.b16 %v808
    %v2110 = vunpack.c.l.b16 %v809
    %v2111 = vunpack.c.h.b16 %v809
    %v2112 = vunpack.c.l.b16 %v810
    %v2113 = vunpack.c.h.b16 %v810
    %v2114 = vunpack.c.l.b16 %v811
    %v2115 = vunpack.c.l.b16 %v812
    %v2116 = vunpack.c.h.b16 %v812
    %v2117 = vunpack.c.l.b16 %v813
    %v2118 = vunpack.c.h.b16 %v813
    %v2119 = vunpack.c.l.b16 %v814
    %v2120 = vunpack.c.h.b16 %v814
    %v2121 = vunpack.c.l.b16 %v815
    %v2122 = vunpack.c.l.b16 %v816
    %v2123 = vunpack.c.h.b16 %v816
    %v2124 = vunpack.c.l.b16 %v817
    %v2125 = vunpack.c.h.b16 %v817
    %v2126 = vunpack.c.l.b16 %v818
    %v2127 = vunpack.c.h.b16 %v818
    %v2128 = vunpack.c.l.b16 %v819
    %v2129 = vunpack.c.l.b16 %v820
    %v2130 = vunpack.c.h.b16 %v820
    %v2131 = vunpack.c.l.b16 %v821
    %v2132 = vunpack.c.h.b16 %v821
    %v2133 = vunpack.c.l.b16 %v822
    %v2134 = vunpack.c.h.b16 %v822
    %v2135 = vunpack.c.l.b16 %v823
    %v2136 = vunpack.c.l.b16 %v824
    %v2137 = vunpack.c.h.b16 %v824
    %v2138 = vunpack.c.l.b16 %v825
    %v2139 = vunpack.c.h.b16 %v825
    %v2140 = vunpack.c.l.b16 %v826
    %v2141 = vunpack.c.h.b16 %v826
    %v2142 = vunpack.c.l.b16 %v827
    %v2143 = vunpack.c.l.b16 %v828
    %v2144 = vunpack.c.h.b16 %v828
    %v2145 = vunpack.c.l.b16 %v829
    %v2146 = vunpack.c.h.b16 %v829
    %v2147 = vunpack.c.l.b16 %v830
    %v2148 = vunpack.c.h.b16 %v830
    %v2149 = vunpack.c.l.b16 %v831
    %v2150 = vunpack.c.l.b16 %v832
    %v2151 = vunpack.c.h.b16 %v832
    %v2152 = vunpack.c.l.b16 %v833
    %v2153 = vunpack.c.h.b16 %v833
    %v2154 = vunpack.c.l.b16 %v834
    %v2155 = vunpack.c.h.b16 %v834
    %v2156 = vunpack.c.l.b16 %v835
    %v2157 = vunpack.c.l.b16 %v836
    %v2158 = vunpack.c.h.b16 %v836
    %v2159 = vunpack.c.l.b16 %v837
    %v2160 = vunpack.c.h.b16 %v837
    %v2161 = vunpack.c.l.b16 %v838
    %v2162 = vunpack.c.h.b16 %v838
    %v2163 = vunpack.c.l.b16 %v839
    %v2164 = vunpack.c.l.b16 %v840
    %v2165 = vunpack.c.h.b16 %v840
    %v2166 = vunpack.c.l.b16 %v841
    %v2167 = vunpack.c.h.b16 %v841
    %v2168 = vunpack.c.l.b16 %v842
    %v2169 = vunpack.c.h.b16 %v842
    %v2170 = vunpack.c.l.b16 %v843
    %v2171 = vunpack.c.l.b16 %v844
    %v2172 = vunpack.c.h.b16 %v844
    %v2173 = vunpack.c.l.b16 %v845
    %v2174 = vunpack.c.h.b16 %v845
    %v2175 = vunpack.c.l.b16 %v846
    %v2176 = vunpack.c.h.b16 %v846
    %v2177 = vunpack.c.l.b16 %v847
    %v2178 = vunpack.c.l.b16 %v848
    %v2179 = vunpack.c.h.b16 %v848
    %v2180 = vunpack.c.l.b16 %v849
    %v2181 = vunpack.c.h.b16 %v849
    %v2182 = vunpack.c.l.b16 %v850
    %v2183 = vunpack.c.h.b16 %v850
    %v2184 = vunpack.c.l.b16 %v851
    %v2185 = vunpack.c.l.b16 %v852
    %v2186 = vunpack.c.h.b16 %v852
    %v2187 = vunpack.c.l.b16 %v853
    %v2188 = vunpack.c.h.b16 %v853
    %v2189 = vunpack.c.l.b16 %v854
    %v2190 = vunpack.c.h.b16 %v854
    %v2191 = vunpack.c.l.b16 %v855
    %v2192 = vunpack.c.l.b16 %v856
    %v2193 = vunpack.c.h.b16 %v856
    %v2194 = vunpack.c.l.b16 %v857
    %v2195 = vunpack.c.h.b16 %v857
    %v2196 = vunpack.c.l.b16 %v858
    %v2197 = vunpack.c.h.b16 %v858
    %v2198 = vunpack.c.l.b16 %v859
    %v2199 = vunpack.c.l.b16 %v860
    %v2200 = vunpack.c.h.b16 %v860
    %v2201 = vunpack.c.l.b16 %v861
    %v2202 = vunpack.c.h.b16 %v861
    %v2203 = vunpack.c.l.b16 %v862
    %v2204 = vunpack.c.h.b16 %v862
    %v2205 = vunpack.c.l.b16 %v863
    %v2206 = vunpack.c.l.b16 %v864
    %v2207 = vunpack.c.h.b16 %v864
    %v2208 = vunpack.c.l.b16 %v865
    %v2209 = vunpack.c.h.b16 %v865
    %v2210 = vunpack.c.l.b16 %v866
    %v2211 = vunpack.c.h.b16 %v866
    %v2212 = vunpack.c.l.b16 %v867
    %v2213 = vunpack.c.l.b16 %v868
    %v2214 = vunpack.c.h.b16 %v868
    %v2215 = vunpack.c.l.b16 %v869
    %v2216 = vunpack.c.h.b16 %v869
    %v2217 = vunpack.c.l.b16 %v870
    %v2218 = vunpack.c.h.b16 %v870
    %v2219 = vunpack.c.l.b16 %v871
    %v2220 = vunpack.c.l.b16 %v872
    %v2221 = vunpack.c.h.b16 %v872
    %v2222 = vunpack.c.l.b16 %v873
    %v2223 = vunpack.c.h.b16 %v873
    %v2224 = vunpack.c.l.b16 %v874
    %v2225 = vunpack.c.h.b16 %v874
    %v2226 = vunpack.c.l.b16 %v875
    %v2227 = vunpack.c.l.b16 %v876
    %v2228 = vunpack.c.h.b16 %v876
    %v2229 = vunpack.c.l.b16 %v877
    %v2230 = vunpack.c.h.b16 %v877
    %v2231 = vunpack.c.l.b16 %v878
    %v2232 = vunpack.c.h.b16 %v878
    %v2233 = vunpack.c.l.b16 %v879
    %v2234 = vunpack.c.l.b16 %v880
    %v2235 = vunpack.c.h.b16 %v880
    %v2236 = vunpack.c.l.b16 %v881
    %v2237 = vunpack.c.h.b16 %v881
    %v2238 = vunpack.c.l.b16 %v882
    %v2239 = vunpack.c.h.b16 %v882
    %v2240 = vunpack.c.l.b16 %v883
    %v2241 = vunpack.c.l.b16 %v884
    %v2242 = vunpack.c.h.b16 %v884
    %v2243 = vunpack.c.l.b16 %v885
    %v2244 = vunpack.c.h.b16 %v885
    %v2245 = vunpack.c.l.b16 %v886
    %v2246 = vunpack.c.h.b16 %v886
    %v2247 = vunpack.c.l.b16 %v887
    %v2248 = vunpack.c.l.b16 %v888
    %v2249 = vunpack.c.h.b16 %v888
    %v2250 = vunpack.c.l.b16 %v889
    %v2251 = vunpack.c.h.b16 %v889
    %v2252 = vunpack.c.l.b16 %v890
    %v2253 = vunpack.c.h.b16 %v890
    %v2254 = vunpack.c.l.b16 %v891
    %v2255 = vunpack.c.l.b16 %v892
    %v2256 = vunpack.c.h.b16 %v892
    %v2257 = vunpack.c.l.b16 %v893
    %v2258 = vunpack.c.h.b16 %v893
    %v2259 = vunpack.c.l.b16 %v894
    %v2260 = vunpack.c.h.b16 %v894
    %v2261 = vunpack.c.l.b16 %v895
    %v2262 = vunpack.c.l.b16 %v896
    %v2263 = vunpack.c.h.b16 %v896
    %v2264 = vunpack.c.l.b16 %v897
    %v2265 = vunpack.c.h.b16 %v897
    %v2266 = vunpack.c.l.b16 %v898
    %v2267 = vunpack.c.h.b16 %v898
    %v2268 = vunpack.c.l.b16 %v899
    %v2269 = vunpack.c.l.b16 %v900
    %v2270 = vunpack.c.h.b16 %v900
    %v2271 = vunpack.c.l.b16 %v901
    %v2272 = vunpack.c.h.b16 %v901
    %v2273 = vunpack.c.l.b16 %v902
    %v2274 = vunpack.c.h.b16 %v902
    %v2275 = vunpack.c.l.b16 %v903
    %v2276 = vunpack.c.l.b16 %v904
    %v2277 = vunpack.c.h.b16 %v904
    %v2278 = vunpack.c.l.b16 %v905
    %v2279 = vunpack.c.h.b16 %v905
    %v2280 = vunpack.c.l.b16 %v906
    %v2281 = vunpack.c.h.b16 %v906
    %v2282 = vunpack.c.l.b16 %v907
    %v2283 = vunpack.c.l.b16 %v908
    %v2284 = vunpack.c.h.b16 %v908
    %v2285 = vunpack.c.l.b16 %v909
    %v2286 = vunpack.c.h.b16 %v909
    %v2287 = vunpack.c.l.b16 %v910
    %v2288 = vunpack.c.h.b16 %v910
    %v2289 = vunpack.c.l.b16 %v911
    %v2290 = vunpack.c.l.b16 %v912
    %v2291 = vunpack.c.h.b16 %v912
    %v2292 = vunpack.c.l.b16 %v913
    %v2293 = vunpack.c.h.b16 %v913
    %v2294 = vunpack.c.l.b16 %v914
    %v2295 = vunpack.c.h.b16 %v914
    %v2296 = vunpack.c.l.b16 %v915
    %v2297 = vunpack.c.l.b16 %v916
    %v2298 = vunpack.c.h.b16 %v916
    %v2299 = vunpack.c.l.b16 %v917
    %v2300 = vunpack.c.h.b16 %v917
    %v2301 = vunpack.c.l.b16 %v918
    %v2302 = vunpack.c.h.b16 %v918
    %v2303 = vunpack.c.l.b16 %v919
    %v2304 = vunpack.c.l.b16 %v920
    %v2305 = vunpack.c.h.b16 %v920
    %v2306 = vunpack.c.l.b16 %v921
    %v2307 = vunpack.c.h.b16 %v921
    %v2308 = vunpack.c.l.b16 %v922
    %v2309 = vunpack.c.h.b16 %v922
    %v2310 = vunpack.c.l.b16 %v923
    %v2311 = vunpack.c.l.b16 %v924
    %v2312 = vunpack.c.h.b16 %v924
    %v2313 = vunpack.c.l.b16 %v925
    %v2314 = vunpack.c.h.b16 %v925
    %v2315 = vunpack.c.l.b16 %v926
    %v2316 = vunpack.c.h.b16 %v926
    %v2317 = vunpack.c.l.b16 %v927
    %v2318 = vunpack.c.l.b16 %v928
    %v2319 = vunpack.c.h.b16 %v928
    %v2320 = vunpack.c.l.b16 %v929
    %v2321 = vunpack.c.h.b16 %v929
    %v2322 = vunpack.c.l.b16 %v930
    %v2323 = vunpack.c.h.b16 %v930
    %v2324 = vunpack.c.l.b16 %v931
    %v2325 = vunpack.c.l.b16 %v932
    %v2326 = vunpack.c.h.b16 %v932
    %v2327 = vunpack.c.l.b16 %v933
    %v2328 = vunpack.c.h.b16 %v933
    %v2329 = vunpack.c.l.b16 %v934
    %v2330 = vunpack.c.h.b16 %v934
    %v2331 = vunpack.c.l.b16 %v935
    %v2332 = vunpack.c.l.b16 %v936
    %v2333 = vunpack.c.h.b16 %v936
    %v2334 = vunpack.c.l.b16 %v937
    %v2335 = vunpack.c.h.b16 %v937
    %v2336 = vunpack.c.l.b16 %v938
    %v2337 = vunpack.c.h.b16 %v938
    %v2338 = vunpack.c.l.b16 %v939
    %v2339 = vunpack.c.l.b16 %v940
    %v2340 = vunpack.c.h.b16 %v940
    %v2341 = vunpack.c.l.b16 %v941
    %v2342 = vunpack.c.h.b16 %v941
    %v2343 = vunpack.c.l.b16 %v942
    %v2344 = vunpack.c.h.b16 %v942
    %v2345 = vunpack.c.l.b16 %v943
    %v2346 = vunpack.c.l.b16 %v944
    %v2347 = vunpack.c.h.b16 %v944
    %v2348 = vunpack.c.l.b16 %v945
    %v2349 = vunpack.c.h.b16 %v945
    %v2350 = vunpack.c.l.b16 %v946
    %v2351 = vunpack.c.h.b16 %v946
    %v2352 = vunpack.c.l.b16 %v947
    %v2353 = vunpack.c.l.b16 %v948
    %v2354 = vunpack.c.h.b16 %v948
    %v2355 = vunpack.c.l.b16 %v949
    %v2356 = vunpack.c.h.b16 %v949
    %v2357 = vunpack.c.l.b16 %v950
    %v2358 = vunpack.c.h.b16 %v950
    %v2359 = vunpack.c.l.b16 %v951
    %v2360 = vunpack.c.l.b16 %v952
    %v2361 = vunpack.c.h.b16 %v952
    %v2362 = vunpack.c.l.b16 %v953
    %v2363 = vunpack.c.h.b16 %v953
    %v2364 = vunpack.c.l.b16 %v954
    %v2365 = vunpack.c.h.b16 %v954
    %v2366 = vunpack.c.l.b16 %v955
    %v2367 = vunpack.c.l.b16 %v956
    %v2368 = vunpack.c.h.b16 %v956
    %v2369 = vunpack.c.l.b16 %v957
    %v2370 = vunpack.c.h.b16 %v957
    %v2371 = vunpack.c.l.b16 %v958
    %v2372 = vunpack.c.h.b16 %v958
    %v2373 = vunpack.c.l.b16 %v959
    %v2374 = vunpack.c.l.b16 %v960
    %v2375 = vunpack.c.h.b16 %v960
    %v2376 = vunpack.c.l.b16 %v961
    %v2377 = vunpack.c.h.b16 %v961
    %v2378 = vunpack.c.l.b16 %v962
    %v2379 = vunpack.c.h.b16 %v962
    %v2380 = vunpack.c.l.b16 %v963
    %v2381 = vunpack.c.l.b16 %v964
    %v2382 = vunpack.c.h.b16 %v964
    %v2383 = vunpack.c.l.b16 %v965
    %v2384 = vunpack.c.h.b16 %v965
    %v2385 = vunpack.c.l.b16 %v966
    %v2386 = vunpack.c.h.b16 %v966
    %v2387 = vunpack.c.l.b16 %v967
    %v2388 = vunpack.c.l.b16 %v968
    %v2389 = vunpack.c.h.b16 %v968
    %v2390 = vunpack.c.l.b16 %v969
    %v2391 = vunpack.c.h.b16 %v969
    %v2392 = vunpack.c.l.b16 %v970
    %v2393 = vunpack.c.h.b16 %v970
    %v2394 = vunpack.c.l.b16 %v971
    %v2395 = vunpack.c.l.b16 %v972
    %v2396 = vunpack.c.h.b16 %v972
    %v2397 = vunpack.c.l.b16 %v973
    %v2398 = vunpack.c.h.b16 %v973
    %v2399 = vunpack.c.l.b16 %v974
    %v2400 = vunpack.c.h.b16 %v974
    %v2401 = vunpack.c.l.b16 %v975
    %v2402 = vunpack.c.l.b16 %v976
    %v2403 = vunpack.c.h.b16 %v976
    %v2404 = vunpack.c.l.b16 %v977
    %v2405 = vunpack.c.h.b16 %v977
    %v2406 = vunpack.c.l.b16 %v978
    %v2407 = vunpack.c.h.b16 %v978
    %v2408 = vunpack.c.l.b16 %v979
    %v2409 = vunpack.c.l.b16 %v980
    %v2410 = vunpack.c.h.b16 %v980
    %v2411 = vunpack.c.l.b16 %v981
    %v2412 = vunpack.c.h.b16 %v981
    %v2413 = vunpack.c.l.b16 %v982
    %v2414 = vunpack.c.h.b16 %v982
    %v2415 = vunpack.c.l.b16 %v983
    %v2416 = vpack.c.b16 %v1527, %v1520
    %v2417 = vpack.c.b16 %v1528, %v1521
    %v2418 = vpack.c.b16 %v1529, %v1522
    %v2419 = vpack.c.b16 %v1530, %v1523
    %v2420 = vpack.c.b16 %v1531, %v1524
    %v2421 = vpack.c.b16 %v1532, %v1525
    %v2422 = vpack.c.b16 %v1533, %v1526
    %v2423 = vpack.c.b16 %v1541, %v1534
    %v2424 = vpack.c.b16 %v1542, %v1535
    %v2425 = vpack.c.b16 %v1543, %v1536
    %v2426 = vpack.c.b16 %v1544, %v1537
    %v2427 = vpack.c.b16 %v1545, %v1538
    %v2428 = vpack.c.b16 %v1546, %v1539
    %v2429 = vpack.c.b16 %v1547, %v1540
    %v2430 = vpack.c.b16 %v1555, %v1548
    %v2431 = vpack.c.b16 %v1556, %v1549
    %v2432 = vpack.c.b16 %v1557, %v1550
    %v2433 = vpack.c.b16 %v1558, %v1551
    %v2434 = vpack.c.b16 %v1559, %v1552
    %v2435 = vpack.c.b16 %v1560, %v1553
    %v2436 = vpack.c.b16 %v1561, %v1554
    %v2437 = vpack.c.b16 %v1569, %v1562
    %v2438 = vpack.c.b16 %v1570, %v1563
    %v2439 = vpack.c.b16 %v1571, %v1564
    %v2440 = vpack.c.b16 %v1572, %v1565
    %v2441 = vpack.c.b16 %v1573, %v1566
    %v2442 = vpack.c.b16 %v1574, %v1567
    %v2443 = vpack.c.b16 %v1575, %v1568
    %v2444 = vpack.c.b16 %v1583, %v1576
    %v2445 = vpack.c.b16 %v1584, %v1577
    %v2446 = vpack.c.b16 %v1585, %v1578
    %v2447 = vpack.c.b16 %v1586, %v1579
    %v2448 = vpack.c.b16 %v1587, %v1580
    %v2449 = vpack.c.b16 %v1588, %v1581
    %v2450 = vpack.c.b16 %v1589, %v1582
    %v2451 = vpack.c.b16 %v1597, %v1590
    %v2452 = vpack.c.b16 %v1598, %v1591
    %v2453 = vpack.c.b16 %v1599, %v1592
    %v2454 = vpack.c.b16 %v1600, %v1593
    %v2455 = vpack.c.b16 %v1601, %v1594
    %v2456 = vpack.c.b16 %v1602, %v1595
    %v2457 = vpack.c.b16 %v1603, %v1596
    %v2458 = vpack.c.b16 %v1611, %v1604
    %v2459 = vpack.c.b16 %v1612, %v1605
    %v2460 = vpack.c.b16 %v1613, %v1606
    %v2461 = vpack.c.b16 %v1614, %v1607
    %v2462 = vpack.c.b16 %v1615, %v1608
    %v2463 = vpack.c.b16 %v1616, %v1609
    %v2464 = vpack.c.b16 %v1617, %v1610
    %v2465 = vpack.c.b16 %v1625, %v1618
    %v2466 = vpack.c.b16 %v1626, %v1619
    %v2467 = vpack.c.b16 %v1627, %v1620
    %v2468 = vpack.c.b16 %v1628, %v1621
    %v2469 = vpack.c.b16 %v1629, %v1622
    %v2470 = vpack.c.b16 %v1630, %v1623
    %v2471 = vpack.c.b16 %v1631, %v1624
    %v2472 = vpack.c.b16 %v1639, %v1632
    %v2473 = vpack.c.b16 %v1640, %v1633
    %v2474 = vpack.c.b16 %v1641, %v1634
    %v2475 = vpack.c.b16 %v1642, %v1635
    %v2476 = vpack.c.b16 %v1643, %v1636
    %v2477 = vpack.c.b16 %v1644, %v1637
    %v2478 = vpack.c.b16 %v1645, %v1638
    %v2479 = vpack.c.b16 %v1653, %v1646
    %v2480 = vpack.c.b16 %v1654, %v1647
    %v2481 = vpack.c.b16 %v1655, %v1648
    %v2482 = vpack.c.b16 %v1656, %v1649
    %v2483 = vpack.c.b16 %v1657, %v1650
    %v2484 = vpack.c.b16 %v1658, %v1651
    %v2485 = vpack.c.b16 %v1659, %v1652
    %v2486 = vpack.c.b16 %v1667, %v1660
    %v2487 = vpack.c.b16 %v1668, %v1661
    %v2488 = vpack.c.b16 %v1669, %v1662
    %v2489 = vpack.c.b16 %v1670, %v1663
    %v2490 = vpack.c.b16 %v1671, %v1664
    %v2491 = vpack.c.b16 %v1672, %v1665
    %v2492 = vpack.c.b16 %v1673, %v1666
    %v2493 = vpack.c.b16 %v1681, %v1674
    %v2494 = vpack.c.b16 %v1682, %v1675
    %v2495 = vpack.c.b16 %v1683, %v1676
    %v2496 = vpack.c.b16 %v1684, %v1677
    %v2497 = vpack.c.b16 %v1685, %v1678
    %v2498 = vpack.c.b16 %v1686, %v1679
    %v2499 = vpack.c.b16 %v1687, %v1680
    %v2500 = vpack.c.b16 %v1695, %v1688
    %v2501 = vpack.c.b16 %v1696, %v1689
    %v2502 = vpack.c.b16 %v1697, %v1690
    %v2503 = vpack.c.b16 %v1698, %v1691
    %v2504 = vpack.c.b16 %v1699, %v1692
    %v2505 = vpack.c.b16 %v1700, %v1693
    %v2506 = vpack.c.b16 %v1701, %v1694
    %v2507 = vpack.c.b16 %v1709, %v1702
    %v2508 = vpack.c.b16 %v1710, %v1703
    %v2509 = vpack.c.b16 %v1711, %v1704
    %v2510 = vpack.c.b16 %v1712, %v1705
    %v2511 = vpack.c.b16 %v1713, %v1706
    %v2512 = vpack.c.b16 %v1714, %v1707
    %v2513 = vpack.c.b16 %v1715, %v1708
    %v2514 = vpack.c.b16 %v1723, %v1716
    %v2515 = vpack.c.b16 %v1724, %v1717
    %v2516 = vpack.c.b16 %v1725, %v1718
    %v2517 = vpack.c.b16 %v1726, %v1719
    %v2518 = vpack.c.b16 %v1727, %v1720
    %v2519 = vpack.c.b16 %v1728, %v1721
    %v2520 = vpack.c.b16 %v1729, %v1722
    %v2521 = vpack.c.b16 %v1737, %v1730
    %v2522 = vpack.c.b16 %v1738, %v1731
    %v2523 = vpack.c.b16 %v1739, %v1732
    %v2524 = vpack.c.b16 %v1740, %v1733
    %v2525 = vpack.c.b16 %v1741, %v1734
    %v2526 = vpack.c.b16 %v1742, %v1735
    %v2527 = vpack.c.b16 %v1743, %v1736
    %v2528 = vpack.c.b16 %v1751, %v1744
    %v2529 = vpack.c.b16 %v1752, %v1745
    %v2530 = vpack.c.b16 %v1753, %v1746
    %v2531 = vpack.c.b16 %v1754, %v1747
    %v2532 = vpack.c.b16 %v1755, %v1748
    %v2533 = vpack.c.b16 %v1756, %v1749
    %v2534 = vpack.c.b16 %v1757, %v1750
    %v2535 = vpack.c.b16 %v1765, %v1758
    %v2536 = vpack.c.b16 %v1766, %v1759
    %v2537 = vpack.c.b16 %v1767, %v1760
    %v2538 = vpack.c.b16 %v1768, %v1761
    %v2539 = vpack.c.b16 %v1769, %v1762
    %v2540 = vpack.c.b16 %v1770, %v1763
    %v2541 = vpack.c.b16 %v1771, %v1764
    %v2542 = vpack.c.b16 %v1779, %v1772
    %v2543 = vpack.c.b16 %v1780, %v1773
    %v2544 = vpack.c.b16 %v1781, %v1774
    %v2545 = vpack.c.b16 %v1782, %v1775
    %v2546 = vpack.c.b16 %v1783, %v1776
    %v2547 = vpack.c.b16 %v1784, %v1777
    %v2548 = vpack.c.b16 %v1785, %v1778
    %v2549 = vpack.c.b16 %v1793, %v1786
    %v2550 = vpack.c.b16 %v1794, %v1787
    %v2551 = vpack.c.b16 %v1795, %v1788
    %v2552 = vpack.c.b16 %v1796, %v1789
    %v2553 = vpack.c.b16 %v1797, %v1790
    %v2554 = vpack.c.b16 %v1798, %v1791
    %v2555 = vpack.c.b16 %v1799, %v1792
    %v2556 = vpack.c.b16 %v1807, %v1800
    %v2557 = vpack.c.b16 %v1808, %v1801
    %v2558 = vpack.c.b16 %v1809, %v1802
    %v2559 = vpack.c.b16 %v1810, %v1803
    %v2560 = vpack.c.b16 %v1811, %v1804
    %v2561 = vpack.c.b16 %v1812, %v1805
    %v2562 = vpack.c.b16 %v1813, %v1806
    %v2563 = vpack.c.b16 %v1821, %v1814
    %v2564 = vpack.c.b16 %v1822, %v1815
    %v2565 = vpack.c.b16 %v1823, %v1816
    %v2566 = vpack.c.b16 %v1824, %v1817
    %v2567 = vpack.c.b16 %v1825, %v1818
    %v2568 = vpack.c.b16 %v1826, %v1819
    %v2569 = vpack.c.b16 %v1827, %v1820
    %v2570 = vpack.c.b16 %v1835, %v1828
    %v2571 = vpack.c.b16 %v1836, %v1829
    %v2572 = vpack.c.b16 %v1837, %v1830
    %v2573 = vpack.c.b16 %v1838, %v1831
    %v2574 = vpack.c.b16 %v1839, %v1832
    %v2575 = vpack.c.b16 %v1840, %v1833
    %v2576 = vpack.c.b16 %v1841, %v1834
    %v2577 = vpack.c.b16 %v1849, %v1842
    %v2578 = vpack.c.b16 %v1850, %v1843
    %v2579 = vpack.c.b16 %v1851, %v1844
    %v2580 = vpack.c.b16 %v1852, %v1845
    %v2581 = vpack.c.b16 %v1853, %v1846
    %v2582 = vpack.c.b16 %v1854, %v1847
    %v2583 = vpack.c.b16 %v1855, %v1848
    %v2584 = vpack.c.b16 %v1863, %v1856
    %v2585 = vpack.c.b16 %v1864, %v1857
    %v2586 = vpack.c.b16 %v1865, %v1858
    %v2587 = vpack.c.b16 %v1866, %v1859
    %v2588 = vpack.c.b16 %v1867, %v1860
    %v2589 = vpack.c.b16 %v1868, %v1861
    %v2590 = vpack.c.b16 %v1869, %v1862
    %v2591 = vpack.c.b16 %v1877, %v1870
    %v2592 = vpack.c.b16 %v1878, %v1871
    %v2593 = vpack.c.b16 %v1879, %v1872
    %v2594 = vpack.c.b16 %v1880, %v1873
    %v2595 = vpack.c.b16 %v1881, %v1874
    %v2596 = vpack.c.b16 %v1882, %v1875
    %v2597 = vpack.c.b16 %v1883, %v1876
    %v2598 = vpack.c.b16 %v1891, %v1884
    %v2599 = vpack.c.b16 %v1892, %v1885
    %v2600 = vpack.c.b16 %v1893, %v1886
    %v2601 = vpack.c.b16 %v1894, %v1887
    %v2602 = vpack.c.b16 %v1895, %v1888
    %v2603 = vpack.c.b16 %v1896, %v1889
    %v2604 = vpack.c.b16 %v1897, %v1890
    %v2605 = vpack.c.b16 %v1905, %v1898
    %v2606 = vpack.c.b16 %v1906, %v1899
    %v2607 = vpack.c.b16 %v1907, %v1900
    %v2608 = vpack.c.b16 %v1908, %v1901
    %v2609 = vpack.c.b16 %v1909, %v1902
    %v2610 = vpack.c.b16 %v1910, %v1903
    %v2611 = vpack.c.b16 %v1911, %v1904
    %v2612 = vpack.c.b16 %v1919, %v1912
    %v2613 = vpack.c.b16 %v1920, %v1913
    %v2614 = vpack.c.b16 %v1921, %v1914
    %v2615 = vpack.c.b16 %v1922, %v1915
    %v2616 = vpack.c.b16 %v1923, %v1916
    %v2617 = vpack.c.b16 %v1924, %v1917
    %v2618 = vpack.c.b16 %v1925, %v1918
    %v2619 = vpack.c.b16 %v1933, %v1926
    %v2620 = vpack.c.b16 %v1934, %v1927
    %v2621 = vpack.c.b16 %v1935, %v1928
    %v2622 = vpack.c.b16 %v1936, %v1929
    %v2623 = vpack.c.b16 %v1937, %v1930
    %v2624 = vpack.c.b16 %v1938, %v1931
    %v2625 = vpack.c.b16 %v1939, %v1932
    %v2626 = vpack.c.b16 %v1947, %v1940
    %v2627 = vpack.c.b16 %v1948, %v1941
    %v2628 = vpack.c.b16 %v1949, %v1942
    %v2629 = vpack.c.b16 %v1950, %v1943
    %v2630 = vpack.c.b16 %v1951, %v1944
    %v2631 = vpack.c.b16 %v1952, %v1945
    %v2632 = vpack.c.b16 %v1953, %v1946
    %v2633 = vpack.c.b16 %v1961, %v1954
    %v2634 = vpack.c.b16 %v1962, %v1955
    %v2635 = vpack.c.b16 %v1963, %v1956
    %v2636 = vpack.c.b16 %v1964, %v1957
    %v2637 = vpack.c.b16 %v1965, %v1958
    %v2638 = vpack.c.b16 %v1966, %v1959
    %v2639 = vpack.c.b16 %v1967, %v1960
    %v2640 = vpack.c.b16 %v1975, %v1968
    %v2641 = vpack.c.b16 %v1976, %v1969
    %v2642 = vpack.c.b16 %v1977, %v1970
    %v2643 = vpack.c.b16 %v1978, %v1971
    %v2644 = vpack.c.b16 %v1979, %v1972
    %v2645 = vpack.c.b16 %v1980, %v1973
    %v2646 = vpack.c.b16 %v1981, %v1974
    %v2647 = vpack.c.b16 %v1989, %v1982
    %v2648 = vpack.c.b16 %v1990, %v1983
    %v2649 = vpack.c.b16 %v1991, %v1984
    %v2650 = vpack.c.b16 %v1992, %v1985
    %v2651 = vpack.c.b16 %v1993, %v1986
    %v2652 = vpack.c.b16 %v1994, %v1987
    %v2653 = vpack.c.b16 %v1995, %v1988
    %v2654 = vpack.c.b16 %v2003, %v1996
    %v2655 = vpack.c.b16 %v2004, %v1997
    %v2656 = vpack.c.b16 %v2005, %v1998
    %v2657 = vpack.c.b16 %v2006, %v1999
    %v2658 = vpack.c.b16 %v2007, %v2000
    %v2659 = vpack.c.b16 %v2008, %v2001
    %v2660 = vpack.c.b16 %v2009, %v2002
    %v2661 = vpack.c.b16 %v2017, %v2010
    %v2662 = vpack.c.b16 %v2018, %v2011
    %v2663 = vpack.c.b16 %v2019, %v2012
    %v2664 = vpack.c.b16 %v2020, %v2013
    %v2665 = vpack.c.b16 %v2021, %v2014
    %v2666 = vpack.c.b16 %v2022, %v2015
    %v2667 = vpack.c.b16 %v2023, %v2016
    %v2668 = vpack.c.b16 %v2031, %v2024
    %v2669 = vpack.c.b16 %v2032, %v2025
    %v2670 = vpack.c.b16 %v2033, %v2026
    %v2671 = vpack.c.b16 %v2034, %v2027
    %v2672 = vpack.c.b16 %v2035, %v2028
    %v2673 = vpack.c.b16 %v2036, %v2029
    %v2674 = vpack.c.b16 %v2037, %v2030
    %v2675 = vpack.c.b16 %v2045, %v2038
    %v2676 = vpack.c.b16 %v2046, %v2039
    %v2677 = vpack.c.b16 %v2047, %v2040
    %v2678 = vpack.c.b16 %v2048, %v2041
    %v2679 = vpack.c.b16 %v2049, %v2042
    %v2680 = vpack.c.b16 %v2050, %v2043
    %v2681 = vpack.c.b16 %v2051, %v2044
    %v2682 = vpack.c.b16 %v2059, %v2052
    %v2683 = vpack.c.b16 %v2060, %v2053
    %v2684 = vpack.c.b16 %v2061, %v2054
    %v2685 = vpack.c.b16 %v2062, %v2055
    %v2686 = vpack.c.b16 %v2063, %v2056
    %v2687 = vpack.c.b16 %v2064, %v2057
    %v2688 = vpack.c.b16 %v2065, %v2058
    %v2689 = vpack.c.b16 %v2073, %v2066
    %v2690 = vpack.c.b16 %v2074, %v2067
    %v2691 = vpack.c.b16 %v2075, %v2068
    %v2692 = vpack.c.b16 %v2076, %v2069
    %v2693 = vpack.c.b16 %v2077, %v2070
    %v2694 = vpack.c.b16 %v2078, %v2071
    %v2695 = vpack.c.b16 %v2079, %v2072
    %v2696 = vpack.c.b16 %v2087, %v2080
    %v2697 = vpack.c.b16 %v2088, %v2081
    %v2698 = vpack.c.b16 %v2089, %v2082
    %v2699 = vpack.c.b16 %v2090, %v2083
    %v2700 = vpack.c.b16 %v2091, %v2084
    %v2701 = vpack.c.b16 %v2092, %v2085
    %v2702 = vpack.c.b16 %v2093, %v2086
    %v2703 = vpack.c.b16 %v2101, %v2094
    %v2704 = vpack.c.b16 %v2102, %v2095
    %v2705 = vpack.c.b16 %v2103, %v2096
    %v2706 = vpack.c.b16 %v2104, %v2097
    %v2707 = vpack.c.b16 %v2105, %v2098
    %v2708 = vpack.c.b16 %v2106, %v2099
    %v2709 = vpack.c.b16 %v2107, %v2100
    %v2710 = vpack.c.b16 %v2115, %v2108
    %v2711 = vpack.c.b16 %v2116, %v2109
    %v2712 = vpack.c.b16 %v2117, %v2110
    %v2713 = vpack.c.b16 %v2118, %v2111
    %v2714 = vpack.c.b16 %v2119, %v2112
    %v2715 = vpack.c.b16 %v2120, %v2113
    %v2716 = vpack.c.b16 %v2121, %v2114
    %v2717 = vpack.c.b16 %v2129, %v2122
    %v2718 = vpack.c.b16 %v2130, %v2123
    %v2719 = vpack.c.b16 %v2131, %v2124
    %v2720 = vpack.c.b16 %v2132, %v2125
    %v2721 = vpack.c.b16 %v2133, %v2126
    %v2722 = vpack.c.b16 %v2134, %v2127
    %v2723 = vpack.c.b16 %v2135, %v2128
    %v2724 = vpack.c.b16 %v2143, %v2136
    %v2725 = vpack.c.b16 %v2144, %v2137
    %v2726 = vpack.c.b16 %v2145, %v2138
    %v2727 = vpack.c.b16 %v2146, %v2139
    %v2728 = vpack.c.b16 %v2147, %v2140
    %v2729 = vpack.c.b16 %v2148, %v2141
    %v2730 = vpack.c.b16 %v2149, %v2142
    %v2731 = vpack.c.b16 %v2157, %v2150
    %v2732 = vpack.c.b16 %v2158, %v2151
    %v2733 = vpack.c.b16 %v2159, %v2152
    %v2734 = vpack.c.b16 %v2160, %v2153
    %v2735 = vpack.c.b16 %v2161, %v2154
    %v2736 = vpack.c.b16 %v2162, %v2155
    %v2737 = vpack.c.b16 %v2163, %v2156
    %v2738 = vpack.c.b16 %v2171, %v2164
    %v2739 = vpack.c.b16 %v2172, %v2165
    %v2740 = vpack.c.b16 %v2173, %v2166
    %v2741 = vpack.c.b16 %v2174, %v2167
    %v2742 = vpack.c.b16 %v2175, %v2168
    %v2743 = vpack.c.b16 %v2176, %v2169
    %v2744 = vpack.c.b16 %v2177, %v2170
    %v2745 = vpack.c.b16 %v2185, %v2178
    %v2746 = vpack.c.b16 %v2186, %v2179
    %v2747 = vpack.c.b16 %v2187, %v2180
    %v2748 = vpack.c.b16 %v2188, %v2181
    %v2749 = vpack.c.b16 %v2189, %v2182
    %v2750 = vpack.c.b16 %v2190, %v2183
    %v2751 = vpack.c.b16 %v2191, %v2184
    %v2752 = vpack.c.b16 %v2199, %v2192
    %v2753 = vpack.c.b16 %v2200, %v2193
    %v2754 = vpack.c.b16 %v2201, %v2194
    %v2755 = vpack.c.b16 %v2202, %v2195
    %v2756 = vpack.c.b16 %v2203, %v2196
    %v2757 = vpack.c.b16 %v2204, %v2197
    %v2758 = vpack.c.b16 %v2205, %v2198
    %v2759 = vpack.c.b16 %v2213, %v2206
    %v2760 = vpack.c.b16 %v2214, %v2207
    %v2761 = vpack.c.b16 %v2215, %v2208
    %v2762 = vpack.c.b16 %v2216, %v2209
    %v2763 = vpack.c.b16 %v2217, %v2210
    %v2764 = vpack.c.b16 %v2218, %v2211
    %v2765 = vpack.c.b16 %v2219, %v2212
    %v2766 = vpack.c.b16 %v2227, %v2220
    %v2767 = vpack.c.b16 %v2228, %v2221
    %v2768 = vpack.c.b16 %v2229, %v2222
    %v2769 = vpack.c.b16 %v2230, %v2223
    %v2770 = vpack.c.b16 %v2231, %v2224
    %v2771 = vpack.c.b16 %v2232, %v2225
    %v2772 = vpack.c.b16 %v2233, %v2226
    %v2773 = vpack.c.b16 %v2241, %v2234
    %v2774 = vpack.c.b16 %v2242, %v2235
    %v2775 = vpack.c.b16 %v2243, %v2236
    %v2776 = vpack.c.b16 %v2244, %v2237
    %v2777 = vpack.c.b16 %v2245, %v2238
    %v2778 = vpack.c.b16 %v2246, %v2239
    %v2779 = vpack.c.b16 %v2247, %v2240
    %v2780 = vpack.c.b16 %v2255, %v2248
    %v2781 = vpack.c.b16 %v2256, %v2249
    %v2782 = vpack.c.b16 %v2257, %v2250
    %v2783 = vpack.c.b16 %v2258, %v2251
    %v2784 = vpack.c.b16 %v2259, %v2252
    %v2785 = vpack.c.b16 %v2260, %v2253
    %v2786 = vpack.c.b16 %v2261, %v2254
    %v2787 = vpack.c.b16 %v2269, %v2262
    %v2788 = vpack.c.b16 %v2270, %v2263
    %v2789 = vpack.c.b16 %v2271, %v2264
    %v2790 = vpack.c.b16 %v2272, %v2265
    %v2791 = vpack.c.b16 %v2273, %v2266
    %v2792 = vpack.c.b16 %v2274, %v2267
    %v2793 = vpack.c.b16 %v2275, %v2268
    %v2794 = vpack.c.b16 %v2283, %v2276
    %v2795 = vpack.c.b16 %v2284, %v2277
    %v2796 = vpack.c.b16 %v2285, %v2278
    %v2797 = vpack.c.b16 %v2286, %v2279
    %v2798 = vpack.c.b16 %v2287, %v2280
    %v2799 = vpack.c.b16 %v2288, %v2281
    %v2800 = vpack.c.b16 %v2289, %v2282
    %v2801 = vpack.c.b16 %v2297, %v2290
    %v2802 = vpack.c.b16 %v2298, %v2291
    %v2803 = vpack.c.b16 %v2299, %v2292
    %v2804 = vpack.c.b16 %v2300, %v2293
    %v2805 = vpack.c.b16 %v2301, %v2294
    %v2806 = vpack.c.b16 %v2302, %v2295
    %v2807 = vpack.c.b16 %v2303, %v2296
    %v2808 = vpack.c.b16 %v2311, %v2304
    %v2809 = vpack.c.b16 %v2312, %v2305
    %v2810 = vpack.c.b16 %v2313, %v2306
    %v2811 = vpack.c.b16 %v2314, %v2307
    %v2812 = vpack.c.b16 %v2315, %v2308
    %v2813 = vpack.c.b16 %v2316, %v2309
    %v2814 = vpack.c.b16 %v2317, %v2310
    %v2815 = vpack.c.b16 %v2325, %v2318
    %v2816 = vpack.c.b16 %v2326, %v2319
    %v2817 = vpack.c.b16 %v2327, %v2320
    %v2818 = vpack.c.b16 %v2328, %v2321
    %v2819 = vpack.c.b16 %v2329, %v2322
    %v2820 = vpack.c.b16 %v2330, %v2323
    %v2821 = vpack.c.b16 %v2331, %v2324
    %v2822 = vpack.c.b16 %v2339, %v2332
    %v2823 = vpack.c.b16 %v2340, %v2333
    %v2824 = vpack.c.b16 %v2341, %v2334
    %v2825 = vpack.c.b16 %v2342, %v2335
    %v2826 = vpack.c.b16 %v2343, %v2336
    %v2827 = vpack.c.b16 %v2344, %v2337
    %v2828 = vpack.c.b16 %v2345, %v2338
    %v2829 = vpack.c.b16 %v2353, %v2346
    %v2830 = vpack.c.b16 %v2354, %v2347
    %v2831 = vpack.c.b16 %v2355, %v2348
    %v2832 = vpack.c.b16 %v2356, %v2349
    %v2833 = vpack.c.b16 %v2357, %v2350
    %v2834 = vpack.c.b16 %v2358, %v2351
    %v2835 = vpack.c.b16 %v2359, %v2352
    %v2836 = vpack.c.b16 %v2367, %v2360
    %v2837 = vpack.c.b16 %v2368, %v2361
    %v2838 = vpack.c.b16 %v2369, %v2362
    %v2839 = vpack.c.b16 %v2370, %v2363
    %v2840 = vpack.c.b16 %v2371, %v2364
    %v2841 = vpack.c.b16 %v2372, %v2365
    %v2842 = vpack.c.b16 %v2373, %v2366
    %v2843 = vpack.c.b16 %v2381, %v2374
    %v2844 = vpack.c.b16 %v2382, %v2375
    %v2845 = vpack.c.b16 %v2383, %v2376
    %v2846 = vpack.c.b16 %v2384, %v2377
    %v2847 = vpack.c.b16 %v2385, %v2378
    %v2848 = vpack.c.b16 %v2386, %v2379
    %v2849 = vpack.c.b16 %v2387, %v2380
    %v2850 = vpack.c.b16 %v2395, %v2388
    %v2851 = vpack.c.b16 %v2396, %v2389
    %v2852 = vpack.c.b16 %v2397, %v2390
    %v2853 = vpack.c.b16 %v2398, %v2391
    %v2854 = vpack.c.b16 %v2399, %v2392
    %v2855 = vpack.c.b16 %v2400, %v2393
    %v2856 = vpack.c.b16 %v2401, %v2394
    %v2857 = vpack.c.b16 %v2409, %v2402
    %v2858 = vpack.c.b16 %v2410, %v2403
    %v2859 = vpack.c.b16 %v2411, %v2404
    %v2860 = vpack.c.b16 %v2412, %v2405
    %v2861 = vpack.c.b16 %v2413, %v2406
    %v2862 = vpack.c.b16 %v2414, %v2407
    %v2863 = vpack.c.b16 %v2415, %v2408
    %3312 = vmatpush.bf16.msra.mxu0 %v2465
    %3313 = vmatpush.bf16.msra.mxu0 %v2458
    %3314 = vmatpush.bf16.msra.mxu0 %v2451
    %3315 = vmatpush.bf16.msra.mxu0 %v2444
    %3316 = vmatpush.bf16.msra.mxu0 %v2437
    %3317 = vmatpush.bf16.msra.mxu0 %v2430
    %3318 = vmatpush.bf16.msra.mxu0 %v2423
    %3319 = vmatpush.bf16.msra.mxu0 %v2416
    %3320 = vmatmul.bf16.gmra.mxu0 %v984
    %v3321 = vpop.f32.mrf.mxu0
    %v3322 = vadd.f32 %v994, %v3321
    %v3323 = vpop.f32.mrf.mxu0
    %3324 = vdwg.mxu0
    %3325 = vmatpush.bf16.msra.mxu0 %v2521
    %3326 = vmatpush.bf16.msra.mxu0 %v2514
    %3327 = vmatpush.bf16.msra.mxu0 %v2507
    %3328 = vmatpush.bf16.msra.mxu0 %v2500
    %3329 = vmatpush.bf16.msra.mxu0 %v2493
    %3330 = vmatpush.bf16.msra.mxu0 %v2486
    %3331 = vmatpush.bf16.msra.mxu0 %v2479
    %3332 = vmatpush.bf16.msra.mxu0 %v2472
    %3333 = vmatmul.bf16.gmra.mxu0 %v985
    %v3334 = vpop.f32.mrf.mxu0
    %v3335 = vadd.f32 %v3322, %v3334
    %v3336 = vpop.f32.mrf.mxu0
    %3337 = vdwg.mxu0
    %3338 = vmatpush.bf16.msra.mxu0 %v2577
    %3339 = vmatpush.bf16.msra.mxu0 %v2570
    %3340 = vmatpush.bf16.msra.mxu0 %v2563
    %3341 = vmatpush.bf16.msra.mxu0 %v2556
    %3342 = vmatpush.bf16.msra.mxu0 %v2549
    %3343 = vmatpush.bf16.msra.mxu0 %v2542
    %3344 = vmatpush.bf16.msra.mxu0 %v2535
    %3345 = vmatpush.bf16.msra.mxu0 %v2528
    %3346 = vmatmul.bf16.gmra.mxu0 %v986
    %v3347 = vpop.f32.mrf.mxu0
    %v3348 = vadd.f32 %v3335, %v3347
    %v3349 = vpop.f32.mrf.mxu0
    %3350 = vdwg.mxu0
    %3351 = vmatpush.bf16.msra.mxu0 %v2633
    %3352 = vmatpush.bf16.msra.mxu0 %v2626
    %3353 = vmatpush.bf16.msra.mxu0 %v2619
    %3354 = vmatpush.bf16.msra.mxu0 %v2612
    %3355 = vmatpush.bf16.msra.mxu0 %v2605
    %3356 = vmatpush.bf16.msra.mxu0 %v2598
    %3357 = vmatpush.bf16.msra.mxu0 %v2591
    %3358 = vmatpush.bf16.msra.mxu0 %v2584
    %3359 = vmatmul.bf16.gmra.mxu0 %v987
    %v3360 = vpop.f32.mrf.mxu0
    %v3361 = vadd.f32 %v3348, %v3360
    %v3362 = vpop.f32.mrf.mxu0
    %3363 = vdwg.mxu0
    %3364 = vmatpush.bf16.msra.mxu0 %v2689
    %3365 = vmatpush.bf16.msra.mxu0 %v2682
    %3366 = vmatpush.bf16.msra.mxu0 %v2675
    %3367 = vmatpush.bf16.msra.mxu0 %v2668
    %3368 = vmatpush.bf16.msra.mxu0 %v2661
    %3369 = vmatpush.bf16.msra.mxu0 %v2654
    %3370 = vmatpush.bf16.msra.mxu0 %v2647
    %3371 = vmatpush.bf16.msra.mxu0 %v2640
    %3372 = vmatmul.bf16.gmra.mxu0 %v988
    %v3373 = vpop.f32.mrf.mxu0
    %v3374 = vadd.f32 %v3361, %v3373
    %v3375 = vpop.f32.mrf.mxu0
    %3376 = vdwg.mxu0
    %3377 = vmatpush.bf16.msra.mxu0 %v2745
    %3378 = vmatpush.bf16.msra.mxu0 %v2738
    %3379 = vmatpush.bf16.msra.mxu0 %v2731
    %3380 = vmatpush.bf16.msra.mxu0 %v2724
    %3381 = vmatpush.bf16.msra.mxu0 %v2717
    %3382 = vmatpush.bf16.msra.mxu0 %v2710
    %3383 = vmatpush.bf16.msra.mxu0 %v2703
    %3384 = vmatpush.bf16.msra.mxu0 %v2696
    %3385 = vmatmul.bf16.gmra.mxu0 %v989
    %v3386 = vpop.f32.mrf.mxu0
    %v3387 = vadd.f32 %v3374, %v3386
    %v3388 = vpop.f32.mrf.mxu0
    %3389 = vdwg.mxu0
    %3390 = vmatpush.bf16.msra.mxu0 %v2801
    %3391 = vmatpush.bf16.msra.mxu0 %v2794
    %3392 = vmatpush.bf16.msra.mxu0 %v2787
    %3393 = vmatpush.bf16.msra.mxu0 %v2780
    %3394 = vmatpush.bf16.msra.mxu0 %v2773
    %3395 = vmatpush.bf16.msra.mxu0 %v2766
    %3396 = vmatpush.bf16.msra.mxu0 %v2759
    %3397 = vmatpush.bf16.msra.mxu0 %v2752
    %3398 = vmatmul.bf16.gmra.mxu0 %v990
    %v3399 = vpop.f32.mrf.mxu0
    %v3400 = vadd.f32 %v3387, %v3399
    %v3401 = vpop.f32.mrf.mxu0
    %3402 = vdwg.mxu0
    %3403 = vmatpush.bf16.msra.mxu0 %v2857
    %3404 = vmatpush.bf16.msra.mxu0 %v2850
    %3405 = vmatpush.bf16.msra.mxu0 %v2843
    %3406 = vmatpush.bf16.msra.mxu0 %v2836
    %3407 = vmatpush.bf16.msra.mxu0 %v2829
    %3408 = vmatpush.bf16.msra.mxu0 %v2822
    %3409 = vmatpush.bf16.msra.mxu0 %v2815
    %3410 = vmatpush.bf16.msra.mxu0 %v2808
    %3411 = vmatmul.bf16.gmra.mxu0 %v991
    %v3412 = vpop.f32.mrf.mxu0
    %v3413 = vadd.f32 %v3400, %v3412
    %v3414 = vpop.f32.mrf.mxu0
    %3415 = vdwg.mxu0
    %3416 = vmatpush.bf16.msra.mxu0 %v2466
    %3417 = vmatpush.bf16.msra.mxu0 %v2459
    %3418 = vmatpush.bf16.msra.mxu0 %v2452
    %3419 = vmatpush.bf16.msra.mxu0 %v2445
    %3420 = vmatpush.bf16.msra.mxu0 %v2438
    %3421 = vmatpush.bf16.msra.mxu0 %v2431
    %3422 = vmatpush.bf16.msra.mxu0 %v2424
    %3423 = vmatpush.bf16.msra.mxu0 %v2417
    %3424 = vmatmul.bf16.gmra.mxu0 %v984
    %v3425 = vpop.f32.mrf.mxu0
    %v3426 = vadd.f32 %v995, %v3425
    %v3427 = vpop.f32.mrf.mxu0
    %3428 = vdwg.mxu0
    %3429 = vmatpush.bf16.msra.mxu0 %v2522
    %3430 = vmatpush.bf16.msra.mxu0 %v2515
    %3431 = vmatpush.bf16.msra.mxu0 %v2508
    %3432 = vmatpush.bf16.msra.mxu0 %v2501
    %3433 = vmatpush.bf16.msra.mxu0 %v2494
    %3434 = vmatpush.bf16.msra.mxu0 %v2487
    %3435 = vmatpush.bf16.msra.mxu0 %v2480
    %3436 = vmatpush.bf16.msra.mxu0 %v2473
    %3437 = vmatmul.bf16.gmra.mxu0 %v985
    %v3438 = vpop.f32.mrf.mxu0
    %v3439 = vadd.f32 %v3426, %v3438
    %v3440 = vpop.f32.mrf.mxu0
    %3441 = vdwg.mxu0
    %3442 = vmatpush.bf16.msra.mxu0 %v2578
    %3443 = vmatpush.bf16.msra.mxu0 %v2571
    %3444 = vmatpush.bf16.msra.mxu0 %v2564
    %3445 = vmatpush.bf16.msra.mxu0 %v2557
    %3446 = vmatpush.bf16.msra.mxu0 %v2550
    %3447 = vmatpush.bf16.msra.mxu0 %v2543
    %3448 = vmatpush.bf16.msra.mxu0 %v2536
    %3449 = vmatpush.bf16.msra.mxu0 %v2529
    %3450 = vmatmul.bf16.gmra.mxu0 %v986
    %v3451 = vpop.f32.mrf.mxu0
    %v3452 = vadd.f32 %v3439, %v3451
    %v3453 = vpop.f32.mrf.mxu0
    %3454 = vdwg.mxu0
    %3455 = vmatpush.bf16.msra.mxu0 %v2634
    %3456 = vmatpush.bf16.msra.mxu0 %v2627
    %3457 = vmatpush.bf16.msra.mxu0 %v2620
    %3458 = vmatpush.bf16.msra.mxu0 %v2613
    %3459 = vmatpush.bf16.msra.mxu0 %v2606
    %3460 = vmatpush.bf16.msra.mxu0 %v2599
    %3461 = vmatpush.bf16.msra.mxu0 %v2592
    %3462 = vmatpush.bf16.msra.mxu0 %v2585
    %3463 = vmatmul.bf16.gmra.mxu0 %v987
    %v3464 = vpop.f32.mrf.mxu0
    %v3465 = vadd.f32 %v3452, %v3464
    %v3466 = vpop.f32.mrf.mxu0
    %3467 = vdwg.mxu0
    %3468 = vmatpush.bf16.msra.mxu0 %v2690
    %3469 = vmatpush.bf16.msra.mxu0 %v2683
    %3470 = vmatpush.bf16.msra.mxu0 %v2676
    %3471 = vmatpush.bf16.msra.mxu0 %v2669
    %3472 = vmatpush.bf16.msra.mxu0 %v2662
    %3473 = vmatpush.bf16.msra.mxu0 %v2655
    %3474 = vmatpush.bf16.msra.mxu0 %v2648
    %3475 = vmatpush.bf16.msra.mxu0 %v2641
    %3476 = vmatmul.bf16.gmra.mxu0 %v988
    %v3477 = vpop.f32.mrf.mxu0
    %v3478 = vadd.f32 %v3465, %v3477
    %v3479 = vpop.f32.mrf.mxu0
    %3480 = vdwg.mxu0
    %3481 = vmatpush.bf16.msra.mxu0 %v2746
    %3482 = vmatpush.bf16.msra.mxu0 %v2739
    %3483 = vmatpush.bf16.msra.mxu0 %v2732
    %3484 = vmatpush.bf16.msra.mxu0 %v2725
    %3485 = vmatpush.bf16.msra.mxu0 %v2718
    %3486 = vmatpush.bf16.msra.mxu0 %v2711
    %3487 = vmatpush.bf16.msra.mxu0 %v2704
    %3488 = vmatpush.bf16.msra.mxu0 %v2697
    %3489 = vmatmul.bf16.gmra.mxu0 %v989
    %v3490 = vpop.f32.mrf.mxu0
    %v3491 = vadd.f32 %v3478, %v3490
    %v3492 = vpop.f32.mrf.mxu0
    %3493 = vdwg.mxu0
    %3494 = vmatpush.bf16.msra.mxu0 %v2802
    %3495 = vmatpush.bf16.msra.mxu0 %v2795
    %3496 = vmatpush.bf16.msra.mxu0 %v2788
    %3497 = vmatpush.bf16.msra.mxu0 %v2781
    %3498 = vmatpush.bf16.msra.mxu0 %v2774
    %3499 = vmatpush.bf16.msra.mxu0 %v2767
    %3500 = vmatpush.bf16.msra.mxu0 %v2760
    %3501 = vmatpush.bf16.msra.mxu0 %v2753
    %3502 = vmatmul.bf16.gmra.mxu0 %v990
    %v3503 = vpop.f32.mrf.mxu0
    %v3504 = vadd.f32 %v3491, %v3503
    %v3505 = vpop.f32.mrf.mxu0
    %3506 = vdwg.mxu0
    %3507 = vmatpush.bf16.msra.mxu0 %v2858
    %3508 = vmatpush.bf16.msra.mxu0 %v2851
    %3509 = vmatpush.bf16.msra.mxu0 %v2844
    %3510 = vmatpush.bf16.msra.mxu0 %v2837
    %3511 = vmatpush.bf16.msra.mxu0 %v2830
    %3512 = vmatpush.bf16.msra.mxu0 %v2823
    %3513 = vmatpush.bf16.msra.mxu0 %v2816
    %3514 = vmatpush.bf16.msra.mxu0 %v2809
    %3515 = vmatmul.bf16.gmra.mxu0 %v991
    %v3516 = vpop.f32.mrf.mxu0
    %v3517 = vadd.f32 %v3504, %v3516
    %v3518 = vpop.f32.mrf.mxu0
    %3519 = vdwg.mxu0
    %3520 = vmatpush.bf16.msra.mxu0 %v2467
    %3521 = vmatpush.bf16.msra.mxu0 %v2460
    %3522 = vmatpush.bf16.msra.mxu0 %v2453
    %3523 = vmatpush.bf16.msra.mxu0 %v2446
    %3524 = vmatpush.bf16.msra.mxu0 %v2439
    %3525 = vmatpush.bf16.msra.mxu0 %v2432
    %3526 = vmatpush.bf16.msra.mxu0 %v2425
    %3527 = vmatpush.bf16.msra.mxu0 %v2418
    %3528 = vmatmul.bf16.gmra.mxu0 %v984
    %v3529 = vpop.f32.mrf.mxu0
    %v3530 = vadd.f32 %v996, %v3529
    %v3531 = vpop.f32.mrf.mxu0
    %3532 = vdwg.mxu0
    %3533 = vmatpush.bf16.msra.mxu0 %v2523
    %3534 = vmatpush.bf16.msra.mxu0 %v2516
    %3535 = vmatpush.bf16.msra.mxu0 %v2509
    %3536 = vmatpush.bf16.msra.mxu0 %v2502
    %3537 = vmatpush.bf16.msra.mxu0 %v2495
    %3538 = vmatpush.bf16.msra.mxu0 %v2488
    %3539 = vmatpush.bf16.msra.mxu0 %v2481
    %3540 = vmatpush.bf16.msra.mxu0 %v2474
    %3541 = vmatmul.bf16.gmra.mxu0 %v985
    %v3542 = vpop.f32.mrf.mxu0
    %v3543 = vadd.f32 %v3530, %v3542
    %v3544 = vpop.f32.mrf.mxu0
    %3545 = vdwg.mxu0
    %3546 = vmatpush.bf16.msra.mxu0 %v2579
    %3547 = vmatpush.bf16.msra.mxu0 %v2572
    %3548 = vmatpush.bf16.msra.mxu0 %v2565
    %3549 = vmatpush.bf16.msra.mxu0 %v2558
    %3550 = vmatpush.bf16.msra.mxu0 %v2551
    %3551 = vmatpush.bf16.msra.mxu0 %v2544
    %3552 = vmatpush.bf16.msra.mxu0 %v2537
    %3553 = vmatpush.bf16.msra.mxu0 %v2530
    %3554 = vmatmul.bf16.gmra.mxu0 %v986
    %v3555 = vpop.f32.mrf.mxu0
    %v3556 = vadd.f32 %v3543, %v3555
    %v3557 = vpop.f32.mrf.mxu0
    %3558 = vdwg.mxu0
    %3559 = vmatpush.bf16.msra.mxu0 %v2635
    %3560 = vmatpush.bf16.msra.mxu0 %v2628
    %3561 = vmatpush.bf16.msra.mxu0 %v2621
    %3562 = vmatpush.bf16.msra.mxu0 %v2614
    %3563 = vmatpush.bf16.msra.mxu0 %v2607
    %3564 = vmatpush.bf16.msra.mxu0 %v2600
    %3565 = vmatpush.bf16.msra.mxu0 %v2593
    %3566 = vmatpush.bf16.msra.mxu0 %v2586
    %3567 = vmatmul.bf16.gmra.mxu0 %v987
    %v3568 = vpop.f32.mrf.mxu0
    %v3569 = vadd.f32 %v3556, %v3568
    %v3570 = vpop.f32.mrf.mxu0
    %3571 = vdwg.mxu0
    %3572 = vmatpush.bf16.msra.mxu0 %v2691
    %3573 = vmatpush.bf16.msra.mxu0 %v2684
    %3574 = vmatpush.bf16.msra.mxu0 %v2677
    %3575 = vmatpush.bf16.msra.mxu0 %v2670
    %3576 = vmatpush.bf16.msra.mxu0 %v2663
    %3577 = vmatpush.bf16.msra.mxu0 %v2656
    %3578 = vmatpush.bf16.msra.mxu0 %v2649
    %3579 = vmatpush.bf16.msra.mxu0 %v2642
    %3580 = vmatmul.bf16.gmra.mxu0 %v988
    %v3581 = vpop.f32.mrf.mxu0
    %v3582 = vadd.f32 %v3569, %v3581
    %v3583 = vpop.f32.mrf.mxu0
    %3584 = vdwg.mxu0
    %3585 = vmatpush.bf16.msra.mxu0 %v2747
    %3586 = vmatpush.bf16.msra.mxu0 %v2740
    %3587 = vmatpush.bf16.msra.mxu0 %v2733
    %3588 = vmatpush.bf16.msra.mxu0 %v2726
    %3589 = vmatpush.bf16.msra.mxu0 %v2719
    %3590 = vmatpush.bf16.msra.mxu0 %v2712
    %3591 = vmatpush.bf16.msra.mxu0 %v2705
    %3592 = vmatpush.bf16.msra.mxu0 %v2698
    %3593 = vmatmul.bf16.gmra.mxu0 %v989
    %v3594 = vpop.f32.mrf.mxu0
    %v3595 = vadd.f32 %v3582, %v3594
    %v3596 = vpop.f32.mrf.mxu0
    %3597 = vdwg.mxu0
    %3598 = vmatpush.bf16.msra.mxu0 %v2803
    %3599 = vmatpush.bf16.msra.mxu0 %v2796
    %3600 = vmatpush.bf16.msra.mxu0 %v2789
    %3601 = vmatpush.bf16.msra.mxu0 %v2782
    %3602 = vmatpush.bf16.msra.mxu0 %v2775
    %3603 = vmatpush.bf16.msra.mxu0 %v2768
    %3604 = vmatpush.bf16.msra.mxu0 %v2761
    %3605 = vmatpush.bf16.msra.mxu0 %v2754
    %3606 = vmatmul.bf16.gmra.mxu0 %v990
    %v3607 = vpop.f32.mrf.mxu0
    %v3608 = vadd.f32 %v3595, %v3607
    %v3609 = vpop.f32.mrf.mxu0
    %3610 = vdwg.mxu0
    %3611 = vmatpush.bf16.msra.mxu0 %v2859
    %3612 = vmatpush.bf16.msra.mxu0 %v2852
    %3613 = vmatpush.bf16.msra.mxu0 %v2845
    %3614 = vmatpush.bf16.msra.mxu0 %v2838
    %3615 = vmatpush.bf16.msra.mxu0 %v2831
    %3616 = vmatpush.bf16.msra.mxu0 %v2824
    %3617 = vmatpush.bf16.msra.mxu0 %v2817
    %3618 = vmatpush.bf16.msra.mxu0 %v2810
    %3619 = vmatmul.bf16.gmra.mxu0 %v991
    %v3620 = vpop.f32.mrf.mxu0
    %v3621 = vadd.f32 %v3608, %v3620
    %v3622 = vpop.f32.mrf.mxu0
    %3623 = vdwg.mxu0
    %3624 = vmatpush.bf16.msra.mxu0 %v2468
    %3625 = vmatpush.bf16.msra.mxu0 %v2461
    %3626 = vmatpush.bf16.msra.mxu0 %v2454
    %3627 = vmatpush.bf16.msra.mxu0 %v2447
    %3628 = vmatpush.bf16.msra.mxu0 %v2440
    %3629 = vmatpush.bf16.msra.mxu0 %v2433
    %3630 = vmatpush.bf16.msra.mxu0 %v2426
    %3631 = vmatpush.bf16.msra.mxu0 %v2419
    %3632 = vmatmul.bf16.gmra.mxu0 %v984
    %v3633 = vpop.f32.mrf.mxu0
    %v3634 = vadd.f32 %v997, %v3633
    %v3635 = vpop.f32.mrf.mxu0
    %3636 = vdwg.mxu0
    %3637 = vmatpush.bf16.msra.mxu0 %v2524
    %3638 = vmatpush.bf16.msra.mxu0 %v2517
    %3639 = vmatpush.bf16.msra.mxu0 %v2510
    %3640 = vmatpush.bf16.msra.mxu0 %v2503
    %3641 = vmatpush.bf16.msra.mxu0 %v2496
    %3642 = vmatpush.bf16.msra.mxu0 %v2489
    %3643 = vmatpush.bf16.msra.mxu0 %v2482
    %3644 = vmatpush.bf16.msra.mxu0 %v2475
    %3645 = vmatmul.bf16.gmra.mxu0 %v985
    %v3646 = vpop.f32.mrf.mxu0
    %v3647 = vadd.f32 %v3634, %v3646
    %v3648 = vpop.f32.mrf.mxu0
    %3649 = vdwg.mxu0
    %3650 = vmatpush.bf16.msra.mxu0 %v2580
    %3651 = vmatpush.bf16.msra.mxu0 %v2573
    %3652 = vmatpush.bf16.msra.mxu0 %v2566
    %3653 = vmatpush.bf16.msra.mxu0 %v2559
    %3654 = vmatpush.bf16.msra.mxu0 %v2552
    %3655 = vmatpush.bf16.msra.mxu0 %v2545
    %3656 = vmatpush.bf16.msra.mxu0 %v2538
    %3657 = vmatpush.bf16.msra.mxu0 %v2531
    %3658 = vmatmul.bf16.gmra.mxu0 %v986
    %v3659 = vpop.f32.mrf.mxu0
    %v3660 = vadd.f32 %v3647, %v3659
    %v3661 = vpop.f32.mrf.mxu0
    %3662 = vdwg.mxu0
    %3663 = vmatpush.bf16.msra.mxu0 %v2636
    %3664 = vmatpush.bf16.msra.mxu0 %v2629
    %3665 = vmatpush.bf16.msra.mxu0 %v2622
    %3666 = vmatpush.bf16.msra.mxu0 %v2615
    %3667 = vmatpush.bf16.msra.mxu0 %v2608
    %3668 = vmatpush.bf16.msra.mxu0 %v2601
    %3669 = vmatpush.bf16.msra.mxu0 %v2594
    %3670 = vmatpush.bf16.msra.mxu0 %v2587
    %3671 = vmatmul.bf16.gmra.mxu0 %v987
    %v3672 = vpop.f32.mrf.mxu0
    %v3673 = vadd.f32 %v3660, %v3672
    %v3674 = vpop.f32.mrf.mxu0
    %3675 = vdwg.mxu0
    %3676 = vmatpush.bf16.msra.mxu0 %v2692
    %3677 = vmatpush.bf16.msra.mxu0 %v2685
    %3678 = vmatpush.bf16.msra.mxu0 %v2678
    %3679 = vmatpush.bf16.msra.mxu0 %v2671
    %3680 = vmatpush.bf16.msra.mxu0 %v2664
    %3681 = vmatpush.bf16.msra.mxu0 %v2657
    %3682 = vmatpush.bf16.msra.mxu0 %v2650
    %3683 = vmatpush.bf16.msra.mxu0 %v2643
    %3684 = vmatmul.bf16.gmra.mxu0 %v988
    %v3685 = vpop.f32.mrf.mxu0
    %v3686 = vadd.f32 %v3673, %v3685
    %v3687 = vpop.f32.mrf.mxu0
    %3688 = vdwg.mxu0
    %3689 = vmatpush.bf16.msra.mxu0 %v2748
    %3690 = vmatpush.bf16.msra.mxu0 %v2741
    %3691 = vmatpush.bf16.msra.mxu0 %v2734
    %3692 = vmatpush.bf16.msra.mxu0 %v2727
    %3693 = vmatpush.bf16.msra.mxu0 %v2720
    %3694 = vmatpush.bf16.msra.mxu0 %v2713
    %3695 = vmatpush.bf16.msra.mxu0 %v2706
    %3696 = vmatpush.bf16.msra.mxu0 %v2699
    %3697 = vmatmul.bf16.gmra.mxu0 %v989
    %v3698 = vpop.f32.mrf.mxu0
    %v3699 = vadd.f32 %v3686, %v3698
    %v3700 = vpop.f32.mrf.mxu0
    %3701 = vdwg.mxu0
    %3702 = vmatpush.bf16.msra.mxu0 %v2804
    %3703 = vmatpush.bf16.msra.mxu0 %v2797
    %3704 = vmatpush.bf16.msra.mxu0 %v2790
    %3705 = vmatpush.bf16.msra.mxu0 %v2783
    %3706 = vmatpush.bf16.msra.mxu0 %v2776
    %3707 = vmatpush.bf16.msra.mxu0 %v2769
    %3708 = vmatpush.bf16.msra.mxu0 %v2762
    %3709 = vmatpush.bf16.msra.mxu0 %v2755
    %3710 = vmatmul.bf16.gmra.mxu0 %v990
    %v3711 = vpop.f32.mrf.mxu0
    %v3712 = vadd.f32 %v3699, %v3711
    %v3713 = vpop.f32.mrf.mxu0
    %3714 = vdwg.mxu0
    %3715 = vmatpush.bf16.msra.mxu0 %v2860
    %3716 = vmatpush.bf16.msra.mxu0 %v2853
    %3717 = vmatpush.bf16.msra.mxu0 %v2846
    %3718 = vmatpush.bf16.msra.mxu0 %v2839
    %3719 = vmatpush.bf16.msra.mxu0 %v2832
    %3720 = vmatpush.bf16.msra.mxu0 %v2825
    %3721 = vmatpush.bf16.msra.mxu0 %v2818
    %3722 = vmatpush.bf16.msra.mxu0 %v2811
    %3723 = vmatmul.bf16.gmra.mxu0 %v991
    %v3724 = vpop.f32.mrf.mxu0
    %v3725 = vadd.f32 %v3712, %v3724
    %v3726 = vpop.f32.mrf.mxu0
    %3727 = vdwg.mxu0
    %3728 = vmatpush.bf16.msra.mxu0 %v2469
    %3729 = vmatpush.bf16.msra.mxu0 %v2462
    %3730 = vmatpush.bf16.msra.mxu0 %v2455
    %3731 = vmatpush.bf16.msra.mxu0 %v2448
    %3732 = vmatpush.bf16.msra.mxu0 %v2441
    %3733 = vmatpush.bf16.msra.mxu0 %v2434
    %3734 = vmatpush.bf16.msra.mxu0 %v2427
    %3735 = vmatpush.bf16.msra.mxu0 %v2420
    %3736 = vmatmul.bf16.gmra.mxu0 %v984
    %v3737 = vpop.f32.mrf.mxu0
    %v3738 = vadd.f32 %v998, %v3737
    %v3739 = vpop.f32.mrf.mxu0
    %3740 = vdwg.mxu0
    %3741 = vmatpush.bf16.msra.mxu0 %v2525
    %3742 = vmatpush.bf16.msra.mxu0 %v2518
    %3743 = vmatpush.bf16.msra.mxu0 %v2511
    %3744 = vmatpush.bf16.msra.mxu0 %v2504
    %3745 = vmatpush.bf16.msra.mxu0 %v2497
    %3746 = vmatpush.bf16.msra.mxu0 %v2490
    %3747 = vmatpush.bf16.msra.mxu0 %v2483
    %3748 = vmatpush.bf16.msra.mxu0 %v2476
    %3749 = vmatmul.bf16.gmra.mxu0 %v985
    %v3750 = vpop.f32.mrf.mxu0
    %v3751 = vadd.f32 %v3738, %v3750
    %v3752 = vpop.f32.mrf.mxu0
    %3753 = vdwg.mxu0
    %3754 = vmatpush.bf16.msra.mxu0 %v2581
    %3755 = vmatpush.bf16.msra.mxu0 %v2574
    %3756 = vmatpush.bf16.msra.mxu0 %v2567
    %3757 = vmatpush.bf16.msra.mxu0 %v2560
    %3758 = vmatpush.bf16.msra.mxu0 %v2553
    %3759 = vmatpush.bf16.msra.mxu0 %v2546
    %3760 = vmatpush.bf16.msra.mxu0 %v2539
    %3761 = vmatpush.bf16.msra.mxu0 %v2532
    %3762 = vmatmul.bf16.gmra.mxu0 %v986
    %v3763 = vpop.f32.mrf.mxu0
    %v3764 = vadd.f32 %v3751, %v3763
    %v3765 = vpop.f32.mrf.mxu0
    %3766 = vdwg.mxu0
    %3767 = vmatpush.bf16.msra.mxu0 %v2637
    %3768 = vmatpush.bf16.msra.mxu0 %v2630
    %3769 = vmatpush.bf16.msra.mxu0 %v2623
    %3770 = vmatpush.bf16.msra.mxu0 %v2616
    %3771 = vmatpush.bf16.msra.mxu0 %v2609
    %3772 = vmatpush.bf16.msra.mxu0 %v2602
    %3773 = vmatpush.bf16.msra.mxu0 %v2595
    %3774 = vmatpush.bf16.msra.mxu0 %v2588
    %3775 = vmatmul.bf16.gmra.mxu0 %v987
    %v3776 = vpop.f32.mrf.mxu0
    %v3777 = vadd.f32 %v3764, %v3776
    %v3778 = vpop.f32.mrf.mxu0
    %3779 = vdwg.mxu0
    %3780 = vmatpush.bf16.msra.mxu0 %v2693
    %3781 = vmatpush.bf16.msra.mxu0 %v2686
    %3782 = vmatpush.bf16.msra.mxu0 %v2679
    %3783 = vmatpush.bf16.msra.mxu0 %v2672
    %3784 = vmatpush.bf16.msra.mxu0 %v2665
    %3785 = vmatpush.bf16.msra.mxu0 %v2658
    %3786 = vmatpush.bf16.msra.mxu0 %v2651
    %3787 = vmatpush.bf16.msra.mxu0 %v2644
    %3788 = vmatmul.bf16.gmra.mxu0 %v988
    %v3789 = vpop.f32.mrf.mxu0
    %v3790 = vadd.f32 %v3777, %v3789
    %v3791 = vpop.f32.mrf.mxu0
    %3792 = vdwg.mxu0
    %3793 = vmatpush.bf16.msra.mxu0 %v2749
    %3794 = vmatpush.bf16.msra.mxu0 %v2742
    %3795 = vmatpush.bf16.msra.mxu0 %v2735
    %3796 = vmatpush.bf16.msra.mxu0 %v2728
    %3797 = vmatpush.bf16.msra.mxu0 %v2721
    %3798 = vmatpush.bf16.msra.mxu0 %v2714
    %3799 = vmatpush.bf16.msra.mxu0 %v2707
    %3800 = vmatpush.bf16.msra.mxu0 %v2700
    %3801 = vmatmul.bf16.gmra.mxu0 %v989
    %v3802 = vpop.f32.mrf.mxu0
    %v3803 = vadd.f32 %v3790, %v3802
    %v3804 = vpop.f32.mrf.mxu0
    %3805 = vdwg.mxu0
    %3806 = vmatpush.bf16.msra.mxu0 %v2805
    %3807 = vmatpush.bf16.msra.mxu0 %v2798
    %3808 = vmatpush.bf16.msra.mxu0 %v2791
    %3809 = vmatpush.bf16.msra.mxu0 %v2784
    %3810 = vmatpush.bf16.msra.mxu0 %v2777
    %3811 = vmatpush.bf16.msra.mxu0 %v2770
    %3812 = vmatpush.bf16.msra.mxu0 %v2763
    %3813 = vmatpush.bf16.msra.mxu0 %v2756
    %3814 = vmatmul.bf16.gmra.mxu0 %v990
    %v3815 = vpop.f32.mrf.mxu0
    %v3816 = vadd.f32 %v3803, %v3815
    %v3817 = vpop.f32.mrf.mxu0
    %3818 = vdwg.mxu0
    %3819 = vmatpush.bf16.msra.mxu0 %v2861
    %3820 = vmatpush.bf16.msra.mxu0 %v2854
    %3821 = vmatpush.bf16.msra.mxu0 %v2847
    %3822 = vmatpush.bf16.msra.mxu0 %v2840
    %3823 = vmatpush.bf16.msra.mxu0 %v2833
    %3824 = vmatpush.bf16.msra.mxu0 %v2826
    %3825 = vmatpush.bf16.msra.mxu0 %v2819
    %3826 = vmatpush.bf16.msra.mxu0 %v2812
    %3827 = vmatmul.bf16.gmra.mxu0 %v991
    %v3828 = vpop.f32.mrf.mxu0
    %v3829 = vadd.f32 %v3816, %v3828
    %v3830 = vpop.f32.mrf.mxu0
    %3831 = vdwg.mxu0
    %3832 = vmatpush.bf16.msra.mxu0 %v2470
    %3833 = vmatpush.bf16.msra.mxu0 %v2463
    %3834 = vmatpush.bf16.msra.mxu0 %v2456
    %3835 = vmatpush.bf16.msra.mxu0 %v2449
    %3836 = vmatpush.bf16.msra.mxu0 %v2442
    %3837 = vmatpush.bf16.msra.mxu0 %v2435
    %3838 = vmatpush.bf16.msra.mxu0 %v2428
    %3839 = vmatpush.bf16.msra.mxu0 %v2421
    %3840 = vmatmul.bf16.gmra.mxu0 %v984
    %v3841 = vpop.f32.mrf.mxu0
    %v3842 = vadd.f32 %v999, %v3841
    %v3843 = vpop.f32.mrf.mxu0
    %3844 = vdwg.mxu0
    %3845 = vmatpush.bf16.msra.mxu0 %v2526
    %3846 = vmatpush.bf16.msra.mxu0 %v2519
    %3847 = vmatpush.bf16.msra.mxu0 %v2512
    %3848 = vmatpush.bf16.msra.mxu0 %v2505
    %3849 = vmatpush.bf16.msra.mxu0 %v2498
    %3850 = vmatpush.bf16.msra.mxu0 %v2491
    %3851 = vmatpush.bf16.msra.mxu0 %v2484
    %3852 = vmatpush.bf16.msra.mxu0 %v2477
    %3853 = vmatmul.bf16.gmra.mxu0 %v985
    %v3854 = vpop.f32.mrf.mxu0
    %v3855 = vadd.f32 %v3842, %v3854
    %v3856 = vpop.f32.mrf.mxu0
    %3857 = vdwg.mxu0
    %3858 = vmatpush.bf16.msra.mxu0 %v2582
    %3859 = vmatpush.bf16.msra.mxu0 %v2575
    %3860 = vmatpush.bf16.msra.mxu0 %v2568
    %3861 = vmatpush.bf16.msra.mxu0 %v2561
    %3862 = vmatpush.bf16.msra.mxu0 %v2554
    %3863 = vmatpush.bf16.msra.mxu0 %v2547
    %3864 = vmatpush.bf16.msra.mxu0 %v2540
    %3865 = vmatpush.bf16.msra.mxu0 %v2533
    %3866 = vmatmul.bf16.gmra.mxu0 %v986
    %v3867 = vpop.f32.mrf.mxu0
    %v3868 = vadd.f32 %v3855, %v3867
    %v3869 = vpop.f32.mrf.mxu0
    %3870 = vdwg.mxu0
    %3871 = vmatpush.bf16.msra.mxu0 %v2638
    %3872 = vmatpush.bf16.msra.mxu0 %v2631
    %3873 = vmatpush.bf16.msra.mxu0 %v2624
    %3874 = vmatpush.bf16.msra.mxu0 %v2617
    %3875 = vmatpush.bf16.msra.mxu0 %v2610
    %3876 = vmatpush.bf16.msra.mxu0 %v2603
    %3877 = vmatpush.bf16.msra.mxu0 %v2596
    %3878 = vmatpush.bf16.msra.mxu0 %v2589
    %3879 = vmatmul.bf16.gmra.mxu0 %v987
    %v3880 = vpop.f32.mrf.mxu0
    %v3881 = vadd.f32 %v3868, %v3880
    %v3882 = vpop.f32.mrf.mxu0
    %3883 = vdwg.mxu0
    %3884 = vmatpush.bf16.msra.mxu0 %v2694
    %3885 = vmatpush.bf16.msra.mxu0 %v2687
    %3886 = vmatpush.bf16.msra.mxu0 %v2680
    %3887 = vmatpush.bf16.msra.mxu0 %v2673
    %3888 = vmatpush.bf16.msra.mxu0 %v2666
    %3889 = vmatpush.bf16.msra.mxu0 %v2659
    %3890 = vmatpush.bf16.msra.mxu0 %v2652
    %3891 = vmatpush.bf16.msra.mxu0 %v2645
    %3892 = vmatmul.bf16.gmra.mxu0 %v988
    %v3893 = vpop.f32.mrf.mxu0
    %v3894 = vadd.f32 %v3881, %v3893
    %v3895 = vpop.f32.mrf.mxu0
    %3896 = vdwg.mxu0
    %3897 = vmatpush.bf16.msra.mxu0 %v2750
    %3898 = vmatpush.bf16.msra.mxu0 %v2743
    %3899 = vmatpush.bf16.msra.mxu0 %v2736
    %3900 = vmatpush.bf16.msra.mxu0 %v2729
    %3901 = vmatpush.bf16.msra.mxu0 %v2722
    %3902 = vmatpush.bf16.msra.mxu0 %v2715
    %3903 = vmatpush.bf16.msra.mxu0 %v2708
    %3904 = vmatpush.bf16.msra.mxu0 %v2701
    %3905 = vmatmul.bf16.gmra.mxu0 %v989
    %v3906 = vpop.f32.mrf.mxu0
    %v3907 = vadd.f32 %v3894, %v3906
    %v3908 = vpop.f32.mrf.mxu0
    %3909 = vdwg.mxu0
    %3910 = vmatpush.bf16.msra.mxu0 %v2806
    %3911 = vmatpush.bf16.msra.mxu0 %v2799
    %3912 = vmatpush.bf16.msra.mxu0 %v2792
    %3913 = vmatpush.bf16.msra.mxu0 %v2785
    %3914 = vmatpush.bf16.msra.mxu0 %v2778
    %3915 = vmatpush.bf16.msra.mxu0 %v2771
    %3916 = vmatpush.bf16.msra.mxu0 %v2764
    %3917 = vmatpush.bf16.msra.mxu0 %v2757
    %3918 = vmatmul.bf16.gmra.mxu0 %v990
    %v3919 = vpop.f32.mrf.mxu0
    %v3920 = vadd.f32 %v3907, %v3919
    %v3921 = vpop.f32.mrf.mxu0
    %3922 = vdwg.mxu0
    %3923 = vmatpush.bf16.msra.mxu0 %v2862
    %3924 = vmatpush.bf16.msra.mxu0 %v2855
    %3925 = vmatpush.bf16.msra.mxu0 %v2848
    %3926 = vmatpush.bf16.msra.mxu0 %v2841
    %3927 = vmatpush.bf16.msra.mxu0 %v2834
    %3928 = vmatpush.bf16.msra.mxu0 %v2827
    %3929 = vmatpush.bf16.msra.mxu0 %v2820
    %3930 = vmatpush.bf16.msra.mxu0 %v2813
    %3931 = vmatmul.bf16.gmra.mxu0 %v991
    %v3932 = vpop.f32.mrf.mxu0
    %v3933 = vadd.f32 %v3920, %v3932
    %v3934 = vpop.f32.mrf.mxu0
    %3935 = vdwg.mxu0
    %3936 = vmatpush.bf16.msra.mxu0 %v2471
    %3937 = vmatpush.bf16.msra.mxu0 %v2464
    %3938 = vmatpush.bf16.msra.mxu0 %v2457
    %3939 = vmatpush.bf16.msra.mxu0 %v2450
    %3940 = vmatpush.bf16.msra.mxu0 %v2443
    %3941 = vmatpush.bf16.msra.mxu0 %v2436
    %3942 = vmatpush.bf16.msra.mxu0 %v2429
    %3943 = vmatpush.bf16.msra.mxu0 %v2422
    %3944 = vmatmul.bf16.gmra.mxu0 %v984
    %v3945 = vpop.f32.mrf.mxu0
    %v3946 = vadd.f32 %v1000, %v3945
    %v3947 = vpop.f32.mrf.mxu0
    %3948 = vdwg.mxu0
    %3949 = vmatpush.bf16.msra.mxu0 %v2527
    %3950 = vmatpush.bf16.msra.mxu0 %v2520
    %3951 = vmatpush.bf16.msra.mxu0 %v2513
    %3952 = vmatpush.bf16.msra.mxu0 %v2506
    %3953 = vmatpush.bf16.msra.mxu0 %v2499
    %3954 = vmatpush.bf16.msra.mxu0 %v2492
    %3955 = vmatpush.bf16.msra.mxu0 %v2485
    %3956 = vmatpush.bf16.msra.mxu0 %v2478
    %3957 = vmatmul.bf16.gmra.mxu0 %v985
    %v3958 = vpop.f32.mrf.mxu0
    %v3959 = vadd.f32 %v3946, %v3958
    %v3960 = vpop.f32.mrf.mxu0
    %3961 = vdwg.mxu0
    %3962 = vmatpush.bf16.msra.mxu0 %v2583
    %3963 = vmatpush.bf16.msra.mxu0 %v2576
    %3964 = vmatpush.bf16.msra.mxu0 %v2569
    %3965 = vmatpush.bf16.msra.mxu0 %v2562
    %3966 = vmatpush.bf16.msra.mxu0 %v2555
    %3967 = vmatpush.bf16.msra.mxu0 %v2548
    %3968 = vmatpush.bf16.msra.mxu0 %v2541
    %3969 = vmatpush.bf16.msra.mxu0 %v2534
    %3970 = vmatmul.bf16.gmra.mxu0 %v986
    %v3971 = vpop.f32.mrf.mxu0
    %v3972 = vadd.f32 %v3959, %v3971
    %v3973 = vpop.f32.mrf.mxu0
    %3974 = vdwg.mxu0
    %3975 = vmatpush.bf16.msra.mxu0 %v2639
    %3976 = vmatpush.bf16.msra.mxu0 %v2632
    %3977 = vmatpush.bf16.msra.mxu0 %v2625
    %3978 = vmatpush.bf16.msra.mxu0 %v2618
    %3979 = vmatpush.bf16.msra.mxu0 %v2611
    %3980 = vmatpush.bf16.msra.mxu0 %v2604
    %3981 = vmatpush.bf16.msra.mxu0 %v2597
    %3982 = vmatpush.bf16.msra.mxu0 %v2590
    %3983 = vmatmul.bf16.gmra.mxu0 %v987
    %v3984 = vpop.f32.mrf.mxu0
    %v3985 = vadd.f32 %v3972, %v3984
    %v3986 = vpop.f32.mrf.mxu0
    %3987 = vdwg.mxu0
    %3988 = vmatpush.bf16.msra.mxu0 %v2695
    %3989 = vmatpush.bf16.msra.mxu0 %v2688
    %3990 = vmatpush.bf16.msra.mxu0 %v2681
    %3991 = vmatpush.bf16.msra.mxu0 %v2674
    %3992 = vmatpush.bf16.msra.mxu0 %v2667
    %3993 = vmatpush.bf16.msra.mxu0 %v2660
    %3994 = vmatpush.bf16.msra.mxu0 %v2653
    %3995 = vmatpush.bf16.msra.mxu0 %v2646
    %3996 = vmatmul.bf16.gmra.mxu0 %v988
    %v3997 = vpop.f32.mrf.mxu0
    %v3998 = vadd.f32 %v3985, %v3997
    %v3999 = vpop.f32.mrf.mxu0
    %4000 = vdwg.mxu0
    %4001 = vmatpush.bf16.msra.mxu0 %v2751
    %4002 = vmatpush.bf16.msra.mxu0 %v2744
    %4003 = vmatpush.bf16.msra.mxu0 %v2737
    %4004 = vmatpush.bf16.msra.mxu0 %v2730
    %4005 = vmatpush.bf16.msra.mxu0 %v2723
    %4006 = vmatpush.bf16.msra.mxu0 %v2716
    %4007 = vmatpush.bf16.msra.mxu0 %v2709
    %4008 = vmatpush.bf16.msra.mxu0 %v2702
    %4009 = vmatmul.bf16.gmra.mxu0 %v989
    %v4010 = vpop.f32.mrf.mxu0
    %v4011 = vadd.f32 %v3998, %v4010
    %v4012 = vpop.f32.mrf.mxu0
    %4013 = vdwg.mxu0
    %4014 = vmatpush.bf16.msra.mxu0 %v2807
    %4015 = vmatpush.bf16.msra.mxu0 %v2800
    %4016 = vmatpush.bf16.msra.mxu0 %v2793
    %4017 = vmatpush.bf16.msra.mxu0 %v2786
    %4018 = vmatpush.bf16.msra.mxu0 %v2779
    %4019 = vmatpush.bf16.msra.mxu0 %v2772
    %4020 = vmatpush.bf16.msra.mxu0 %v2765
    %4021 = vmatpush.bf16.msra.mxu0 %v2758
    %4022 = vmatmul.bf16.gmra.mxu0 %v990
    %v4023 = vpop.f32.mrf.mxu0
    %v4024 = vadd.f32 %v4011, %v4023
    %v4025 = vpop.f32.mrf.mxu0
    %4026 = vdwg.mxu0
    %4027 = vmatpush.bf16.msra.mxu0 %v2863
    %4028 = vmatpush.bf16.msra.mxu0 %v2856
    %4029 = vmatpush.bf16.msra.mxu0 %v2849
    %4030 = vmatpush.bf16.msra.mxu0 %v2842
    %4031 = vmatpush.bf16.msra.mxu0 %v2835
    %4032 = vmatpush.bf16.msra.mxu0 %v2828
    %4033 = vmatpush.bf16.msra.mxu0 %v2821
    %4034 = vmatpush.bf16.msra.mxu0 %v2814
    %4035 = vmatmul.bf16.gmra.mxu0 %v991
    %v4036 = vpop.f32.mrf.mxu0
    %v4037 = vadd.f32 %v4024, %v4036
    %v4038 = vpop.f32.mrf.mxu0
    %4039 = vdwg.mxu0
    %s4040 = sld [smem:[#allocation2 + $0x1]]
    %vm4041 = vcmp.ge.f32.partialorder %v3413, 0.0
    %vm4042 = vcmp.ge.f32.partialorder %v3517, 0.0
    %vm4043 = vcmp.ge.f32.partialorder %v3621, 0.0
    %vm4044 = vcmp.ge.f32.partialorder %v3725, 0.0
    %vm4045 = vcmp.ge.f32.partialorder %v3829, 0.0
    %vm4046 = vcmp.ge.f32.partialorder %v3933, 0.0
    %vm4047 = vcmp.ge.f32.partialorder %v4037, 0.0
    %v4048 = vstv %s4040
    %v4049 = vmul.f32 %v4048, %v3413
    %v4050 = vmul.f32 %v4048, %v3517
    %v4051 = vmul.f32 %v4048, %v3621
    %v4052 = vmul.f32 %v4048, %v3725
    %v4053 = vmul.f32 %v4048, %v3829
    %v4054 = vmul.f32 %v4048, %v3933
    %v4055 = vmul.f32 %v4048, %v4037
    %v4056 = vsel %vm4041, %v3413, %v4049
    %v4057 = vsel %vm4042, %v3517, %v4050
    %v4058 = vsel %vm4043, %v3621, %v4051
    %v4059 = vsel %vm4044, %v3725, %v4052
    %v4060 = vsel %vm4045, %v3829, %v4053
    %v4061 = vsel %vm4046, %v3933, %v4054
    %v4062 = vsel %vm4047, %v4037, %v4055
    %v4063 = vld [vmem:[#allocation10] sm:$0xff]
    %v4064 = vld [vmem:[#allocation10 + $0x8] sm:$0xff]
    %v4065 = vld [vmem:[#allocation10 + $0x10] sm:$0xff]
    %v4066 = vld [vmem:[#allocation10 + $0x18] sm:$0xff]
    %v4067 = vld [vmem:[#allocation10 + $0x20] sm:$0xff]
    %v4068 = vld [vmem:[#allocation10 + $0x28] sm:$0xff]
    %v4069 = vld [vmem:[#allocation10 + $0x30] sm:$0xff]
    %v4070 = vld [vmem:[#allocation10 + $0x38] sm:$0xff]
    %v4071 = vld [vmem:[#allocation10 + $0x40] sm:$0xff]
    %v4072 = vld [vmem:[#allocation10 + $0x48] sm:$0xff]
    %v4073 = vld [vmem:[#allocation10 + $0x50] sm:$0xff]
    %v4074 = vld [vmem:[#allocation10 + $0x58] sm:$0xff]
    %v4075 = vld [vmem:[#allocation10 + $0x60] sm:$0xff]
    %v4076 = vld [vmem:[#allocation10 + $0x68] sm:$0xff]
    %v4077 = vld [vmem:[#allocation10 + $0x70] sm:$0xff]
    %v4078 = vld [vmem:[#allocation10 + $0x78] sm:$0xff]
    %v4079 = vld [vmem:[#allocation10 + $0x80] sm:$0xff]
    %v4080 = vld [vmem:[#allocation10 + $0x88] sm:$0xff]
    %v4081 = vld [vmem:[#allocation10 + $0x90] sm:$0xff]
    %v4082 = vld [vmem:[#allocation10 + $0x98] sm:$0xff]
    %v4083 = vld [vmem:[#allocation10 + $0xa0] sm:$0xff]
    %v4084 = vld [vmem:[#allocation10 + $0xa8] sm:$0xff]
    %v4085 = vld [vmem:[#allocation10 + $0xb0] sm:$0xff]
    %v4086 = vld [vmem:[#allocation10 + $0xb8] sm:$0xff]
    %v4087 = vld [vmem:[#allocation10 + $0xc0] sm:$0xff]
    %v4088 = vld [vmem:[#allocation10 + $0xc8] sm:$0xff]
    %v4089 = vld [vmem:[#allocation10 + $0xd0] sm:$0xff]
    %v4090 = vld [vmem:[#allocation10 + $0xd8] sm:$0xff]
    %v4091 = vld [vmem:[#allocation10 + $0xe0] sm:$0xff]
    %v4092 = vld [vmem:[#allocation10 + $0xe8] sm:$0xff]
    %v4093 = vld [vmem:[#allocation10 + $0xf0] sm:$0xff]
    %v4094 = vld [vmem:[#allocation10 + $0xf8] sm:$0xff]
    %v4095 = vld [vmem:[#allocation10 + $0x100] sm:$0xff]
    %v4096 = vld [vmem:[#allocation10 + $0x108] sm:$0xff]
    %v4097 = vld [vmem:[#allocation10 + $0x110] sm:$0xff]
    %v4098 = vld [vmem:[#allocation10 + $0x118] sm:$0xff]
    %v4099 = vld [vmem:[#allocation10 + $0x120] sm:$0xff]
    %v4100 = vld [vmem:[#allocation10 + $0x128] sm:$0xff]
    %v4101 = vld [vmem:[#allocation10 + $0x130] sm:$0xff]
    %v4102 = vld [vmem:[#allocation10 + $0x138] sm:$0xff]
    %v4103 = vld [vmem:[#allocation10 + $0x140] sm:$0xff]
    %v4104 = vld [vmem:[#allocation10 + $0x148] sm:$0xff]
    %v4105 = vld [vmem:[#allocation10 + $0x150] sm:$0xff]
    %v4106 = vld [vmem:[#allocation10 + $0x158] sm:$0xff]
    %v4107 = vld [vmem:[#allocation10 + $0x160] sm:$0xff]
    %v4108 = vld [vmem:[#allocation10 + $0x168] sm:$0xff]
    %v4109 = vld [vmem:[#allocation10 + $0x170] sm:$0xff]
    %v4110 = vld [vmem:[#allocation10 + $0x178] sm:$0xff]
    %v4111 = vld [vmem:[#allocation10 + $0x180] sm:$0xff]
    %v4112 = vld [vmem:[#allocation10 + $0x188] sm:$0xff]
    %v4113 = vld [vmem:[#allocation10 + $0x190] sm:$0xff]
    %v4114 = vld [vmem:[#allocation10 + $0x198] sm:$0xff]
    %v4115 = vld [vmem:[#allocation10 + $0x1a0] sm:$0xff]
    %v4116 = vld [vmem:[#allocation10 + $0x1a8] sm:$0xff]
    %v4117 = vld [vmem:[#allocation10 + $0x1b0] sm:$0xff]
    %v4118 = vld [vmem:[#allocation10 + $0x1b8] sm:$0xff]
    %v4119 = vld [vmem:[#allocation10 + $0x1c0] sm:$0xff]
    %v4120 = vld [vmem:[#allocation10 + $0x1c8] sm:$0xff]
    %v4121 = vld [vmem:[#allocation10 + $0x1d0] sm:$0xff]
    %v4122 = vld [vmem:[#allocation10 + $0x1d8] sm:$0xff]
    %v4123 = vld [vmem:[#allocation10 + $0x1e0] sm:$0xff]
    %v4124 = vld [vmem:[#allocation10 + $0x1e8] sm:$0xff]
    %v4125 = vld [vmem:[#allocation10 + $0x1f0] sm:$0xff]
    %v4126 = vld [vmem:[#allocation10 + $0x1f8] sm:$0xff]
    %v4127 = vld [vmem:[#allocation10 + $0x200] sm:$0xff]
    %v4128 = vld [vmem:[#allocation10 + $0x208] sm:$0xff]
    %v4129 = vld [vmem:[#allocation10 + $0x210] sm:$0xff]
    %v4130 = vld [vmem:[#allocation10 + $0x218] sm:$0xff]
    %v4131 = vld [vmem:[#allocation10 + $0x220] sm:$0xff]
    %v4132 = vld [vmem:[#allocation10 + $0x228] sm:$0xff]
    %v4133 = vld [vmem:[#allocation10 + $0x230] sm:$0xff]
    %v4134 = vld [vmem:[#allocation10 + $0x238] sm:$0xff]
    %v4135 = vld [vmem:[#allocation10 + $0x240] sm:$0xff]
    %v4136 = vld [vmem:[#allocation10 + $0x248] sm:$0xff]
    %v4137 = vld [vmem:[#allocation10 + $0x250] sm:$0xff]
    %v4138 = vld [vmem:[#allocation10 + $0x258] sm:$0xff]
    %v4139 = vld [vmem:[#allocation10 + $0x260] sm:$0xff]
    %v4140 = vld [vmem:[#allocation10 + $0x268] sm:$0xff]
    %v4141 = vld [vmem:[#allocation10 + $0x270] sm:$0xff]
    %v4142 = vld [vmem:[#allocation10 + $0x278] sm:$0xff]
    %v4143 = vld [vmem:[#allocation10 + $0x280] sm:$0xff]
    %v4144 = vld [vmem:[#allocation10 + $0x288] sm:$0xff]
    %v4145 = vld [vmem:[#allocation10 + $0x290] sm:$0xff]
    %v4146 = vld [vmem:[#allocation10 + $0x298] sm:$0xff]
    %v4147 = vld [vmem:[#allocation10 + $0x2a0] sm:$0xff]
    %v4148 = vld [vmem:[#allocation10 + $0x2a8] sm:$0xff]
    %v4149 = vld [vmem:[#allocation10 + $0x2b0] sm:$0xff]
    %v4150 = vld [vmem:[#allocation10 + $0x2b8] sm:$0xff]
    %v4151 = vld [vmem:[#allocation10 + $0x2c0] sm:$0xff]
    %v4152 = vld [vmem:[#allocation10 + $0x2c8] sm:$0xff]
    %v4153 = vld [vmem:[#allocation10 + $0x2d0] sm:$0xff]
    %v4154 = vld [vmem:[#allocation10 + $0x2d8] sm:$0xff]
    %v4155 = vld [vmem:[#allocation10 + $0x2e0] sm:$0xff]
    %v4156 = vld [vmem:[#allocation10 + $0x2e8] sm:$0xff]
    %v4157 = vld [vmem:[#allocation10 + $0x2f0] sm:$0xff]
    %v4158 = vld [vmem:[#allocation10 + $0x2f8] sm:$0xff]
    %v4159 = vld [vmem:[#allocation10 + $0x300] sm:$0xff]
    %v4160 = vld [vmem:[#allocation10 + $0x308] sm:$0xff]
    %v4161 = vld [vmem:[#allocation10 + $0x310] sm:$0xff]
    %v4162 = vld [vmem:[#allocation10 + $0x318] sm:$0xff]
    %v4163 = vld [vmem:[#allocation10 + $0x320] sm:$0xff]
    %v4164 = vld [vmem:[#allocation10 + $0x328] sm:$0xff]
    %v4165 = vld [vmem:[#allocation10 + $0x330] sm:$0xff]
    %v4166 = vld [vmem:[#allocation10 + $0x338] sm:$0xff]
    %v4167 = vld [vmem:[#allocation10 + $0x340] sm:$0xff]
    %v4168 = vld [vmem:[#allocation10 + $0x348] sm:$0xff]
    %v4169 = vld [vmem:[#allocation10 + $0x350] sm:$0xff]
    %v4170 = vld [vmem:[#allocation10 + $0x358] sm:$0xff]
    %v4171 = vld [vmem:[#allocation10 + $0x360] sm:$0xff]
    %v4172 = vld [vmem:[#allocation10 + $0x368] sm:$0xff]
    %v4173 = vld [vmem:[#allocation10 + $0x370] sm:$0xff]
    %v4174 = vld [vmem:[#allocation10 + $0x378] sm:$0xff]
    %v4175 = vld [vmem:[#allocation10 + $0x380] sm:$0xff]
    %v4176 = vld [vmem:[#allocation10 + $0x388] sm:$0xff]
    %v4177 = vld [vmem:[#allocation10 + $0x390] sm:$0xff]
    %v4178 = vld [vmem:[#allocation10 + $0x398] sm:$0xff]
    %v4179 = vld [vmem:[#allocation10 + $0x3a0] sm:$0xff]
    %v4180 = vld [vmem:[#allocation10 + $0x3a8] sm:$0xff]
    %v4181 = vld [vmem:[#allocation10 + $0x3b0] sm:$0xff]
    %v4182 = vld [vmem:[#allocation10 + $0x3b8] sm:$0xff]
    %v4183 = vld [vmem:[#allocation10 + $0x3c0] sm:$0xff]
    %v4184 = vld [vmem:[#allocation10 + $0x3c8] sm:$0xff]
    %v4185 = vld [vmem:[#allocation10 + $0x3d0] sm:$0xff]
    %v4186 = vld [vmem:[#allocation10 + $0x3d8] sm:$0xff]
    %v4187 = vld [vmem:[#allocation10 + $0x3e0] sm:$0xff]
    %v4188 = vld [vmem:[#allocation10 + $0x3e8] sm:$0xff]
    %v4189 = vld [vmem:[#allocation10 + $0x3f0] sm:$0xff]
    %v4190 = vld [vmem:[#allocation10 + $0x3f8] sm:$0xff]
    %v4191 = vld [vmem:[#allocation10 + $0x400] sm:$0xff]
    %v4192 = vld [vmem:[#allocation10 + $0x408] sm:$0xff]
    %v4193 = vld [vmem:[#allocation10 + $0x410] sm:$0xff]
    %v4194 = vld [vmem:[#allocation10 + $0x418] sm:$0xff]
    %v4195 = vld [vmem:[#allocation10 + $0x420] sm:$0xff]
    %v4196 = vld [vmem:[#allocation10 + $0x428] sm:$0xff]
    %v4197 = vld [vmem:[#allocation10 + $0x430] sm:$0xff]
    %v4198 = vld [vmem:[#allocation10 + $0x438] sm:$0xff]
    %v4199 = vld [vmem:[#allocation10 + $0x440] sm:$0xff]
    %v4200 = vld [vmem:[#allocation10 + $0x448] sm:$0xff]
    %v4201 = vld [vmem:[#allocation10 + $0x450] sm:$0xff]
    %v4202 = vld [vmem:[#allocation10 + $0x458] sm:$0xff]
    %v4203 = vld [vmem:[#allocation10 + $0x460] sm:$0xff]
    %v4204 = vld [vmem:[#allocation10 + $0x468] sm:$0xff]
    %v4205 = vld [vmem:[#allocation10 + $0x470] sm:$0xff]
    %v4206 = vld [vmem:[#allocation10 + $0x478] sm:$0xff]
    %v4207 = vld [vmem:[#allocation10 + $0x480] sm:$0xff]
    %v4208 = vld [vmem:[#allocation10 + $0x488] sm:$0xff]
    %v4209 = vld [vmem:[#allocation10 + $0x490] sm:$0xff]
    %v4210 = vld [vmem:[#allocation10 + $0x498] sm:$0xff]
    %v4211 = vld [vmem:[#allocation10 + $0x4a0] sm:$0xff]
    %v4212 = vld [vmem:[#allocation10 + $0x4a8] sm:$0xff]
    %v4213 = vld [vmem:[#allocation10 + $0x4b0] sm:$0xff]
    %v4214 = vld [vmem:[#allocation10 + $0x4b8] sm:$0xff]
    %v4215 = vld [vmem:[#allocation10 + $0x4c0] sm:$0xff]
    %v4216 = vld [vmem:[#allocation10 + $0x4c8] sm:$0xff]
    %v4217 = vld [vmem:[#allocation10 + $0x4d0] sm:$0xff]
    %v4218 = vld [vmem:[#allocation10 + $0x4d8] sm:$0xff]
    %v4219 = vld [vmem:[#allocation10 + $0x4e0] sm:$0xff]
    %v4220 = vld [vmem:[#allocation10 + $0x4e8] sm:$0xff]
    %v4221 = vld [vmem:[#allocation10 + $0x4f0] sm:$0xff]
    %v4222 = vld [vmem:[#allocation10 + $0x4f8] sm:$0xff]
    %v4223 = vld [vmem:[#allocation10 + $0x500] sm:$0xff]
    %v4224 = vld [vmem:[#allocation10 + $0x508] sm:$0xff]
    %v4225 = vld [vmem:[#allocation10 + $0x510] sm:$0xff]
    %v4226 = vld [vmem:[#allocation10 + $0x518] sm:$0xff]
    %v4227 = vld [vmem:[#allocation10 + $0x520] sm:$0xff]
    %v4228 = vld [vmem:[#allocation10 + $0x528] sm:$0xff]
    %v4229 = vld [vmem:[#allocation10 + $0x530] sm:$0xff]
    %v4230 = vld [vmem:[#allocation10 + $0x538] sm:$0xff]
    %v4231 = vld [vmem:[#allocation10 + $0x540] sm:$0xff]
    %v4232 = vld [vmem:[#allocation10 + $0x548] sm:$0xff]
    %v4233 = vld [vmem:[#allocation10 + $0x550] sm:$0xff]
    %v4234 = vld [vmem:[#allocation10 + $0x558] sm:$0xff]
    %v4235 = vld [vmem:[#allocation10 + $0x560] sm:$0xff]
    %v4236 = vld [vmem:[#allocation10 + $0x568] sm:$0xff]
    %v4237 = vld [vmem:[#allocation10 + $0x570] sm:$0xff]
    %v4238 = vld [vmem:[#allocation10 + $0x578] sm:$0xff]
    %v4239 = vld [vmem:[#allocation10 + $0x580] sm:$0xff]
    %v4240 = vld [vmem:[#allocation10 + $0x588] sm:$0xff]
    %v4241 = vld [vmem:[#allocation10 + $0x590] sm:$0xff]
    %v4242 = vld [vmem:[#allocation10 + $0x598] sm:$0xff]
    %v4243 = vld [vmem:[#allocation10 + $0x5a0] sm:$0xff]
    %v4244 = vld [vmem:[#allocation10 + $0x5a8] sm:$0xff]
    %v4245 = vld [vmem:[#allocation10 + $0x5b0] sm:$0xff]
    %v4246 = vld [vmem:[#allocation10 + $0x5b8] sm:$0xff]
    %v4247 = vld [vmem:[#allocation10 + $0x5c0] sm:$0xff]
    %v4248 = vld [vmem:[#allocation10 + $0x5c8] sm:$0xff]
    %v4249 = vld [vmem:[#allocation10 + $0x5d0] sm:$0xff]
    %v4250 = vld [vmem:[#allocation10 + $0x5d8] sm:$0xff]
    %v4251 = vld [vmem:[#allocation10 + $0x5e0] sm:$0xff]
    %v4252 = vld [vmem:[#allocation10 + $0x5e8] sm:$0xff]
    %v4253 = vld [vmem:[#allocation10 + $0x5f0] sm:$0xff]
    %v4254 = vld [vmem:[#allocation10 + $0x5f8] sm:$0xff]
    %v4255 = vld [vmem:[#allocation10 + $0x600] sm:$0xff]
    %v4256 = vld [vmem:[#allocation10 + $0x608] sm:$0xff]
    %v4257 = vld [vmem:[#allocation10 + $0x610] sm:$0xff]
    %v4258 = vld [vmem:[#allocation10 + $0x618] sm:$0xff]
    %v4259 = vld [vmem:[#allocation10 + $0x620] sm:$0xff]
    %v4260 = vld [vmem:[#allocation10 + $0x628] sm:$0xff]
    %v4261 = vld [vmem:[#allocation10 + $0x630] sm:$0xff]
    %v4262 = vld [vmem:[#allocation10 + $0x638] sm:$0xff]
    %v4263 = vld [vmem:[#allocation10 + $0x640] sm:$0xff]
    %v4264 = vld [vmem:[#allocation10 + $0x648] sm:$0xff]
    %v4265 = vld [vmem:[#allocation10 + $0x650] sm:$0xff]
    %v4266 = vld [vmem:[#allocation10 + $0x658] sm:$0xff]
    %v4267 = vld [vmem:[#allocation10 + $0x660] sm:$0xff]
    %v4268 = vld [vmem:[#allocation10 + $0x668] sm:$0xff]
    %v4269 = vld [vmem:[#allocation10 + $0x670] sm:$0xff]
    %v4270 = vld [vmem:[#allocation10 + $0x678] sm:$0xff]
    %v4271 = vld [vmem:[#allocation10 + $0x680] sm:$0xff]
    %v4272 = vld [vmem:[#allocation10 + $0x688] sm:$0xff]
    %v4273 = vld [vmem:[#allocation10 + $0x690] sm:$0xff]
    %v4274 = vld [vmem:[#allocation10 + $0x698] sm:$0xff]
    %v4275 = vld [vmem:[#allocation10 + $0x6a0] sm:$0xff]
    %v4276 = vld [vmem:[#allocation10 + $0x6a8] sm:$0xff]
    %v4277 = vld [vmem:[#allocation10 + $0x6b0] sm:$0xff]
    %v4278 = vld [vmem:[#allocation10 + $0x6b8] sm:$0xff]
    %v4279 = vld [vmem:[#allocation10 + $0x6c0] sm:$0xff]
    %v4280 = vld [vmem:[#allocation10 + $0x6c8] sm:$0xff]
    %v4281 = vld [vmem:[#allocation10 + $0x6d0] sm:$0xff]
    %v4282 = vld [vmem:[#allocation10 + $0x6d8] sm:$0xff]
    %v4283 = vld [vmem:[#allocation10 + $0x6e0] sm:$0xff]
    %v4284 = vld [vmem:[#allocation10 + $0x6e8] sm:$0xff]
    %v4285 = vld [vmem:[#allocation10 + $0x6f0] sm:$0xff]
    %v4286 = vld [vmem:[#allocation10 + $0x6f8] sm:$0xff]
    %v4287 = vld [vmem:[#allocation10 + $0x700] sm:$0xff]
    %v4288 = vld [vmem:[#allocation10 + $0x708] sm:$0xff]
    %v4289 = vld [vmem:[#allocation10 + $0x710] sm:$0xff]
    %v4290 = vld [vmem:[#allocation10 + $0x718] sm:$0xff]
    %v4291 = vld [vmem:[#allocation10 + $0x720] sm:$0xff]
    %v4292 = vld [vmem:[#allocation10 + $0x728] sm:$0xff]
    %v4293 = vld [vmem:[#allocation10 + $0x730] sm:$0xff]
    %v4294 = vld [vmem:[#allocation10 + $0x738] sm:$0xff]
    %v4295 = vld [vmem:[#allocation10 + $0x740] sm:$0xff]
    %v4296 = vld [vmem:[#allocation10 + $0x748] sm:$0xff]
    %v4297 = vld [vmem:[#allocation10 + $0x750] sm:$0xff]
    %v4298 = vld [vmem:[#allocation10 + $0x758] sm:$0xff]
    %v4299 = vld [vmem:[#allocation10 + $0x760] sm:$0xff]
    %v4300 = vld [vmem:[#allocation10 + $0x768] sm:$0xff]
    %v4301 = vld [vmem:[#allocation10 + $0x770] sm:$0xff]
    %v4302 = vld [vmem:[#allocation10 + $0x778] sm:$0xff]
    %v4303 = vld [vmem:[#allocation10 + $0x780] sm:$0xff]
    %v4304 = vld [vmem:[#allocation10 + $0x788] sm:$0xff]
    %v4305 = vld [vmem:[#allocation10 + $0x790] sm:$0xff]
    %v4306 = vld [vmem:[#allocation10 + $0x798] sm:$0xff]
    %v4307 = vld [vmem:[#allocation10 + $0x7a0] sm:$0xff]
    %v4308 = vld [vmem:[#allocation10 + $0x7a8] sm:$0xff]
    %v4309 = vld [vmem:[#allocation10 + $0x7b0] sm:$0xff]
    %v4310 = vld [vmem:[#allocation10 + $0x7b8] sm:$0xff]
    %v4311 = vld [vmem:[#allocation10 + $0x7c0] sm:$0xff]
    %v4312 = vld [vmem:[#allocation10 + $0x7c8] sm:$0xff]
    %v4313 = vld [vmem:[#allocation10 + $0x7d0] sm:$0xff]
    %v4314 = vld [vmem:[#allocation10 + $0x7d8] sm:$0xff]
    %v4315 = vld [vmem:[#allocation10 + $0x7e0] sm:$0xff]
    %v4316 = vld [vmem:[#allocation10 + $0x7e8] sm:$0xff]
    %v4317 = vld [vmem:[#allocation10 + $0x7f0] sm:$0xff]
    %v4318 = vld [vmem:[#allocation10 + $0x7f8] sm:$0xff]
    %v4319 = vld [vmem:[#allocation10 + $0x800] sm:$0xff]
    %v4320 = vld [vmem:[#allocation10 + $0x808] sm:$0xff]
    %v4321 = vld [vmem:[#allocation10 + $0x810] sm:$0xff]
    %v4322 = vld [vmem:[#allocation10 + $0x818] sm:$0xff]
    %v4323 = vld [vmem:[#allocation10 + $0x820] sm:$0xff]
    %v4324 = vld [vmem:[#allocation10 + $0x828] sm:$0xff]
    %v4325 = vld [vmem:[#allocation10 + $0x830] sm:$0xff]
    %v4326 = vld [vmem:[#allocation10 + $0x838] sm:$0xff]
    %v4327 = vld [vmem:[#allocation10 + $0x840] sm:$0xff]
    %v4328 = vld [vmem:[#allocation10 + $0x848] sm:$0xff]
    %v4329 = vld [vmem:[#allocation10 + $0x850] sm:$0xff]
    %v4330 = vld [vmem:[#allocation10 + $0x858] sm:$0xff]
    %v4331 = vld [vmem:[#allocation10 + $0x860] sm:$0xff]
    %v4332 = vld [vmem:[#allocation10 + $0x868] sm:$0xff]
    %v4333 = vld [vmem:[#allocation10 + $0x870] sm:$0xff]
    %v4334 = vld [vmem:[#allocation10 + $0x878] sm:$0xff]
    %v4335 = vld [vmem:[#allocation10 + $0x880] sm:$0xff]
    %v4336 = vld [vmem:[#allocation10 + $0x888] sm:$0xff]
    %v4337 = vld [vmem:[#allocation10 + $0x890] sm:$0xff]
    %v4338 = vld [vmem:[#allocation10 + $0x898] sm:$0xff]
    %v4339 = vld [vmem:[#allocation10 + $0x8a0] sm:$0xff]
    %v4340 = vld [vmem:[#allocation10 + $0x8a8] sm:$0xff]
    %v4341 = vld [vmem:[#allocation10 + $0x8b0] sm:$0xff]
    %v4342 = vld [vmem:[#allocation10 + $0x8b8] sm:$0xff]
    %v4343 = vld [vmem:[#allocation10 + $0x8c0] sm:$0xff]
    %v4344 = vld [vmem:[#allocation10 + $0x8c8] sm:$0xff]
    %v4345 = vld [vmem:[#allocation10 + $0x8d0] sm:$0xff]
    %v4346 = vld [vmem:[#allocation10 + $0x8d8] sm:$0xff]
    %v4347 = vld [vmem:[#allocation10 + $0x8e0] sm:$0xff]
    %v4348 = vld [vmem:[#allocation10 + $0x8e8] sm:$0xff]
    %v4349 = vld [vmem:[#allocation10 + $0x8f0] sm:$0xff]
    %v4350 = vld [vmem:[#allocation10 + $0x8f8] sm:$0xff]
    %v4351 = vld [vmem:[#allocation10 + $0x900] sm:$0xff]
    %v4352 = vld [vmem:[#allocation10 + $0x908] sm:$0xff]
    %v4353 = vld [vmem:[#allocation10 + $0x910] sm:$0xff]
    %v4354 = vld [vmem:[#allocation10 + $0x918] sm:$0xff]
    %v4355 = vld [vmem:[#allocation10 + $0x920] sm:$0xff]
    %v4356 = vld [vmem:[#allocation10 + $0x928] sm:$0xff]
    %v4357 = vld [vmem:[#allocation10 + $0x930] sm:$0xff]
    %v4358 = vld [vmem:[#allocation10 + $0x938] sm:$0xff]
    %v4359 = vld [vmem:[#allocation10 + $0x940] sm:$0xff]
    %v4360 = vld [vmem:[#allocation10 + $0x948] sm:$0xff]
    %v4361 = vld [vmem:[#allocation10 + $0x950] sm:$0xff]
    %v4362 = vld [vmem:[#allocation10 + $0x958] sm:$0xff]
    %v4363 = vld [vmem:[#allocation10 + $0x960] sm:$0xff]
    %v4364 = vld [vmem:[#allocation10 + $0x968] sm:$0xff]
    %v4365 = vld [vmem:[#allocation10 + $0x970] sm:$0xff]
    %v4366 = vld [vmem:[#allocation10 + $0x978] sm:$0xff]
    %v4367 = vld [vmem:[#allocation10 + $0x980] sm:$0xff]
    %v4368 = vld [vmem:[#allocation10 + $0x988] sm:$0xff]
    %v4369 = vld [vmem:[#allocation10 + $0x990] sm:$0xff]
    %v4370 = vld [vmem:[#allocation10 + $0x998] sm:$0xff]
    %v4371 = vld [vmem:[#allocation10 + $0x9a0] sm:$0xff]
    %v4372 = vld [vmem:[#allocation10 + $0x9a8] sm:$0xff]
    %v4373 = vld [vmem:[#allocation10 + $0x9b0] sm:$0xff]
    %v4374 = vld [vmem:[#allocation10 + $0x9b8] sm:$0xff]
    %v4375 = vld [vmem:[#allocation10 + $0x9c0] sm:$0xff]
    %v4376 = vld [vmem:[#allocation10 + $0x9c8] sm:$0xff]
    %v4377 = vld [vmem:[#allocation10 + $0x9d0] sm:$0xff]
    %v4378 = vld [vmem:[#allocation10 + $0x9d8] sm:$0xff]
    %v4379 = vld [vmem:[#allocation10 + $0x9e0] sm:$0xff]
    %v4380 = vld [vmem:[#allocation10 + $0x9e8] sm:$0xff]
    %v4381 = vld [vmem:[#allocation10 + $0x9f0] sm:$0xff]
    %v4382 = vld [vmem:[#allocation10 + $0x9f8] sm:$0xff]
    %v4383 = vld [vmem:[#allocation10 + $0xa00] sm:$0xff]
    %v4384 = vld [vmem:[#allocation10 + $0xa08] sm:$0xff]
    %v4385 = vld [vmem:[#allocation10 + $0xa10] sm:$0xff]
    %v4386 = vld [vmem:[#allocation10 + $0xa18] sm:$0xff]
    %v4387 = vld [vmem:[#allocation10 + $0xa20] sm:$0xff]
    %v4388 = vld [vmem:[#allocation10 + $0xa28] sm:$0xff]
    %v4389 = vld [vmem:[#allocation10 + $0xa30] sm:$0xff]
    %v4390 = vld [vmem:[#allocation10 + $0xa38] sm:$0xff]
    %v4391 = vld [vmem:[#allocation10 + $0xa40] sm:$0xff]
    %v4392 = vld [vmem:[#allocation10 + $0xa48] sm:$0xff]
    %v4393 = vld [vmem:[#allocation10 + $0xa50] sm:$0xff]
    %v4394 = vld [vmem:[#allocation10 + $0xa58] sm:$0xff]
    %v4395 = vld [vmem:[#allocation10 + $0xa60] sm:$0xff]
    %v4396 = vld [vmem:[#allocation10 + $0xa68] sm:$0xff]
    %v4397 = vld [vmem:[#allocation10 + $0xa70] sm:$0xff]
    %v4398 = vld [vmem:[#allocation10 + $0xa78] sm:$0xff]
    %v4399 = vpack.c.bf16 %v4056, %v4056
    %v4400 = vpack.c.bf16 %v4057, %v4057
    %v4401 = vpack.c.bf16 %v4058, %v4058
    %v4402 = vpack.c.bf16 %v4059, %v4059
    %v4403 = vpack.c.bf16 %v4060, %v4060
    %v4404 = vpack.c.bf16 %v4061, %v4061
    %v4405 = vpack.c.bf16 %v4062, %v4062
    %v4406 = vld [vmem:[#allocation6 + $0xf] sm:$0x3f]
    %v4408 = vperm.slane %v4406, 0
    %v4409 = vperm.slane %v4406, 1
    %v4410 = vperm.slane %v4406, 2
    %v4411 = vperm.slane %v4406, 3
    %v4412 = vperm.slane %v4406, 4
    %v4413 = vperm.slane %v4406, 5
    %v4756 = vunpack.c.l.b16 %v4063
    %v4757 = vunpack.c.h.b16 %v4063
    %v4758 = vunpack.c.l.b16 %v4064
    %v4759 = vunpack.c.h.b16 %v4064
    %v4760 = vunpack.c.l.b16 %v4065
    %v4761 = vunpack.c.h.b16 %v4065
    %v4762 = vunpack.c.l.b16 %v4066
    %v4763 = vunpack.c.h.b16 %v4066
    %v4764 = vunpack.c.l.b16 %v4067
    %v4765 = vunpack.c.h.b16 %v4067
    %v4766 = vunpack.c.l.b16 %v4068
    %v4767 = vunpack.c.h.b16 %v4068
    %v4768 = vunpack.c.l.b16 %v4069
    %v4769 = vunpack.c.h.b16 %v4069
    %v4770 = vunpack.c.l.b16 %v4070
    %v4771 = vunpack.c.h.b16 %v4070
    %v4772 = vunpack.c.l.b16 %v4071
    %v4773 = vunpack.c.h.b16 %v4071
    %v4774 = vunpack.c.l.b16 %v4072
    %v4775 = vunpack.c.h.b16 %v4072
    %v4776 = vunpack.c.l.b16 %v4073
    %v4777 = vunpack.c.h.b16 %v4073
    %v4778 = vunpack.c.l.b16 %v4074
    %v4779 = vunpack.c.h.b16 %v4074
    %v4780 = vunpack.c.l.b16 %v4075
    %v4781 = vunpack.c.h.b16 %v4075
    %v4782 = vunpack.c.l.b16 %v4076
    %v4783 = vunpack.c.h.b16 %v4076
    %v4784 = vunpack.c.l.b16 %v4077
    %v4785 = vunpack.c.h.b16 %v4077
    %v4786 = vunpack.c.l.b16 %v4078
    %v4787 = vunpack.c.h.b16 %v4078
    %v4788 = vunpack.c.l.b16 %v4079
    %v4789 = vunpack.c.h.b16 %v4079
    %v4790 = vunpack.c.l.b16 %v4080
    %v4791 = vunpack.c.h.b16 %v4080
    %v4792 = vunpack.c.l.b16 %v4081
    %v4793 = vunpack.c.h.b16 %v4081
    %v4794 = vunpack.c.l.b16 %v4082
    %v4795 = vunpack.c.h.b16 %v4082
    %v4796 = vunpack.c.l.b16 %v4083
    %v4797 = vunpack.c.h.b16 %v4083
    %v4798 = vunpack.c.l.b16 %v4084
    %v4799 = vunpack.c.h.b16 %v4084
    %v4800 = vunpack.c.l.b16 %v4085
    %v4801 = vunpack.c.h.b16 %v4085
    %v4802 = vunpack.c.l.b16 %v4086
    %v4803 = vunpack.c.h.b16 %v4086
    %v4804 = vunpack.c.l.b16 %v4087
    %v4805 = vunpack.c.h.b16 %v4087
    %v4806 = vunpack.c.l.b16 %v4088
    %v4807 = vunpack.c.h.b16 %v4088
    %v4808 = vunpack.c.l.b16 %v4089
    %v4809 = vunpack.c.h.b16 %v4089
    %v4810 = vunpack.c.l.b16 %v4090
    %v4811 = vunpack.c.h.b16 %v4090
    %v4812 = vunpack.c.l.b16 %v4091
    %v4813 = vunpack.c.h.b16 %v4091
    %v4814 = vunpack.c.l.b16 %v4092
    %v4815 = vunpack.c.h.b16 %v4092
    %v4816 = vunpack.c.l.b16 %v4093
    %v4817 = vunpack.c.h.b16 %v4093
    %v4818 = vunpack.c.l.b16 %v4094
    %v4819 = vunpack.c.h.b16 %v4094
    %v4820 = vunpack.c.l.b16 %v4095
    %v4821 = vunpack.c.h.b16 %v4095
    %v4822 = vunpack.c.l.b16 %v4096
    %v4823 = vunpack.c.h.b16 %v4096
    %v4824 = vunpack.c.l.b16 %v4097
    %v4825 = vunpack.c.h.b16 %v4097
    %v4826 = vunpack.c.l.b16 %v4098
    %v4827 = vunpack.c.h.b16 %v4098
    %v4828 = vunpack.c.l.b16 %v4099
    %v4829 = vunpack.c.h.b16 %v4099
    %v4830 = vunpack.c.l.b16 %v4100
    %v4831 = vunpack.c.h.b16 %v4100
    %v4832 = vunpack.c.l.b16 %v4101
    %v4833 = vunpack.c.h.b16 %v4101
    %v4834 = vunpack.c.l.b16 %v4102
    %v4835 = vunpack.c.h.b16 %v4102
    %v4836 = vunpack.c.l.b16 %v4103
    %v4837 = vunpack.c.h.b16 %v4103
    %v4838 = vunpack.c.l.b16 %v4104
    %v4839 = vunpack.c.h.b16 %v4104
    %v4840 = vunpack.c.l.b16 %v4105
    %v4841 = vunpack.c.h.b16 %v4105
    %v4842 = vunpack.c.l.b16 %v4106
    %v4843 = vunpack.c.h.b16 %v4106
    %v4844 = vunpack.c.l.b16 %v4107
    %v4845 = vunpack.c.h.b16 %v4107
    %v4846 = vunpack.c.l.b16 %v4108
    %v4847 = vunpack.c.h.b16 %v4108
    %v4848 = vunpack.c.l.b16 %v4109
    %v4849 = vunpack.c.h.b16 %v4109
    %v4850 = vunpack.c.l.b16 %v4110
    %v4851 = vunpack.c.h.b16 %v4110
    %v4852 = vunpack.c.l.b16 %v4111
    %v4853 = vunpack.c.h.b16 %v4111
    %v4854 = vunpack.c.l.b16 %v4112
    %v4855 = vunpack.c.h.b16 %v4112
    %v4856 = vunpack.c.l.b16 %v4113
    %v4857 = vunpack.c.h.b16 %v4113
    %v4858 = vunpack.c.l.b16 %v4114
    %v4859 = vunpack.c.h.b16 %v4114
    %v4860 = vunpack.c.l.b16 %v4115
    %v4861 = vunpack.c.h.b16 %v4115
    %v4862 = vunpack.c.l.b16 %v4116
    %v4863 = vunpack.c.h.b16 %v4116
    %v4864 = vunpack.c.l.b16 %v4117
    %v4865 = vunpack.c.h.b16 %v4117
    %v4866 = vunpack.c.l.b16 %v4118
    %v4867 = vunpack.c.h.b16 %v4118
    %v4868 = vunpack.c.l.b16 %v4119
    %v4869 = vunpack.c.h.b16 %v4119
    %v4870 = vunpack.c.l.b16 %v4120
    %v4871 = vunpack.c.h.b16 %v4120
    %v4872 = vunpack.c.l.b16 %v4121
    %v4873 = vunpack.c.h.b16 %v4121
    %v4874 = vunpack.c.l.b16 %v4122
    %v4875 = vunpack.c.h.b16 %v4122
    %v4876 = vunpack.c.l.b16 %v4123
    %v4877 = vunpack.c.h.b16 %v4123
    %v4878 = vunpack.c.l.b16 %v4124
    %v4879 = vunpack.c.h.b16 %v4124
    %v4880 = vunpack.c.l.b16 %v4125
    %v4881 = vunpack.c.h.b16 %v4125
    %v4882 = vunpack.c.l.b16 %v4126
    %v4883 = vunpack.c.h.b16 %v4126
    %v4884 = vunpack.c.l.b16 %v4127
    %v4885 = vunpack.c.h.b16 %v4127
    %v4886 = vunpack.c.l.b16 %v4128
    %v4887 = vunpack.c.h.b16 %v4128
    %v4888 = vunpack.c.l.b16 %v4129
    %v4889 = vunpack.c.h.b16 %v4129
    %v4890 = vunpack.c.l.b16 %v4130
    %v4891 = vunpack.c.h.b16 %v4130
    %v4892 = vunpack.c.l.b16 %v4131
    %v4893 = vunpack.c.h.b16 %v4131
    %v4894 = vunpack.c.l.b16 %v4132
    %v4895 = vunpack.c.h.b16 %v4132
    %v4896 = vunpack.c.l.b16 %v4133
    %v4897 = vunpack.c.h.b16 %v4133
    %v4898 = vunpack.c.l.b16 %v4134
    %v4899 = vunpack.c.h.b16 %v4134
    %v4900 = vunpack.c.l.b16 %v4135
    %v4901 = vunpack.c.h.b16 %v4135
    %v4902 = vunpack.c.l.b16 %v4136
    %v4903 = vunpack.c.h.b16 %v4136
    %v4904 = vunpack.c.l.b16 %v4137
    %v4905 = vunpack.c.h.b16 %v4137
    %v4906 = vunpack.c.l.b16 %v4138
    %v4907 = vunpack.c.h.b16 %v4138
    %v4908 = vunpack.c.l.b16 %v4139
    %v4909 = vunpack.c.h.b16 %v4139
    %v4910 = vunpack.c.l.b16 %v4140
    %v4911 = vunpack.c.h.b16 %v4140
    %v4912 = vunpack.c.l.b16 %v4141
    %v4913 = vunpack.c.h.b16 %v4141
    %v4914 = vunpack.c.l.b16 %v4142
    %v4915 = vunpack.c.h.b16 %v4142
    %v4916 = vunpack.c.l.b16 %v4143
    %v4917 = vunpack.c.h.b16 %v4143
    %v4918 = vunpack.c.l.b16 %v4144
    %v4919 = vunpack.c.h.b16 %v4144
    %v4920 = vunpack.c.l.b16 %v4145
    %v4921 = vunpack.c.h.b16 %v4145
    %v4922 = vunpack.c.l.b16 %v4146
    %v4923 = vunpack.c.h.b16 %v4146
    %v4924 = vunpack.c.l.b16 %v4147
    %v4925 = vunpack.c.h.b16 %v4147
    %v4926 = vunpack.c.l.b16 %v4148
    %v4927 = vunpack.c.h.b16 %v4148
    %v4928 = vunpack.c.l.b16 %v4149
    %v4929 = vunpack.c.h.b16 %v4149
    %v4930 = vunpack.c.l.b16 %v4150
    %v4931 = vunpack.c.h.b16 %v4150
    %v4932 = vunpack.c.l.b16 %v4151
    %v4933 = vunpack.c.h.b16 %v4151
    %v4934 = vunpack.c.l.b16 %v4152
    %v4935 = vunpack.c.h.b16 %v4152
    %v4936 = vunpack.c.l.b16 %v4153
    %v4937 = vunpack.c.h.b16 %v4153
    %v4938 = vunpack.c.l.b16 %v4154
    %v4939 = vunpack.c.h.b16 %v4154
    %v4940 = vunpack.c.l.b16 %v4155
    %v4941 = vunpack.c.h.b16 %v4155
    %v4942 = vunpack.c.l.b16 %v4156
    %v4943 = vunpack.c.h.b16 %v4156
    %v4944 = vunpack.c.l.b16 %v4157
    %v4945 = vunpack.c.h.b16 %v4157
    %v4946 = vunpack.c.l.b16 %v4158
    %v4947 = vunpack.c.h.b16 %v4158
    %v4948 = vunpack.c.l.b16 %v4159
    %v4949 = vunpack.c.h.b16 %v4159
    %v4950 = vunpack.c.l.b16 %v4160
    %v4951 = vunpack.c.h.b16 %v4160
    %v4952 = vunpack.c.l.b16 %v4161
    %v4953 = vunpack.c.h.b16 %v4161
    %v4954 = vunpack.c.l.b16 %v4162
    %v4955 = vunpack.c.h.b16 %v4162
    %v4956 = vunpack.c.l.b16 %v4163
    %v4957 = vunpack.c.h.b16 %v4163
    %v4958 = vunpack.c.l.b16 %v4164
    %v4959 = vunpack.c.h.b16 %v4164
    %v4960 = vunpack.c.l.b16 %v4165
    %v4961 = vunpack.c.h.b16 %v4165
    %v4962 = vunpack.c.l.b16 %v4166
    %v4963 = vunpack.c.h.b16 %v4166
    %v4964 = vunpack.c.l.b16 %v4167
    %v4965 = vunpack.c.h.b16 %v4167
    %v4966 = vunpack.c.l.b16 %v4168
    %v4967 = vunpack.c.h.b16 %v4168
    %v4968 = vunpack.c.l.b16 %v4169
    %v4969 = vunpack.c.h.b16 %v4169
    %v4970 = vunpack.c.l.b16 %v4170
    %v4971 = vunpack.c.h.b16 %v4170
    %v4972 = vunpack.c.l.b16 %v4171
    %v4973 = vunpack.c.h.b16 %v4171
    %v4974 = vunpack.c.l.b16 %v4172
    %v4975 = vunpack.c.h.b16 %v4172
    %v4976 = vunpack.c.l.b16 %v4173
    %v4977 = vunpack.c.h.b16 %v4173
    %v4978 = vunpack.c.l.b16 %v4174
    %v4979 = vunpack.c.h.b16 %v4174
    %v4980 = vunpack.c.l.b16 %v4175
    %v4981 = vunpack.c.h.b16 %v4175
    %v4982 = vunpack.c.l.b16 %v4176
    %v4983 = vunpack.c.h.b16 %v4176
    %v4984 = vunpack.c.l.b16 %v4177
    %v4985 = vunpack.c.h.b16 %v4177
    %v4986 = vunpack.c.l.b16 %v4178
    %v4987 = vunpack.c.h.b16 %v4178
    %v4988 = vunpack.c.l.b16 %v4179
    %v4989 = vunpack.c.h.b16 %v4179
    %v4990 = vunpack.c.l.b16 %v4180
    %v4991 = vunpack.c.h.b16 %v4180
    %v4992 = vunpack.c.l.b16 %v4181
    %v4993 = vunpack.c.h.b16 %v4181
    %v4994 = vunpack.c.l.b16 %v4182
    %v4995 = vunpack.c.h.b16 %v4182
    %v4996 = vunpack.c.l.b16 %v4183
    %v4997 = vunpack.c.h.b16 %v4183
    %v4998 = vunpack.c.l.b16 %v4184
    %v4999 = vunpack.c.h.b16 %v4184
    %v5000 = vunpack.c.l.b16 %v4185
    %v5001 = vunpack.c.h.b16 %v4185
    %v5002 = vunpack.c.l.b16 %v4186
    %v5003 = vunpack.c.h.b16 %v4186
    %v5004 = vunpack.c.l.b16 %v4187
    %v5005 = vunpack.c.h.b16 %v4187
    %v5006 = vunpack.c.l.b16 %v4188
    %v5007 = vunpack.c.h.b16 %v4188
    %v5008 = vunpack.c.l.b16 %v4189
    %v5009 = vunpack.c.h.b16 %v4189
    %v5010 = vunpack.c.l.b16 %v4190
    %v5011 = vunpack.c.h.b16 %v4190
    %v5012 = vunpack.c.l.b16 %v4191
    %v5013 = vunpack.c.h.b16 %v4191
    %v5014 = vunpack.c.l.b16 %v4192
    %v5015 = vunpack.c.h.b16 %v4192
    %v5016 = vunpack.c.l.b16 %v4193
    %v5017 = vunpack.c.h.b16 %v4193
    %v5018 = vunpack.c.l.b16 %v4194
    %v5019 = vunpack.c.h.b16 %v4194
    %v5020 = vunpack.c.l.b16 %v4195
    %v5021 = vunpack.c.h.b16 %v4195
    %v5022 = vunpack.c.l.b16 %v4196
    %v5023 = vunpack.c.h.b16 %v4196
    %v5024 = vunpack.c.l.b16 %v4197
    %v5025 = vunpack.c.h.b16 %v4197
    %v5026 = vunpack.c.l.b16 %v4198
    %v5027 = vunpack.c.h.b16 %v4198
    %v5028 = vunpack.c.l.b16 %v4199
    %v5029 = vunpack.c.h.b16 %v4199
    %v5030 = vunpack.c.l.b16 %v4200
    %v5031 = vunpack.c.h.b16 %v4200
    %v5032 = vunpack.c.l.b16 %v4201
    %v5033 = vunpack.c.h.b16 %v4201
    %v5034 = vunpack.c.l.b16 %v4202
    %v5035 = vunpack.c.h.b16 %v4202
    %v5036 = vunpack.c.l.b16 %v4203
    %v5037 = vunpack.c.h.b16 %v4203
    %v5038 = vunpack.c.l.b16 %v4204
    %v5039 = vunpack.c.h.b16 %v4204
    %v5040 = vunpack.c.l.b16 %v4205
    %v5041 = vunpack.c.h.b16 %v4205
    %v5042 = vunpack.c.l.b16 %v4206
    %v5043 = vunpack.c.h.b16 %v4206
    %v5044 = vunpack.c.l.b16 %v4207
    %v5045 = vunpack.c.h.b16 %v4207
    %v5046 = vunpack.c.l.b16 %v4208
    %v5047 = vunpack.c.h.b16 %v4208
    %v5048 = vunpack.c.l.b16 %v4209
    %v5049 = vunpack.c.h.b16 %v4209
    %v5050 = vunpack.c.l.b16 %v4210
    %v5051 = vunpack.c.h.b16 %v4210
    %v5052 = vunpack.c.l.b16 %v4211
    %v5053 = vunpack.c.h.b16 %v4211
    %v5054 = vunpack.c.l.b16 %v4212
    %v5055 = vunpack.c.h.b16 %v4212
    %v5056 = vunpack.c.l.b16 %v4213
    %v5057 = vunpack.c.h.b16 %v4213
    %v5058 = vunpack.c.l.b16 %v4214
    %v5059 = vunpack.c.h.b16 %v4214
    %v5060 = vunpack.c.l.b16 %v4215
    %v5061 = vunpack.c.h.b16 %v4215
    %v5062 = vunpack.c.l.b16 %v4216
    %v5063 = vunpack.c.h.b16 %v4216
    %v5064 = vunpack.c.l.b16 %v4217
    %v5065 = vunpack.c.h.b16 %v4217
    %v5066 = vunpack.c.l.b16 %v4218
    %v5067 = vunpack.c.h.b16 %v4218
    %v5068 = vunpack.c.l.b16 %v4219
    %v5069 = vunpack.c.h.b16 %v4219
    %v5070 = vunpack.c.l.b16 %v4220
    %v5071 = vunpack.c.h.b16 %v4220
    %v5072 = vunpack.c.l.b16 %v4221
    %v5073 = vunpack.c.h.b16 %v4221
    %v5074 = vunpack.c.l.b16 %v4222
    %v5075 = vunpack.c.h.b16 %v4222
    %v5076 = vunpack.c.l.b16 %v4223
    %v5077 = vunpack.c.h.b16 %v4223
    %v5078 = vunpack.c.l.b16 %v4224
    %v5079 = vunpack.c.h.b16 %v4224
    %v5080 = vunpack.c.l.b16 %v4225
    %v5081 = vunpack.c.h.b16 %v4225
    %v5082 = vunpack.c.l.b16 %v4226
    %v5083 = vunpack.c.h.b16 %v4226
    %v5084 = vunpack.c.l.b16 %v4227
    %v5085 = vunpack.c.h.b16 %v4227
    %v5086 = vunpack.c.l.b16 %v4228
    %v5087 = vunpack.c.h.b16 %v4228
    %v5088 = vunpack.c.l.b16 %v4229
    %v5089 = vunpack.c.h.b16 %v4229
    %v5090 = vunpack.c.l.b16 %v4230
    %v5091 = vunpack.c.h.b16 %v4230
    %v5092 = vunpack.c.l.b16 %v4231
    %v5093 = vunpack.c.h.b16 %v4231
    %v5094 = vunpack.c.l.b16 %v4232
    %v5095 = vunpack.c.h.b16 %v4232
    %v5096 = vunpack.c.l.b16 %v4233
    %v5097 = vunpack.c.h.b16 %v4233
    %v5098 = vunpack.c.l.b16 %v4234
    %v5099 = vunpack.c.h.b16 %v4234
    %v5100 = vunpack.c.l.b16 %v4235
    %v5101 = vunpack.c.h.b16 %v4235
    %v5102 = vunpack.c.l.b16 %v4236
    %v5103 = vunpack.c.h.b16 %v4236
    %v5104 = vunpack.c.l.b16 %v4237
    %v5105 = vunpack.c.h.b16 %v4237
    %v5106 = vunpack.c.l.b16 %v4238
    %v5107 = vunpack.c.h.b16 %v4238
    %v5108 = vunpack.c.l.b16 %v4239
    %v5109 = vunpack.c.h.b16 %v4239
    %v5110 = vunpack.c.l.b16 %v4240
    %v5111 = vunpack.c.h.b16 %v4240
    %v5112 = vunpack.c.l.b16 %v4241
    %v5113 = vunpack.c.h.b16 %v4241
    %v5114 = vunpack.c.l.b16 %v4242
    %v5115 = vunpack.c.h.b16 %v4242
    %v5116 = vunpack.c.l.b16 %v4243
    %v5117 = vunpack.c.h.b16 %v4243
    %v5118 = vunpack.c.l.b16 %v4244
    %v5119 = vunpack.c.h.b16 %v4244
    %v5120 = vunpack.c.l.b16 %v4245
    %v5121 = vunpack.c.h.b16 %v4245
    %v5122 = vunpack.c.l.b16 %v4246
    %v5123 = vunpack.c.h.b16 %v4246
    %v5124 = vunpack.c.l.b16 %v4247
    %v5125 = vunpack.c.h.b16 %v4247
    %v5126 = vunpack.c.l.b16 %v4248
    %v5127 = vunpack.c.h.b16 %v4248
    %v5128 = vunpack.c.l.b16 %v4249
    %v5129 = vunpack.c.h.b16 %v4249
    %v5130 = vunpack.c.l.b16 %v4250
    %v5131 = vunpack.c.h.b16 %v4250
    %v5132 = vunpack.c.l.b16 %v4251
    %v5133 = vunpack.c.h.b16 %v4251
    %v5134 = vunpack.c.l.b16 %v4252
    %v5135 = vunpack.c.h.b16 %v4252
    %v5136 = vunpack.c.l.b16 %v4253
    %v5137 = vunpack.c.h.b16 %v4253
    %v5138 = vunpack.c.l.b16 %v4254
    %v5139 = vunpack.c.h.b16 %v4254
    %v5140 = vunpack.c.l.b16 %v4255
    %v5141 = vunpack.c.h.b16 %v4255
    %v5142 = vunpack.c.l.b16 %v4256
    %v5143 = vunpack.c.h.b16 %v4256
    %v5144 = vunpack.c.l.b16 %v4257
    %v5145 = vunpack.c.h.b16 %v4257
    %v5146 = vunpack.c.l.b16 %v4258
    %v5147 = vunpack.c.h.b16 %v4258
    %v5148 = vunpack.c.l.b16 %v4259
    %v5149 = vunpack.c.h.b16 %v4259
    %v5150 = vunpack.c.l.b16 %v4260
    %v5151 = vunpack.c.h.b16 %v4260
    %v5152 = vunpack.c.l.b16 %v4261
    %v5153 = vunpack.c.h.b16 %v4261
    %v5154 = vunpack.c.l.b16 %v4262
    %v5155 = vunpack.c.h.b16 %v4262
    %v5156 = vunpack.c.l.b16 %v4263
    %v5157 = vunpack.c.h.b16 %v4263
    %v5158 = vunpack.c.l.b16 %v4264
    %v5159 = vunpack.c.h.b16 %v4264
    %v5160 = vunpack.c.l.b16 %v4265
    %v5161 = vunpack.c.h.b16 %v4265
    %v5162 = vunpack.c.l.b16 %v4266
    %v5163 = vunpack.c.h.b16 %v4266
    %v5164 = vunpack.c.l.b16 %v4267
    %v5165 = vunpack.c.h.b16 %v4267
    %v5166 = vunpack.c.l.b16 %v4268
    %v5167 = vunpack.c.h.b16 %v4268
    %v5168 = vunpack.c.l.b16 %v4269
    %v5169 = vunpack.c.h.b16 %v4269
    %v5170 = vunpack.c.l.b16 %v4270
    %v5171 = vunpack.c.h.b16 %v4270
    %v5172 = vunpack.c.l.b16 %v4271
    %v5173 = vunpack.c.h.b16 %v4271
    %v5174 = vunpack.c.l.b16 %v4272
    %v5175 = vunpack.c.h.b16 %v4272
    %v5176 = vunpack.c.l.b16 %v4273
    %v5177 = vunpack.c.h.b16 %v4273
    %v5178 = vunpack.c.l.b16 %v4274
    %v5179 = vunpack.c.h.b16 %v4274
    %v5180 = vunpack.c.l.b16 %v4275
    %v5181 = vunpack.c.h.b16 %v4275
    %v5182 = vunpack.c.l.b16 %v4276
    %v5183 = vunpack.c.h.b16 %v4276
    %v5184 = vunpack.c.l.b16 %v4277
    %v5185 = vunpack.c.h.b16 %v4277
    %v5186 = vunpack.c.l.b16 %v4278
    %v5187 = vunpack.c.h.b16 %v4278
    %v5188 = vunpack.c.l.b16 %v4279
    %v5189 = vunpack.c.h.b16 %v4279
    %v5190 = vunpack.c.l.b16 %v4280
    %v5191 = vunpack.c.h.b16 %v4280
    %v5192 = vunpack.c.l.b16 %v4281
    %v5193 = vunpack.c.h.b16 %v4281
    %v5194 = vunpack.c.l.b16 %v4282
    %v5195 = vunpack.c.h.b16 %v4282
    %v5196 = vunpack.c.l.b16 %v4283
    %v5197 = vunpack.c.h.b16 %v4283
    %v5198 = vunpack.c.l.b16 %v4284
    %v5199 = vunpack.c.h.b16 %v4284
    %v5200 = vunpack.c.l.b16 %v4285
    %v5201 = vunpack.c.h.b16 %v4285
    %v5202 = vunpack.c.l.b16 %v4286
    %v5203 = vunpack.c.h.b16 %v4286
    %v5204 = vunpack.c.l.b16 %v4287
    %v5205 = vunpack.c.h.b16 %v4287
    %v5206 = vunpack.c.l.b16 %v4288
    %v5207 = vunpack.c.h.b16 %v4288
    %v5208 = vunpack.c.l.b16 %v4289
    %v5209 = vunpack.c.h.b16 %v4289
    %v5210 = vunpack.c.l.b16 %v4290
    %v5211 = vunpack.c.h.b16 %v4290
    %v5212 = vunpack.c.l.b16 %v4291
    %v5213 = vunpack.c.h.b16 %v4291
    %v5214 = vunpack.c.l.b16 %v4292
    %v5215 = vunpack.c.h.b16 %v4292
    %v5216 = vunpack.c.l.b16 %v4293
    %v5217 = vunpack.c.h.b16 %v4293
    %v5218 = vunpack.c.l.b16 %v4294
    %v5219 = vunpack.c.h.b16 %v4294
    %v5220 = vunpack.c.l.b16 %v4295
    %v5221 = vunpack.c.h.b16 %v4295
    %v5222 = vunpack.c.l.b16 %v4296
    %v5223 = vunpack.c.h.b16 %v4296
    %v5224 = vunpack.c.l.b16 %v4297
    %v5225 = vunpack.c.h.b16 %v4297
    %v5226 = vunpack.c.l.b16 %v4298
    %v5227 = vunpack.c.h.b16 %v4298
    %v5228 = vunpack.c.l.b16 %v4299
    %v5229 = vunpack.c.h.b16 %v4299
    %v5230 = vunpack.c.l.b16 %v4300
    %v5231 = vunpack.c.h.b16 %v4300
    %v5232 = vunpack.c.l.b16 %v4301
    %v5233 = vunpack.c.h.b16 %v4301
    %v5234 = vunpack.c.l.b16 %v4302
    %v5235 = vunpack.c.h.b16 %v4302
    %v5236 = vunpack.c.l.b16 %v4303
    %v5237 = vunpack.c.h.b16 %v4303
    %v5238 = vunpack.c.l.b16 %v4304
    %v5239 = vunpack.c.h.b16 %v4304
    %v5240 = vunpack.c.l.b16 %v4305
    %v5241 = vunpack.c.h.b16 %v4305
    %v5242 = vunpack.c.l.b16 %v4306
    %v5243 = vunpack.c.h.b16 %v4306
    %v5244 = vunpack.c.l.b16 %v4307
    %v5245 = vunpack.c.h.b16 %v4307
    %v5246 = vunpack.c.l.b16 %v4308
    %v5247 = vunpack.c.h.b16 %v4308
    %v5248 = vunpack.c.l.b16 %v4309
    %v5249 = vunpack.c.h.b16 %v4309
    %v5250 = vunpack.c.l.b16 %v4310
    %v5251 = vunpack.c.h.b16 %v4310
    %v5252 = vunpack.c.l.b16 %v4311
    %v5253 = vunpack.c.h.b16 %v4311
    %v5254 = vunpack.c.l.b16 %v4312
    %v5255 = vunpack.c.h.b16 %v4312
    %v5256 = vunpack.c.l.b16 %v4313
    %v5257 = vunpack.c.h.b16 %v4313
    %v5258 = vunpack.c.l.b16 %v4314
    %v5259 = vunpack.c.h.b16 %v4314
    %v5260 = vunpack.c.l.b16 %v4315
    %v5261 = vunpack.c.h.b16 %v4315
    %v5262 = vunpack.c.l.b16 %v4316
    %v5263 = vunpack.c.h.b16 %v4316
    %v5264 = vunpack.c.l.b16 %v4317
    %v5265 = vunpack.c.h.b16 %v4317
    %v5266 = vunpack.c.l.b16 %v4318
    %v5267 = vunpack.c.h.b16 %v4318
    %v5268 = vunpack.c.l.b16 %v4319
    %v5269 = vunpack.c.h.b16 %v4319
    %v5270 = vunpack.c.l.b16 %v4320
    %v5271 = vunpack.c.h.b16 %v4320
    %v5272 = vunpack.c.l.b16 %v4321
    %v5273 = vunpack.c.h.b16 %v4321
    %v5274 = vunpack.c.l.b16 %v4322
    %v5275 = vunpack.c.h.b16 %v4322
    %v5276 = vunpack.c.l.b16 %v4323
    %v5277 = vunpack.c.h.b16 %v4323
    %v5278 = vunpack.c.l.b16 %v4324
    %v5279 = vunpack.c.h.b16 %v4324
    %v5280 = vunpack.c.l.b16 %v4325
    %v5281 = vunpack.c.h.b16 %v4325
    %v5282 = vunpack.c.l.b16 %v4326
    %v5283 = vunpack.c.h.b16 %v4326
    %v5284 = vunpack.c.l.b16 %v4327
    %v5285 = vunpack.c.h.b16 %v4327
    %v5286 = vunpack.c.l.b16 %v4328
    %v5287 = vunpack.c.h.b16 %v4328
    %v5288 = vunpack.c.l.b16 %v4329
    %v5289 = vunpack.c.h.b16 %v4329
    %v5290 = vunpack.c.l.b16 %v4330
    %v5291 = vunpack.c.h.b16 %v4330
    %v5292 = vunpack.c.l.b16 %v4331
    %v5293 = vunpack.c.h.b16 %v4331
    %v5294 = vunpack.c.l.b16 %v4332
    %v5295 = vunpack.c.h.b16 %v4332
    %v5296 = vunpack.c.l.b16 %v4333
    %v5297 = vunpack.c.h.b16 %v4333
    %v5298 = vunpack.c.l.b16 %v4334
    %v5299 = vunpack.c.h.b16 %v4334
    %v5300 = vunpack.c.l.b16 %v4335
    %v5301 = vunpack.c.h.b16 %v4335
    %v5302 = vunpack.c.l.b16 %v4336
    %v5303 = vunpack.c.h.b16 %v4336
    %v5304 = vunpack.c.l.b16 %v4337
    %v5305 = vunpack.c.h.b16 %v4337
    %v5306 = vunpack.c.l.b16 %v4338
    %v5307 = vunpack.c.h.b16 %v4338
    %v5308 = vunpack.c.l.b16 %v4339
    %v5309 = vunpack.c.h.b16 %v4339
    %v5310 = vunpack.c.l.b16 %v4340
    %v5311 = vunpack.c.h.b16 %v4340
    %v5312 = vunpack.c.l.b16 %v4341
    %v5313 = vunpack.c.h.b16 %v4341
    %v5314 = vunpack.c.l.b16 %v4342
    %v5315 = vunpack.c.h.b16 %v4342
    %v5316 = vunpack.c.l.b16 %v4343
    %v5317 = vunpack.c.h.b16 %v4343
    %v5318 = vunpack.c.l.b16 %v4344
    %v5319 = vunpack.c.h.b16 %v4344
    %v5320 = vunpack.c.l.b16 %v4345
    %v5321 = vunpack.c.h.b16 %v4345
    %v5322 = vunpack.c.l.b16 %v4346
    %v5323 = vunpack.c.h.b16 %v4346
    %v5324 = vunpack.c.l.b16 %v4347
    %v5325 = vunpack.c.h.b16 %v4347
    %v5326 = vunpack.c.l.b16 %v4348
    %v5327 = vunpack.c.h.b16 %v4348
    %v5328 = vunpack.c.l.b16 %v4349
    %v5329 = vunpack.c.h.b16 %v4349
    %v5330 = vunpack.c.l.b16 %v4350
    %v5331 = vunpack.c.h.b16 %v4350
    %v5332 = vunpack.c.l.b16 %v4351
    %v5333 = vunpack.c.h.b16 %v4351
    %v5334 = vunpack.c.l.b16 %v4352
    %v5335 = vunpack.c.h.b16 %v4352
    %v5336 = vunpack.c.l.b16 %v4353
    %v5337 = vunpack.c.h.b16 %v4353
    %v5338 = vunpack.c.l.b16 %v4354
    %v5339 = vunpack.c.h.b16 %v4354
    %v5340 = vunpack.c.l.b16 %v4355
    %v5341 = vunpack.c.h.b16 %v4355
    %v5342 = vunpack.c.l.b16 %v4356
    %v5343 = vunpack.c.h.b16 %v4356
    %v5344 = vunpack.c.l.b16 %v4357
    %v5345 = vunpack.c.h.b16 %v4357
    %v5346 = vunpack.c.l.b16 %v4358
    %v5347 = vunpack.c.h.b16 %v4358
    %v5348 = vunpack.c.l.b16 %v4359
    %v5349 = vunpack.c.h.b16 %v4359
    %v5350 = vunpack.c.l.b16 %v4360
    %v5351 = vunpack.c.h.b16 %v4360
    %v5352 = vunpack.c.l.b16 %v4361
    %v5353 = vunpack.c.h.b16 %v4361
    %v5354 = vunpack.c.l.b16 %v4362
    %v5355 = vunpack.c.h.b16 %v4362
    %v5356 = vunpack.c.l.b16 %v4363
    %v5357 = vunpack.c.h.b16 %v4363
    %v5358 = vunpack.c.l.b16 %v4364
    %v5359 = vunpack.c.h.b16 %v4364
    %v5360 = vunpack.c.l.b16 %v4365
    %v5361 = vunpack.c.h.b16 %v4365
    %v5362 = vunpack.c.l.b16 %v4366
    %v5363 = vunpack.c.h.b16 %v4366
    %v5364 = vunpack.c.l.b16 %v4367
    %v5365 = vunpack.c.h.b16 %v4367
    %v5366 = vunpack.c.l.b16 %v4368
    %v5367 = vunpack.c.h.b16 %v4368
    %v5368 = vunpack.c.l.b16 %v4369
    %v5369 = vunpack.c.h.b16 %v4369
    %v5370 = vunpack.c.l.b16 %v4370
    %v5371 = vunpack.c.h.b16 %v4370
    %v5372 = vunpack.c.l.b16 %v4371
    %v5373 = vunpack.c.h.b16 %v4371
    %v5374 = vunpack.c.l.b16 %v4372
    %v5375 = vunpack.c.h.b16 %v4372
    %v5376 = vunpack.c.l.b16 %v4373
    %v5377 = vunpack.c.h.b16 %v4373
    %v5378 = vunpack.c.l.b16 %v4374
    %v5379 = vunpack.c.h.b16 %v4374
    %v5380 = vunpack.c.l.b16 %v4375
    %v5381 = vunpack.c.h.b16 %v4375
    %v5382 = vunpack.c.l.b16 %v4376
    %v5383 = vunpack.c.h.b16 %v4376
    %v5384 = vunpack.c.l.b16 %v4377
    %v5385 = vunpack.c.h.b16 %v4377
    %v5386 = vunpack.c.l.b16 %v4378
    %v5387 = vunpack.c.h.b16 %v4378
    %v5388 = vunpack.c.l.b16 %v4379
    %v5389 = vunpack.c.h.b16 %v4379
    %v5390 = vunpack.c.l.b16 %v4380
    %v5391 = vunpack.c.h.b16 %v4380
    %v5392 = vunpack.c.l.b16 %v4381
    %v5393 = vunpack.c.h.b16 %v4381
    %v5394 = vunpack.c.l.b16 %v4382
    %v5395 = vunpack.c.h.b16 %v4382
    %v5396 = vunpack.c.l.b16 %v4383
    %v5397 = vunpack.c.h.b16 %v4383
    %v5398 = vunpack.c.l.b16 %v4384
    %v5399 = vunpack.c.h.b16 %v4384
    %v5400 = vunpack.c.l.b16 %v4385
    %v5401 = vunpack.c.h.b16 %v4385
    %v5402 = vunpack.c.l.b16 %v4386
    %v5403 = vunpack.c.h.b16 %v4386
    %v5404 = vunpack.c.l.b16 %v4387
    %v5405 = vunpack.c.h.b16 %v4387
    %v5406 = vunpack.c.l.b16 %v4388
    %v5407 = vunpack.c.h.b16 %v4388
    %v5408 = vunpack.c.l.b16 %v4389
    %v5409 = vunpack.c.h.b16 %v4389
    %v5410 = vunpack.c.l.b16 %v4390
    %v5411 = vunpack.c.h.b16 %v4390
    %v5412 = vunpack.c.l.b16 %v4391
    %v5413 = vunpack.c.h.b16 %v4391
    %v5414 = vunpack.c.l.b16 %v4392
    %v5415 = vunpack.c.h.b16 %v4392
    %v5416 = vunpack.c.l.b16 %v4393
    %v5417 = vunpack.c.h.b16 %v4393
    %v5418 = vunpack.c.l.b16 %v4394
    %v5419 = vunpack.c.h.b16 %v4394
    %v5420 = vunpack.c.l.b16 %v4395
    %v5421 = vunpack.c.h.b16 %v4395
    %v5422 = vunpack.c.l.b16 %v4396
    %v5423 = vunpack.c.h.b16 %v4396
    %v5424 = vunpack.c.l.b16 %v4397
    %v5425 = vunpack.c.h.b16 %v4397
    %v5426 = vunpack.c.l.b16 %v4398
    %v5427 = vunpack.c.h.b16 %v4398
    %v5428 = vpack.c.b16 %v4762, %v4756
    %v5429 = vpack.c.b16 %v4763, %v4757
    %v5430 = vpack.c.b16 %v4764, %v4758
    %v5431 = vpack.c.b16 %v4765, %v4759
    %v5432 = vpack.c.b16 %v4766, %v4760
    %v5433 = vpack.c.b16 %v4767, %v4761
    %v5434 = vpack.c.b16 %v4774, %v4768
    %v5435 = vpack.c.b16 %v4775, %v4769
    %v5436 = vpack.c.b16 %v4776, %v4770
    %v5437 = vpack.c.b16 %v4777, %v4771
    %v5438 = vpack.c.b16 %v4778, %v4772
    %v5439 = vpack.c.b16 %v4779, %v4773
    %v5440 = vpack.c.b16 %v4786, %v4780
    %v5441 = vpack.c.b16 %v4787, %v4781
    %v5442 = vpack.c.b16 %v4788, %v4782
    %v5443 = vpack.c.b16 %v4789, %v4783
    %v5444 = vpack.c.b16 %v4790, %v4784
    %v5445 = vpack.c.b16 %v4791, %v4785
    %v5446 = vpack.c.b16 %v4798, %v4792
    %v5447 = vpack.c.b16 %v4799, %v4793
    %v5448 = vpack.c.b16 %v4800, %v4794
    %v5449 = vpack.c.b16 %v4801, %v4795
    %v5450 = vpack.c.b16 %v4802, %v4796
    %v5451 = vpack.c.b16 %v4803, %v4797
    %v5452 = vpack.c.b16 %v4810, %v4804
    %v5453 = vpack.c.b16 %v4811, %v4805
    %v5454 = vpack.c.b16 %v4812, %v4806
    %v5455 = vpack.c.b16 %v4813, %v4807
    %v5456 = vpack.c.b16 %v4814, %v4808
    %v5457 = vpack.c.b16 %v4815, %v4809
    %v5458 = vpack.c.b16 %v4822, %v4816
    %v5459 = vpack.c.b16 %v4823, %v4817
    %v5460 = vpack.c.b16 %v4824, %v4818
    %v5461 = vpack.c.b16 %v4825, %v4819
    %v5462 = vpack.c.b16 %v4826, %v4820
    %v5463 = vpack.c.b16 %v4827, %v4821
    %v5464 = vpack.c.b16 %v4834, %v4828
    %v5465 = vpack.c.b16 %v4835, %v4829
    %v5466 = vpack.c.b16 %v4836, %v4830
    %v5467 = vpack.c.b16 %v4837, %v4831
    %v5468 = vpack.c.b16 %v4838, %v4832
    %v5469 = vpack.c.b16 %v4839, %v4833
    %v5470 = vpack.c.b16 %v4846, %v4840
    %v5471 = vpack.c.b16 %v4847, %v4841
    %v5472 = vpack.c.b16 %v4848, %v4842
    %v5473 = vpack.c.b16 %v4849, %v4843
    %v5474 = vpack.c.b16 %v4850, %v4844
    %v5475 = vpack.c.b16 %v4851, %v4845
    %v5476 = vpack.c.b16 %v4858, %v4852
    %v5477 = vpack.c.b16 %v4859, %v4853
    %v5478 = vpack.c.b16 %v4860, %v4854
    %v5479 = vpack.c.b16 %v4861, %v4855
    %v5480 = vpack.c.b16 %v4862, %v4856
    %v5481 = vpack.c.b16 %v4863, %v4857
    %v5482 = vpack.c.b16 %v4870, %v4864
    %v5483 = vpack.c.b16 %v4871, %v4865
    %v5484 = vpack.c.b16 %v4872, %v4866
    %v5485 = vpack.c.b16 %v4873, %v4867
    %v5486 = vpack.c.b16 %v4874, %v4868
    %v5487 = vpack.c.b16 %v4875, %v4869
    %v5488 = vpack.c.b16 %v4882, %v4876
    %v5489 = vpack.c.b16 %v4883, %v4877
    %v5490 = vpack.c.b16 %v4884, %v4878
    %v5491 = vpack.c.b16 %v4885, %v4879
    %v5492 = vpack.c.b16 %v4886, %v4880
    %v5493 = vpack.c.b16 %v4887, %v4881
    %v5494 = vpack.c.b16 %v4894, %v4888
    %v5495 = vpack.c.b16 %v4895, %v4889
    %v5496 = vpack.c.b16 %v4896, %v4890
    %v5497 = vpack.c.b16 %v4897, %v4891
    %v5498 = vpack.c.b16 %v4898, %v4892
    %v5499 = vpack.c.b16 %v4899, %v4893
    %v5500 = vpack.c.b16 %v4906, %v4900
    %v5501 = vpack.c.b16 %v4907, %v4901
    %v5502 = vpack.c.b16 %v4908, %v4902
    %v5503 = vpack.c.b16 %v4909, %v4903
    %v5504 = vpack.c.b16 %v4910, %v4904
    %v5505 = vpack.c.b16 %v4911, %v4905
    %v5506 = vpack.c.b16 %v4918, %v4912
    %v5507 = vpack.c.b16 %v4919, %v4913
    %v5508 = vpack.c.b16 %v4920, %v4914
    %v5509 = vpack.c.b16 %v4921, %v4915
    %v5510 = vpack.c.b16 %v4922, %v4916
    %v5511 = vpack.c.b16 %v4923, %v4917
    %v5512 = vpack.c.b16 %v4930, %v4924
    %v5513 = vpack.c.b16 %v4931, %v4925
    %v5514 = vpack.c.b16 %v4932, %v4926
    %v5515 = vpack.c.b16 %v4933, %v4927
    %v5516 = vpack.c.b16 %v4934, %v4928
    %v5517 = vpack.c.b16 %v4935, %v4929
    %v5518 = vpack.c.b16 %v4942, %v4936
    %v5519 = vpack.c.b16 %v4943, %v4937
    %v5520 = vpack.c.b16 %v4944, %v4938
    %v5521 = vpack.c.b16 %v4945, %v4939
    %v5522 = vpack.c.b16 %v4946, %v4940
    %v5523 = vpack.c.b16 %v4947, %v4941
    %v5524 = vpack.c.b16 %v4954, %v4948
    %v5525 = vpack.c.b16 %v4955, %v4949
    %v5526 = vpack.c.b16 %v4956, %v4950
    %v5527 = vpack.c.b16 %v4957, %v4951
    %v5528 = vpack.c.b16 %v4958, %v4952
    %v5529 = vpack.c.b16 %v4959, %v4953
    %v5530 = vpack.c.b16 %v4966, %v4960
    %v5531 = vpack.c.b16 %v4967, %v4961
    %v5532 = vpack.c.b16 %v4968, %v4962
    %v5533 = vpack.c.b16 %v4969, %v4963
    %v5534 = vpack.c.b16 %v4970, %v4964
    %v5535 = vpack.c.b16 %v4971, %v4965
    %v5536 = vpack.c.b16 %v4978, %v4972
    %v5537 = vpack.c.b16 %v4979, %v4973
    %v5538 = vpack.c.b16 %v4980, %v4974
    %v5539 = vpack.c.b16 %v4981, %v4975
    %v5540 = vpack.c.b16 %v4982, %v4976
    %v5541 = vpack.c.b16 %v4983, %v4977
    %v5542 = vpack.c.b16 %v4990, %v4984
    %v5543 = vpack.c.b16 %v4991, %v4985
    %v5544 = vpack.c.b16 %v4992, %v4986
    %v5545 = vpack.c.b16 %v4993, %v4987
    %v5546 = vpack.c.b16 %v4994, %v4988
    %v5547 = vpack.c.b16 %v4995, %v4989
    %v5548 = vpack.c.b16 %v5002, %v4996
    %v5549 = vpack.c.b16 %v5003, %v4997
    %v5550 = vpack.c.b16 %v5004, %v4998
    %v5551 = vpack.c.b16 %v5005, %v4999
    %v5552 = vpack.c.b16 %v5006, %v5000
    %v5553 = vpack.c.b16 %v5007, %v5001
    %v5554 = vpack.c.b16 %v5014, %v5008
    %v5555 = vpack.c.b16 %v5015, %v5009
    %v5556 = vpack.c.b16 %v5016, %v5010
    %v5557 = vpack.c.b16 %v5017, %v5011
    %v5558 = vpack.c.b16 %v5018, %v5012
    %v5559 = vpack.c.b16 %v5019, %v5013
    %v5560 = vpack.c.b16 %v5026, %v5020
    %v5561 = vpack.c.b16 %v5027, %v5021
    %v5562 = vpack.c.b16 %v5028, %v5022
    %v5563 = vpack.c.b16 %v5029, %v5023
    %v5564 = vpack.c.b16 %v5030, %v5024
    %v5565 = vpack.c.b16 %v5031, %v5025
    %v5566 = vpack.c.b16 %v5038, %v5032
    %v5567 = vpack.c.b16 %v5039, %v5033
    %v5568 = vpack.c.b16 %v5040, %v5034
    %v5569 = vpack.c.b16 %v5041, %v5035
    %v5570 = vpack.c.b16 %v5042, %v5036
    %v5571 = vpack.c.b16 %v5043, %v5037
    %v5572 = vpack.c.b16 %v5050, %v5044
    %v5573 = vpack.c.b16 %v5051, %v5045
    %v5574 = vpack.c.b16 %v5052, %v5046
    %v5575 = vpack.c.b16 %v5053, %v5047
    %v5576 = vpack.c.b16 %v5054, %v5048
    %v5577 = vpack.c.b16 %v5055, %v5049
    %v5578 = vpack.c.b16 %v5062, %v5056
    %v5579 = vpack.c.b16 %v5063, %v5057
    %v5580 = vpack.c.b16 %v5064, %v5058
    %v5581 = vpack.c.b16 %v5065, %v5059
    %v5582 = vpack.c.b16 %v5066, %v5060
    %v5583 = vpack.c.b16 %v5067, %v5061
    %v5584 = vpack.c.b16 %v5074, %v5068
    %v5585 = vpack.c.b16 %v5075, %v5069
    %v5586 = vpack.c.b16 %v5076, %v5070
    %v5587 = vpack.c.b16 %v5077, %v5071
    %v5588 = vpack.c.b16 %v5078, %v5072
    %v5589 = vpack.c.b16 %v5079, %v5073
    %v5590 = vpack.c.b16 %v5086, %v5080
    %v5591 = vpack.c.b16 %v5087, %v5081
    %v5592 = vpack.c.b16 %v5088, %v5082
    %v5593 = vpack.c.b16 %v5089, %v5083
    %v5594 = vpack.c.b16 %v5090, %v5084
    %v5595 = vpack.c.b16 %v5091, %v5085
    %v5596 = vpack.c.b16 %v5098, %v5092
    %v5597 = vpack.c.b16 %v5099, %v5093
    %v5598 = vpack.c.b16 %v5100, %v5094
    %v5599 = vpack.c.b16 %v5101, %v5095
    %v5600 = vpack.c.b16 %v5102, %v5096
    %v5601 = vpack.c.b16 %v5103, %v5097
    %v5602 = vpack.c.b16 %v5110, %v5104
    %v5603 = vpack.c.b16 %v5111, %v5105
    %v5604 = vpack.c.b16 %v5112, %v5106
    %v5605 = vpack.c.b16 %v5113, %v5107
    %v5606 = vpack.c.b16 %v5114, %v5108
    %v5607 = vpack.c.b16 %v5115, %v5109
    %v5608 = vpack.c.b16 %v5122, %v5116
    %v5609 = vpack.c.b16 %v5123, %v5117
    %v5610 = vpack.c.b16 %v5124, %v5118
    %v5611 = vpack.c.b16 %v5125, %v5119
    %v5612 = vpack.c.b16 %v5126, %v5120
    %v5613 = vpack.c.b16 %v5127, %v5121
    %v5614 = vpack.c.b16 %v5134, %v5128
    %v5615 = vpack.c.b16 %v5135, %v5129
    %v5616 = vpack.c.b16 %v5136, %v5130
    %v5617 = vpack.c.b16 %v5137, %v5131
    %v5618 = vpack.c.b16 %v5138, %v5132
    %v5619 = vpack.c.b16 %v5139, %v5133
    %v5620 = vpack.c.b16 %v5146, %v5140
    %v5621 = vpack.c.b16 %v5147, %v5141
    %v5622 = vpack.c.b16 %v5148, %v5142
    %v5623 = vpack.c.b16 %v5149, %v5143
    %v5624 = vpack.c.b16 %v5150, %v5144
    %v5625 = vpack.c.b16 %v5151, %v5145
    %v5626 = vpack.c.b16 %v5158, %v5152
    %v5627 = vpack.c.b16 %v5159, %v5153
    %v5628 = vpack.c.b16 %v5160, %v5154
    %v5629 = vpack.c.b16 %v5161, %v5155
    %v5630 = vpack.c.b16 %v5162, %v5156
    %v5631 = vpack.c.b16 %v5163, %v5157
    %v5632 = vpack.c.b16 %v5170, %v5164
    %v5633 = vpack.c.b16 %v5171, %v5165
    %v5634 = vpack.c.b16 %v5172, %v5166
    %v5635 = vpack.c.b16 %v5173, %v5167
    %v5636 = vpack.c.b16 %v5174, %v5168
    %v5637 = vpack.c.b16 %v5175, %v5169
    %v5638 = vpack.c.b16 %v5182, %v5176
    %v5639 = vpack.c.b16 %v5183, %v5177
    %v5640 = vpack.c.b16 %v5184, %v5178
    %v5641 = vpack.c.b16 %v5185, %v5179
    %v5642 = vpack.c.b16 %v5186, %v5180
    %v5643 = vpack.c.b16 %v5187, %v5181
    %v5644 = vpack.c.b16 %v5194, %v5188
    %v5645 = vpack.c.b16 %v5195, %v5189
    %v5646 = vpack.c.b16 %v5196, %v5190
    %v5647 = vpack.c.b16 %v5197, %v5191
    %v5648 = vpack.c.b16 %v5198, %v5192
    %v5649 = vpack.c.b16 %v5199, %v5193
    %v5650 = vpack.c.b16 %v5206, %v5200
    %v5651 = vpack.c.b16 %v5207, %v5201
    %v5652 = vpack.c.b16 %v5208, %v5202
    %v5653 = vpack.c.b16 %v5209, %v5203
    %v5654 = vpack.c.b16 %v5210, %v5204
    %v5655 = vpack.c.b16 %v5211, %v5205
    %v5656 = vpack.c.b16 %v5218, %v5212
    %v5657 = vpack.c.b16 %v5219, %v5213
    %v5658 = vpack.c.b16 %v5220, %v5214
    %v5659 = vpack.c.b16 %v5221, %v5215
    %v5660 = vpack.c.b16 %v5222, %v5216
    %v5661 = vpack.c.b16 %v5223, %v5217
    %v5662 = vpack.c.b16 %v5230, %v5224
    %v5663 = vpack.c.b16 %v5231, %v5225
    %v5664 = vpack.c.b16 %v5232, %v5226
    %v5665 = vpack.c.b16 %v5233, %v5227
    %v5666 = vpack.c.b16 %v5234, %v5228
    %v5667 = vpack.c.b16 %v5235, %v5229
    %v5668 = vpack.c.b16 %v5242, %v5236
    %v5669 = vpack.c.b16 %v5243, %v5237
    %v5670 = vpack.c.b16 %v5244, %v5238
    %v5671 = vpack.c.b16 %v5245, %v5239
    %v5672 = vpack.c.b16 %v5246, %v5240
    %v5673 = vpack.c.b16 %v5247, %v5241
    %v5674 = vpack.c.b16 %v5254, %v5248
    %v5675 = vpack.c.b16 %v5255, %v5249
    %v5676 = vpack.c.b16 %v5256, %v5250
    %v5677 = vpack.c.b16 %v5257, %v5251
    %v5678 = vpack.c.b16 %v5258, %v5252
    %v5679 = vpack.c.b16 %v5259, %v5253
    %v5680 = vpack.c.b16 %v5266, %v5260
    %v5681 = vpack.c.b16 %v5267, %v5261
    %v5682 = vpack.c.b16 %v5268, %v5262
    %v5683 = vpack.c.b16 %v5269, %v5263
    %v5684 = vpack.c.b16 %v5270, %v5264
    %v5685 = vpack.c.b16 %v5271, %v5265
    %v5686 = vpack.c.b16 %v5278, %v5272
    %v5687 = vpack.c.b16 %v5279, %v5273
    %v5688 = vpack.c.b16 %v5280, %v5274
    %v5689 = vpack.c.b16 %v5281, %v5275
    %v5690 = vpack.c.b16 %v5282, %v5276
    %v5691 = vpack.c.b16 %v5283, %v5277
    %v5692 = vpack.c.b16 %v5290, %v5284
    %v5693 = vpack.c.b16 %v5291, %v5285
    %v5694 = vpack.c.b16 %v5292, %v5286
    %v5695 = vpack.c.b16 %v5293, %v5287
    %v5696 = vpack.c.b16 %v5294, %v5288
    %v5697 = vpack.c.b16 %v5295, %v5289
    %v5698 = vpack.c.b16 %v5302, %v5296
    %v5699 = vpack.c.b16 %v5303, %v5297
    %v5700 = vpack.c.b16 %v5304, %v5298
    %v5701 = vpack.c.b16 %v5305, %v5299
    %v5702 = vpack.c.b16 %v5306, %v5300
    %v5703 = vpack.c.b16 %v5307, %v5301
    %v5704 = vpack.c.b16 %v5314, %v5308
    %v5705 = vpack.c.b16 %v5315, %v5309
    %v5706 = vpack.c.b16 %v5316, %v5310
    %v5707 = vpack.c.b16 %v5317, %v5311
    %v5708 = vpack.c.b16 %v5318, %v5312
    %v5709 = vpack.c.b16 %v5319, %v5313
    %v5710 = vpack.c.b16 %v5326, %v5320
    %v5711 = vpack.c.b16 %v5327, %v5321
    %v5712 = vpack.c.b16 %v5328, %v5322
    %v5713 = vpack.c.b16 %v5329, %v5323
    %v5714 = vpack.c.b16 %v5330, %v5324
    %v5715 = vpack.c.b16 %v5331, %v5325
    %v5716 = vpack.c.b16 %v5338, %v5332
    %v5717 = vpack.c.b16 %v5339, %v5333
    %v5718 = vpack.c.b16 %v5340, %v5334
    %v5719 = vpack.c.b16 %v5341, %v5335
    %v5720 = vpack.c.b16 %v5342, %v5336
    %v5721 = vpack.c.b16 %v5343, %v5337
    %v5722 = vpack.c.b16 %v5350, %v5344
    %v5723 = vpack.c.b16 %v5351, %v5345
    %v5724 = vpack.c.b16 %v5352, %v5346
    %v5725 = vpack.c.b16 %v5353, %v5347
    %v5726 = vpack.c.b16 %v5354, %v5348
    %v5727 = vpack.c.b16 %v5355, %v5349
    %v5728 = vpack.c.b16 %v5362, %v5356
    %v5729 = vpack.c.b16 %v5363, %v5357
    %v5730 = vpack.c.b16 %v5364, %v5358
    %v5731 = vpack.c.b16 %v5365, %v5359
    %v5732 = vpack.c.b16 %v5366, %v5360
    %v5733 = vpack.c.b16 %v5367, %v5361
    %v5734 = vpack.c.b16 %v5374, %v5368
    %v5735 = vpack.c.b16 %v5375, %v5369
    %v5736 = vpack.c.b16 %v5376, %v5370
    %v5737 = vpack.c.b16 %v5377, %v5371
    %v5738 = vpack.c.b16 %v5378, %v5372
    %v5739 = vpack.c.b16 %v5379, %v5373
    %v5740 = vpack.c.b16 %v5386, %v5380
    %v5741 = vpack.c.b16 %v5387, %v5381
    %v5742 = vpack.c.b16 %v5388, %v5382
    %v5743 = vpack.c.b16 %v5389, %v5383
    %v5744 = vpack.c.b16 %v5390, %v5384
    %v5745 = vpack.c.b16 %v5391, %v5385
    %v5746 = vpack.c.b16 %v5398, %v5392
    %v5747 = vpack.c.b16 %v5399, %v5393
    %v5748 = vpack.c.b16 %v5400, %v5394
    %v5749 = vpack.c.b16 %v5401, %v5395
    %v5750 = vpack.c.b16 %v5402, %v5396
    %v5751 = vpack.c.b16 %v5403, %v5397
    %v5752 = vpack.c.b16 %v5410, %v5404
    %v5753 = vpack.c.b16 %v5411, %v5405
    %v5754 = vpack.c.b16 %v5412, %v5406
    %v5755 = vpack.c.b16 %v5413, %v5407
    %v5756 = vpack.c.b16 %v5414, %v5408
    %v5757 = vpack.c.b16 %v5415, %v5409
    %v5758 = vpack.c.b16 %v5422, %v5416
    %v5759 = vpack.c.b16 %v5423, %v5417
    %v5760 = vpack.c.b16 %v5424, %v5418
    %v5761 = vpack.c.b16 %v5425, %v5419
    %v5762 = vpack.c.b16 %v5426, %v5420
    %v5763 = vpack.c.b16 %v5427, %v5421
    %6100 = vmatpush.bf16.msra.mxu0 %v5470
    %6101 = vmatpush.bf16.msra.mxu0 %v5464
    %6102 = vmatpush.bf16.msra.mxu0 %v5458
    %6103 = vmatpush.bf16.msra.mxu0 %v5452
    %6104 = vmatpush.bf16.msra.mxu0 %v5446
    %6105 = vmatpush.bf16.msra.mxu0 %v5440
    %6106 = vmatpush.bf16.msra.mxu0 %v5434
    %6107 = vmatpush.bf16.msra.mxu0 %v5428
    %6108 = vmatmul.bf16.gmra.mxu0 %v4399
    %v6109 = vpop.f32.mrf.mxu0
    %v6110 = vadd.f32 %v4408, %v6109
    %v6111 = vpop.f32.mrf.mxu0
    %6112 = vdwg.mxu0
    %6113 = vmatpush.bf16.msra.mxu0 %v5518
    %6114 = vmatpush.bf16.msra.mxu0 %v5512
    %6115 = vmatpush.bf16.msra.mxu0 %v5506
    %6116 = vmatpush.bf16.msra.mxu0 %v5500
    %6117 = vmatpush.bf16.msra.mxu0 %v5494
    %6118 = vmatpush.bf16.msra.mxu0 %v5488
    %6119 = vmatpush.bf16.msra.mxu0 %v5482
    %6120 = vmatpush.bf16.msra.mxu0 %v5476
    %6121 = vmatmul.bf16.gmra.mxu0 %v4400
    %v6122 = vpop.f32.mrf.mxu0
    %v6123 = vadd.f32 %v6110, %v6122
    %v6124 = vpop.f32.mrf.mxu0
    %6125 = vdwg.mxu0
    %6126 = vmatpush.bf16.msra.mxu0 %v5566
    %6127 = vmatpush.bf16.msra.mxu0 %v5560
    %6128 = vmatpush.bf16.msra.mxu0 %v5554
    %6129 = vmatpush.bf16.msra.mxu0 %v5548
    %6130 = vmatpush.bf16.msra.mxu0 %v5542
    %6131 = vmatpush.bf16.msra.mxu0 %v5536
    %6132 = vmatpush.bf16.msra.mxu0 %v5530
    %6133 = vmatpush.bf16.msra.mxu0 %v5524
    %6134 = vmatmul.bf16.gmra.mxu0 %v4401
    %v6135 = vpop.f32.mrf.mxu0
    %v6136 = vadd.f32 %v6123, %v6135
    %v6137 = vpop.f32.mrf.mxu0
    %6138 = vdwg.mxu0
    %6139 = vmatpush.bf16.msra.mxu0 %v5614
    %6140 = vmatpush.bf16.msra.mxu0 %v5608
    %6141 = vmatpush.bf16.msra.mxu0 %v5602
    %6142 = vmatpush.bf16.msra.mxu0 %v5596
    %6143 = vmatpush.bf16.msra.mxu0 %v5590
    %6144 = vmatpush.bf16.msra.mxu0 %v5584
    %6145 = vmatpush.bf16.msra.mxu0 %v5578
    %6146 = vmatpush.bf16.msra.mxu0 %v5572
    %6147 = vmatmul.bf16.gmra.mxu0 %v4402
    %v6148 = vpop.f32.mrf.mxu0
    %v6149 = vadd.f32 %v6136, %v6148
    %v6150 = vpop.f32.mrf.mxu0
    %6151 = vdwg.mxu0
    %6152 = vmatpush.bf16.msra.mxu0 %v5662
    %6153 = vmatpush.bf16.msra.mxu0 %v5656
    %6154 = vmatpush.bf16.msra.mxu0 %v5650
    %6155 = vmatpush.bf16.msra.mxu0 %v5644
    %6156 = vmatpush.bf16.msra.mxu0 %v5638
    %6157 = vmatpush.bf16.msra.mxu0 %v5632
    %6158 = vmatpush.bf16.msra.mxu0 %v5626
    %6159 = vmatpush.bf16.msra.mxu0 %v5620
    %6160 = vmatmul.bf16.gmra.mxu0 %v4403
    %v6161 = vpop.f32.mrf.mxu0
    %v6162 = vadd.f32 %v6149, %v6161
    %v6163 = vpop.f32.mrf.mxu0
    %6164 = vdwg.mxu0
    %6165 = vmatpush.bf16.msra.mxu0 %v5710
    %6166 = vmatpush.bf16.msra.mxu0 %v5704
    %6167 = vmatpush.bf16.msra.mxu0 %v5698
    %6168 = vmatpush.bf16.msra.mxu0 %v5692
    %6169 = vmatpush.bf16.msra.mxu0 %v5686
    %6170 = vmatpush.bf16.msra.mxu0 %v5680
    %6171 = vmatpush.bf16.msra.mxu0 %v5674
    %6172 = vmatpush.bf16.msra.mxu0 %v5668
    %6173 = vmatmul.bf16.gmra.mxu0 %v4404
    %v6174 = vpop.f32.mrf.mxu0
    %v6175 = vadd.f32 %v6162, %v6174
    %v6176 = vpop.f32.mrf.mxu0
    %6177 = vdwg.mxu0
    %6178 = vmatpush.bf16.msra.mxu0 %v5758
    %6179 = vmatpush.bf16.msra.mxu0 %v5752
    %6180 = vmatpush.bf16.msra.mxu0 %v5746
    %6181 = vmatpush.bf16.msra.mxu0 %v5740
    %6182 = vmatpush.bf16.msra.mxu0 %v5734
    %6183 = vmatpush.bf16.msra.mxu0 %v5728
    %6184 = vmatpush.bf16.msra.mxu0 %v5722
    %6185 = vmatpush.bf16.msra.mxu0 %v5716
    %6186 = vmatmul.bf16.gmra.mxu0 %v4405
    %v6187 = vpop.f32.mrf.mxu0
    %v6188 = vadd.f32 %v6175, %v6187
    %v6189 = vpop.f32.mrf.mxu0
    %6190 = vdwg.mxu0
    %6191 = vmatpush.bf16.msra.mxu0 %v5471
    %6192 = vmatpush.bf16.msra.mxu0 %v5465
    %6193 = vmatpush.bf16.msra.mxu0 %v5459
    %6194 = vmatpush.bf16.msra.mxu0 %v5453
    %6195 = vmatpush.bf16.msra.mxu0 %v5447
    %6196 = vmatpush.bf16.msra.mxu0 %v5441
    %6197 = vmatpush.bf16.msra.mxu0 %v5435
    %6198 = vmatpush.bf16.msra.mxu0 %v5429
    %6199 = vmatmul.bf16.gmra.mxu0 %v4399
    %v6200 = vpop.f32.mrf.mxu0
    %v6201 = vadd.f32 %v4409, %v6200
    %v6202 = vpop.f32.mrf.mxu0
    %6203 = vdwg.mxu0
    %6204 = vmatpush.bf16.msra.mxu0 %v5519
    %6205 = vmatpush.bf16.msra.mxu0 %v5513
    %6206 = vmatpush.bf16.msra.mxu0 %v5507
    %6207 = vmatpush.bf16.msra.mxu0 %v5501
    %6208 = vmatpush.bf16.msra.mxu0 %v5495
    %6209 = vmatpush.bf16.msra.mxu0 %v5489
    %6210 = vmatpush.bf16.msra.mxu0 %v5483
    %6211 = vmatpush.bf16.msra.mxu0 %v5477
    %6212 = vmatmul.bf16.gmra.mxu0 %v4400
    %v6213 = vpop.f32.mrf.mxu0
    %v6214 = vadd.f32 %v6201, %v6213
    %v6215 = vpop.f32.mrf.mxu0
    %6216 = vdwg.mxu0
    %6217 = vmatpush.bf16.msra.mxu0 %v5567
    %6218 = vmatpush.bf16.msra.mxu0 %v5561
    %6219 = vmatpush.bf16.msra.mxu0 %v5555
    %6220 = vmatpush.bf16.msra.mxu0 %v5549
    %6221 = vmatpush.bf16.msra.mxu0 %v5543
    %6222 = vmatpush.bf16.msra.mxu0 %v5537
    %6223 = vmatpush.bf16.msra.mxu0 %v5531
    %6224 = vmatpush.bf16.msra.mxu0 %v5525
    %6225 = vmatmul.bf16.gmra.mxu0 %v4401
    %v6226 = vpop.f32.mrf.mxu0
    %v6227 = vadd.f32 %v6214, %v6226
    %v6228 = vpop.f32.mrf.mxu0
    %6229 = vdwg.mxu0
    %6230 = vmatpush.bf16.msra.mxu0 %v5615
    %6231 = vmatpush.bf16.msra.mxu0 %v5609
    %6232 = vmatpush.bf16.msra.mxu0 %v5603
    %6233 = vmatpush.bf16.msra.mxu0 %v5597
    %6234 = vmatpush.bf16.msra.mxu0 %v5591
    %6235 = vmatpush.bf16.msra.mxu0 %v5585
    %6236 = vmatpush.bf16.msra.mxu0 %v5579
    %6237 = vmatpush.bf16.msra.mxu0 %v5573
    %6238 = vmatmul.bf16.gmra.mxu0 %v4402
    %v6239 = vpop.f32.mrf.mxu0
    %v6240 = vadd.f32 %v6227, %v6239
    %v6241 = vpop.f32.mrf.mxu0
    %6242 = vdwg.mxu0
    %6243 = vmatpush.bf16.msra.mxu0 %v5663
    %6244 = vmatpush.bf16.msra.mxu0 %v5657
    %6245 = vmatpush.bf16.msra.mxu0 %v5651
    %6246 = vmatpush.bf16.msra.mxu0 %v5645
    %6247 = vmatpush.bf16.msra.mxu0 %v5639
    %6248 = vmatpush.bf16.msra.mxu0 %v5633
    %6249 = vmatpush.bf16.msra.mxu0 %v5627
    %6250 = vmatpush.bf16.msra.mxu0 %v5621
    %6251 = vmatmul.bf16.gmra.mxu0 %v4403
    %v6252 = vpop.f32.mrf.mxu0
    %v6253 = vadd.f32 %v6240, %v6252
    %v6254 = vpop.f32.mrf.mxu0
    %6255 = vdwg.mxu0
    %6256 = vmatpush.bf16.msra.mxu0 %v5711
    %6257 = vmatpush.bf16.msra.mxu0 %v5705
    %6258 = vmatpush.bf16.msra.mxu0 %v5699
    %6259 = vmatpush.bf16.msra.mxu0 %v5693
    %6260 = vmatpush.bf16.msra.mxu0 %v5687
    %6261 = vmatpush.bf16.msra.mxu0 %v5681
    %6262 = vmatpush.bf16.msra.mxu0 %v5675
    %6263 = vmatpush.bf16.msra.mxu0 %v5669
    %6264 = vmatmul.bf16.gmra.mxu0 %v4404
    %v6265 = vpop.f32.mrf.mxu0
    %v6266 = vadd.f32 %v6253, %v6265
    %v6267 = vpop.f32.mrf.mxu0
    %6268 = vdwg.mxu0
    %6269 = vmatpush.bf16.msra.mxu0 %v5759
    %6270 = vmatpush.bf16.msra.mxu0 %v5753
    %6271 = vmatpush.bf16.msra.mxu0 %v5747
    %6272 = vmatpush.bf16.msra.mxu0 %v5741
    %6273 = vmatpush.bf16.msra.mxu0 %v5735
    %6274 = vmatpush.bf16.msra.mxu0 %v5729
    %6275 = vmatpush.bf16.msra.mxu0 %v5723
    %6276 = vmatpush.bf16.msra.mxu0 %v5717
    %6277 = vmatmul.bf16.gmra.mxu0 %v4405
    %v6278 = vpop.f32.mrf.mxu0
    %v6279 = vadd.f32 %v6266, %v6278
    %v6280 = vpop.f32.mrf.mxu0
    %6281 = vdwg.mxu0
    %6282 = vmatpush.bf16.msra.mxu0 %v5472
    %6283 = vmatpush.bf16.msra.mxu0 %v5466
    %6284 = vmatpush.bf16.msra.mxu0 %v5460
    %6285 = vmatpush.bf16.msra.mxu0 %v5454
    %6286 = vmatpush.bf16.msra.mxu0 %v5448
    %6287 = vmatpush.bf16.msra.mxu0 %v5442
    %6288 = vmatpush.bf16.msra.mxu0 %v5436
    %6289 = vmatpush.bf16.msra.mxu0 %v5430
    %6290 = vmatmul.bf16.gmra.mxu0 %v4399
    %v6291 = vpop.f32.mrf.mxu0
    %v6292 = vadd.f32 %v4410, %v6291
    %v6293 = vpop.f32.mrf.mxu0
    %6294 = vdwg.mxu0
    %6295 = vmatpush.bf16.msra.mxu0 %v5520
    %6296 = vmatpush.bf16.msra.mxu0 %v5514
    %6297 = vmatpush.bf16.msra.mxu0 %v5508
    %6298 = vmatpush.bf16.msra.mxu0 %v5502
    %6299 = vmatpush.bf16.msra.mxu0 %v5496
    %6300 = vmatpush.bf16.msra.mxu0 %v5490
    %6301 = vmatpush.bf16.msra.mxu0 %v5484
    %6302 = vmatpush.bf16.msra.mxu0 %v5478
    %6303 = vmatmul.bf16.gmra.mxu0 %v4400
    %v6304 = vpop.f32.mrf.mxu0
    %v6305 = vadd.f32 %v6292, %v6304
    %v6306 = vpop.f32.mrf.mxu0
    %6307 = vdwg.mxu0
    %6308 = vmatpush.bf16.msra.mxu0 %v5568
    %6309 = vmatpush.bf16.msra.mxu0 %v5562
    %6310 = vmatpush.bf16.msra.mxu0 %v5556
    %6311 = vmatpush.bf16.msra.mxu0 %v5550
    %6312 = vmatpush.bf16.msra.mxu0 %v5544
    %6313 = vmatpush.bf16.msra.mxu0 %v5538
    %6314 = vmatpush.bf16.msra.mxu0 %v5532
    %6315 = vmatpush.bf16.msra.mxu0 %v5526
    %6316 = vmatmul.bf16.gmra.mxu0 %v4401
    %v6317 = vpop.f32.mrf.mxu0
    %v6318 = vadd.f32 %v6305, %v6317
    %v6319 = vpop.f32.mrf.mxu0
    %6320 = vdwg.mxu0
    %6321 = vmatpush.bf16.msra.mxu0 %v5616
    %6322 = vmatpush.bf16.msra.mxu0 %v5610
    %6323 = vmatpush.bf16.msra.mxu0 %v5604
    %6324 = vmatpush.bf16.msra.mxu0 %v5598
    %6325 = vmatpush.bf16.msra.mxu0 %v5592
    %6326 = vmatpush.bf16.msra.mxu0 %v5586
    %6327 = vmatpush.bf16.msra.mxu0 %v5580
    %6328 = vmatpush.bf16.msra.mxu0 %v5574
    %6329 = vmatmul.bf16.gmra.mxu0 %v4402
    %v6330 = vpop.f32.mrf.mxu0
    %v6331 = vadd.f32 %v6318, %v6330
    %v6332 = vpop.f32.mrf.mxu0
    %6333 = vdwg.mxu0
    %6334 = vmatpush.bf16.msra.mxu0 %v5664
    %6335 = vmatpush.bf16.msra.mxu0 %v5658
    %6336 = vmatpush.bf16.msra.mxu0 %v5652
    %6337 = vmatpush.bf16.msra.mxu0 %v5646
    %6338 = vmatpush.bf16.msra.mxu0 %v5640
    %6339 = vmatpush.bf16.msra.mxu0 %v5634
    %6340 = vmatpush.bf16.msra.mxu0 %v5628
    %6341 = vmatpush.bf16.msra.mxu0 %v5622
    %6342 = vmatmul.bf16.gmra.mxu0 %v4403
    %v6343 = vpop.f32.mrf.mxu0
    %v6344 = vadd.f32 %v6331, %v6343
    %v6345 = vpop.f32.mrf.mxu0
    %6346 = vdwg.mxu0
    %6347 = vmatpush.bf16.msra.mxu0 %v5712
    %6348 = vmatpush.bf16.msra.mxu0 %v5706
    %6349 = vmatpush.bf16.msra.mxu0 %v5700
    %6350 = vmatpush.bf16.msra.mxu0 %v5694
    %6351 = vmatpush.bf16.msra.mxu0 %v5688
    %6352 = vmatpush.bf16.msra.mxu0 %v5682
    %6353 = vmatpush.bf16.msra.mxu0 %v5676
    %6354 = vmatpush.bf16.msra.mxu0 %v5670
    %6355 = vmatmul.bf16.gmra.mxu0 %v4404
    %v6356 = vpop.f32.mrf.mxu0
    %v6357 = vadd.f32 %v6344, %v6356
    %v6358 = vpop.f32.mrf.mxu0
    %6359 = vdwg.mxu0
    %6360 = vmatpush.bf16.msra.mxu0 %v5760
    %6361 = vmatpush.bf16.msra.mxu0 %v5754
    %6362 = vmatpush.bf16.msra.mxu0 %v5748
    %6363 = vmatpush.bf16.msra.mxu0 %v5742
    %6364 = vmatpush.bf16.msra.mxu0 %v5736
    %6365 = vmatpush.bf16.msra.mxu0 %v5730
    %6366 = vmatpush.bf16.msra.mxu0 %v5724
    %6367 = vmatpush.bf16.msra.mxu0 %v5718
    %6368 = vmatmul.bf16.gmra.mxu0 %v4405
    %v6369 = vpop.f32.mrf.mxu0
    %v6370 = vadd.f32 %v6357, %v6369
    %v6371 = vpop.f32.mrf.mxu0
    %6372 = vdwg.mxu0
    %6373 = vmatpush.bf16.msra.mxu0 %v5473
    %6374 = vmatpush.bf16.msra.mxu0 %v5467
    %6375 = vmatpush.bf16.msra.mxu0 %v5461
    %6376 = vmatpush.bf16.msra.mxu0 %v5455
    %6377 = vmatpush.bf16.msra.mxu0 %v5449
    %6378 = vmatpush.bf16.msra.mxu0 %v5443
    %6379 = vmatpush.bf16.msra.mxu0 %v5437
    %6380 = vmatpush.bf16.msra.mxu0 %v5431
    %6381 = vmatmul.bf16.gmra.mxu0 %v4399
    %v6382 = vpop.f32.mrf.mxu0
    %v6383 = vadd.f32 %v4411, %v6382
    %v6384 = vpop.f32.mrf.mxu0
    %6385 = vdwg.mxu0
    %6386 = vmatpush.bf16.msra.mxu0 %v5521
    %6387 = vmatpush.bf16.msra.mxu0 %v5515
    %6388 = vmatpush.bf16.msra.mxu0 %v5509
    %6389 = vmatpush.bf16.msra.mxu0 %v5503
    %6390 = vmatpush.bf16.msra.mxu0 %v5497
    %6391 = vmatpush.bf16.msra.mxu0 %v5491
    %6392 = vmatpush.bf16.msra.mxu0 %v5485
    %6393 = vmatpush.bf16.msra.mxu0 %v5479
    %6394 = vmatmul.bf16.gmra.mxu0 %v4400
    %v6395 = vpop.f32.mrf.mxu0
    %v6396 = vadd.f32 %v6383, %v6395
    %v6397 = vpop.f32.mrf.mxu0
    %6398 = vdwg.mxu0
    %6399 = vmatpush.bf16.msra.mxu0 %v5569
    %6400 = vmatpush.bf16.msra.mxu0 %v5563
    %6401 = vmatpush.bf16.msra.mxu0 %v5557
    %6402 = vmatpush.bf16.msra.mxu0 %v5551
    %6403 = vmatpush.bf16.msra.mxu0 %v5545
    %6404 = vmatpush.bf16.msra.mxu0 %v5539
    %6405 = vmatpush.bf16.msra.mxu0 %v5533
    %6406 = vmatpush.bf16.msra.mxu0 %v5527
    %6407 = vmatmul.bf16.gmra.mxu0 %v4401
    %v6408 = vpop.f32.mrf.mxu0
    %v6409 = vadd.f32 %v6396, %v6408
    %v6410 = vpop.f32.mrf.mxu0
    %6411 = vdwg.mxu0
    %6412 = vmatpush.bf16.msra.mxu0 %v5617
    %6413 = vmatpush.bf16.msra.mxu0 %v5611
    %6414 = vmatpush.bf16.msra.mxu0 %v5605
    %6415 = vmatpush.bf16.msra.mxu0 %v5599
    %6416 = vmatpush.bf16.msra.mxu0 %v5593
    %6417 = vmatpush.bf16.msra.mxu0 %v5587
    %6418 = vmatpush.bf16.msra.mxu0 %v5581
    %6419 = vmatpush.bf16.msra.mxu0 %v5575
    %6420 = vmatmul.bf16.gmra.mxu0 %v4402
    %v6421 = vpop.f32.mrf.mxu0
    %v6422 = vadd.f32 %v6409, %v6421
    %v6423 = vpop.f32.mrf.mxu0
    %6424 = vdwg.mxu0
    %6425 = vmatpush.bf16.msra.mxu0 %v5665
    %6426 = vmatpush.bf16.msra.mxu0 %v5659
    %6427 = vmatpush.bf16.msra.mxu0 %v5653
    %6428 = vmatpush.bf16.msra.mxu0 %v5647
    %6429 = vmatpush.bf16.msra.mxu0 %v5641
    %6430 = vmatpush.bf16.msra.mxu0 %v5635
    %6431 = vmatpush.bf16.msra.mxu0 %v5629
    %6432 = vmatpush.bf16.msra.mxu0 %v5623
    %6433 = vmatmul.bf16.gmra.mxu0 %v4403
    %v6434 = vpop.f32.mrf.mxu0
    %v6435 = vadd.f32 %v6422, %v6434
    %v6436 = vpop.f32.mrf.mxu0
    %6437 = vdwg.mxu0
    %6438 = vmatpush.bf16.msra.mxu0 %v5713
    %6439 = vmatpush.bf16.msra.mxu0 %v5707
    %6440 = vmatpush.bf16.msra.mxu0 %v5701
    %6441 = vmatpush.bf16.msra.mxu0 %v5695
    %6442 = vmatpush.bf16.msra.mxu0 %v5689
    %6443 = vmatpush.bf16.msra.mxu0 %v5683
    %6444 = vmatpush.bf16.msra.mxu0 %v5677
    %6445 = vmatpush.bf16.msra.mxu0 %v5671
    %6446 = vmatmul.bf16.gmra.mxu0 %v4404
    %v6447 = vpop.f32.mrf.mxu0
    %v6448 = vadd.f32 %v6435, %v6447
    %v6449 = vpop.f32.mrf.mxu0
    %6450 = vdwg.mxu0
    %6451 = vmatpush.bf16.msra.mxu0 %v5761
    %6452 = vmatpush.bf16.msra.mxu0 %v5755
    %6453 = vmatpush.bf16.msra.mxu0 %v5749
    %6454 = vmatpush.bf16.msra.mxu0 %v5743
    %6455 = vmatpush.bf16.msra.mxu0 %v5737
    %6456 = vmatpush.bf16.msra.mxu0 %v5731
    %6457 = vmatpush.bf16.msra.mxu0 %v5725
    %6458 = vmatpush.bf16.msra.mxu0 %v5719
    %6459 = vmatmul.bf16.gmra.mxu0 %v4405
    %v6460 = vpop.f32.mrf.mxu0
    %v6461 = vadd.f32 %v6448, %v6460
    %v6462 = vpop.f32.mrf.mxu0
    %6463 = vdwg.mxu0
    %6464 = vmatpush.bf16.msra.mxu0 %v5474
    %6465 = vmatpush.bf16.msra.mxu0 %v5468
    %6466 = vmatpush.bf16.msra.mxu0 %v5462
    %6467 = vmatpush.bf16.msra.mxu0 %v5456
    %6468 = vmatpush.bf16.msra.mxu0 %v5450
    %6469 = vmatpush.bf16.msra.mxu0 %v5444
    %6470 = vmatpush.bf16.msra.mxu0 %v5438
    %6471 = vmatpush.bf16.msra.mxu0 %v5432
    %6472 = vmatmul.bf16.gmra.mxu0 %v4399
    %v6473 = vpop.f32.mrf.mxu0
    %v6474 = vadd.f32 %v4412, %v6473
    %v6475 = vpop.f32.mrf.mxu0
    %6476 = vdwg.mxu0
    %6477 = vmatpush.bf16.msra.mxu0 %v5522
    %6478 = vmatpush.bf16.msra.mxu0 %v5516
    %6479 = vmatpush.bf16.msra.mxu0 %v5510
    %6480 = vmatpush.bf16.msra.mxu0 %v5504
    %6481 = vmatpush.bf16.msra.mxu0 %v5498
    %6482 = vmatpush.bf16.msra.mxu0 %v5492
    %6483 = vmatpush.bf16.msra.mxu0 %v5486
    %6484 = vmatpush.bf16.msra.mxu0 %v5480
    %6485 = vmatmul.bf16.gmra.mxu0 %v4400
    %v6486 = vpop.f32.mrf.mxu0
    %v6487 = vadd.f32 %v6474, %v6486
    %v6488 = vpop.f32.mrf.mxu0
    %6489 = vdwg.mxu0
    %6490 = vmatpush.bf16.msra.mxu0 %v5570
    %6491 = vmatpush.bf16.msra.mxu0 %v5564
    %6492 = vmatpush.bf16.msra.mxu0 %v5558
    %6493 = vmatpush.bf16.msra.mxu0 %v5552
    %6494 = vmatpush.bf16.msra.mxu0 %v5546
    %6495 = vmatpush.bf16.msra.mxu0 %v5540
    %6496 = vmatpush.bf16.msra.mxu0 %v5534
    %6497 = vmatpush.bf16.msra.mxu0 %v5528
    %6498 = vmatmul.bf16.gmra.mxu0 %v4401
    %v6499 = vpop.f32.mrf.mxu0
    %v6500 = vadd.f32 %v6487, %v6499
    %v6501 = vpop.f32.mrf.mxu0
    %6502 = vdwg.mxu0
    %6503 = vmatpush.bf16.msra.mxu0 %v5618
    %6504 = vmatpush.bf16.msra.mxu0 %v5612
    %6505 = vmatpush.bf16.msra.mxu0 %v5606
    %6506 = vmatpush.bf16.msra.mxu0 %v5600
    %6507 = vmatpush.bf16.msra.mxu0 %v5594
    %6508 = vmatpush.bf16.msra.mxu0 %v5588
    %6509 = vmatpush.bf16.msra.mxu0 %v5582
    %6510 = vmatpush.bf16.msra.mxu0 %v5576
    %6511 = vmatmul.bf16.gmra.mxu0 %v4402
    %v6512 = vpop.f32.mrf.mxu0
    %v6513 = vadd.f32 %v6500, %v6512
    %v6514 = vpop.f32.mrf.mxu0
    %6515 = vdwg.mxu0
    %6516 = vmatpush.bf16.msra.mxu0 %v5666
    %6517 = vmatpush.bf16.msra.mxu0 %v5660
    %6518 = vmatpush.bf16.msra.mxu0 %v5654
    %6519 = vmatpush.bf16.msra.mxu0 %v5648
    %6520 = vmatpush.bf16.msra.mxu0 %v5642
    %6521 = vmatpush.bf16.msra.mxu0 %v5636
    %6522 = vmatpush.bf16.msra.mxu0 %v5630
    %6523 = vmatpush.bf16.msra.mxu0 %v5624
    %6524 = vmatmul.bf16.gmra.mxu0 %v4403
    %v6525 = vpop.f32.mrf.mxu0
    %v6526 = vadd.f32 %v6513, %v6525
    %v6527 = vpop.f32.mrf.mxu0
    %6528 = vdwg.mxu0
    %6529 = vmatpush.bf16.msra.mxu0 %v5714
    %6530 = vmatpush.bf16.msra.mxu0 %v5708
    %6531 = vmatpush.bf16.msra.mxu0 %v5702
    %6532 = vmatpush.bf16.msra.mxu0 %v5696
    %6533 = vmatpush.bf16.msra.mxu0 %v5690
    %6534 = vmatpush.bf16.msra.mxu0 %v5684
    %6535 = vmatpush.bf16.msra.mxu0 %v5678
    %6536 = vmatpush.bf16.msra.mxu0 %v5672
    %6537 = vmatmul.bf16.gmra.mxu0 %v4404
    %v6538 = vpop.f32.mrf.mxu0
    %v6539 = vadd.f32 %v6526, %v6538
    %v6540 = vpop.f32.mrf.mxu0
    %6541 = vdwg.mxu0
    %6542 = vmatpush.bf16.msra.mxu0 %v5762
    %6543 = vmatpush.bf16.msra.mxu0 %v5756
    %6544 = vmatpush.bf16.msra.mxu0 %v5750
    %6545 = vmatpush.bf16.msra.mxu0 %v5744
    %6546 = vmatpush.bf16.msra.mxu0 %v5738
    %6547 = vmatpush.bf16.msra.mxu0 %v5732
    %6548 = vmatpush.bf16.msra.mxu0 %v5726
    %6549 = vmatpush.bf16.msra.mxu0 %v5720
    %6550 = vmatmul.bf16.gmra.mxu0 %v4405
    %v6551 = vpop.f32.mrf.mxu0
    %v6552 = vadd.f32 %v6539, %v6551
    %v6553 = vpop.f32.mrf.mxu0
    %6554 = vdwg.mxu0
    %6555 = vmatpush.bf16.msra.mxu0 %v5475
    %6556 = vmatpush.bf16.msra.mxu0 %v5469
    %6557 = vmatpush.bf16.msra.mxu0 %v5463
    %6558 = vmatpush.bf16.msra.mxu0 %v5457
    %6559 = vmatpush.bf16.msra.mxu0 %v5451
    %6560 = vmatpush.bf16.msra.mxu0 %v5445
    %6561 = vmatpush.bf16.msra.mxu0 %v5439
    %6562 = vmatpush.bf16.msra.mxu0 %v5433
    %6563 = vmatmul.bf16.gmra.mxu0 %v4399
    %v6564 = vpop.f32.mrf.mxu0
    %v6565 = vadd.f32 %v4413, %v6564
    %v6566 = vpop.f32.mrf.mxu0
    %6567 = vdwg.mxu0
    %6568 = vmatpush.bf16.msra.mxu0 %v5523
    %6569 = vmatpush.bf16.msra.mxu0 %v5517
    %6570 = vmatpush.bf16.msra.mxu0 %v5511
    %6571 = vmatpush.bf16.msra.mxu0 %v5505
    %6572 = vmatpush.bf16.msra.mxu0 %v5499
    %6573 = vmatpush.bf16.msra.mxu0 %v5493
    %6574 = vmatpush.bf16.msra.mxu0 %v5487
    %6575 = vmatpush.bf16.msra.mxu0 %v5481
    %6576 = vmatmul.bf16.gmra.mxu0 %v4400
    %v6577 = vpop.f32.mrf.mxu0
    %v6578 = vadd.f32 %v6565, %v6577
    %v6579 = vpop.f32.mrf.mxu0
    %6580 = vdwg.mxu0
    %6581 = vmatpush.bf16.msra.mxu0 %v5571
    %6582 = vmatpush.bf16.msra.mxu0 %v5565
    %6583 = vmatpush.bf16.msra.mxu0 %v5559
    %6584 = vmatpush.bf16.msra.mxu0 %v5553
    %6585 = vmatpush.bf16.msra.mxu0 %v5547
    %6586 = vmatpush.bf16.msra.mxu0 %v5541
    %6587 = vmatpush.bf16.msra.mxu0 %v5535
    %6588 = vmatpush.bf16.msra.mxu0 %v5529
    %6589 = vmatmul.bf16.gmra.mxu0 %v4401
    %v6590 = vpop.f32.mrf.mxu0
    %v6591 = vadd.f32 %v6578, %v6590
    %v6592 = vpop.f32.mrf.mxu0
    %6593 = vdwg.mxu0
    %6594 = vmatpush.bf16.msra.mxu0 %v5619
    %6595 = vmatpush.bf16.msra.mxu0 %v5613
    %6596 = vmatpush.bf16.msra.mxu0 %v5607
    %6597 = vmatpush.bf16.msra.mxu0 %v5601
    %6598 = vmatpush.bf16.msra.mxu0 %v5595
    %6599 = vmatpush.bf16.msra.mxu0 %v5589
    %6600 = vmatpush.bf16.msra.mxu0 %v5583
    %6601 = vmatpush.bf16.msra.mxu0 %v5577
    %6602 = vmatmul.bf16.gmra.mxu0 %v4402
    %v6603 = vpop.f32.mrf.mxu0
    %v6604 = vadd.f32 %v6591, %v6603
    %v6605 = vpop.f32.mrf.mxu0
    %6606 = vdwg.mxu0
    %6607 = vmatpush.bf16.msra.mxu0 %v5667
    %6608 = vmatpush.bf16.msra.mxu0 %v5661
    %6609 = vmatpush.bf16.msra.mxu0 %v5655
    %6610 = vmatpush.bf16.msra.mxu0 %v5649
    %6611 = vmatpush.bf16.msra.mxu0 %v5643
    %6612 = vmatpush.bf16.msra.mxu0 %v5637
    %6613 = vmatpush.bf16.msra.mxu0 %v5631
    %6614 = vmatpush.bf16.msra.mxu0 %v5625
    %6615 = vmatmul.bf16.gmra.mxu0 %v4403
    %v6616 = vpop.f32.mrf.mxu0
    %v6617 = vadd.f32 %v6604, %v6616
    %v6618 = vpop.f32.mrf.mxu0
    %6619 = vdwg.mxu0
    %6620 = vmatpush.bf16.msra.mxu0 %v5715
    %6621 = vmatpush.bf16.msra.mxu0 %v5709
    %6622 = vmatpush.bf16.msra.mxu0 %v5703
    %6623 = vmatpush.bf16.msra.mxu0 %v5697
    %6624 = vmatpush.bf16.msra.mxu0 %v5691
    %6625 = vmatpush.bf16.msra.mxu0 %v5685
    %6626 = vmatpush.bf16.msra.mxu0 %v5679
    %6627 = vmatpush.bf16.msra.mxu0 %v5673
    %6628 = vmatmul.bf16.gmra.mxu0 %v4404
    %v6629 = vpop.f32.mrf.mxu0
    %v6630 = vadd.f32 %v6617, %v6629
    %v6631 = vpop.f32.mrf.mxu0
    %6632 = vdwg.mxu0
    %6633 = vmatpush.bf16.msra.mxu0 %v5763
    %6634 = vmatpush.bf16.msra.mxu0 %v5757
    %6635 = vmatpush.bf16.msra.mxu0 %v5751
    %6636 = vmatpush.bf16.msra.mxu0 %v5745
    %6637 = vmatpush.bf16.msra.mxu0 %v5739
    %6638 = vmatpush.bf16.msra.mxu0 %v5733
    %6639 = vmatpush.bf16.msra.mxu0 %v5727
    %6640 = vmatpush.bf16.msra.mxu0 %v5721
    %6641 = vmatmul.bf16.gmra.mxu0 %v4405
    %v6642 = vpop.f32.mrf.mxu0
    %v6643 = vadd.f32 %v6630, %v6642
    %v6644 = vpop.f32.mrf.mxu0
    %6645 = vdwg.mxu0
    %s6646 = sld [smem:[#allocation2 + $0x2]]
    %vm6647 = vcmp.ge.f32.partialorder %v6188, 0.0
    %vm6648 = vcmp.ge.f32.partialorder %v6279, 0.0
    %vm6649 = vcmp.ge.f32.partialorder %v6370, 0.0
    %vm6650 = vcmp.ge.f32.partialorder %v6461, 0.0
    %vm6651 = vcmp.ge.f32.partialorder %v6552, 0.0
    %vm6652 = vcmp.ge.f32.partialorder %v6643, 0.0
    %v6653 = vstv %s6646
    %v6654 = vmul.f32 %v6653, %v6188
    %v6655 = vmul.f32 %v6653, %v6279
    %v6656 = vmul.f32 %v6653, %v6370
    %v6657 = vmul.f32 %v6653, %v6461
    %v6658 = vmul.f32 %v6653, %v6552
    %v6659 = vmul.f32 %v6653, %v6643
    %v6660 = vsel %vm6647, %v6188, %v6654
    %v6661 = vsel %vm6648, %v6279, %v6655
    %v6662 = vsel %vm6649, %v6370, %v6656
    %v6663 = vsel %vm6650, %v6461, %v6657
    %v6664 = vsel %vm6651, %v6552, %v6658
    %v6665 = vsel %vm6652, %v6643, %v6659
    %v6666 = vld [vmem:[#allocation12] sm:$0xff]
    %v6667 = vld [vmem:[#allocation12 + $0x8] sm:$0xff]
    %v6668 = vld [vmem:[#allocation12 + $0x10] sm:$0xff]
    %v6669 = vld [vmem:[#allocation12 + $0x18] sm:$0xff]
    %v6670 = vld [vmem:[#allocation12 + $0x20] sm:$0xff]
    %v6671 = vld [vmem:[#allocation12 + $0x28] sm:$0xff]
    %v6672 = vld [vmem:[#allocation12 + $0x30] sm:$0xff]
    %v6673 = vld [vmem:[#allocation12 + $0x38] sm:$0xff]
    %v6674 = vld [vmem:[#allocation12 + $0x40] sm:$0xff]
    %v6675 = vld [vmem:[#allocation12 + $0x48] sm:$0xff]
    %v6676 = vld [vmem:[#allocation12 + $0x50] sm:$0xff]
    %v6677 = vld [vmem:[#allocation12 + $0x58] sm:$0xff]
    %v6678 = vld [vmem:[#allocation12 + $0x60] sm:$0xff]
    %v6679 = vld [vmem:[#allocation12 + $0x68] sm:$0xff]
    %v6680 = vld [vmem:[#allocation12 + $0x70] sm:$0xff]
    %v6681 = vld [vmem:[#allocation12 + $0x78] sm:$0xff]
    %v6682 = vld [vmem:[#allocation12 + $0x80] sm:$0xff]
    %v6683 = vld [vmem:[#allocation12 + $0x88] sm:$0xff]
    %v6684 = vld [vmem:[#allocation12 + $0x90] sm:$0xff]
    %v6685 = vld [vmem:[#allocation12 + $0x98] sm:$0xff]
    %v6686 = vld [vmem:[#allocation12 + $0xa0] sm:$0xff]
    %v6687 = vld [vmem:[#allocation12 + $0xa8] sm:$0xff]
    %v6688 = vld [vmem:[#allocation12 + $0xb0] sm:$0xff]
    %v6689 = vld [vmem:[#allocation12 + $0xb8] sm:$0xff]
    %v6690 = vld [vmem:[#allocation12 + $0xc0] sm:$0xff]
    %v6691 = vld [vmem:[#allocation12 + $0xc8] sm:$0xff]
    %v6692 = vld [vmem:[#allocation12 + $0xd0] sm:$0xff]
    %v6693 = vld [vmem:[#allocation12 + $0xd8] sm:$0xff]
    %v6694 = vld [vmem:[#allocation12 + $0xe0] sm:$0xff]
    %v6695 = vld [vmem:[#allocation12 + $0xe8] sm:$0xff]
    %v6696 = vld [vmem:[#allocation12 + $0xf0] sm:$0xff]
    %v6697 = vld [vmem:[#allocation12 + $0xf8] sm:$0xff]
    %v6698 = vld [vmem:[#allocation12 + $0x100] sm:$0xff]
    %v6699 = vld [vmem:[#allocation12 + $0x108] sm:$0xff]
    %v6700 = vld [vmem:[#allocation12 + $0x110] sm:$0xff]
    %v6701 = vld [vmem:[#allocation12 + $0x118] sm:$0xff]
    %v6702 = vld [vmem:[#allocation12 + $0x120] sm:$0xff]
    %v6703 = vld [vmem:[#allocation12 + $0x128] sm:$0xff]
    %v6704 = vld [vmem:[#allocation12 + $0x130] sm:$0xff]
    %v6705 = vld [vmem:[#allocation12 + $0x138] sm:$0xff]
    %v6706 = vld [vmem:[#allocation12 + $0x140] sm:$0xff]
    %v6707 = vld [vmem:[#allocation12 + $0x148] sm:$0xff]
    %v6708 = vld [vmem:[#allocation12 + $0x150] sm:$0xff]
    %v6709 = vld [vmem:[#allocation12 + $0x158] sm:$0xff]
    %v6710 = vld [vmem:[#allocation12 + $0x160] sm:$0xff]
    %v6711 = vld [vmem:[#allocation12 + $0x168] sm:$0xff]
    %v6712 = vld [vmem:[#allocation12 + $0x170] sm:$0xff]
    %v6713 = vld [vmem:[#allocation12 + $0x178] sm:$0xff]
    %v6714 = vld [vmem:[#allocation12 + $0x180] sm:$0xff]
    %v6715 = vld [vmem:[#allocation12 + $0x188] sm:$0xff]
    %v6716 = vld [vmem:[#allocation12 + $0x190] sm:$0xff]
    %v6717 = vld [vmem:[#allocation12 + $0x198] sm:$0xff]
    %v6718 = vld [vmem:[#allocation12 + $0x1a0] sm:$0xff]
    %v6719 = vld [vmem:[#allocation12 + $0x1a8] sm:$0xff]
    %v6720 = vld [vmem:[#allocation12 + $0x1b0] sm:$0xff]
    %v6721 = vld [vmem:[#allocation12 + $0x1b8] sm:$0xff]
    %v6722 = vld [vmem:[#allocation12 + $0x1c0] sm:$0xff]
    %v6723 = vld [vmem:[#allocation12 + $0x1c8] sm:$0xff]
    %v6724 = vld [vmem:[#allocation12 + $0x1d0] sm:$0xff]
    %v6725 = vld [vmem:[#allocation12 + $0x1d8] sm:$0xff]
    %v6726 = vld [vmem:[#allocation12 + $0x1e0] sm:$0xff]
    %v6727 = vld [vmem:[#allocation12 + $0x1e8] sm:$0xff]
    %v6728 = vld [vmem:[#allocation12 + $0x1f0] sm:$0xff]
    %v6729 = vld [vmem:[#allocation12 + $0x1f8] sm:$0xff]
    %v6730 = vld [vmem:[#allocation12 + $0x200] sm:$0xff]
    %v6731 = vld [vmem:[#allocation12 + $0x208] sm:$0xff]
    %v6732 = vld [vmem:[#allocation12 + $0x210] sm:$0xff]
    %v6733 = vld [vmem:[#allocation12 + $0x218] sm:$0xff]
    %v6734 = vld [vmem:[#allocation12 + $0x220] sm:$0xff]
    %v6735 = vld [vmem:[#allocation12 + $0x228] sm:$0xff]
    %v6736 = vld [vmem:[#allocation12 + $0x230] sm:$0xff]
    %v6737 = vld [vmem:[#allocation12 + $0x238] sm:$0xff]
    %v6738 = vld [vmem:[#allocation12 + $0x240] sm:$0xff]
    %v6739 = vld [vmem:[#allocation12 + $0x248] sm:$0xff]
    %v6740 = vld [vmem:[#allocation12 + $0x250] sm:$0xff]
    %v6741 = vld [vmem:[#allocation12 + $0x258] sm:$0xff]
    %v6742 = vld [vmem:[#allocation12 + $0x260] sm:$0xff]
    %v6743 = vld [vmem:[#allocation12 + $0x268] sm:$0xff]
    %v6744 = vld [vmem:[#allocation12 + $0x270] sm:$0xff]
    %v6745 = vld [vmem:[#allocation12 + $0x278] sm:$0xff]
    %v6746 = vld [vmem:[#allocation12 + $0x280] sm:$0xff]
    %v6747 = vld [vmem:[#allocation12 + $0x288] sm:$0xff]
    %v6748 = vld [vmem:[#allocation12 + $0x290] sm:$0xff]
    %v6749 = vld [vmem:[#allocation12 + $0x298] sm:$0xff]
    %v6750 = vld [vmem:[#allocation12 + $0x2a0] sm:$0xff]
    %v6751 = vld [vmem:[#allocation12 + $0x2a8] sm:$0xff]
    %v6752 = vld [vmem:[#allocation12 + $0x2b0] sm:$0xff]
    %v6753 = vld [vmem:[#allocation12 + $0x2b8] sm:$0xff]
    %v6754 = vld [vmem:[#allocation12 + $0x2c0] sm:$0xff]
    %v6755 = vld [vmem:[#allocation12 + $0x2c8] sm:$0xff]
    %v6756 = vld [vmem:[#allocation12 + $0x2d0] sm:$0xff]
    %v6757 = vld [vmem:[#allocation12 + $0x2d8] sm:$0xff]
    %v6758 = vld [vmem:[#allocation12 + $0x2e0] sm:$0xff]
    %v6759 = vld [vmem:[#allocation12 + $0x2e8] sm:$0xff]
    %v6760 = vld [vmem:[#allocation12 + $0x2f0] sm:$0xff]
    %v6761 = vld [vmem:[#allocation12 + $0x2f8] sm:$0xff]
    %v6762 = vld [vmem:[#allocation12 + $0x300] sm:$0xff]
    %v6763 = vld [vmem:[#allocation12 + $0x308] sm:$0xff]
    %v6764 = vld [vmem:[#allocation12 + $0x310] sm:$0xff]
    %v6765 = vld [vmem:[#allocation12 + $0x318] sm:$0xff]
    %v6766 = vld [vmem:[#allocation12 + $0x320] sm:$0xff]
    %v6767 = vld [vmem:[#allocation12 + $0x328] sm:$0xff]
    %v6768 = vld [vmem:[#allocation12 + $0x330] sm:$0xff]
    %v6769 = vld [vmem:[#allocation12 + $0x338] sm:$0xff]
    %v6770 = vld [vmem:[#allocation12 + $0x340] sm:$0xff]
    %v6771 = vld [vmem:[#allocation12 + $0x348] sm:$0xff]
    %v6772 = vld [vmem:[#allocation12 + $0x350] sm:$0xff]
    %v6773 = vld [vmem:[#allocation12 + $0x358] sm:$0xff]
    %v6774 = vld [vmem:[#allocation12 + $0x360] sm:$0xff]
    %v6775 = vld [vmem:[#allocation12 + $0x368] sm:$0xff]
    %v6776 = vld [vmem:[#allocation12 + $0x370] sm:$0xff]
    %v6777 = vld [vmem:[#allocation12 + $0x378] sm:$0xff]
    %v6778 = vld [vmem:[#allocation12 + $0x380] sm:$0xff]
    %v6779 = vld [vmem:[#allocation12 + $0x388] sm:$0xff]
    %v6780 = vld [vmem:[#allocation12 + $0x390] sm:$0xff]
    %v6781 = vld [vmem:[#allocation12 + $0x398] sm:$0xff]
    %v6782 = vld [vmem:[#allocation12 + $0x3a0] sm:$0xff]
    %v6783 = vld [vmem:[#allocation12 + $0x3a8] sm:$0xff]
    %v6784 = vld [vmem:[#allocation12 + $0x3b0] sm:$0xff]
    %v6785 = vld [vmem:[#allocation12 + $0x3b8] sm:$0xff]
    %v6786 = vld [vmem:[#allocation12 + $0x3c0] sm:$0xff]
    %v6787 = vld [vmem:[#allocation12 + $0x3c8] sm:$0xff]
    %v6788 = vld [vmem:[#allocation12 + $0x3d0] sm:$0xff]
    %v6789 = vld [vmem:[#allocation12 + $0x3d8] sm:$0xff]
    %v6790 = vld [vmem:[#allocation12 + $0x3e0] sm:$0xff]
    %v6791 = vld [vmem:[#allocation12 + $0x3e8] sm:$0xff]
    %v6792 = vld [vmem:[#allocation12 + $0x3f0] sm:$0xff]
    %v6793 = vld [vmem:[#allocation12 + $0x3f8] sm:$0xff]
    %v6794 = vld [vmem:[#allocation12 + $0x400] sm:$0xff]
    %v6795 = vld [vmem:[#allocation12 + $0x408] sm:$0xff]
    %v6796 = vld [vmem:[#allocation12 + $0x410] sm:$0xff]
    %v6797 = vld [vmem:[#allocation12 + $0x418] sm:$0xff]
    %v6798 = vld [vmem:[#allocation12 + $0x420] sm:$0xff]
    %v6799 = vld [vmem:[#allocation12 + $0x428] sm:$0xff]
    %v6800 = vld [vmem:[#allocation12 + $0x430] sm:$0xff]
    %v6801 = vld [vmem:[#allocation12 + $0x438] sm:$0xff]
    %v6802 = vld [vmem:[#allocation12 + $0x440] sm:$0xff]
    %v6803 = vld [vmem:[#allocation12 + $0x448] sm:$0xff]
    %v6804 = vld [vmem:[#allocation12 + $0x450] sm:$0xff]
    %v6805 = vld [vmem:[#allocation12 + $0x458] sm:$0xff]
    %v6806 = vld [vmem:[#allocation12 + $0x460] sm:$0xff]
    %v6807 = vld [vmem:[#allocation12 + $0x468] sm:$0xff]
    %v6808 = vld [vmem:[#allocation12 + $0x470] sm:$0xff]
    %v6809 = vld [vmem:[#allocation12 + $0x478] sm:$0xff]
    %v6810 = vld [vmem:[#allocation12 + $0x480] sm:$0xff]
    %v6811 = vld [vmem:[#allocation12 + $0x488] sm:$0xff]
    %v6812 = vld [vmem:[#allocation12 + $0x490] sm:$0xff]
    %v6813 = vld [vmem:[#allocation12 + $0x498] sm:$0xff]
    %v6814 = vld [vmem:[#allocation12 + $0x4a0] sm:$0xff]
    %v6815 = vld [vmem:[#allocation12 + $0x4a8] sm:$0xff]
    %v6816 = vld [vmem:[#allocation12 + $0x4b0] sm:$0xff]
    %v6817 = vld [vmem:[#allocation12 + $0x4b8] sm:$0xff]
    %v6818 = vld [vmem:[#allocation12 + $0x4c0] sm:$0xff]
    %v6819 = vld [vmem:[#allocation12 + $0x4c8] sm:$0xff]
    %v6820 = vld [vmem:[#allocation12 + $0x4d0] sm:$0xff]
    %v6821 = vld [vmem:[#allocation12 + $0x4d8] sm:$0xff]
    %v6822 = vld [vmem:[#allocation12 + $0x4e0] sm:$0xff]
    %v6823 = vld [vmem:[#allocation12 + $0x4e8] sm:$0xff]
    %v6824 = vld [vmem:[#allocation12 + $0x4f0] sm:$0xff]
    %v6825 = vld [vmem:[#allocation12 + $0x4f8] sm:$0xff]
    %v6826 = vld [vmem:[#allocation12 + $0x500] sm:$0xff]
    %v6827 = vld [vmem:[#allocation12 + $0x508] sm:$0xff]
    %v6828 = vld [vmem:[#allocation12 + $0x510] sm:$0xff]
    %v6829 = vld [vmem:[#allocation12 + $0x518] sm:$0xff]
    %v6830 = vld [vmem:[#allocation12 + $0x520] sm:$0xff]
    %v6831 = vld [vmem:[#allocation12 + $0x528] sm:$0xff]
    %v6832 = vld [vmem:[#allocation12 + $0x530] sm:$0xff]
    %v6833 = vld [vmem:[#allocation12 + $0x538] sm:$0xff]
    %v6834 = vld [vmem:[#allocation12 + $0x540] sm:$0xff]
    %v6835 = vld [vmem:[#allocation12 + $0x548] sm:$0xff]
    %v6836 = vld [vmem:[#allocation12 + $0x550] sm:$0xff]
    %v6837 = vld [vmem:[#allocation12 + $0x558] sm:$0xff]
    %v6838 = vld [vmem:[#allocation12 + $0x560] sm:$0xff]
    %v6839 = vld [vmem:[#allocation12 + $0x568] sm:$0xff]
    %v6840 = vld [vmem:[#allocation12 + $0x570] sm:$0xff]
    %v6841 = vld [vmem:[#allocation12 + $0x578] sm:$0xff]
    %v6842 = vld [vmem:[#allocation12 + $0x580] sm:$0xff]
    %v6843 = vld [vmem:[#allocation12 + $0x588] sm:$0xff]
    %v6844 = vld [vmem:[#allocation12 + $0x590] sm:$0xff]
    %v6845 = vld [vmem:[#allocation12 + $0x598] sm:$0xff]
    %v6846 = vld [vmem:[#allocation12 + $0x5a0] sm:$0xff]
    %v6847 = vld [vmem:[#allocation12 + $0x5a8] sm:$0xff]
    %v6848 = vld [vmem:[#allocation12 + $0x5b0] sm:$0xff]
    %v6849 = vld [vmem:[#allocation12 + $0x5b8] sm:$0xff]
    %v6850 = vld [vmem:[#allocation12 + $0x5c0] sm:$0xff]
    %v6851 = vld [vmem:[#allocation12 + $0x5c8] sm:$0xff]
    %v6852 = vld [vmem:[#allocation12 + $0x5d0] sm:$0xff]
    %v6853 = vld [vmem:[#allocation12 + $0x5d8] sm:$0xff]
    %v6854 = vld [vmem:[#allocation12 + $0x5e0] sm:$0xff]
    %v6855 = vld [vmem:[#allocation12 + $0x5e8] sm:$0xff]
    %v6856 = vld [vmem:[#allocation12 + $0x5f0] sm:$0xff]
    %v6857 = vld [vmem:[#allocation12 + $0x5f8] sm:$0xff]
    %v6858 = vpack.c.bf16 %v6660, %v6660
    %v6859 = vpack.c.bf16 %v6661, %v6661
    %v6860 = vpack.c.bf16 %v6662, %v6662
    %v6861 = vpack.c.bf16 %v6663, %v6663
    %v6862 = vpack.c.bf16 %v6664, %v6664
    %v6863 = vpack.c.bf16 %v6665, %v6665
    %v6864 = vld [vmem:[#allocation6 + $0x15] sm:$0xf]
    %v6866 = vperm.slane %v6864, 0
    %v6867 = vperm.slane %v6864, 1
    %v6868 = vperm.slane %v6864, 2
    %v6869 = vperm.slane %v6864, 3
    %v7066 = vunpack.c.l.b16 %v6666
    %v7067 = vunpack.c.h.b16 %v6666
    %v7068 = vunpack.c.l.b16 %v6667
    %v7069 = vunpack.c.h.b16 %v6667
    %v7070 = vunpack.c.l.b16 %v6668
    %v7071 = vunpack.c.h.b16 %v6668
    %v7072 = vunpack.c.l.b16 %v6669
    %v7073 = vunpack.c.h.b16 %v6669
    %v7074 = vunpack.c.l.b16 %v6670
    %v7075 = vunpack.c.h.b16 %v6670
    %v7076 = vunpack.c.l.b16 %v6671
    %v7077 = vunpack.c.h.b16 %v6671
    %v7078 = vunpack.c.l.b16 %v6672
    %v7079 = vunpack.c.h.b16 %v6672
    %v7080 = vunpack.c.l.b16 %v6673
    %v7081 = vunpack.c.h.b16 %v6673
    %v7082 = vunpack.c.l.b16 %v6674
    %v7083 = vunpack.c.h.b16 %v6674
    %v7084 = vunpack.c.l.b16 %v6675
    %v7085 = vunpack.c.h.b16 %v6675
    %v7086 = vunpack.c.l.b16 %v6676
    %v7087 = vunpack.c.h.b16 %v6676
    %v7088 = vunpack.c.l.b16 %v6677
    %v7089 = vunpack.c.h.b16 %v6677
    %v7090 = vunpack.c.l.b16 %v6678
    %v7091 = vunpack.c.h.b16 %v6678
    %v7092 = vunpack.c.l.b16 %v6679
    %v7093 = vunpack.c.h.b16 %v6679
    %v7094 = vunpack.c.l.b16 %v6680
    %v7095 = vunpack.c.h.b16 %v6680
    %v7096 = vunpack.c.l.b16 %v6681
    %v7097 = vunpack.c.h.b16 %v6681
    %v7098 = vunpack.c.l.b16 %v6682
    %v7099 = vunpack.c.h.b16 %v6682
    %v7100 = vunpack.c.l.b16 %v6683
    %v7101 = vunpack.c.h.b16 %v6683
    %v7102 = vunpack.c.l.b16 %v6684
    %v7103 = vunpack.c.h.b16 %v6684
    %v7104 = vunpack.c.l.b16 %v6685
    %v7105 = vunpack.c.h.b16 %v6685
    %v7106 = vunpack.c.l.b16 %v6686
    %v7107 = vunpack.c.h.b16 %v6686
    %v7108 = vunpack.c.l.b16 %v6687
    %v7109 = vunpack.c.h.b16 %v6687
    %v7110 = vunpack.c.l.b16 %v6688
    %v7111 = vunpack.c.h.b16 %v6688
    %v7112 = vunpack.c.l.b16 %v6689
    %v7113 = vunpack.c.h.b16 %v6689
    %v7114 = vunpack.c.l.b16 %v6690
    %v7115 = vunpack.c.h.b16 %v6690
    %v7116 = vunpack.c.l.b16 %v6691
    %v7117 = vunpack.c.h.b16 %v6691
    %v7118 = vunpack.c.l.b16 %v6692
    %v7119 = vunpack.c.h.b16 %v6692
    %v7120 = vunpack.c.l.b16 %v6693
    %v7121 = vunpack.c.h.b16 %v6693
    %v7122 = vunpack.c.l.b16 %v6694
    %v7123 = vunpack.c.h.b16 %v6694
    %v7124 = vunpack.c.l.b16 %v6695
    %v7125 = vunpack.c.h.b16 %v6695
    %v7126 = vunpack.c.l.b16 %v6696
    %v7127 = vunpack.c.h.b16 %v6696
    %v7128 = vunpack.c.l.b16 %v6697
    %v7129 = vunpack.c.h.b16 %v6697
    %v7130 = vunpack.c.l.b16 %v6698
    %v7131 = vunpack.c.h.b16 %v6698
    %v7132 = vunpack.c.l.b16 %v6699
    %v7133 = vunpack.c.h.b16 %v6699
    %v7134 = vunpack.c.l.b16 %v6700
    %v7135 = vunpack.c.h.b16 %v6700
    %v7136 = vunpack.c.l.b16 %v6701
    %v7137 = vunpack.c.h.b16 %v6701
    %v7138 = vunpack.c.l.b16 %v6702
    %v7139 = vunpack.c.h.b16 %v6702
    %v7140 = vunpack.c.l.b16 %v6703
    %v7141 = vunpack.c.h.b16 %v6703
    %v7142 = vunpack.c.l.b16 %v6704
    %v7143 = vunpack.c.h.b16 %v6704
    %v7144 = vunpack.c.l.b16 %v6705
    %v7145 = vunpack.c.h.b16 %v6705
    %v7146 = vunpack.c.l.b16 %v6706
    %v7147 = vunpack.c.h.b16 %v6706
    %v7148 = vunpack.c.l.b16 %v6707
    %v7149 = vunpack.c.h.b16 %v6707
    %v7150 = vunpack.c.l.b16 %v6708
    %v7151 = vunpack.c.h.b16 %v6708
    %v7152 = vunpack.c.l.b16 %v6709
    %v7153 = vunpack.c.h.b16 %v6709
    %v7154 = vunpack.c.l.b16 %v6710
    %v7155 = vunpack.c.h.b16 %v6710
    %v7156 = vunpack.c.l.b16 %v6711
    %v7157 = vunpack.c.h.b16 %v6711
    %v7158 = vunpack.c.l.b16 %v6712
    %v7159 = vunpack.c.h.b16 %v6712
    %v7160 = vunpack.c.l.b16 %v6713
    %v7161 = vunpack.c.h.b16 %v6713
    %v7162 = vunpack.c.l.b16 %v6714
    %v7163 = vunpack.c.h.b16 %v6714
    %v7164 = vunpack.c.l.b16 %v6715
    %v7165 = vunpack.c.h.b16 %v6715
    %v7166 = vunpack.c.l.b16 %v6716
    %v7167 = vunpack.c.h.b16 %v6716
    %v7168 = vunpack.c.l.b16 %v6717
    %v7169 = vunpack.c.h.b16 %v6717
    %v7170 = vunpack.c.l.b16 %v6718
    %v7171 = vunpack.c.h.b16 %v6718
    %v7172 = vunpack.c.l.b16 %v6719
    %v7173 = vunpack.c.h.b16 %v6719
    %v7174 = vunpack.c.l.b16 %v6720
    %v7175 = vunpack.c.h.b16 %v6720
    %v7176 = vunpack.c.l.b16 %v6721
    %v7177 = vunpack.c.h.b16 %v6721
    %v7178 = vunpack.c.l.b16 %v6722
    %v7179 = vunpack.c.h.b16 %v6722
    %v7180 = vunpack.c.l.b16 %v6723
    %v7181 = vunpack.c.h.b16 %v6723
    %v7182 = vunpack.c.l.b16 %v6724
    %v7183 = vunpack.c.h.b16 %v6724
    %v7184 = vunpack.c.l.b16 %v6725
    %v7185 = vunpack.c.h.b16 %v6725
    %v7186 = vunpack.c.l.b16 %v6726
    %v7187 = vunpack.c.h.b16 %v6726
    %v7188 = vunpack.c.l.b16 %v6727
    %v7189 = vunpack.c.h.b16 %v6727
    %v7190 = vunpack.c.l.b16 %v6728
    %v7191 = vunpack.c.h.b16 %v6728
    %v7192 = vunpack.c.l.b16 %v6729
    %v7193 = vunpack.c.h.b16 %v6729
    %v7194 = vunpack.c.l.b16 %v6730
    %v7195 = vunpack.c.h.b16 %v6730
    %v7196 = vunpack.c.l.b16 %v6731
    %v7197 = vunpack.c.h.b16 %v6731
    %v7198 = vunpack.c.l.b16 %v6732
    %v7199 = vunpack.c.h.b16 %v6732
    %v7200 = vunpack.c.l.b16 %v6733
    %v7201 = vunpack.c.h.b16 %v6733
    %v7202 = vunpack.c.l.b16 %v6734
    %v7203 = vunpack.c.h.b16 %v6734
    %v7204 = vunpack.c.l.b16 %v6735
    %v7205 = vunpack.c.h.b16 %v6735
    %v7206 = vunpack.c.l.b16 %v6736
    %v7207 = vunpack.c.h.b16 %v6736
    %v7208 = vunpack.c.l.b16 %v6737
    %v7209 = vunpack.c.h.b16 %v6737
    %v7210 = vunpack.c.l.b16 %v6738
    %v7211 = vunpack.c.h.b16 %v6738
    %v7212 = vunpack.c.l.b16 %v6739
    %v7213 = vunpack.c.h.b16 %v6739
    %v7214 = vunpack.c.l.b16 %v6740
    %v7215 = vunpack.c.h.b16 %v6740
    %v7216 = vunpack.c.l.b16 %v6741
    %v7217 = vunpack.c.h.b16 %v6741
    %v7218 = vunpack.c.l.b16 %v6742
    %v7219 = vunpack.c.h.b16 %v6742
    %v7220 = vunpack.c.l.b16 %v6743
    %v7221 = vunpack.c.h.b16 %v6743
    %v7222 = vunpack.c.l.b16 %v6744
    %v7223 = vunpack.c.h.b16 %v6744
    %v7224 = vunpack.c.l.b16 %v6745
    %v7225 = vunpack.c.h.b16 %v6745
    %v7226 = vunpack.c.l.b16 %v6746
    %v7227 = vunpack.c.h.b16 %v6746
    %v7228 = vunpack.c.l.b16 %v6747
    %v7229 = vunpack.c.h.b16 %v6747
    %v7230 = vunpack.c.l.b16 %v6748
    %v7231 = vunpack.c.h.b16 %v6748
    %v7232 = vunpack.c.l.b16 %v6749
    %v7233 = vunpack.c.h.b16 %v6749
    %v7234 = vunpack.c.l.b16 %v6750
    %v7235 = vunpack.c.h.b16 %v6750
    %v7236 = vunpack.c.l.b16 %v6751
    %v7237 = vunpack.c.h.b16 %v6751
    %v7238 = vunpack.c.l.b16 %v6752
    %v7239 = vunpack.c.h.b16 %v6752
    %v7240 = vunpack.c.l.b16 %v6753
    %v7241 = vunpack.c.h.b16 %v6753
    %v7242 = vunpack.c.l.b16 %v6754
    %v7243 = vunpack.c.h.b16 %v6754
    %v7244 = vunpack.c.l.b16 %v6755
    %v7245 = vunpack.c.h.b16 %v6755
    %v7246 = vunpack.c.l.b16 %v6756
    %v7247 = vunpack.c.h.b16 %v6756
    %v7248 = vunpack.c.l.b16 %v6757
    %v7249 = vunpack.c.h.b16 %v6757
    %v7250 = vunpack.c.l.b16 %v6758
    %v7251 = vunpack.c.h.b16 %v6758
    %v7252 = vunpack.c.l.b16 %v6759
    %v7253 = vunpack.c.h.b16 %v6759
    %v7254 = vunpack.c.l.b16 %v6760
    %v7255 = vunpack.c.h.b16 %v6760
    %v7256 = vunpack.c.l.b16 %v6761
    %v7257 = vunpack.c.h.b16 %v6761
    %v7258 = vunpack.c.l.b16 %v6762
    %v7259 = vunpack.c.h.b16 %v6762
    %v7260 = vunpack.c.l.b16 %v6763
    %v7261 = vunpack.c.h.b16 %v6763
    %v7262 = vunpack.c.l.b16 %v6764
    %v7263 = vunpack.c.h.b16 %v6764
    %v7264 = vunpack.c.l.b16 %v6765
    %v7265 = vunpack.c.h.b16 %v6765
    %v7266 = vunpack.c.l.b16 %v6766
    %v7267 = vunpack.c.h.b16 %v6766
    %v7268 = vunpack.c.l.b16 %v6767
    %v7269 = vunpack.c.h.b16 %v6767
    %v7270 = vunpack.c.l.b16 %v6768
    %v7271 = vunpack.c.h.b16 %v6768
    %v7272 = vunpack.c.l.b16 %v6769
    %v7273 = vunpack.c.h.b16 %v6769
    %v7274 = vunpack.c.l.b16 %v6770
    %v7275 = vunpack.c.h.b16 %v6770
    %v7276 = vunpack.c.l.b16 %v6771
    %v7277 = vunpack.c.h.b16 %v6771
    %v7278 = vunpack.c.l.b16 %v6772
    %v7279 = vunpack.c.h.b16 %v6772
    %v7280 = vunpack.c.l.b16 %v6773
    %v7281 = vunpack.c.h.b16 %v6773
    %v7282 = vunpack.c.l.b16 %v6774
    %v7283 = vunpack.c.h.b16 %v6774
    %v7284 = vunpack.c.l.b16 %v6775
    %v7285 = vunpack.c.h.b16 %v6775
    %v7286 = vunpack.c.l.b16 %v6776
    %v7287 = vunpack.c.h.b16 %v6776
    %v7288 = vunpack.c.l.b16 %v6777
    %v7289 = vunpack.c.h.b16 %v6777
    %v7290 = vunpack.c.l.b16 %v6778
    %v7291 = vunpack.c.h.b16 %v6778
    %v7292 = vunpack.c.l.b16 %v6779
    %v7293 = vunpack.c.h.b16 %v6779
    %v7294 = vunpack.c.l.b16 %v6780
    %v7295 = vunpack.c.h.b16 %v6780
    %v7296 = vunpack.c.l.b16 %v6781
    %v7297 = vunpack.c.h.b16 %v6781
    %v7298 = vunpack.c.l.b16 %v6782
    %v7299 = vunpack.c.h.b16 %v6782
    %v7300 = vunpack.c.l.b16 %v6783
    %v7301 = vunpack.c.h.b16 %v6783
    %v7302 = vunpack.c.l.b16 %v6784
    %v7303 = vunpack.c.h.b16 %v6784
    %v7304 = vunpack.c.l.b16 %v6785
    %v7305 = vunpack.c.h.b16 %v6785
    %v7306 = vunpack.c.l.b16 %v6786
    %v7307 = vunpack.c.h.b16 %v6786
    %v7308 = vunpack.c.l.b16 %v6787
    %v7309 = vunpack.c.h.b16 %v6787
    %v7310 = vunpack.c.l.b16 %v6788
    %v7311 = vunpack.c.h.b16 %v6788
    %v7312 = vunpack.c.l.b16 %v6789
    %v7313 = vunpack.c.h.b16 %v6789
    %v7314 = vunpack.c.l.b16 %v6790
    %v7315 = vunpack.c.h.b16 %v6790
    %v7316 = vunpack.c.l.b16 %v6791
    %v7317 = vunpack.c.h.b16 %v6791
    %v7318 = vunpack.c.l.b16 %v6792
    %v7319 = vunpack.c.h.b16 %v6792
    %v7320 = vunpack.c.l.b16 %v6793
    %v7321 = vunpack.c.h.b16 %v6793
    %v7322 = vunpack.c.l.b16 %v6794
    %v7323 = vunpack.c.h.b16 %v6794
    %v7324 = vunpack.c.l.b16 %v6795
    %v7325 = vunpack.c.h.b16 %v6795
    %v7326 = vunpack.c.l.b16 %v6796
    %v7327 = vunpack.c.h.b16 %v6796
    %v7328 = vunpack.c.l.b16 %v6797
    %v7329 = vunpack.c.h.b16 %v6797
    %v7330 = vunpack.c.l.b16 %v6798
    %v7331 = vunpack.c.h.b16 %v6798
    %v7332 = vunpack.c.l.b16 %v6799
    %v7333 = vunpack.c.h.b16 %v6799
    %v7334 = vunpack.c.l.b16 %v6800
    %v7335 = vunpack.c.h.b16 %v6800
    %v7336 = vunpack.c.l.b16 %v6801
    %v7337 = vunpack.c.h.b16 %v6801
    %v7338 = vunpack.c.l.b16 %v6802
    %v7339 = vunpack.c.h.b16 %v6802
    %v7340 = vunpack.c.l.b16 %v6803
    %v7341 = vunpack.c.h.b16 %v6803
    %v7342 = vunpack.c.l.b16 %v6804
    %v7343 = vunpack.c.h.b16 %v6804
    %v7344 = vunpack.c.l.b16 %v6805
    %v7345 = vunpack.c.h.b16 %v6805
    %v7346 = vunpack.c.l.b16 %v6806
    %v7347 = vunpack.c.h.b16 %v6806
    %v7348 = vunpack.c.l.b16 %v6807
    %v7349 = vunpack.c.h.b16 %v6807
    %v7350 = vunpack.c.l.b16 %v6808
    %v7351 = vunpack.c.h.b16 %v6808
    %v7352 = vunpack.c.l.b16 %v6809
    %v7353 = vunpack.c.h.b16 %v6809
    %v7354 = vunpack.c.l.b16 %v6810
    %v7355 = vunpack.c.h.b16 %v6810
    %v7356 = vunpack.c.l.b16 %v6811
    %v7357 = vunpack.c.h.b16 %v6811
    %v7358 = vunpack.c.l.b16 %v6812
    %v7359 = vunpack.c.h.b16 %v6812
    %v7360 = vunpack.c.l.b16 %v6813
    %v7361 = vunpack.c.h.b16 %v6813
    %v7362 = vunpack.c.l.b16 %v6814
    %v7363 = vunpack.c.h.b16 %v6814
    %v7364 = vunpack.c.l.b16 %v6815
    %v7365 = vunpack.c.h.b16 %v6815
    %v7366 = vunpack.c.l.b16 %v6816
    %v7367 = vunpack.c.h.b16 %v6816
    %v7368 = vunpack.c.l.b16 %v6817
    %v7369 = vunpack.c.h.b16 %v6817
    %v7370 = vunpack.c.l.b16 %v6818
    %v7371 = vunpack.c.h.b16 %v6818
    %v7372 = vunpack.c.l.b16 %v6819
    %v7373 = vunpack.c.h.b16 %v6819
    %v7374 = vunpack.c.l.b16 %v6820
    %v7375 = vunpack.c.h.b16 %v6820
    %v7376 = vunpack.c.l.b16 %v6821
    %v7377 = vunpack.c.h.b16 %v6821
    %v7378 = vunpack.c.l.b16 %v6822
    %v7379 = vunpack.c.h.b16 %v6822
    %v7380 = vunpack.c.l.b16 %v6823
    %v7381 = vunpack.c.h.b16 %v6823
    %v7382 = vunpack.c.l.b16 %v6824
    %v7383 = vunpack.c.h.b16 %v6824
    %v7384 = vunpack.c.l.b16 %v6825
    %v7385 = vunpack.c.h.b16 %v6825
    %v7386 = vunpack.c.l.b16 %v6826
    %v7387 = vunpack.c.h.b16 %v6826
    %v7388 = vunpack.c.l.b16 %v6827
    %v7389 = vunpack.c.h.b16 %v6827
    %v7390 = vunpack.c.l.b16 %v6828
    %v7391 = vunpack.c.h.b16 %v6828
    %v7392 = vunpack.c.l.b16 %v6829
    %v7393 = vunpack.c.h.b16 %v6829
    %v7394 = vunpack.c.l.b16 %v6830
    %v7395 = vunpack.c.h.b16 %v6830
    %v7396 = vunpack.c.l.b16 %v6831
    %v7397 = vunpack.c.h.b16 %v6831
    %v7398 = vunpack.c.l.b16 %v6832
    %v7399 = vunpack.c.h.b16 %v6832
    %v7400 = vunpack.c.l.b16 %v6833
    %v7401 = vunpack.c.h.b16 %v6833
    %v7402 = vunpack.c.l.b16 %v6834
    %v7403 = vunpack.c.h.b16 %v6834
    %v7404 = vunpack.c.l.b16 %v6835
    %v7405 = vunpack.c.h.b16 %v6835
    %v7406 = vunpack.c.l.b16 %v6836
    %v7407 = vunpack.c.h.b16 %v6836
    %v7408 = vunpack.c.l.b16 %v6837
    %v7409 = vunpack.c.h.b16 %v6837
    %v7410 = vunpack.c.l.b16 %v6838
    %v7411 = vunpack.c.h.b16 %v6838
    %v7412 = vunpack.c.l.b16 %v6839
    %v7413 = vunpack.c.h.b16 %v6839
    %v7414 = vunpack.c.l.b16 %v6840
    %v7415 = vunpack.c.h.b16 %v6840
    %v7416 = vunpack.c.l.b16 %v6841
    %v7417 = vunpack.c.h.b16 %v6841
    %v7418 = vunpack.c.l.b16 %v6842
    %v7419 = vunpack.c.h.b16 %v6842
    %v7420 = vunpack.c.l.b16 %v6843
    %v7421 = vunpack.c.h.b16 %v6843
    %v7422 = vunpack.c.l.b16 %v6844
    %v7423 = vunpack.c.h.b16 %v6844
    %v7424 = vunpack.c.l.b16 %v6845
    %v7425 = vunpack.c.h.b16 %v6845
    %v7426 = vunpack.c.l.b16 %v6846
    %v7427 = vunpack.c.h.b16 %v6846
    %v7428 = vunpack.c.l.b16 %v6847
    %v7429 = vunpack.c.h.b16 %v6847
    %v7430 = vunpack.c.l.b16 %v6848
    %v7431 = vunpack.c.h.b16 %v6848
    %v7432 = vunpack.c.l.b16 %v6849
    %v7433 = vunpack.c.h.b16 %v6849
    %v7434 = vunpack.c.l.b16 %v6850
    %v7435 = vunpack.c.h.b16 %v6850
    %v7436 = vunpack.c.l.b16 %v6851
    %v7437 = vunpack.c.h.b16 %v6851
    %v7438 = vunpack.c.l.b16 %v6852
    %v7439 = vunpack.c.h.b16 %v6852
    %v7440 = vunpack.c.l.b16 %v6853
    %v7441 = vunpack.c.h.b16 %v6853
    %v7442 = vunpack.c.l.b16 %v6854
    %v7443 = vunpack.c.h.b16 %v6854
    %v7444 = vunpack.c.l.b16 %v6855
    %v7445 = vunpack.c.h.b16 %v6855
    %v7446 = vunpack.c.l.b16 %v6856
    %v7447 = vunpack.c.h.b16 %v6856
    %v7448 = vunpack.c.l.b16 %v6857
    %v7449 = vunpack.c.h.b16 %v6857
    %v7450 = vpack.c.b16 %v7070, %v7066
    %v7451 = vpack.c.b16 %v7071, %v7067
    %v7452 = vpack.c.b16 %v7072, %v7068
    %v7453 = vpack.c.b16 %v7073, %v7069
    %v7454 = vpack.c.b16 %v7078, %v7074
    %v7455 = vpack.c.b16 %v7079, %v7075
    %v7456 = vpack.c.b16 %v7080, %v7076
    %v7457 = vpack.c.b16 %v7081, %v7077
    %v7458 = vpack.c.b16 %v7086, %v7082
    %v7459 = vpack.c.b16 %v7087, %v7083
    %v7460 = vpack.c.b16 %v7088, %v7084
    %v7461 = vpack.c.b16 %v7089, %v7085
    %v7462 = vpack.c.b16 %v7094, %v7090
    %v7463 = vpack.c.b16 %v7095, %v7091
    %v7464 = vpack.c.b16 %v7096, %v7092
    %v7465 = vpack.c.b16 %v7097, %v7093
    %v7466 = vpack.c.b16 %v7102, %v7098
    %v7467 = vpack.c.b16 %v7103, %v7099
    %v7468 = vpack.c.b16 %v7104, %v7100
    %v7469 = vpack.c.b16 %v7105, %v7101
    %v7470 = vpack.c.b16 %v7110, %v7106
    %v7471 = vpack.c.b16 %v7111, %v7107
    %v7472 = vpack.c.b16 %v7112, %v7108
    %v7473 = vpack.c.b16 %v7113, %v7109
    %v7474 = vpack.c.b16 %v7118, %v7114
    %v7475 = vpack.c.b16 %v7119, %v7115
    %v7476 = vpack.c.b16 %v7120, %v7116
    %v7477 = vpack.c.b16 %v7121, %v7117
    %v7478 = vpack.c.b16 %v7126, %v7122
    %v7479 = vpack.c.b16 %v7127, %v7123
    %v7480 = vpack.c.b16 %v7128, %v7124
    %v7481 = vpack.c.b16 %v7129, %v7125
    %v7482 = vpack.c.b16 %v7134, %v7130
    %v7483 = vpack.c.b16 %v7135, %v7131
    %v7484 = vpack.c.b16 %v7136, %v7132
    %v7485 = vpack.c.b16 %v7137, %v7133
    %v7486 = vpack.c.b16 %v7142, %v7138
    %v7487 = vpack.c.b16 %v7143, %v7139
    %v7488 = vpack.c.b16 %v7144, %v7140
    %v7489 = vpack.c.b16 %v7145, %v7141
    %v7490 = vpack.c.b16 %v7150, %v7146
    %v7491 = vpack.c.b16 %v7151, %v7147
    %v7492 = vpack.c.b16 %v7152, %v7148
    %v7493 = vpack.c.b16 %v7153, %v7149
    %v7494 = vpack.c.b16 %v7158, %v7154
    %v7495 = vpack.c.b16 %v7159, %v7155
    %v7496 = vpack.c.b16 %v7160, %v7156
    %v7497 = vpack.c.b16 %v7161, %v7157
    %v7498 = vpack.c.b16 %v7166, %v7162
    %v7499 = vpack.c.b16 %v7167, %v7163
    %v7500 = vpack.c.b16 %v7168, %v7164
    %v7501 = vpack.c.b16 %v7169, %v7165
    %v7502 = vpack.c.b16 %v7174, %v7170
    %v7503 = vpack.c.b16 %v7175, %v7171
    %v7504 = vpack.c.b16 %v7176, %v7172
    %v7505 = vpack.c.b16 %v7177, %v7173
    %v7506 = vpack.c.b16 %v7182, %v7178
    %v7507 = vpack.c.b16 %v7183, %v7179
    %v7508 = vpack.c.b16 %v7184, %v7180
    %v7509 = vpack.c.b16 %v7185, %v7181
    %v7510 = vpack.c.b16 %v7190, %v7186
    %v7511 = vpack.c.b16 %v7191, %v7187
    %v7512 = vpack.c.b16 %v7192, %v7188
    %v7513 = vpack.c.b16 %v7193, %v7189
    %v7514 = vpack.c.b16 %v7198, %v7194
    %v7515 = vpack.c.b16 %v7199, %v7195
    %v7516 = vpack.c.b16 %v7200, %v7196
    %v7517 = vpack.c.b16 %v7201, %v7197
    %v7518 = vpack.c.b16 %v7206, %v7202
    %v7519 = vpack.c.b16 %v7207, %v7203
    %v7520 = vpack.c.b16 %v7208, %v7204
    %v7521 = vpack.c.b16 %v7209, %v7205
    %v7522 = vpack.c.b16 %v7214, %v7210
    %v7523 = vpack.c.b16 %v7215, %v7211
    %v7524 = vpack.c.b16 %v7216, %v7212
    %v7525 = vpack.c.b16 %v7217, %v7213
    %v7526 = vpack.c.b16 %v7222, %v7218
    %v7527 = vpack.c.b16 %v7223, %v7219
    %v7528 = vpack.c.b16 %v7224, %v7220
    %v7529 = vpack.c.b16 %v7225, %v7221
    %v7530 = vpack.c.b16 %v7230, %v7226
    %v7531 = vpack.c.b16 %v7231, %v7227
    %v7532 = vpack.c.b16 %v7232, %v7228
    %v7533 = vpack.c.b16 %v7233, %v7229
    %v7534 = vpack.c.b16 %v7238, %v7234
    %v7535 = vpack.c.b16 %v7239, %v7235
    %v7536 = vpack.c.b16 %v7240, %v7236
    %v7537 = vpack.c.b16 %v7241, %v7237
    %v7538 = vpack.c.b16 %v7246, %v7242
    %v7539 = vpack.c.b16 %v7247, %v7243
    %v7540 = vpack.c.b16 %v7248, %v7244
    %v7541 = vpack.c.b16 %v7249, %v7245
    %v7542 = vpack.c.b16 %v7254, %v7250
    %v7543 = vpack.c.b16 %v7255, %v7251
    %v7544 = vpack.c.b16 %v7256, %v7252
    %v7545 = vpack.c.b16 %v7257, %v7253
    %v7546 = vpack.c.b16 %v7262, %v7258
    %v7547 = vpack.c.b16 %v7263, %v7259
    %v7548 = vpack.c.b16 %v7264, %v7260
    %v7549 = vpack.c.b16 %v7265, %v7261
    %v7550 = vpack.c.b16 %v7270, %v7266
    %v7551 = vpack.c.b16 %v7271, %v7267
    %v7552 = vpack.c.b16 %v7272, %v7268
    %v7553 = vpack.c.b16 %v7273, %v7269
    %v7554 = vpack.c.b16 %v7278, %v7274
    %v7555 = vpack.c.b16 %v7279, %v7275
    %v7556 = vpack.c.b16 %v7280, %v7276
    %v7557 = vpack.c.b16 %v7281, %v7277
    %v7558 = vpack.c.b16 %v7286, %v7282
    %v7559 = vpack.c.b16 %v7287, %v7283
    %v7560 = vpack.c.b16 %v7288, %v7284
    %v7561 = vpack.c.b16 %v7289, %v7285
    %v7562 = vpack.c.b16 %v7294, %v7290
    %v7563 = vpack.c.b16 %v7295, %v7291
    %v7564 = vpack.c.b16 %v7296, %v7292
    %v7565 = vpack.c.b16 %v7297, %v7293
    %v7566 = vpack.c.b16 %v7302, %v7298
    %v7567 = vpack.c.b16 %v7303, %v7299
    %v7568 = vpack.c.b16 %v7304, %v7300
    %v7569 = vpack.c.b16 %v7305, %v7301
    %v7570 = vpack.c.b16 %v7310, %v7306
    %v7571 = vpack.c.b16 %v7311, %v7307
    %v7572 = vpack.c.b16 %v7312, %v7308
    %v7573 = vpack.c.b16 %v7313, %v7309
    %v7574 = vpack.c.b16 %v7318, %v7314
    %v7575 = vpack.c.b16 %v7319, %v7315
    %v7576 = vpack.c.b16 %v7320, %v7316
    %v7577 = vpack.c.b16 %v7321, %v7317
    %v7578 = vpack.c.b16 %v7326, %v7322
    %v7579 = vpack.c.b16 %v7327, %v7323
    %v7580 = vpack.c.b16 %v7328, %v7324
    %v7581 = vpack.c.b16 %v7329, %v7325
    %v7582 = vpack.c.b16 %v7334, %v7330
    %v7583 = vpack.c.b16 %v7335, %v7331
    %v7584 = vpack.c.b16 %v7336, %v7332
    %v7585 = vpack.c.b16 %v7337, %v7333
    %v7586 = vpack.c.b16 %v7342, %v7338
    %v7587 = vpack.c.b16 %v7343, %v7339
    %v7588 = vpack.c.b16 %v7344, %v7340
    %v7589 = vpack.c.b16 %v7345, %v7341
    %v7590 = vpack.c.b16 %v7350, %v7346
    %v7591 = vpack.c.b16 %v7351, %v7347
    %v7592 = vpack.c.b16 %v7352, %v7348
    %v7593 = vpack.c.b16 %v7353, %v7349
    %v7594 = vpack.c.b16 %v7358, %v7354
    %v7595 = vpack.c.b16 %v7359, %v7355
    %v7596 = vpack.c.b16 %v7360, %v7356
    %v7597 = vpack.c.b16 %v7361, %v7357
    %v7598 = vpack.c.b16 %v7366, %v7362
    %v7599 = vpack.c.b16 %v7367, %v7363
    %v7600 = vpack.c.b16 %v7368, %v7364
    %v7601 = vpack.c.b16 %v7369, %v7365
    %v7602 = vpack.c.b16 %v7374, %v7370
    %v7603 = vpack.c.b16 %v7375, %v7371
    %v7604 = vpack.c.b16 %v7376, %v7372
    %v7605 = vpack.c.b16 %v7377, %v7373
    %v7606 = vpack.c.b16 %v7382, %v7378
    %v7607 = vpack.c.b16 %v7383, %v7379
    %v7608 = vpack.c.b16 %v7384, %v7380
    %v7609 = vpack.c.b16 %v7385, %v7381
    %v7610 = vpack.c.b16 %v7390, %v7386
    %v7611 = vpack.c.b16 %v7391, %v7387
    %v7612 = vpack.c.b16 %v7392, %v7388
    %v7613 = vpack.c.b16 %v7393, %v7389
    %v7614 = vpack.c.b16 %v7398, %v7394
    %v7615 = vpack.c.b16 %v7399, %v7395
    %v7616 = vpack.c.b16 %v7400, %v7396
    %v7617 = vpack.c.b16 %v7401, %v7397
    %v7618 = vpack.c.b16 %v7406, %v7402
    %v7619 = vpack.c.b16 %v7407, %v7403
    %v7620 = vpack.c.b16 %v7408, %v7404
    %v7621 = vpack.c.b16 %v7409, %v7405
    %v7622 = vpack.c.b16 %v7414, %v7410
    %v7623 = vpack.c.b16 %v7415, %v7411
    %v7624 = vpack.c.b16 %v7416, %v7412
    %v7625 = vpack.c.b16 %v7417, %v7413
    %v7626 = vpack.c.b16 %v7422, %v7418
    %v7627 = vpack.c.b16 %v7423, %v7419
    %v7628 = vpack.c.b16 %v7424, %v7420
    %v7629 = vpack.c.b16 %v7425, %v7421
    %v7630 = vpack.c.b16 %v7430, %v7426
    %v7631 = vpack.c.b16 %v7431, %v7427
    %v7632 = vpack.c.b16 %v7432, %v7428
    %v7633 = vpack.c.b16 %v7433, %v7429
    %v7634 = vpack.c.b16 %v7438, %v7434
    %v7635 = vpack.c.b16 %v7439, %v7435
    %v7636 = vpack.c.b16 %v7440, %v7436
    %v7637 = vpack.c.b16 %v7441, %v7437
    %v7638 = vpack.c.b16 %v7446, %v7442
    %v7639 = vpack.c.b16 %v7447, %v7443
    %v7640 = vpack.c.b16 %v7448, %v7444
    %v7641 = vpack.c.b16 %v7449, %v7445
    %7834 = vmatpush.bf16.msra.mxu0 %v7478
    %7835 = vmatpush.bf16.msra.mxu0 %v7474
    %7836 = vmatpush.bf16.msra.mxu0 %v7470
    %7837 = vmatpush.bf16.msra.mxu0 %v7466
    %7838 = vmatpush.bf16.msra.mxu0 %v7462
    %7839 = vmatpush.bf16.msra.mxu0 %v7458
    %7840 = vmatpush.bf16.msra.mxu0 %v7454
    %7841 = vmatpush.bf16.msra.mxu0 %v7450
    %7842 = vmatmul.bf16.gmra.mxu0 %v6858
    %v7843 = vpop.f32.mrf.mxu0
    %v7844 = vadd.f32 %v6866, %v7843
    %v7845 = vpop.f32.mrf.mxu0
    %7846 = vdwg.mxu0
    %7847 = vmatpush.bf16.msra.mxu0 %v7510
    %7848 = vmatpush.bf16.msra.mxu0 %v7506
    %7849 = vmatpush.bf16.msra.mxu0 %v7502
    %7850 = vmatpush.bf16.msra.mxu0 %v7498
    %7851 = vmatpush.bf16.msra.mxu0 %v7494
    %7852 = vmatpush.bf16.msra.mxu0 %v7490
    %7853 = vmatpush.bf16.msra.mxu0 %v7486
    %7854 = vmatpush.bf16.msra.mxu0 %v7482
    %7855 = vmatmul.bf16.gmra.mxu0 %v6859
    %v7856 = vpop.f32.mrf.mxu0
    %v7857 = vadd.f32 %v7844, %v7856
    %v7858 = vpop.f32.mrf.mxu0
    %7859 = vdwg.mxu0
    %7860 = vmatpush.bf16.msra.mxu0 %v7542
    %7861 = vmatpush.bf16.msra.mxu0 %v7538
    %7862 = vmatpush.bf16.msra.mxu0 %v7534
    %7863 = vmatpush.bf16.msra.mxu0 %v7530
    %7864 = vmatpush.bf16.msra.mxu0 %v7526
    %7865 = vmatpush.bf16.msra.mxu0 %v7522
    %7866 = vmatpush.bf16.msra.mxu0 %v7518
    %7867 = vmatpush.bf16.msra.mxu0 %v7514
    %7868 = vmatmul.bf16.gmra.mxu0 %v6860
    %v7869 = vpop.f32.mrf.mxu0
    %v7870 = vadd.f32 %v7857, %v7869
    %v7871 = vpop.f32.mrf.mxu0
    %7872 = vdwg.mxu0
    %7873 = vmatpush.bf16.msra.mxu0 %v7574
    %7874 = vmatpush.bf16.msra.mxu0 %v7570
    %7875 = vmatpush.bf16.msra.mxu0 %v7566
    %7876 = vmatpush.bf16.msra.mxu0 %v7562
    %7877 = vmatpush.bf16.msra.mxu0 %v7558
    %7878 = vmatpush.bf16.msra.mxu0 %v7554
    %7879 = vmatpush.bf16.msra.mxu0 %v7550
    %7880 = vmatpush.bf16.msra.mxu0 %v7546
    %7881 = vmatmul.bf16.gmra.mxu0 %v6861
    %v7882 = vpop.f32.mrf.mxu0
    %v7883 = vadd.f32 %v7870, %v7882
    %v7884 = vpop.f32.mrf.mxu0
    %7885 = vdwg.mxu0
    %7886 = vmatpush.bf16.msra.mxu0 %v7606
    %7887 = vmatpush.bf16.msra.mxu0 %v7602
    %7888 = vmatpush.bf16.msra.mxu0 %v7598
    %7889 = vmatpush.bf16.msra.mxu0 %v7594
    %7890 = vmatpush.bf16.msra.mxu0 %v7590
    %7891 = vmatpush.bf16.msra.mxu0 %v7586
    %7892 = vmatpush.bf16.msra.mxu0 %v7582
    %7893 = vmatpush.bf16.msra.mxu0 %v7578
    %7894 = vmatmul.bf16.gmra.mxu0 %v6862
    %v7895 = vpop.f32.mrf.mxu0
    %v7896 = vadd.f32 %v7883, %v7895
    %v7897 = vpop.f32.mrf.mxu0
    %7898 = vdwg.mxu0
    %7899 = vmatpush.bf16.msra.mxu0 %v7638
    %7900 = vmatpush.bf16.msra.mxu0 %v7634
    %7901 = vmatpush.bf16.msra.mxu0 %v7630
    %7902 = vmatpush.bf16.msra.mxu0 %v7626
    %7903 = vmatpush.bf16.msra.mxu0 %v7622
    %7904 = vmatpush.bf16.msra.mxu0 %v7618
    %7905 = vmatpush.bf16.msra.mxu0 %v7614
    %7906 = vmatpush.bf16.msra.mxu0 %v7610
    %7907 = vmatmul.bf16.gmra.mxu0 %v6863
    %v7908 = vpop.f32.mrf.mxu0
    %v7909 = vadd.f32 %v7896, %v7908
    %v7910 = vpop.f32.mrf.mxu0
    %7911 = vdwg.mxu0
    %7912 = vmatpush.bf16.msra.mxu0 %v7479
    %7913 = vmatpush.bf16.msra.mxu0 %v7475
    %7914 = vmatpush.bf16.msra.mxu0 %v7471
    %7915 = vmatpush.bf16.msra.mxu0 %v7467
    %7916 = vmatpush.bf16.msra.mxu0 %v7463
    %7917 = vmatpush.bf16.msra.mxu0 %v7459
    %7918 = vmatpush.bf16.msra.mxu0 %v7455
    %7919 = vmatpush.bf16.msra.mxu0 %v7451
    %7920 = vmatmul.bf16.gmra.mxu0 %v6858
    %v7921 = vpop.f32.mrf.mxu0
    %v7922 = vadd.f32 %v6867, %v7921
    %v7923 = vpop.f32.mrf.mxu0
    %7924 = vdwg.mxu0
    %7925 = vmatpush.bf16.msra.mxu0 %v7511
    %7926 = vmatpush.bf16.msra.mxu0 %v7507
    %7927 = vmatpush.bf16.msra.mxu0 %v7503
    %7928 = vmatpush.bf16.msra.mxu0 %v7499
    %7929 = vmatpush.bf16.msra.mxu0 %v7495
    %7930 = vmatpush.bf16.msra.mxu0 %v7491
    %7931 = vmatpush.bf16.msra.mxu0 %v7487
    %7932 = vmatpush.bf16.msra.mxu0 %v7483
    %7933 = vmatmul.bf16.gmra.mxu0 %v6859
    %v7934 = vpop.f32.mrf.mxu0
    %v7935 = vadd.f32 %v7922, %v7934
    %v7936 = vpop.f32.mrf.mxu0
    %7937 = vdwg.mxu0
    %7938 = vmatpush.bf16.msra.mxu0 %v7543
    %7939 = vmatpush.bf16.msra.mxu0 %v7539
    %7940 = vmatpush.bf16.msra.mxu0 %v7535
    %7941 = vmatpush.bf16.msra.mxu0 %v7531
    %7942 = vmatpush.bf16.msra.mxu0 %v7527
    %7943 = vmatpush.bf16.msra.mxu0 %v7523
    %7944 = vmatpush.bf16.msra.mxu0 %v7519
    %7945 = vmatpush.bf16.msra.mxu0 %v7515
    %7946 = vmatmul.bf16.gmra.mxu0 %v6860
    %v7947 = vpop.f32.mrf.mxu0
    %v7948 = vadd.f32 %v7935, %v7947
    %v7949 = vpop.f32.mrf.mxu0
    %7950 = vdwg.mxu0
    %7951 = vmatpush.bf16.msra.mxu0 %v7575
    %7952 = vmatpush.bf16.msra.mxu0 %v7571
    %7953 = vmatpush.bf16.msra.mxu0 %v7567
    %7954 = vmatpush.bf16.msra.mxu0 %v7563
    %7955 = vmatpush.bf16.msra.mxu0 %v7559
    %7956 = vmatpush.bf16.msra.mxu0 %v7555
    %7957 = vmatpush.bf16.msra.mxu0 %v7551
    %7958 = vmatpush.bf16.msra.mxu0 %v7547
    %7959 = vmatmul.bf16.gmra.mxu0 %v6861
    %v7960 = vpop.f32.mrf.mxu0
    %v7961 = vadd.f32 %v7948, %v7960
    %v7962 = vpop.f32.mrf.mxu0
    %7963 = vdwg.mxu0
    %7964 = vmatpush.bf16.msra.mxu0 %v7607
    %7965 = vmatpush.bf16.msra.mxu0 %v7603
    %7966 = vmatpush.bf16.msra.mxu0 %v7599
    %7967 = vmatpush.bf16.msra.mxu0 %v7595
    %7968 = vmatpush.bf16.msra.mxu0 %v7591
    %7969 = vmatpush.bf16.msra.mxu0 %v7587
    %7970 = vmatpush.bf16.msra.mxu0 %v7583
    %7971 = vmatpush.bf16.msra.mxu0 %v7579
    %7972 = vmatmul.bf16.gmra.mxu0 %v6862
    %v7973 = vpop.f32.mrf.mxu0
    %v7974 = vadd.f32 %v7961, %v7973
    %v7975 = vpop.f32.mrf.mxu0
    %7976 = vdwg.mxu0
    %7977 = vmatpush.bf16.msra.mxu0 %v7639
    %7978 = vmatpush.bf16.msra.mxu0 %v7635
    %7979 = vmatpush.bf16.msra.mxu0 %v7631
    %7980 = vmatpush.bf16.msra.mxu0 %v7627
    %7981 = vmatpush.bf16.msra.mxu0 %v7623
    %7982 = vmatpush.bf16.msra.mxu0 %v7619
    %7983 = vmatpush.bf16.msra.mxu0 %v7615
    %7984 = vmatpush.bf16.msra.mxu0 %v7611
    %7985 = vmatmul.bf16.gmra.mxu0 %v6863
    %v7986 = vpop.f32.mrf.mxu0
    %v7987 = vadd.f32 %v7974, %v7986
    %v7988 = vpop.f32.mrf.mxu0
    %7989 = vdwg.mxu0
    %7990 = vmatpush.bf16.msra.mxu0 %v7480
    %7991 = vmatpush.bf16.msra.mxu0 %v7476
    %7992 = vmatpush.bf16.msra.mxu0 %v7472
    %7993 = vmatpush.bf16.msra.mxu0 %v7468
    %7994 = vmatpush.bf16.msra.mxu0 %v7464
    %7995 = vmatpush.bf16.msra.mxu0 %v7460
    %7996 = vmatpush.bf16.msra.mxu0 %v7456
    %7997 = vmatpush.bf16.msra.mxu0 %v7452
    %7998 = vmatmul.bf16.gmra.mxu0 %v6858
    %v7999 = vpop.f32.mrf.mxu0
    %v8000 = vadd.f32 %v6868, %v7999
    %v8001 = vpop.f32.mrf.mxu0
    %8002 = vdwg.mxu0
    %8003 = vmatpush.bf16.msra.mxu0 %v7512
    %8004 = vmatpush.bf16.msra.mxu0 %v7508
    %8005 = vmatpush.bf16.msra.mxu0 %v7504
    %8006 = vmatpush.bf16.msra.mxu0 %v7500
    %8007 = vmatpush.bf16.msra.mxu0 %v7496
    %8008 = vmatpush.bf16.msra.mxu0 %v7492
    %8009 = vmatpush.bf16.msra.mxu0 %v7488
    %8010 = vmatpush.bf16.msra.mxu0 %v7484
    %8011 = vmatmul.bf16.gmra.mxu0 %v6859
    %v8012 = vpop.f32.mrf.mxu0
    %v8013 = vadd.f32 %v8000, %v8012
    %v8014 = vpop.f32.mrf.mxu0
    %8015 = vdwg.mxu0
    %8016 = vmatpush.bf16.msra.mxu0 %v7544
    %8017 = vmatpush.bf16.msra.mxu0 %v7540
    %8018 = vmatpush.bf16.msra.mxu0 %v7536
    %8019 = vmatpush.bf16.msra.mxu0 %v7532
    %8020 = vmatpush.bf16.msra.mxu0 %v7528
    %8021 = vmatpush.bf16.msra.mxu0 %v7524
    %8022 = vmatpush.bf16.msra.mxu0 %v7520
    %8023 = vmatpush.bf16.msra.mxu0 %v7516
    %8024 = vmatmul.bf16.gmra.mxu0 %v6860
    %v8025 = vpop.f32.mrf.mxu0
    %v8026 = vadd.f32 %v8013, %v8025
    %v8027 = vpop.f32.mrf.mxu0
    %8028 = vdwg.mxu0
    %8029 = vmatpush.bf16.msra.mxu0 %v7576
    %8030 = vmatpush.bf16.msra.mxu0 %v7572
    %8031 = vmatpush.bf16.msra.mxu0 %v7568
    %8032 = vmatpush.bf16.msra.mxu0 %v7564
    %8033 = vmatpush.bf16.msra.mxu0 %v7560
    %8034 = vmatpush.bf16.msra.mxu0 %v7556
    %8035 = vmatpush.bf16.msra.mxu0 %v7552
    %8036 = vmatpush.bf16.msra.mxu0 %v7548
    %8037 = vmatmul.bf16.gmra.mxu0 %v6861
    %v8038 = vpop.f32.mrf.mxu0
    %v8039 = vadd.f32 %v8026, %v8038
    %v8040 = vpop.f32.mrf.mxu0
    %8041 = vdwg.mxu0
    %8042 = vmatpush.bf16.msra.mxu0 %v7608
    %8043 = vmatpush.bf16.msra.mxu0 %v7604
    %8044 = vmatpush.bf16.msra.mxu0 %v7600
    %8045 = vmatpush.bf16.msra.mxu0 %v7596
    %8046 = vmatpush.bf16.msra.mxu0 %v7592
    %8047 = vmatpush.bf16.msra.mxu0 %v7588
    %8048 = vmatpush.bf16.msra.mxu0 %v7584
    %8049 = vmatpush.bf16.msra.mxu0 %v7580
    %8050 = vmatmul.bf16.gmra.mxu0 %v6862
    %v8051 = vpop.f32.mrf.mxu0
    %v8052 = vadd.f32 %v8039, %v8051
    %v8053 = vpop.f32.mrf.mxu0
    %8054 = vdwg.mxu0
    %8055 = vmatpush.bf16.msra.mxu0 %v7640
    %8056 = vmatpush.bf16.msra.mxu0 %v7636
    %8057 = vmatpush.bf16.msra.mxu0 %v7632
    %8058 = vmatpush.bf16.msra.mxu0 %v7628
    %8059 = vmatpush.bf16.msra.mxu0 %v7624
    %8060 = vmatpush.bf16.msra.mxu0 %v7620
    %8061 = vmatpush.bf16.msra.mxu0 %v7616
    %8062 = vmatpush.bf16.msra.mxu0 %v7612
    %8063 = vmatmul.bf16.gmra.mxu0 %v6863
    %v8064 = vpop.f32.mrf.mxu0
    %v8065 = vadd.f32 %v8052, %v8064
    %v8066 = vpop.f32.mrf.mxu0
    %8067 = vdwg.mxu0
    %8068 = vmatpush.bf16.msra.mxu0 %v7481
    %8069 = vmatpush.bf16.msra.mxu0 %v7477
    %8070 = vmatpush.bf16.msra.mxu0 %v7473
    %8071 = vmatpush.bf16.msra.mxu0 %v7469
    %8072 = vmatpush.bf16.msra.mxu0 %v7465
    %8073 = vmatpush.bf16.msra.mxu0 %v7461
    %8074 = vmatpush.bf16.msra.mxu0 %v7457
    %8075 = vmatpush.bf16.msra.mxu0 %v7453
    %8076 = vmatmul.bf16.gmra.mxu0 %v6858
    %v8077 = vpop.f32.mrf.mxu0
    %v8078 = vadd.f32 %v6869, %v8077
    %v8079 = vpop.f32.mrf.mxu0
    %8080 = vdwg.mxu0
    %8081 = vmatpush.bf16.msra.mxu0 %v7513
    %8082 = vmatpush.bf16.msra.mxu0 %v7509
    %8083 = vmatpush.bf16.msra.mxu0 %v7505
    %8084 = vmatpush.bf16.msra.mxu0 %v7501
    %8085 = vmatpush.bf16.msra.mxu0 %v7497
    %8086 = vmatpush.bf16.msra.mxu0 %v7493
    %8087 = vmatpush.bf16.msra.mxu0 %v7489
    %8088 = vmatpush.bf16.msra.mxu0 %v7485
    %8089 = vmatmul.bf16.gmra.mxu0 %v6859
    %v8090 = vpop.f32.mrf.mxu0
    %v8091 = vadd.f32 %v8078, %v8090
    %v8092 = vpop.f32.mrf.mxu0
    %8093 = vdwg.mxu0
    %8094 = vmatpush.bf16.msra.mxu0 %v7545
    %8095 = vmatpush.bf16.msra.mxu0 %v7541
    %8096 = vmatpush.bf16.msra.mxu0 %v7537
    %8097 = vmatpush.bf16.msra.mxu0 %v7533
    %8098 = vmatpush.bf16.msra.mxu0 %v7529
    %8099 = vmatpush.bf16.msra.mxu0 %v7525
    %8100 = vmatpush.bf16.msra.mxu0 %v7521
    %8101 = vmatpush.bf16.msra.mxu0 %v7517
    %8102 = vmatmul.bf16.gmra.mxu0 %v6860
    %v8103 = vpop.f32.mrf.mxu0
    %v8104 = vadd.f32 %v8091, %v8103
    %v8105 = vpop.f32.mrf.mxu0
    %8106 = vdwg.mxu0
    %8107 = vmatpush.bf16.msra.mxu0 %v7577
    %8108 = vmatpush.bf16.msra.mxu0 %v7573
    %8109 = vmatpush.bf16.msra.mxu0 %v7569
    %8110 = vmatpush.bf16.msra.mxu0 %v7565
    %8111 = vmatpush.bf16.msra.mxu0 %v7561
    %8112 = vmatpush.bf16.msra.mxu0 %v7557
    %8113 = vmatpush.bf16.msra.mxu0 %v7553
    %8114 = vmatpush.bf16.msra.mxu0 %v7549
    %8115 = vmatmul.bf16.gmra.mxu0 %v6861
    %v8116 = vpop.f32.mrf.mxu0
    %v8117 = vadd.f32 %v8104, %v8116
    %v8118 = vpop.f32.mrf.mxu0
    %8119 = vdwg.mxu0
    %8120 = vmatpush.bf16.msra.mxu0 %v7609
    %8121 = vmatpush.bf16.msra.mxu0 %v7605
    %8122 = vmatpush.bf16.msra.mxu0 %v7601
    %8123 = vmatpush.bf16.msra.mxu0 %v7597
    %8124 = vmatpush.bf16.msra.mxu0 %v7593
    %8125 = vmatpush.bf16.msra.mxu0 %v7589
    %8126 = vmatpush.bf16.msra.mxu0 %v7585
    %8127 = vmatpush.bf16.msra.mxu0 %v7581
    %8128 = vmatmul.bf16.gmra.mxu0 %v6862
    %v8129 = vpop.f32.mrf.mxu0
    %v8130 = vadd.f32 %v8117, %v8129
    %v8131 = vpop.f32.mrf.mxu0
    %8132 = vdwg.mxu0
    %8133 = vmatpush.bf16.msra.mxu0 %v7641
    %8134 = vmatpush.bf16.msra.mxu0 %v7637
    %8135 = vmatpush.bf16.msra.mxu0 %v7633
    %8136 = vmatpush.bf16.msra.mxu0 %v7629
    %8137 = vmatpush.bf16.msra.mxu0 %v7625
    %8138 = vmatpush.bf16.msra.mxu0 %v7621
    %8139 = vmatpush.bf16.msra.mxu0 %v7617
    %8140 = vmatpush.bf16.msra.mxu0 %v7613
    %8141 = vmatmul.bf16.gmra.mxu0 %v6863
    %v8142 = vpop.f32.mrf.mxu0
    %v8143 = vadd.f32 %v8130, %v8142
    %v8144 = vpop.f32.mrf.mxu0
    %8145 = vdwg.mxu0
    %s8146 = sld [smem:[#allocation2 + $0x3]]
    %vm8147 = vcmp.ge.f32.partialorder %v7909, 0.0
    %vm8148 = vcmp.ge.f32.partialorder %v7987, 0.0
    %vm8149 = vcmp.ge.f32.partialorder %v8065, 0.0
    %vm8150 = vcmp.ge.f32.partialorder %v8143, 0.0
    %v8151 = vstv %s8146
    %v8152 = vmul.f32 %v8151, %v7909
    %v8153 = vmul.f32 %v8151, %v7987
    %v8154 = vmul.f32 %v8151, %v8065
    %v8155 = vmul.f32 %v8151, %v8143
    %v8156 = vsel %vm8147, %v7909, %v8152
    %v8157 = vsel %vm8148, %v7987, %v8153
    %v8158 = vsel %vm8149, %v8065, %v8154
    %v8159 = vsel %vm8150, %v8143, %v8155
    %v8160 = vld [vmem:[#allocation13] sm:$0xff]
    %v8161 = vld [vmem:[#allocation13 + $0x8] sm:$0xf]
    %v8162 = vld [vmem:[#allocation13 + $0xc] sm:$0xff]
    %v8163 = vld [vmem:[#allocation13 + $0x14] sm:$0xf]
    %v8164 = vld [vmem:[#allocation13 + $0x18] sm:$0xff]
    %v8165 = vld [vmem:[#allocation13 + $0x20] sm:$0xf]
    %v8166 = vld [vmem:[#allocation13 + $0x24] sm:$0xff]
    %v8167 = vld [vmem:[#allocation13 + $0x2c] sm:$0xf]
    %v8168 = vld [vmem:[#allocation13 + $0x30] sm:$0xff]
    %v8169 = vld [vmem:[#allocation13 + $0x38] sm:$0xf]
    %v8170 = vld [vmem:[#allocation13 + $0x3c] sm:$0xff]
    %v8171 = vld [vmem:[#allocation13 + $0x44] sm:$0xf]
    %v8172 = vld [vmem:[#allocation13 + $0x48] sm:$0xff]
    %v8173 = vld [vmem:[#allocation13 + $0x50] sm:$0xf]
    %v8174 = vld [vmem:[#allocation13 + $0x54] sm:$0xff]
    %v8175 = vld [vmem:[#allocation13 + $0x5c] sm:$0xf]
    %v8176 = vld [vmem:[#allocation13 + $0x60] sm:$0xff]
    %v8177 = vld [vmem:[#allocation13 + $0x68] sm:$0xf]
    %v8178 = vld [vmem:[#allocation13 + $0x6c] sm:$0xff]
    %v8179 = vld [vmem:[#allocation13 + $0x74] sm:$0xf]
    %v8180 = vld [vmem:[#allocation13 + $0x78] sm:$0xff]
    %v8181 = vld [vmem:[#allocation13 + $0x80] sm:$0xf]
    %v8182 = vld [vmem:[#allocation13 + $0x84] sm:$0xff]
    %v8183 = vld [vmem:[#allocation13 + $0x8c] sm:$0xf]
    %v8184 = vld [vmem:[#allocation13 + $0x90] sm:$0xff]
    %v8185 = vld [vmem:[#allocation13 + $0x98] sm:$0xf]
    %v8186 = vld [vmem:[#allocation13 + $0x9c] sm:$0xff]
    %v8187 = vld [vmem:[#allocation13 + $0xa4] sm:$0xf]
    %v8188 = vld [vmem:[#allocation13 + $0xa8] sm:$0xff]
    %v8189 = vld [vmem:[#allocation13 + $0xb0] sm:$0xf]
    %v8190 = vld [vmem:[#allocation13 + $0xb4] sm:$0xff]
    %v8191 = vld [vmem:[#allocation13 + $0xbc] sm:$0xf]
    %v8192 = vld [vmem:[#allocation13 + $0xc0] sm:$0xff]
    %v8193 = vld [vmem:[#allocation13 + $0xc8] sm:$0xf]
    %v8194 = vld [vmem:[#allocation13 + $0xcc] sm:$0xff]
    %v8195 = vld [vmem:[#allocation13 + $0xd4] sm:$0xf]
    %v8196 = vld [vmem:[#allocation13 + $0xd8] sm:$0xff]
    %v8197 = vld [vmem:[#allocation13 + $0xe0] sm:$0xf]
    %v8198 = vld [vmem:[#allocation13 + $0xe4] sm:$0xff]
    %v8199 = vld [vmem:[#allocation13 + $0xec] sm:$0xf]
    %v8200 = vld [vmem:[#allocation13 + $0xf0] sm:$0xff]
    %v8201 = vld [vmem:[#allocation13 + $0xf8] sm:$0xf]
    %v8202 = vld [vmem:[#allocation13 + $0xfc] sm:$0xff]
    %v8203 = vld [vmem:[#allocation13 + $0x104] sm:$0xf]
    %v8204 = vld [vmem:[#allocation13 + $0x108] sm:$0xff]
    %v8205 = vld [vmem:[#allocation13 + $0x110] sm:$0xf]
    %v8206 = vld [vmem:[#allocation13 + $0x114] sm:$0xff]
    %v8207 = vld [vmem:[#allocation13 + $0x11c] sm:$0xf]
    %v8208 = vld [vmem:[#allocation13 + $0x120] sm:$0xff]
    %v8209 = vld [vmem:[#allocation13 + $0x128] sm:$0xf]
    %v8210 = vld [vmem:[#allocation13 + $0x12c] sm:$0xff]
    %v8211 = vld [vmem:[#allocation13 + $0x134] sm:$0xf]
    %v8212 = vld [vmem:[#allocation13 + $0x138] sm:$0xff]
    %v8213 = vld [vmem:[#allocation13 + $0x140] sm:$0xf]
    %v8214 = vld [vmem:[#allocation13 + $0x144] sm:$0xff]
    %v8215 = vld [vmem:[#allocation13 + $0x14c] sm:$0xf]
    %v8216 = vld [vmem:[#allocation13 + $0x150] sm:$0xff]
    %v8217 = vld [vmem:[#allocation13 + $0x158] sm:$0xf]
    %v8218 = vld [vmem:[#allocation13 + $0x15c] sm:$0xff]
    %v8219 = vld [vmem:[#allocation13 + $0x164] sm:$0xf]
    %v8220 = vld [vmem:[#allocation13 + $0x168] sm:$0xff]
    %v8221 = vld [vmem:[#allocation13 + $0x170] sm:$0xf]
    %v8222 = vld [vmem:[#allocation13 + $0x174] sm:$0xff]
    %v8223 = vld [vmem:[#allocation13 + $0x17c] sm:$0xf]
    %v8224 = vld [vmem:[#allocation13 + $0x180] sm:$0xff]
    %v8225 = vld [vmem:[#allocation13 + $0x188] sm:$0xf]
    %v8226 = vld [vmem:[#allocation13 + $0x18c] sm:$0xff]
    %v8227 = vld [vmem:[#allocation13 + $0x194] sm:$0xf]
    %v8228 = vld [vmem:[#allocation13 + $0x198] sm:$0xff]
    %v8229 = vld [vmem:[#allocation13 + $0x1a0] sm:$0xf]
    %v8230 = vld [vmem:[#allocation13 + $0x1a4] sm:$0xff]
    %v8231 = vld [vmem:[#allocation13 + $0x1ac] sm:$0xf]
    %v8232 = vld [vmem:[#allocation13 + $0x1b0] sm:$0xff]
    %v8233 = vld [vmem:[#allocation13 + $0x1b8] sm:$0xf]
    %v8234 = vld [vmem:[#allocation13 + $0x1bc] sm:$0xff]
    %v8235 = vld [vmem:[#allocation13 + $0x1c4] sm:$0xf]
    %v8236 = vld [vmem:[#allocation13 + $0x1c8] sm:$0xff]
    %v8237 = vld [vmem:[#allocation13 + $0x1d0] sm:$0xf]
    %v8238 = vld [vmem:[#allocation13 + $0x1d4] sm:$0xff]
    %v8239 = vld [vmem:[#allocation13 + $0x1dc] sm:$0xf]
    %v8240 = vld [vmem:[#allocation13 + $0x1e0] sm:$0xff]
    %v8241 = vld [vmem:[#allocation13 + $0x1e8] sm:$0xf]
    %v8242 = vld [vmem:[#allocation13 + $0x1ec] sm:$0xff]
    %v8243 = vld [vmem:[#allocation13 + $0x1f4] sm:$0xf]
    %v8244 = vld [vmem:[#allocation13 + $0x1f8] sm:$0xff]
    %v8245 = vld [vmem:[#allocation13 + $0x200] sm:$0xf]
    %v8246 = vld [vmem:[#allocation13 + $0x204] sm:$0xff]
    %v8247 = vld [vmem:[#allocation13 + $0x20c] sm:$0xf]
    %v8248 = vld [vmem:[#allocation13 + $0x210] sm:$0xff]
    %v8249 = vld [vmem:[#allocation13 + $0x218] sm:$0xf]
    %v8250 = vld [vmem:[#allocation13 + $0x21c] sm:$0xff]
    %v8251 = vld [vmem:[#allocation13 + $0x224] sm:$0xf]
    %v8252 = vld [vmem:[#allocation13 + $0x228] sm:$0xff]
    %v8253 = vld [vmem:[#allocation13 + $0x230] sm:$0xf]
    %v8254 = vld [vmem:[#allocation13 + $0x234] sm:$0xff]
    %v8255 = vld [vmem:[#allocation13 + $0x23c] sm:$0xf]
    %v8256 = vld [vmem:[#allocation13 + $0x240] sm:$0xff]
    %v8257 = vld [vmem:[#allocation13 + $0x248] sm:$0xf]
    %v8258 = vld [vmem:[#allocation13 + $0x24c] sm:$0xff]
    %v8259 = vld [vmem:[#allocation13 + $0x254] sm:$0xf]
    %v8260 = vld [vmem:[#allocation13 + $0x258] sm:$0xff]
    %v8261 = vld [vmem:[#allocation13 + $0x260] sm:$0xf]
    %v8262 = vld [vmem:[#allocation13 + $0x264] sm:$0xff]
    %v8263 = vld [vmem:[#allocation13 + $0x26c] sm:$0xf]
    %v8264 = vld [vmem:[#allocation13 + $0x270] sm:$0xff]
    %v8265 = vld [vmem:[#allocation13 + $0x278] sm:$0xf]
    %v8266 = vld [vmem:[#allocation13 + $0x27c] sm:$0xff]
    %v8267 = vld [vmem:[#allocation13 + $0x284] sm:$0xf]
    %v8268 = vld [vmem:[#allocation13 + $0x288] sm:$0xff]
    %v8269 = vld [vmem:[#allocation13 + $0x290] sm:$0xf]
    %v8270 = vld [vmem:[#allocation13 + $0x294] sm:$0xff]
    %v8271 = vld [vmem:[#allocation13 + $0x29c] sm:$0xf]
    %v8272 = vld [vmem:[#allocation13 + $0x2a0] sm:$0xff]
    %v8273 = vld [vmem:[#allocation13 + $0x2a8] sm:$0xf]
    %v8274 = vld [vmem:[#allocation13 + $0x2ac] sm:$0xff]
    %v8275 = vld [vmem:[#allocation13 + $0x2b4] sm:$0xf]
    %v8276 = vld [vmem:[#allocation13 + $0x2b8] sm:$0xff]
    %v8277 = vld [vmem:[#allocation13 + $0x2c0] sm:$0xf]
    %v8278 = vld [vmem:[#allocation13 + $0x2c4] sm:$0xff]
    %v8279 = vld [vmem:[#allocation13 + $0x2cc] sm:$0xf]
    %v8280 = vld [vmem:[#allocation13 + $0x2d0] sm:$0xff]
    %v8281 = vld [vmem:[#allocation13 + $0x2d8] sm:$0xf]
    %v8282 = vld [vmem:[#allocation13 + $0x2dc] sm:$0xff]
    %v8283 = vld [vmem:[#allocation13 + $0x2e4] sm:$0xf]
    %v8284 = vld [vmem:[#allocation13 + $0x2e8] sm:$0xff]
    %v8285 = vld [vmem:[#allocation13 + $0x2f0] sm:$0xf]
    %v8286 = vld [vmem:[#allocation13 + $0x2f4] sm:$0xff]
    %v8287 = vld [vmem:[#allocation13 + $0x2fc] sm:$0xf]
    %v8288 = vpack.c.bf16 %v8156, %v8156
    %v8289 = vpack.c.bf16 %v8157, %v8157
    %v8290 = vpack.c.bf16 %v8158, %v8158
    %v8291 = vpack.c.bf16 %v8159, %v8159
    %v8292 = vld [vmem:[#allocation6 + $0x19] sm:$0x7]
    %v8294 = vperm.slane %v8292, 0
    %v8295 = vperm.slane %v8292, 1
    %v8296 = vperm.slane %v8292, 2
    %v8428 = vunpack.c.l.b16 %v8160
    %v8429 = vunpack.c.h.b16 %v8160
    %v8430 = vunpack.c.l.b16 %v8161
    %v8431 = vunpack.c.l.b16 %v8162
    %v8432 = vunpack.c.h.b16 %v8162
    %v8433 = vunpack.c.l.b16 %v8163
    %v8434 = vunpack.c.l.b16 %v8164
    %v8435 = vunpack.c.h.b16 %v8164
    %v8436 = vunpack.c.l.b16 %v8165
    %v8437 = vunpack.c.l.b16 %v8166
    %v8438 = vunpack.c.h.b16 %v8166
    %v8439 = vunpack.c.l.b16 %v8167
    %v8440 = vunpack.c.l.b16 %v8168
    %v8441 = vunpack.c.h.b16 %v8168
    %v8442 = vunpack.c.l.b16 %v8169
    %v8443 = vunpack.c.l.b16 %v8170
    %v8444 = vunpack.c.h.b16 %v8170
    %v8445 = vunpack.c.l.b16 %v8171
    %v8446 = vunpack.c.l.b16 %v8172
    %v8447 = vunpack.c.h.b16 %v8172
    %v8448 = vunpack.c.l.b16 %v8173
    %v8449 = vunpack.c.l.b16 %v8174
    %v8450 = vunpack.c.h.b16 %v8174
    %v8451 = vunpack.c.l.b16 %v8175
    %v8452 = vunpack.c.l.b16 %v8176
    %v8453 = vunpack.c.h.b16 %v8176
    %v8454 = vunpack.c.l.b16 %v8177
    %v8455 = vunpack.c.l.b16 %v8178
    %v8456 = vunpack.c.h.b16 %v8178
    %v8457 = vunpack.c.l.b16 %v8179
    %v8458 = vunpack.c.l.b16 %v8180
    %v8459 = vunpack.c.h.b16 %v8180
    %v8460 = vunpack.c.l.b16 %v8181
    %v8461 = vunpack.c.l.b16 %v8182
    %v8462 = vunpack.c.h.b16 %v8182
    %v8463 = vunpack.c.l.b16 %v8183
    %v8464 = vunpack.c.l.b16 %v8184
    %v8465 = vunpack.c.h.b16 %v8184
    %v8466 = vunpack.c.l.b16 %v8185
    %v8467 = vunpack.c.l.b16 %v8186
    %v8468 = vunpack.c.h.b16 %v8186
    %v8469 = vunpack.c.l.b16 %v8187
    %v8470 = vunpack.c.l.b16 %v8188
    %v8471 = vunpack.c.h.b16 %v8188
    %v8472 = vunpack.c.l.b16 %v8189
    %v8473 = vunpack.c.l.b16 %v8190
    %v8474 = vunpack.c.h.b16 %v8190
    %v8475 = vunpack.c.l.b16 %v8191
    %v8476 = vunpack.c.l.b16 %v8192
    %v8477 = vunpack.c.h.b16 %v8192
    %v8478 = vunpack.c.l.b16 %v8193
    %v8479 = vunpack.c.l.b16 %v8194
    %v8480 = vunpack.c.h.b16 %v8194
    %v8481 = vunpack.c.l.b16 %v8195
    %v8482 = vunpack.c.l.b16 %v8196
    %v8483 = vunpack.c.h.b16 %v8196
    %v8484 = vunpack.c.l.b16 %v8197
    %v8485 = vunpack.c.l.b16 %v8198
    %v8486 = vunpack.c.h.b16 %v8198
    %v8487 = vunpack.c.l.b16 %v8199
    %v8488 = vunpack.c.l.b16 %v8200
    %v8489 = vunpack.c.h.b16 %v8200
    %v8490 = vunpack.c.l.b16 %v8201
    %v8491 = vunpack.c.l.b16 %v8202
    %v8492 = vunpack.c.h.b16 %v8202
    %v8493 = vunpack.c.l.b16 %v8203
    %v8494 = vunpack.c.l.b16 %v8204
    %v8495 = vunpack.c.h.b16 %v8204
    %v8496 = vunpack.c.l.b16 %v8205
    %v8497 = vunpack.c.l.b16 %v8206
    %v8498 = vunpack.c.h.b16 %v8206
    %v8499 = vunpack.c.l.b16 %v8207
    %v8500 = vunpack.c.l.b16 %v8208
    %v8501 = vunpack.c.h.b16 %v8208
    %v8502 = vunpack.c.l.b16 %v8209
    %v8503 = vunpack.c.l.b16 %v8210
    %v8504 = vunpack.c.h.b16 %v8210
    %v8505 = vunpack.c.l.b16 %v8211
    %v8506 = vunpack.c.l.b16 %v8212
    %v8507 = vunpack.c.h.b16 %v8212
    %v8508 = vunpack.c.l.b16 %v8213
    %v8509 = vunpack.c.l.b16 %v8214
    %v8510 = vunpack.c.h.b16 %v8214
    %v8511 = vunpack.c.l.b16 %v8215
    %v8512 = vunpack.c.l.b16 %v8216
    %v8513 = vunpack.c.h.b16 %v8216
    %v8514 = vunpack.c.l.b16 %v8217
    %v8515 = vunpack.c.l.b16 %v8218
    %v8516 = vunpack.c.h.b16 %v8218
    %v8517 = vunpack.c.l.b16 %v8219
    %v8518 = vunpack.c.l.b16 %v8220
    %v8519 = vunpack.c.h.b16 %v8220
    %v8520 = vunpack.c.l.b16 %v8221
    %v8521 = vunpack.c.l.b16 %v8222
    %v8522 = vunpack.c.h.b16 %v8222
    %v8523 = vunpack.c.l.b16 %v8223
    %v8524 = vunpack.c.l.b16 %v8224
    %v8525 = vunpack.c.h.b16 %v8224
    %v8526 = vunpack.c.l.b16 %v8225
    %v8527 = vunpack.c.l.b16 %v8226
    %v8528 = vunpack.c.h.b16 %v8226
    %v8529 = vunpack.c.l.b16 %v8227
    %v8530 = vunpack.c.l.b16 %v8228
    %v8531 = vunpack.c.h.b16 %v8228
    %v8532 = vunpack.c.l.b16 %v8229
    %v8533 = vunpack.c.l.b16 %v8230
    %v8534 = vunpack.c.h.b16 %v8230
    %v8535 = vunpack.c.l.b16 %v8231
    %v8536 = vunpack.c.l.b16 %v8232
    %v8537 = vunpack.c.h.b16 %v8232
    %v8538 = vunpack.c.l.b16 %v8233
    %v8539 = vunpack.c.l.b16 %v8234
    %v8540 = vunpack.c.h.b16 %v8234
    %v8541 = vunpack.c.l.b16 %v8235
    %v8542 = vunpack.c.l.b16 %v8236
    %v8543 = vunpack.c.h.b16 %v8236
    %v8544 = vunpack.c.l.b16 %v8237
    %v8545 = vunpack.c.l.b16 %v8238
    %v8546 = vunpack.c.h.b16 %v8238
    %v8547 = vunpack.c.l.b16 %v8239
    %v8548 = vunpack.c.l.b16 %v8240
    %v8549 = vunpack.c.h.b16 %v8240
    %v8550 = vunpack.c.l.b16 %v8241
    %v8551 = vunpack.c.l.b16 %v8242
    %v8552 = vunpack.c.h.b16 %v8242
    %v8553 = vunpack.c.l.b16 %v8243
    %v8554 = vunpack.c.l.b16 %v8244
    %v8555 = vunpack.c.h.b16 %v8244
    %v8556 = vunpack.c.l.b16 %v8245
    %v8557 = vunpack.c.l.b16 %v8246
    %v8558 = vunpack.c.h.b16 %v8246
    %v8559 = vunpack.c.l.b16 %v8247
    %v8560 = vunpack.c.l.b16 %v8248
    %v8561 = vunpack.c.h.b16 %v8248
    %v8562 = vunpack.c.l.b16 %v8249
    %v8563 = vunpack.c.l.b16 %v8250
    %v8564 = vunpack.c.h.b16 %v8250
    %v8565 = vunpack.c.l.b16 %v8251
    %v8566 = vunpack.c.l.b16 %v8252
    %v8567 = vunpack.c.h.b16 %v8252
    %v8568 = vunpack.c.l.b16 %v8253
    %v8569 = vunpack.c.l.b16 %v8254
    %v8570 = vunpack.c.h.b16 %v8254
    %v8571 = vunpack.c.l.b16 %v8255
    %v8572 = vunpack.c.l.b16 %v8256
    %v8573 = vunpack.c.h.b16 %v8256
    %v8574 = vunpack.c.l.b16 %v8257
    %v8575 = vunpack.c.l.b16 %v8258
    %v8576 = vunpack.c.h.b16 %v8258
    %v8577 = vunpack.c.l.b16 %v8259
    %v8578 = vunpack.c.l.b16 %v8260
    %v8579 = vunpack.c.h.b16 %v8260
    %v8580 = vunpack.c.l.b16 %v8261
    %v8581 = vunpack.c.l.b16 %v8262
    %v8582 = vunpack.c.h.b16 %v8262
    %v8583 = vunpack.c.l.b16 %v8263
    %v8584 = vunpack.c.l.b16 %v8264
    %v8585 = vunpack.c.h.b16 %v8264
    %v8586 = vunpack.c.l.b16 %v8265
    %v8587 = vunpack.c.l.b16 %v8266
    %v8588 = vunpack.c.h.b16 %v8266
    %v8589 = vunpack.c.l.b16 %v8267
    %v8590 = vunpack.c.l.b16 %v8268
    %v8591 = vunpack.c.h.b16 %v8268
    %v8592 = vunpack.c.l.b16 %v8269
    %v8593 = vunpack.c.l.b16 %v8270
    %v8594 = vunpack.c.h.b16 %v8270
    %v8595 = vunpack.c.l.b16 %v8271
    %v8596 = vunpack.c.l.b16 %v8272
    %v8597 = vunpack.c.h.b16 %v8272
    %v8598 = vunpack.c.l.b16 %v8273
    %v8599 = vunpack.c.l.b16 %v8274
    %v8600 = vunpack.c.h.b16 %v8274
    %v8601 = vunpack.c.l.b16 %v8275
    %v8602 = vunpack.c.l.b16 %v8276
    %v8603 = vunpack.c.h.b16 %v8276
    %v8604 = vunpack.c.l.b16 %v8277
    %v8605 = vunpack.c.l.b16 %v8278
    %v8606 = vunpack.c.h.b16 %v8278
    %v8607 = vunpack.c.l.b16 %v8279
    %v8608 = vunpack.c.l.b16 %v8280
    %v8609 = vunpack.c.h.b16 %v8280
    %v8610 = vunpack.c.l.b16 %v8281
    %v8611 = vunpack.c.l.b16 %v8282
    %v8612 = vunpack.c.h.b16 %v8282
    %v8613 = vunpack.c.l.b16 %v8283
    %v8614 = vunpack.c.l.b16 %v8284
    %v8615 = vunpack.c.h.b16 %v8284
    %v8616 = vunpack.c.l.b16 %v8285
    %v8617 = vunpack.c.l.b16 %v8286
    %v8618 = vunpack.c.h.b16 %v8286
    %v8619 = vunpack.c.l.b16 %v8287
    %v8620 = vpack.c.b16 %v8431, %v8428
    %v8621 = vpack.c.b16 %v8432, %v8429
    %v8622 = vpack.c.b16 %v8433, %v8430
    %v8623 = vpack.c.b16 %v8437, %v8434
    %v8624 = vpack.c.b16 %v8438, %v8435
    %v8625 = vpack.c.b16 %v8439, %v8436
    %v8626 = vpack.c.b16 %v8443, %v8440
    %v8627 = vpack.c.b16 %v8444, %v8441
    %v8628 = vpack.c.b16 %v8445, %v8442
    %v8629 = vpack.c.b16 %v8449, %v8446
    %v8630 = vpack.c.b16 %v8450, %v8447
    %v8631 = vpack.c.b16 %v8451, %v8448
    %v8632 = vpack.c.b16 %v8455, %v8452
    %v8633 = vpack.c.b16 %v8456, %v8453
    %v8634 = vpack.c.b16 %v8457, %v8454
    %v8635 = vpack.c.b16 %v8461, %v8458
    %v8636 = vpack.c.b16 %v8462, %v8459
    %v8637 = vpack.c.b16 %v8463, %v8460
    %v8638 = vpack.c.b16 %v8467, %v8464
    %v8639 = vpack.c.b16 %v8468, %v8465
    %v8640 = vpack.c.b16 %v8469, %v8466
    %v8641 = vpack.c.b16 %v8473, %v8470
    %v8642 = vpack.c.b16 %v8474, %v8471
    %v8643 = vpack.c.b16 %v8475, %v8472
    %v8644 = vpack.c.b16 %v8479, %v8476
    %v8645 = vpack.c.b16 %v8480, %v8477
    %v8646 = vpack.c.b16 %v8481, %v8478
    %v8647 = vpack.c.b16 %v8485, %v8482
    %v8648 = vpack.c.b16 %v8486, %v8483
    %v8649 = vpack.c.b16 %v8487, %v8484
    %v8650 = vpack.c.b16 %v8491, %v8488
    %v8651 = vpack.c.b16 %v8492, %v8489
    %v8652 = vpack.c.b16 %v8493, %v8490
    %v8653 = vpack.c.b16 %v8497, %v8494
    %v8654 = vpack.c.b16 %v8498, %v8495
    %v8655 = vpack.c.b16 %v8499, %v8496
    %v8656 = vpack.c.b16 %v8503, %v8500
    %v8657 = vpack.c.b16 %v8504, %v8501
    %v8658 = vpack.c.b16 %v8505, %v8502
    %v8659 = vpack.c.b16 %v8509, %v8506
    %v8660 = vpack.c.b16 %v8510, %v8507
    %v8661 = vpack.c.b16 %v8511, %v8508
    %v8662 = vpack.c.b16 %v8515, %v8512
    %v8663 = vpack.c.b16 %v8516, %v8513
    %v8664 = vpack.c.b16 %v8517, %v8514
    %v8665 = vpack.c.b16 %v8521, %v8518
    %v8666 = vpack.c.b16 %v8522, %v8519
    %v8667 = vpack.c.b16 %v8523, %v8520
    %v8668 = vpack.c.b16 %v8527, %v8524
    %v8669 = vpack.c.b16 %v8528, %v8525
    %v8670 = vpack.c.b16 %v8529, %v8526
    %v8671 = vpack.c.b16 %v8533, %v8530
    %v8672 = vpack.c.b16 %v8534, %v8531
    %v8673 = vpack.c.b16 %v8535, %v8532
    %v8674 = vpack.c.b16 %v8539, %v8536
    %v8675 = vpack.c.b16 %v8540, %v8537
    %v8676 = vpack.c.b16 %v8541, %v8538
    %v8677 = vpack.c.b16 %v8545, %v8542
    %v8678 = vpack.c.b16 %v8546, %v8543
    %v8679 = vpack.c.b16 %v8547, %v8544
    %v8680 = vpack.c.b16 %v8551, %v8548
    %v8681 = vpack.c.b16 %v8552, %v8549
    %v8682 = vpack.c.b16 %v8553, %v8550
    %v8683 = vpack.c.b16 %v8557, %v8554
    %v8684 = vpack.c.b16 %v8558, %v8555
    %v8685 = vpack.c.b16 %v8559, %v8556
    %v8686 = vpack.c.b16 %v8563, %v8560
    %v8687 = vpack.c.b16 %v8564, %v8561
    %v8688 = vpack.c.b16 %v8565, %v8562
    %v8689 = vpack.c.b16 %v8569, %v8566
    %v8690 = vpack.c.b16 %v8570, %v8567
    %v8691 = vpack.c.b16 %v8571, %v8568
    %v8692 = vpack.c.b16 %v8575, %v8572
    %v8693 = vpack.c.b16 %v8576, %v8573
    %v8694 = vpack.c.b16 %v8577, %v8574
    %v8695 = vpack.c.b16 %v8581, %v8578
    %v8696 = vpack.c.b16 %v8582, %v8579
    %v8697 = vpack.c.b16 %v8583, %v8580
    %v8698 = vpack.c.b16 %v8587, %v8584
    %v8699 = vpack.c.b16 %v8588, %v8585
    %v8700 = vpack.c.b16 %v8589, %v8586
    %v8701 = vpack.c.b16 %v8593, %v8590
    %v8702 = vpack.c.b16 %v8594, %v8591
    %v8703 = vpack.c.b16 %v8595, %v8592
    %v8704 = vpack.c.b16 %v8599, %v8596
    %v8705 = vpack.c.b16 %v8600, %v8597
    %v8706 = vpack.c.b16 %v8601, %v8598
    %v8707 = vpack.c.b16 %v8605, %v8602
    %v8708 = vpack.c.b16 %v8606, %v8603
    %v8709 = vpack.c.b16 %v8607, %v8604
    %v8710 = vpack.c.b16 %v8611, %v8608
    %v8711 = vpack.c.b16 %v8612, %v8609
    %v8712 = vpack.c.b16 %v8613, %v8610
    %v8713 = vpack.c.b16 %v8617, %v8614
    %v8714 = vpack.c.b16 %v8618, %v8615
    %v8715 = vpack.c.b16 %v8619, %v8616
    %8812 = vmatpush.bf16.msra.mxu0 %v8641
    %8813 = vmatpush.bf16.msra.mxu0 %v8638
    %8814 = vmatpush.bf16.msra.mxu0 %v8635
    %8815 = vmatpush.bf16.msra.mxu0 %v8632
    %8816 = vmatpush.bf16.msra.mxu0 %v8629
    %8817 = vmatpush.bf16.msra.mxu0 %v8626
    %8818 = vmatpush.bf16.msra.mxu0 %v8623
    %8819 = vmatpush.bf16.msra.mxu0 %v8620
    %8820 = vmatmul.bf16.gmra.mxu0 %v8288
    %v8821 = vpop.f32.mrf.mxu0
    %v8822 = vadd.f32 %v8294, %v8821
    %v8823 = vpop.f32.mrf.mxu0
    %8824 = vdwg.mxu0
    %8825 = vmatpush.bf16.msra.mxu0 %v8665
    %8826 = vmatpush.bf16.msra.mxu0 %v8662
    %8827 = vmatpush.bf16.msra.mxu0 %v8659
    %8828 = vmatpush.bf16.msra.mxu0 %v8656
    %8829 = vmatpush.bf16.msra.mxu0 %v8653
    %8830 = vmatpush.bf16.msra.mxu0 %v8650
    %8831 = vmatpush.bf16.msra.mxu0 %v8647
    %8832 = vmatpush.bf16.msra.mxu0 %v8644
    %8833 = vmatmul.bf16.gmra.mxu0 %v8289
    %v8834 = vpop.f32.mrf.mxu0
    %v8835 = vadd.f32 %v8822, %v8834
    %v8836 = vpop.f32.mrf.mxu0
    %8837 = vdwg.mxu0
    %8838 = vmatpush.bf16.msra.mxu0 %v8689
    %8839 = vmatpush.bf16.msra.mxu0 %v8686
    %8840 = vmatpush.bf16.msra.mxu0 %v8683
    %8841 = vmatpush.bf16.msra.mxu0 %v8680
    %8842 = vmatpush.bf16.msra.mxu0 %v8677
    %8843 = vmatpush.bf16.msra.mxu0 %v8674
    %8844 = vmatpush.bf16.msra.mxu0 %v8671
    %8845 = vmatpush.bf16.msra.mxu0 %v8668
    %8846 = vmatmul.bf16.gmra.mxu0 %v8290
    %v8847 = vpop.f32.mrf.mxu0
    %v8848 = vadd.f32 %v8835, %v8847
    %v8849 = vpop.f32.mrf.mxu0
    %8850 = vdwg.mxu0
    %8851 = vmatpush.bf16.msra.mxu0 %v8713
    %8852 = vmatpush.bf16.msra.mxu0 %v8710
    %8853 = vmatpush.bf16.msra.mxu0 %v8707
    %8854 = vmatpush.bf16.msra.mxu0 %v8704
    %8855 = vmatpush.bf16.msra.mxu0 %v8701
    %8856 = vmatpush.bf16.msra.mxu0 %v8698
    %8857 = vmatpush.bf16.msra.mxu0 %v8695
    %8858 = vmatpush.bf16.msra.mxu0 %v8692
    %8859 = vmatmul.bf16.gmra.mxu0 %v8291
    %v8860 = vpop.f32.mrf.mxu0
    %v8861 = vadd.f32 %v8848, %v8860
    %v8862 = vpop.f32.mrf.mxu0
    %8863 = vdwg.mxu0
    %8864 = vmatpush.bf16.msra.mxu0 %v8642
    %8865 = vmatpush.bf16.msra.mxu0 %v8639
    %8866 = vmatpush.bf16.msra.mxu0 %v8636
    %8867 = vmatpush.bf16.msra.mxu0 %v8633
    %8868 = vmatpush.bf16.msra.mxu0 %v8630
    %8869 = vmatpush.bf16.msra.mxu0 %v8627
    %8870 = vmatpush.bf16.msra.mxu0 %v8624
    %8871 = vmatpush.bf16.msra.mxu0 %v8621
    %8872 = vmatmul.bf16.gmra.mxu0 %v8288
    %v8873 = vpop.f32.mrf.mxu0
    %v8874 = vadd.f32 %v8295, %v8873
    %v8875 = vpop.f32.mrf.mxu0
    %8876 = vdwg.mxu0
    %8877 = vmatpush.bf16.msra.mxu0 %v8666
    %8878 = vmatpush.bf16.msra.mxu0 %v8663
    %8879 = vmatpush.bf16.msra.mxu0 %v8660
    %8880 = vmatpush.bf16.msra.mxu0 %v8657
    %8881 = vmatpush.bf16.msra.mxu0 %v8654
    %8882 = vmatpush.bf16.msra.mxu0 %v8651
    %8883 = vmatpush.bf16.msra.mxu0 %v8648
    %8884 = vmatpush.bf16.msra.mxu0 %v8645
    %8885 = vmatmul.bf16.gmra.mxu0 %v8289
    %v8886 = vpop.f32.mrf.mxu0
    %v8887 = vadd.f32 %v8874, %v8886
    %v8888 = vpop.f32.mrf.mxu0
    %8889 = vdwg.mxu0
    %8890 = vmatpush.bf16.msra.mxu0 %v8690
    %8891 = vmatpush.bf16.msra.mxu0 %v8687
    %8892 = vmatpush.bf16.msra.mxu0 %v8684
    %8893 = vmatpush.bf16.msra.mxu0 %v8681
    %8894 = vmatpush.bf16.msra.mxu0 %v8678
    %8895 = vmatpush.bf16.msra.mxu0 %v8675
    %8896 = vmatpush.bf16.msra.mxu0 %v8672
    %8897 = vmatpush.bf16.msra.mxu0 %v8669
    %8898 = vmatmul.bf16.gmra.mxu0 %v8290
    %v8899 = vpop.f32.mrf.mxu0
    %v8900 = vadd.f32 %v8887, %v8899
    %v8901 = vpop.f32.mrf.mxu0
    %8902 = vdwg.mxu0
    %8903 = vmatpush.bf16.msra.mxu0 %v8714
    %8904 = vmatpush.bf16.msra.mxu0 %v8711
    %8905 = vmatpush.bf16.msra.mxu0 %v8708
    %8906 = vmatpush.bf16.msra.mxu0 %v8705
    %8907 = vmatpush.bf16.msra.mxu0 %v8702
    %8908 = vmatpush.bf16.msra.mxu0 %v8699
    %8909 = vmatpush.bf16.msra.mxu0 %v8696
    %8910 = vmatpush.bf16.msra.mxu0 %v8693
    %8911 = vmatmul.bf16.gmra.mxu0 %v8291
    %v8912 = vpop.f32.mrf.mxu0
    %v8913 = vadd.f32 %v8900, %v8912
    %v8914 = vpop.f32.mrf.mxu0
    %8915 = vdwg.mxu0
    %8916 = vmatpush.bf16.msra.mxu0 %v8643
    %8917 = vmatpush.bf16.msra.mxu0 %v8640
    %8918 = vmatpush.bf16.msra.mxu0 %v8637
    %8919 = vmatpush.bf16.msra.mxu0 %v8634
    %8920 = vmatpush.bf16.msra.mxu0 %v8631
    %8921 = vmatpush.bf16.msra.mxu0 %v8628
    %8922 = vmatpush.bf16.msra.mxu0 %v8625
    %8923 = vmatpush.bf16.msra.mxu0 %v8622
    %8924 = vmatmul.bf16.gmra.mxu0 %v8288
    %v8925 = vpop.f32.mrf.mxu0
    %v8926 = vadd.f32 %v8296, %v8925
    %v8927 = vpop.f32.mrf.mxu0
    %8928 = vdwg.mxu0
    %8929 = vmatpush.bf16.msra.mxu0 %v8667
    %8930 = vmatpush.bf16.msra.mxu0 %v8664
    %8931 = vmatpush.bf16.msra.mxu0 %v8661
    %8932 = vmatpush.bf16.msra.mxu0 %v8658
    %8933 = vmatpush.bf16.msra.mxu0 %v8655
    %8934 = vmatpush.bf16.msra.mxu0 %v8652
    %8935 = vmatpush.bf16.msra.mxu0 %v8649
    %8936 = vmatpush.bf16.msra.mxu0 %v8646
    %8937 = vmatmul.bf16.gmra.mxu0 %v8289
    %v8938 = vpop.f32.mrf.mxu0
    %v8939 = vadd.f32 %v8926, %v8938
    %v8940 = vpop.f32.mrf.mxu0
    %8941 = vdwg.mxu0
    %8942 = vmatpush.bf16.msra.mxu0 %v8691
    %8943 = vmatpush.bf16.msra.mxu0 %v8688
    %8944 = vmatpush.bf16.msra.mxu0 %v8685
    %8945 = vmatpush.bf16.msra.mxu0 %v8682
    %8946 = vmatpush.bf16.msra.mxu0 %v8679
    %8947 = vmatpush.bf16.msra.mxu0 %v8676
    %8948 = vmatpush.bf16.msra.mxu0 %v8673
    %8949 = vmatpush.bf16.msra.mxu0 %v8670
    %8950 = vmatmul.bf16.gmra.mxu0 %v8290
    %v8951 = vpop.f32.mrf.mxu0
    %v8952 = vadd.f32 %v8939, %v8951
    %v8953 = vpop.f32.mrf.mxu0
    %8954 = vdwg.mxu0
    %8955 = vmatpush.bf16.msra.mxu0 %v8715
    %8956 = vmatpush.bf16.msra.mxu0 %v8712
    %8957 = vmatpush.bf16.msra.mxu0 %v8709
    %8958 = vmatpush.bf16.msra.mxu0 %v8706
    %8959 = vmatpush.bf16.msra.mxu0 %v8703
    %8960 = vmatpush.bf16.msra.mxu0 %v8700
    %8961 = vmatpush.bf16.msra.mxu0 %v8697
    %8962 = vmatpush.bf16.msra.mxu0 %v8694
    %8963 = vmatmul.bf16.gmra.mxu0 %v8291
    %v8964 = vpop.f32.mrf.mxu0
    %v8965 = vadd.f32 %v8952, %v8964
    %v8966 = vpop.f32.mrf.mxu0
    %8967 = vdwg.mxu0
    %s8968 = sld [smem:[#allocation2 + $0x4]]
    %vm8969 = vcmp.ge.f32.partialorder %v8861, 0.0
    %vm8970 = vcmp.ge.f32.partialorder %v8913, 0.0
    %vm8971 = vcmp.ge.f32.partialorder %v8965, 0.0
    %v8972 = vstv %s8968
    %v8973 = vmul.f32 %v8972, %v8861
    %v8974 = vmul.f32 %v8972, %v8913
    %v8975 = vmul.f32 %v8972, %v8965
    %v8976 = vsel %vm8969, %v8861, %v8973
    %v8977 = vsel %vm8970, %v8913, %v8974
    %v8978 = vsel %vm8971, %v8965, %v8975
    %v8979 = vld [vmem:[#allocation15] sm:$0xff]
    %v8980 = vld [vmem:[#allocation15 + $0x8] sm:$0xff]
    %v8981 = vld [vmem:[#allocation15 + $0x10] sm:$0xff]
    %v8982 = vld [vmem:[#allocation15 + $0x18] sm:$0xff]
    %v8983 = vld [vmem:[#allocation15 + $0x20] sm:$0xff]
    %v8984 = vld [vmem:[#allocation15 + $0x28] sm:$0xff]
    %v8985 = vld [vmem:[#allocation15 + $0x30] sm:$0xff]
    %v8986 = vld [vmem:[#allocation15 + $0x38] sm:$0xff]
    %v8987 = vld [vmem:[#allocation15 + $0x40] sm:$0xff]
    %v8988 = vld [vmem:[#allocation15 + $0x48] sm:$0xff]
    %v8989 = vld [vmem:[#allocation15 + $0x50] sm:$0xff]
    %v8990 = vld [vmem:[#allocation15 + $0x58] sm:$0xff]
    %v8991 = vld [vmem:[#allocation15 + $0x60] sm:$0xff]
    %v8992 = vld [vmem:[#allocation15 + $0x68] sm:$0xff]
    %v8993 = vld [vmem:[#allocation15 + $0x70] sm:$0xff]
    %v8994 = vld [vmem:[#allocation15 + $0x78] sm:$0xff]
    %v8995 = vld [vmem:[#allocation15 + $0x80] sm:$0xff]
    %v8996 = vld [vmem:[#allocation15 + $0x88] sm:$0xff]
    %v8997 = vld [vmem:[#allocation15 + $0x90] sm:$0xff]
    %v8998 = vld [vmem:[#allocation15 + $0x98] sm:$0xff]
    %v8999 = vld [vmem:[#allocation15 + $0xa0] sm:$0xff]
    %v9000 = vld [vmem:[#allocation15 + $0xa8] sm:$0xff]
    %v9001 = vld [vmem:[#allocation15 + $0xb0] sm:$0xff]
    %v9002 = vld [vmem:[#allocation15 + $0xb8] sm:$0xff]
    %v9003 = vld [vmem:[#allocation15 + $0xc0] sm:$0xff]
    %v9004 = vld [vmem:[#allocation15 + $0xc8] sm:$0xff]
    %v9005 = vld [vmem:[#allocation15 + $0xd0] sm:$0xff]
    %v9006 = vld [vmem:[#allocation15 + $0xd8] sm:$0xff]
    %v9007 = vld [vmem:[#allocation15 + $0xe0] sm:$0xff]
    %v9008 = vld [vmem:[#allocation15 + $0xe8] sm:$0xff]
    %v9009 = vld [vmem:[#allocation15 + $0xf0] sm:$0xff]
    %v9010 = vld [vmem:[#allocation15 + $0xf8] sm:$0xff]
    %v9011 = vld [vmem:[#allocation15 + $0x100] sm:$0xff]
    %v9012 = vld [vmem:[#allocation15 + $0x108] sm:$0xff]
    %v9013 = vld [vmem:[#allocation15 + $0x110] sm:$0xff]
    %v9014 = vld [vmem:[#allocation15 + $0x118] sm:$0xff]
    %v9015 = vld [vmem:[#allocation15 + $0x120] sm:$0xff]
    %v9016 = vld [vmem:[#allocation15 + $0x128] sm:$0xff]
    %v9017 = vld [vmem:[#allocation15 + $0x130] sm:$0xff]
    %v9018 = vld [vmem:[#allocation15 + $0x138] sm:$0xff]
    %v9019 = vld [vmem:[#allocation15 + $0x140] sm:$0xff]
    %v9020 = vld [vmem:[#allocation15 + $0x148] sm:$0xff]
    %v9021 = vld [vmem:[#allocation15 + $0x150] sm:$0xff]
    %v9022 = vld [vmem:[#allocation15 + $0x158] sm:$0xff]
    %v9023 = vld [vmem:[#allocation15 + $0x160] sm:$0xff]
    %v9024 = vld [vmem:[#allocation15 + $0x168] sm:$0xff]
    %v9025 = vld [vmem:[#allocation15 + $0x170] sm:$0xff]
    %v9026 = vld [vmem:[#allocation15 + $0x178] sm:$0xff]
    %v9027 = vpack.c.bf16 %v8976, %v8976
    %v9028 = vpack.c.bf16 %v8977, %v8977
    %v9029 = vpack.c.bf16 %v8978, %v8978
    %v9030 = vld [vmem:[#allocation6 + $0x1c] sm:$0x3]
    %v9032 = vperm.slane %v9030, 0
    %v9033 = vperm.slane %v9030, 1
    %v9084 = vunpack.c.l.b16 %v8979
    %v9085 = vunpack.c.h.b16 %v8979
    %v9086 = vunpack.c.l.b16 %v8980
    %v9087 = vunpack.c.h.b16 %v8980
    %v9088 = vunpack.c.l.b16 %v8981
    %v9089 = vunpack.c.h.b16 %v8981
    %v9090 = vunpack.c.l.b16 %v8982
    %v9091 = vunpack.c.h.b16 %v8982
    %v9092 = vunpack.c.l.b16 %v8983
    %v9093 = vunpack.c.h.b16 %v8983
    %v9094 = vunpack.c.l.b16 %v8984
    %v9095 = vunpack.c.h.b16 %v8984
    %v9096 = vunpack.c.l.b16 %v8985
    %v9097 = vunpack.c.h.b16 %v8985
    %v9098 = vunpack.c.l.b16 %v8986
    %v9099 = vunpack.c.h.b16 %v8986
    %v9100 = vunpack.c.l.b16 %v8987
    %v9101 = vunpack.c.h.b16 %v8987
    %v9102 = vunpack.c.l.b16 %v8988
    %v9103 = vunpack.c.h.b16 %v8988
    %v9104 = vunpack.c.l.b16 %v8989
    %v9105 = vunpack.c.h.b16 %v8989
    %v9106 = vunpack.c.l.b16 %v8990
    %v9107 = vunpack.c.h.b16 %v8990
    %v9108 = vunpack.c.l.b16 %v8991
    %v9109 = vunpack.c.h.b16 %v8991
    %v9110 = vunpack.c.l.b16 %v8992
    %v9111 = vunpack.c.h.b16 %v8992
    %v9112 = vunpack.c.l.b16 %v8993
    %v9113 = vunpack.c.h.b16 %v8993
    %v9114 = vunpack.c.l.b16 %v8994
    %v9115 = vunpack.c.h.b16 %v8994
    %v9116 = vunpack.c.l.b16 %v8995
    %v9117 = vunpack.c.h.b16 %v8995
    %v9118 = vunpack.c.l.b16 %v8996
    %v9119 = vunpack.c.h.b16 %v8996
    %v9120 = vunpack.c.l.b16 %v8997
    %v9121 = vunpack.c.h.b16 %v8997
    %v9122 = vunpack.c.l.b16 %v8998
    %v9123 = vunpack.c.h.b16 %v8998
    %v9124 = vunpack.c.l.b16 %v8999
    %v9125 = vunpack.c.h.b16 %v8999
    %v9126 = vunpack.c.l.b16 %v9000
    %v9127 = vunpack.c.h.b16 %v9000
    %v9128 = vunpack.c.l.b16 %v9001
    %v9129 = vunpack.c.h.b16 %v9001
    %v9130 = vunpack.c.l.b16 %v9002
    %v9131 = vunpack.c.h.b16 %v9002
    %v9132 = vunpack.c.l.b16 %v9003
    %v9133 = vunpack.c.h.b16 %v9003
    %v9134 = vunpack.c.l.b16 %v9004
    %v9135 = vunpack.c.h.b16 %v9004
    %v9136 = vunpack.c.l.b16 %v9005
    %v9137 = vunpack.c.h.b16 %v9005
    %v9138 = vunpack.c.l.b16 %v9006
    %v9139 = vunpack.c.h.b16 %v9006
    %v9140 = vunpack.c.l.b16 %v9007
    %v9141 = vunpack.c.h.b16 %v9007
    %v9142 = vunpack.c.l.b16 %v9008
    %v9143 = vunpack.c.h.b16 %v9008
    %v9144 = vunpack.c.l.b16 %v9009
    %v9145 = vunpack.c.h.b16 %v9009
    %v9146 = vunpack.c.l.b16 %v9010
    %v9147 = vunpack.c.h.b16 %v9010
    %v9148 = vunpack.c.l.b16 %v9011
    %v9149 = vunpack.c.h.b16 %v9011
    %v9150 = vunpack.c.l.b16 %v9012
    %v9151 = vunpack.c.h.b16 %v9012
    %v9152 = vunpack.c.l.b16 %v9013
    %v9153 = vunpack.c.h.b16 %v9013
    %v9154 = vunpack.c.l.b16 %v9014
    %v9155 = vunpack.c.h.b16 %v9014
    %v9156 = vunpack.c.l.b16 %v9015
    %v9157 = vunpack.c.h.b16 %v9015
    %v9158 = vunpack.c.l.b16 %v9016
    %v9159 = vunpack.c.h.b16 %v9016
    %v9160 = vunpack.c.l.b16 %v9017
    %v9161 = vunpack.c.h.b16 %v9017
    %v9162 = vunpack.c.l.b16 %v9018
    %v9163 = vunpack.c.h.b16 %v9018
    %v9164 = vunpack.c.l.b16 %v9019
    %v9165 = vunpack.c.h.b16 %v9019
    %v9166 = vunpack.c.l.b16 %v9020
    %v9167 = vunpack.c.h.b16 %v9020
    %v9168 = vunpack.c.l.b16 %v9021
    %v9169 = vunpack.c.h.b16 %v9021
    %v9170 = vunpack.c.l.b16 %v9022
    %v9171 = vunpack.c.h.b16 %v9022
    %v9172 = vunpack.c.l.b16 %v9023
    %v9173 = vunpack.c.h.b16 %v9023
    %v9174 = vunpack.c.l.b16 %v9024
    %v9175 = vunpack.c.h.b16 %v9024
    %v9176 = vunpack.c.l.b16 %v9025
    %v9177 = vunpack.c.h.b16 %v9025
    %v9178 = vunpack.c.l.b16 %v9026
    %v9179 = vunpack.c.h.b16 %v9026
    %v9180 = vpack.c.b16 %v9086, %v9084
    %v9181 = vpack.c.b16 %v9087, %v9085
    %v9182 = vpack.c.b16 %v9090, %v9088
    %v9183 = vpack.c.b16 %v9091, %v9089
    %v9184 = vpack.c.b16 %v9094, %v9092
    %v9185 = vpack.c.b16 %v9095, %v9093
    %v9186 = vpack.c.b16 %v9098, %v9096
    %v9187 = vpack.c.b16 %v9099, %v9097
    %v9188 = vpack.c.b16 %v9102, %v9100
    %v9189 = vpack.c.b16 %v9103, %v9101
    %v9190 = vpack.c.b16 %v9106, %v9104
    %v9191 = vpack.c.b16 %v9107, %v9105
    %v9192 = vpack.c.b16 %v9110, %v9108
    %v9193 = vpack.c.b16 %v9111, %v9109
    %v9194 = vpack.c.b16 %v9114, %v9112
    %v9195 = vpack.c.b16 %v9115, %v9113
    %v9196 = vpack.c.b16 %v9118, %v9116
    %v9197 = vpack.c.b16 %v9119, %v9117
    %v9198 = vpack.c.b16 %v9122, %v9120
    %v9199 = vpack.c.b16 %v9123, %v9121
    %v9200 = vpack.c.b16 %v9126, %v9124
    %v9201 = vpack.c.b16 %v9127, %v9125
    %v9202 = vpack.c.b16 %v9130, %v9128
    %v9203 = vpack.c.b16 %v9131, %v9129
    %v9204 = vpack.c.b16 %v9134, %v9132
    %v9205 = vpack.c.b16 %v9135, %v9133
    %v9206 = vpack.c.b16 %v9138, %v9136
    %v9207 = vpack.c.b16 %v9139, %v9137
    %v9208 = vpack.c.b16 %v9142, %v9140
    %v9209 = vpack.c.b16 %v9143, %v9141
    %v9210 = vpack.c.b16 %v9146, %v9144
    %v9211 = vpack.c.b16 %v9147, %v9145
    %v9212 = vpack.c.b16 %v9150, %v9148
    %v9213 = vpack.c.b16 %v9151, %v9149
    %v9214 = vpack.c.b16 %v9154, %v9152
    %v9215 = vpack.c.b16 %v9155, %v9153
    %v9216 = vpack.c.b16 %v9158, %v9156
    %v9217 = vpack.c.b16 %v9159, %v9157
    %v9218 = vpack.c.b16 %v9162, %v9160
    %v9219 = vpack.c.b16 %v9163, %v9161
    %v9220 = vpack.c.b16 %v9166, %v9164
    %v9221 = vpack.c.b16 %v9167, %v9165
    %v9222 = vpack.c.b16 %v9170, %v9168
    %v9223 = vpack.c.b16 %v9171, %v9169
    %v9224 = vpack.c.b16 %v9174, %v9172
    %v9225 = vpack.c.b16 %v9175, %v9173
    %v9226 = vpack.c.b16 %v9178, %v9176
    %v9227 = vpack.c.b16 %v9179, %v9177
    %9276 = vmatpush.bf16.msra.mxu0 %v9194
    %9277 = vmatpush.bf16.msra.mxu0 %v9192
    %9278 = vmatpush.bf16.msra.mxu0 %v9190
    %9279 = vmatpush.bf16.msra.mxu0 %v9188
    %9280 = vmatpush.bf16.msra.mxu0 %v9186
    %9281 = vmatpush.bf16.msra.mxu0 %v9184
    %9282 = vmatpush.bf16.msra.mxu0 %v9182
    %9283 = vmatpush.bf16.msra.mxu0 %v9180
    %9284 = vmatmul.bf16.gmra.mxu0 %v9027
    %v9285 = vpop.f32.mrf.mxu0
    %v9286 = vadd.f32 %v9032, %v9285
    %v9287 = vpop.f32.mrf.mxu0
    %9288 = vdwg.mxu0
    %9289 = vmatpush.bf16.msra.mxu0 %v9210
    %9290 = vmatpush.bf16.msra.mxu0 %v9208
    %9291 = vmatpush.bf16.msra.mxu0 %v9206
    %9292 = vmatpush.bf16.msra.mxu0 %v9204
    %9293 = vmatpush.bf16.msra.mxu0 %v9202
    %9294 = vmatpush.bf16.msra.mxu0 %v9200
    %9295 = vmatpush.bf16.msra.mxu0 %v9198
    %9296 = vmatpush.bf16.msra.mxu0 %v9196
    %9297 = vmatmul.bf16.gmra.mxu0 %v9028
    %v9298 = vpop.f32.mrf.mxu0
    %v9299 = vadd.f32 %v9286, %v9298
    %v9300 = vpop.f32.mrf.mxu0
    %9301 = vdwg.mxu0
    %9302 = vmatpush.bf16.msra.mxu0 %v9226
    %9303 = vmatpush.bf16.msra.mxu0 %v9224
    %9304 = vmatpush.bf16.msra.mxu0 %v9222
    %9305 = vmatpush.bf16.msra.mxu0 %v9220
    %9306 = vmatpush.bf16.msra.mxu0 %v9218
    %9307 = vmatpush.bf16.msra.mxu0 %v9216
    %9308 = vmatpush.bf16.msra.mxu0 %v9214
    %9309 = vmatpush.bf16.msra.mxu0 %v9212
    %9310 = vmatmul.bf16.gmra.mxu0 %v9029
    %v9311 = vpop.f32.mrf.mxu0
    %v9312 = vadd.f32 %v9299, %v9311
    %v9313 = vpop.f32.mrf.mxu0
    %9314 = vdwg.mxu0
    %9315 = vmatpush.bf16.msra.mxu0 %v9195
    %9316 = vmatpush.bf16.msra.mxu0 %v9193
    %9317 = vmatpush.bf16.msra.mxu0 %v9191
    %9318 = vmatpush.bf16.msra.mxu0 %v9189
    %9319 = vmatpush.bf16.msra.mxu0 %v9187
    %9320 = vmatpush.bf16.msra.mxu0 %v9185
    %9321 = vmatpush.bf16.msra.mxu0 %v9183
    %9322 = vmatpush.bf16.msra.mxu0 %v9181
    %9323 = vmatmul.bf16.gmra.mxu0 %v9027
    %v9324 = vpop.f32.mrf.mxu0
    %v9325 = vadd.f32 %v9033, %v9324
    %v9326 = vpop.f32.mrf.mxu0
    %9327 = vdwg.mxu0
    %9328 = vmatpush.bf16.msra.mxu0 %v9211
    %9329 = vmatpush.bf16.msra.mxu0 %v9209
    %9330 = vmatpush.bf16.msra.mxu0 %v9207
    %9331 = vmatpush.bf16.msra.mxu0 %v9205
    %9332 = vmatpush.bf16.msra.mxu0 %v9203
    %9333 = vmatpush.bf16.msra.mxu0 %v9201
    %9334 = vmatpush.bf16.msra.mxu0 %v9199
    %9335 = vmatpush.bf16.msra.mxu0 %v9197
    %9336 = vmatmul.bf16.gmra.mxu0 %v9028
    %v9337 = vpop.f32.mrf.mxu0
    %v9338 = vadd.f32 %v9325, %v9337
    %v9339 = vpop.f32.mrf.mxu0
    %9340 = vdwg.mxu0
    %9341 = vmatpush.bf16.msra.mxu0 %v9227
    %9342 = vmatpush.bf16.msra.mxu0 %v9225
    %9343 = vmatpush.bf16.msra.mxu0 %v9223
    %9344 = vmatpush.bf16.msra.mxu0 %v9221
    %9345 = vmatpush.bf16.msra.mxu0 %v9219
    %9346 = vmatpush.bf16.msra.mxu0 %v9217
    %9347 = vmatpush.bf16.msra.mxu0 %v9215
    %9348 = vmatpush.bf16.msra.mxu0 %v9213
    %9349 = vmatmul.bf16.gmra.mxu0 %v9029
    %v9350 = vpop.f32.mrf.mxu0
    %v9351 = vadd.f32 %v9338, %v9350
    %v9352 = vpop.f32.mrf.mxu0
    %9353 = vdwg.mxu0
    %s9354 = sld [smem:[#allocation2 + $0x5]]
    %vm9355 = vcmp.ge.f32.partialorder %v9312, 0.0
    %vm9356 = vcmp.ge.f32.partialorder %v9351, 0.0
    %v9357 = vstv %s9354
    %v9358 = vmul.f32 %v9357, %v9312
    %v9359 = vmul.f32 %v9357, %v9351
    %v9360 = vsel %vm9355, %v9312, %v9358
    %v9361 = vsel %vm9356, %v9351, %v9359
    %v9362 = vld [vmem:[#allocation16] sm:$0xf]
    %v9363 = vld [vmem:[#allocation16 + $0x4] sm:$0xf]
    %v9364 = vld [vmem:[#allocation16 + $0x8] sm:$0xf]
    %v9365 = vld [vmem:[#allocation16 + $0xc] sm:$0xf]
    %v9366 = vld [vmem:[#allocation16 + $0x10] sm:$0xf]
    %v9367 = vld [vmem:[#allocation16 + $0x14] sm:$0xf]
    %v9368 = vld [vmem:[#allocation16 + $0x18] sm:$0xf]
    %v9369 = vld [vmem:[#allocation16 + $0x1c] sm:$0xf]
    %v9370 = vld [vmem:[#allocation16 + $0x20] sm:$0xf]
    %v9371 = vld [vmem:[#allocation16 + $0x24] sm:$0xf]
    %v9372 = vld [vmem:[#allocation16 + $0x28] sm:$0xf]
    %v9373 = vld [vmem:[#allocation16 + $0x2c] sm:$0xf]
    %v9374 = vld [vmem:[#allocation16 + $0x30] sm:$0xf]
    %v9375 = vld [vmem:[#allocation16 + $0x34] sm:$0xf]
    %v9376 = vld [vmem:[#allocation16 + $0x38] sm:$0xf]
    %v9377 = vld [vmem:[#allocation16 + $0x3c] sm:$0xf]
    %v9378 = vld [vmem:[#allocation16 + $0x40] sm:$0xf]
    %v9379 = vld [vmem:[#allocation16 + $0x44] sm:$0xf]
    %v9380 = vld [vmem:[#allocation16 + $0x48] sm:$0xf]
    %v9381 = vld [vmem:[#allocation16 + $0x4c] sm:$0xf]
    %v9382 = vld [vmem:[#allocation16 + $0x50] sm:$0xf]
    %v9383 = vld [vmem:[#allocation16 + $0x54] sm:$0xf]
    %v9384 = vld [vmem:[#allocation16 + $0x58] sm:$0xf]
    %v9385 = vld [vmem:[#allocation16 + $0x5c] sm:$0xf]
    %v9386 = vld [vmem:[#allocation16 + $0x60] sm:$0xf]
    %v9387 = vld [vmem:[#allocation16 + $0x64] sm:$0xf]
    %v9388 = vld [vmem:[#allocation16 + $0x68] sm:$0xf]
    %v9389 = vld [vmem:[#allocation16 + $0x6c] sm:$0xf]
    %v9390 = vld [vmem:[#allocation16 + $0x70] sm:$0xf]
    %v9391 = vld [vmem:[#allocation16 + $0x74] sm:$0xf]
    %v9392 = vld [vmem:[#allocation16 + $0x78] sm:$0xf]
    %v9393 = vld [vmem:[#allocation16 + $0x7c] sm:$0xf]
    %v9394 = vpack.c.bf16 %v9360, %v9360
    %v9395 = vpack.c.bf16 %v9361, %v9361
    %v9396 = vld [vmem:[#allocation6 + $0x1e] sm:$0x1]
    %v9398 = vperm.slane %v9396, 0
    %v9432 = vunpack.c.l.b16 %v9362
    %v9433 = vunpack.c.l.b16 %v9363
    %v9434 = vunpack.c.l.b16 %v9364
    %v9435 = vunpack.c.l.b16 %v9365
    %v9436 = vunpack.c.l.b16 %v9366
    %v9437 = vunpack.c.l.b16 %v9367
    %v9438 = vunpack.c.l.b16 %v9368
    %v9439 = vunpack.c.l.b16 %v9369
    %v9440 = vunpack.c.l.b16 %v9370
    %v9441 = vunpack.c.l.b16 %v9371
    %v9442 = vunpack.c.l.b16 %v9372
    %v9443 = vunpack.c.l.b16 %v9373
    %v9444 = vunpack.c.l.b16 %v9374
    %v9445 = vunpack.c.l.b16 %v9375
    %v9446 = vunpack.c.l.b16 %v9376
    %v9447 = vunpack.c.l.b16 %v9377
    %v9448 = vunpack.c.l.b16 %v9378
    %v9449 = vunpack.c.l.b16 %v9379
    %v9450 = vunpack.c.l.b16 %v9380
    %v9451 = vunpack.c.l.b16 %v9381
    %v9452 = vunpack.c.l.b16 %v9382
    %v9453 = vunpack.c.l.b16 %v9383
    %v9454 = vunpack.c.l.b16 %v9384
    %v9455 = vunpack.c.l.b16 %v9385
    %v9456 = vunpack.c.l.b16 %v9386
    %v9457 = vunpack.c.l.b16 %v9387
    %v9458 = vunpack.c.l.b16 %v9388
    %v9459 = vunpack.c.l.b16 %v9389
    %v9460 = vunpack.c.l.b16 %v9390
    %v9461 = vunpack.c.l.b16 %v9391
    %v9462 = vunpack.c.l.b16 %v9392
    %v9463 = vunpack.c.l.b16 %v9393
    %v9464 = vpack.c.b16 %v9433, %v9432
    %v9465 = vpack.c.b16 %v9435, %v9434
    %v9466 = vpack.c.b16 %v9437, %v9436
    %v9467 = vpack.c.b16 %v9439, %v9438
    %v9468 = vpack.c.b16 %v9441, %v9440
    %v9469 = vpack.c.b16 %v9443, %v9442
    %v9470 = vpack.c.b16 %v9445, %v9444
    %v9471 = vpack.c.b16 %v9447, %v9446
    %v9472 = vpack.c.b16 %v9449, %v9448
    %v9473 = vpack.c.b16 %v9451, %v9450
    %v9474 = vpack.c.b16 %v9453, %v9452
    %v9475 = vpack.c.b16 %v9455, %v9454
    %v9476 = vpack.c.b16 %v9457, %v9456
    %v9477 = vpack.c.b16 %v9459, %v9458
    %v9478 = vpack.c.b16 %v9461, %v9460
    %v9479 = vpack.c.b16 %v9463, %v9462
    %9496 = vmatpush.bf16.msra.mxu0 %v9471
    %9497 = vmatpush.bf16.msra.mxu0 %v9470
    %9498 = vmatpush.bf16.msra.mxu0 %v9469
    %9499 = vmatpush.bf16.msra.mxu0 %v9468
    %9500 = vmatpush.bf16.msra.mxu0 %v9467
    %9501 = vmatpush.bf16.msra.mxu0 %v9466
    %9502 = vmatpush.bf16.msra.mxu0 %v9465
    %9503 = vmatpush.bf16.msra.mxu0 %v9464
    %9504 = vmatmul.bf16.gmra.mxu0 %v9394
    %v9505 = vpop.f32.mrf.mxu0
    %v9506 = vadd.f32 %v9398, %v9505
    %v9507 = vpop.f32.mrf.mxu0
    %9508 = vdwg.mxu0
    %9509 = vmatpush.bf16.msra.mxu0 %v9479
    %9510 = vmatpush.bf16.msra.mxu0 %v9478
    %9511 = vmatpush.bf16.msra.mxu0 %v9477
    %9512 = vmatpush.bf16.msra.mxu0 %v9476
    %9513 = vmatpush.bf16.msra.mxu0 %v9475
    %9514 = vmatpush.bf16.msra.mxu0 %v9474
    %9515 = vmatpush.bf16.msra.mxu0 %v9473
    %9516 = vmatpush.bf16.msra.mxu0 %v9472
    %9517 = vmatmul.bf16.gmra.mxu0 %v9395
    %v9518 = vpop.f32.mrf.mxu0
    %v9519 = vadd.f32 %v9506, %v9518
    %v9520 = vpop.f32.mrf.mxu0
    %9521 = vdwg.mxu0
    %s9522 = sld [smem:[#allocation2 + $0x6]]
    %vm9523 = vcmp.ge.f32.partialorder %v9519, 0.0
    %v9524 = vstv %s9522
    %v9525 = vmul.f32 %v9524, %v9519
    %v9526 = vsel %vm9523, %v9519, %v9525
    %v9527 = vld [vmem:[#allocation16 + $0x80] sm:$0xf]
    %v9528 = vld [vmem:[#allocation16 + $0x84] sm:$0xf]
    %v9529 = vld [vmem:[#allocation16 + $0x88] sm:$0xf]
    %v9530 = vld [vmem:[#allocation16 + $0x8c] sm:$0xf]
    %v9531 = vld [vmem:[#allocation16 + $0x90] sm:$0xf]
    %v9532 = vld [vmem:[#allocation16 + $0x94] sm:$0xf]
    %v9533 = vld [vmem:[#allocation16 + $0x98] sm:$0xf]
    %v9534 = vld [vmem:[#allocation16 + $0x9c] sm:$0xf]
    %v9535 = vld [vmem:[#allocation16 + $0xa0] sm:$0xf]
    %v9536 = vld [vmem:[#allocation16 + $0xa4] sm:$0xf]
    %v9537 = vld [vmem:[#allocation16 + $0xa8] sm:$0xf]
    %v9538 = vld [vmem:[#allocation16 + $0xac] sm:$0xf]
    %v9539 = vld [vmem:[#allocation16 + $0xb0] sm:$0xf]
    %v9540 = vld [vmem:[#allocation16 + $0xb4] sm:$0xf]
    %v9541 = vld [vmem:[#allocation16 + $0xb8] sm:$0xf]
    %v9542 = vld [vmem:[#allocation16 + $0xbc] sm:$0xf]
    %v9543 = vpack.c.bf16 %v9526, %v9526
    %v9544 = vld [vmem:[#allocation6 + $0x1f] sm:$0x1]
    %v9546 = vperm.slane %v9544, 0
    %v9564 = vunpack.c.l.b16 %v9527
    %v9565 = vunpack.c.l.b16 %v9528
    %v9566 = vunpack.c.l.b16 %v9529
    %v9567 = vunpack.c.l.b16 %v9530
    %v9568 = vunpack.c.l.b16 %v9531
    %v9569 = vunpack.c.l.b16 %v9532
    %v9570 = vunpack.c.l.b16 %v9533
    %v9571 = vunpack.c.l.b16 %v9534
    %v9572 = vunpack.c.l.b16 %v9535
    %v9573 = vunpack.c.l.b16 %v9536
    %v9574 = vunpack.c.l.b16 %v9537
    %v9575 = vunpack.c.l.b16 %v9538
    %v9576 = vunpack.c.l.b16 %v9539
    %v9577 = vunpack.c.l.b16 %v9540
    %v9578 = vunpack.c.l.b16 %v9541
    %v9579 = vunpack.c.l.b16 %v9542
    %v9580 = vpack.c.b16 %v9565, %v9564
    %v9581 = vpack.c.b16 %v9567, %v9566
    %v9582 = vpack.c.b16 %v9569, %v9568
    %v9583 = vpack.c.b16 %v9571, %v9570
    %v9584 = vpack.c.b16 %v9573, %v9572
    %v9585 = vpack.c.b16 %v9575, %v9574
    %v9586 = vpack.c.b16 %v9577, %v9576
    %v9587 = vpack.c.b16 %v9579, %v9578
    %9596 = vmatpush.bf16.msra.mxu0 %v9587
    %9597 = vmatpush.bf16.msra.mxu0 %v9586
    %9598 = vmatpush.bf16.msra.mxu0 %v9585
    %9599 = vmatpush.bf16.msra.mxu0 %v9584
    %9600 = vmatpush.bf16.msra.mxu0 %v9583
    %9601 = vmatpush.bf16.msra.mxu0 %v9582
    %9602 = vmatpush.bf16.msra.mxu0 %v9581
    %9603 = vmatpush.bf16.msra.mxu0 %v9580
    %9604 = vmatmul.bf16.gmra.mxu0 %v9543
    %v9605 = vpop.f32.mrf.mxu0
    %v9606 = vadd.f32 %v9546, %v9605
    %v9607 = vpop.f32.mrf.mxu0
    %9608 = vdwg.mxu0
    %s9609 = sld [smem:[#allocation2 + $0x7]]
    %vm9610 = vcmp.ge.f32.partialorder %v9606, 0.0
    %v9611 = vstv %s9609
    %v9612 = vmul.f32 %v9611, %v9606
    %v9613 = vsel %vm9610, %v9606, %v9612
    %v9614 = vld [vmem:[#allocation16 + $0xc0] sm:$0xf]
    %v9615 = vld [vmem:[#allocation16 + $0xc4] sm:$0xf]
    %v9616 = vld [vmem:[#allocation16 + $0xc8] sm:$0xf]
    %v9617 = vld [vmem:[#allocation16 + $0xcc] sm:$0xf]
    %v9618 = vld [vmem:[#allocation16 + $0xd0] sm:$0xf]
    %v9619 = vld [vmem:[#allocation16 + $0xd4] sm:$0xf]
    %v9620 = vld [vmem:[#allocation16 + $0xd8] sm:$0xf]
    %v9621 = vld [vmem:[#allocation16 + $0xdc] sm:$0xf]
    %v9622 = vpack.c.bf16 %v9613, %v9613
    %v9623 = vld [vmem:[#allocation6 + $0x20] sm:$0x1]
    %v9625 = vperm.slane %v9623, 0
    %v9635 = vunpack.c.l.b16 %v9614
    %v9636 = vunpack.c.l.b16 %v9615
    %v9637 = vunpack.c.l.b16 %v9616
    %v9638 = vunpack.c.l.b16 %v9617
    %v9639 = vunpack.c.l.b16 %v9618
    %v9640 = vunpack.c.l.b16 %v9619
    %v9641 = vunpack.c.l.b16 %v9620
    %v9642 = vunpack.c.l.b16 %v9621
    %v9643 = vpack.c.b16 %v9636, %v9635
    %v9644 = vpack.c.b16 %v9638, %v9637
    %v9645 = vpack.c.b16 %v9640, %v9639
    %v9646 = vpack.c.b16 %v9642, %v9641
    %vm9651 = vcmask 523264
    %v9653 = vsel %vm9651, %v9622, 0
    %9655 = vmatpush.bf16.msra.mxu0 0
    %9656 = vmatpush.bf16.msra.mxu0 0
    %9657 = vmatpush.bf16.msra.mxu0 0
    %9658 = vmatpush.bf16.msra.mxu0 0
    %9659 = vmatpush.bf16.msra.mxu0 %v9646
    %9660 = vmatpush.bf16.msra.mxu0 %v9645
    %9661 = vmatpush.bf16.msra.mxu0 %v9644
    %9662 = vmatpush.bf16.msra.mxu0 %v9643
    %9663 = vmatmul.bf16.gmra.mxu0 %v9653
    %v9664 = vpop.f32.mrf.mxu0
    %v9665 = vadd.f32 %v9625, %v9664
    %v9666 = vpop.f32.mrf.mxu0
    %9667 = vdwg.mxu0
    %s9668 = sld [smem:[#allocation2 + $0x8]]
    %vm9669 = vcmp.ge.f32.partialorder %v9665, 0.0
    %v9670 = vstv %s9668
    %v9671 = vmul.f32 %v9670, %v9665
    %v9672 = vsel %vm9669, %v9665, %v9671
    %v9673 = vld [vmem:[#allocation16 + $0xe0] sm:$0xf]
    %v9674 = vld [vmem:[#allocation16 + $0xe4] sm:$0xf]
    %v9675 = vld [vmem:[#allocation16 + $0xe8] sm:$0xf]
    %v9676 = vld [vmem:[#allocation16 + $0xec] sm:$0xf]
    %v9677 = vpack.c.bf16 %v9672, %v9672
    %v9678 = vld [vmem:[#allocation6 + $0x21] sm:$0x1]
    %v9680 = vperm.slane %v9678, 0
    %v9686 = vunpack.c.l.b16 %v9673
    %v9687 = vunpack.c.l.b16 %v9674
    %v9688 = vunpack.c.l.b16 %v9675
    %v9689 = vunpack.c.l.b16 %v9676
    %v9690 = vpack.c.b16 %v9687, %v9686
    %v9691 = vpack.c.b16 %v9689, %v9688
    %vm9694 = vcmask 261120
    %v9696 = vsel %vm9694, %v9677, 0
    %9698 = vmatpush.bf16.msra.mxu0 0
    %9699 = vmatpush.bf16.msra.mxu0 0
    %9700 = vmatpush.bf16.msra.mxu0 0
    %9701 = vmatpush.bf16.msra.mxu0 0
    %9702 = vmatpush.bf16.msra.mxu0 0
    %9703 = vmatpush.bf16.msra.mxu0 0
    %9704 = vmatpush.bf16.msra.mxu0 %v9691
    %9705 = vmatpush.bf16.msra.mxu0 %v9690
    %9706 = vmatmul.bf16.gmra.mxu0 %v9696
    %v9707 = vpop.f32.mrf.mxu0
    %v9708 = vadd.f32 %v9680, %v9707
    %v9709 = vpop.f32.mrf.mxu0
    %9710 = vdwg.mxu0
    %vm9711 = vcmask 130048
    %9712 = vst.msk [vmem:[#allocation18] sm:$0xff] %vm9711, %v9708
    // Predicated region
    $region78: #{planner_forward.1} parent=1 // pred_check
      _
    $region79: #{planner_forward.1} parent=1 // pred_check_branch
      %9714 = sbr.rel (0) target = $region81
    $region80: #{planner_forward.1} parent=1 // pred_region
      %9716 = vsyncadd [#allocation4], 0
      %s9718 = sshll.u32 [#allocation18], 4
      %s9719 = int_to_ptr.vmem [resolvable:$true] %s9718
      %s9720 = sshll.u32 %s10, 4
      %s9721 = int_to_ptr.hbm [resolvable:$true] %s9720
      %9723 = dma.vmem_to_hbm [thread:$0]  %s9719, 128, %s9721, [#allocation4]
    $region81: #{planner_forward.1} parent=1 // pred_fallthru
      _
    // Predicated region
    $region82: #{planner_forward.1} parent=1 // pred_check
      _
    $region83: #{planner_forward.1} parent=1 // pred_check_branch
      %9725 = sbr.rel (0) target = $region85
    $region84: #{planner_forward.1} parent=1 // pred_region
      %9727 = dma.done [#allocation4], 128
    $region85: #{planner_forward.1} parent=1 // pred_fallthru
      _
    %9728 = vsyncpa [#allocation3], 1
    %9729 = vsyncpa [#allocation8], 1
    %9730 = vsyncpa [#allocation11], 1
    %9731 = vsyncpa [#allocation14], 1
    %9732 = vsyncpa [#allocation17], 1
    %9733 = vsyncpa [#allocation4], 1
    %9734 = vsyncpa [#allocation5], 1

</llo_original>
